<compile_context>
chip_gen: v7x
topology: tpu7x:2x2x1
jax: 0.10.0
libtpu: 0.0.40
codegen_flags: <defaults>
</compile_context>

<pallas_src>
import functools

import jax
import jax.numpy as jnp
from jax import lax
from jax.experimental import pallas as pl
from jax.experimental.pallas import tpu as pltpu

EPS = 1e-5  # nn.InstanceNorm2d default eps


def _round_up(x, m):
    return (x + m - 1) // m * m


def _sam_kernel(xcat_ref, ws_ref, bs_ref, wgb_ref, bgb_ref,
                out_ref, xbf_ref, style_ref, *, H, W, C):
    # xcat_ref: (1, PAD_ROWS, 2C) f32   -- flattened zero-padded concat(lr, ref)
    # ws_ref:   (9, 2C, C)  bf16        -- conv_shared weights (tap-major)
    # wgb_ref:  (9, C, 2C)  bf16        -- conv_gamma|conv_beta fused weights
    # bs_ref:   (1, C) f32   bgb_ref: (1, 2C) f32
    # out_ref:  (1, H, W, C)
    Wp = W + 2
    HW = H * W
    HW2 = H * Wp            # strided row count (includes 2 junk cols / row)
    base = Wp + 1           # flat offset of image pixel (0, 0) in padded grid

    # ---- load padded activations once; make a bf16 copy for the MXU taps
    x_all = xcat_ref[0]                                   # (PAD_ROWS, 2C) f32
    xbf_ref[...] = x_all.astype(jnp.bfloat16)

    # ---- single-pass statistics (padding rows are zero -> sums unaffected)
    s1 = jnp.sum(x_all, axis=0, keepdims=True)            # (1, 2C)
    s2 = jnp.sum(x_all * x_all, axis=0, keepdims=True)    # (1, 2C)
    lr_sum, ref_sum = s1[:, :C], s1[:, C:]
    lr_ssq, ref_ssq = s2[:, :C], s2[:, C:]

    lr_mean = lr_sum / HW
    ref_mean = ref_sum / HW
    # InstanceNorm2d: biased variance over spatial dims
    ref_var = jnp.maximum(ref_ssq / HW - ref_mean * ref_mean, 0.0)
    # torch.std default: unbiased
    lr_var = jnp.maximum((lr_ssq - HW * lr_mean * lr_mean) / (HW - 1), 0.0)
    lr_std = jnp.sqrt(lr_var)

    # ---- conv_shared (3x3 / pad 1) + ReLU : 9 contiguous-window matmuls
    acc = jnp.zeros((HW2, C), jnp.float32)
    for dy in range(3):
        for dx in range(3):
            off = dy * Wp + dx
            tap = xbf_ref[pl.ds(off, HW2), :]              # (HW2, 2C) bf16
            acc = acc + jnp.dot(tap, ws_ref[dy * 3 + dx],
                                preferred_element_type=jnp.float32)
    # mask the 2 junk columns per row so they become the zero padding of the
    # gamma/beta conv.
    col = lax.broadcasted_iota(jnp.int32, (HW2, 1), 0) % Wp
    valid = col < W
    style = jnp.where(valid, jnp.maximum(acc + bs_ref[...], 0.0), 0.0)

    # ---- embed style into the flattened padded grid with one contiguous
    # store; zero only the small top/bottom border strips.
    spad_rows = style_ref.shape[0]
    tail = spad_rows - base - HW2
    style_ref[pl.ds(0, base), :] = jnp.zeros((base, C), jnp.bfloat16)
    style_ref[pl.ds(base + HW2, tail), :] = jnp.zeros((tail, C), jnp.bfloat16)
    style_ref[pl.ds(base, HW2), :] = style.astype(jnp.bfloat16)

    # ---- fused gamma/beta conv: one (C, 2C) matmul per tap
    gb = jnp.zeros((HW2, 2 * C), jnp.float32)
    for dy in range(3):
        for dx in range(3):
            off = dy * Wp + dx
            tap = style_ref[pl.ds(off, HW2), :]            # (HW2, C) bf16
            gb = gb + jnp.dot(tap, wgb_ref[dy * 3 + dx],
                              preferred_element_type=jnp.float32)
    gb = gb + bgb_ref[...]
    gamma = gb[:, :C] + lr_std        # use_residual=True branch
    beta = gb[:, C:] + lr_mean

    # ---- instance-norm(ref) and final affine remap (strided layout)
    ref_s = x_all[base:base + HW2, C:]                     # (HW2, C) f32
    ref_normed = (ref_s - ref_mean) * lax.rsqrt(ref_var + EPS)
    out = ref_normed * gamma + beta                        # (HW2, C) f32

    # drop the junk columns and store (H, W, C)
    out_ref[0] = out.reshape(H, Wp, C)[:, :W, :].astype(out_ref.dtype)


def sam_forward(lr_nchw, ref_nchw, params):
    """Pallas implementation of SAM.forward (learnable=True, use_residual=True)."""
    N, C, H, W = lr_nchw.shape
    Wp = W + 2
    pad_rows = _round_up((H + 2) * Wp + 2, 8)   # +2: max tap offset overrun

    # NCHW -> NHWC glue, build the single padded+flattened activation tensor.
    lr = jnp.transpose(lr_nchw, (0, 2, 3, 1))
    ref = jnp.transpose(ref_nchw, (0, 2, 3, 1))
    xcat = jnp.pad(jnp.concatenate([lr, ref], axis=-1),
                   ((0, 0), (1, 1), (1, 1), (0, 0)))        # (N, H+2, W+2, 2C)
    xcat = xcat.reshape(N, (H + 2) * Wp, 2 * C)
    xcat = jnp.pad(xcat, ((0, 0), (0, pad_rows - (H + 2) * Wp), (0, 0)))

    # Weights HWIO -> (9, Cin, Cout); gamma/beta fused along Cout. bf16 for MXU.
    ws = params["w_shared"].reshape(9, 2 * C, C).astype(jnp.bfloat16)
    wgb = jnp.concatenate([params["w_gamma"], params["w_beta"]],
                          axis=-1).reshape(9, C, 2 * C).astype(jnp.bfloat16)
    bs = params["b_shared"].reshape(1, C).astype(jnp.float32)
    bgb = jnp.concatenate([params["b_gamma"], params["b_beta"]]
                          ).reshape(1, 2 * C).astype(jnp.float32)

    out_nhwc = pl.pallas_call(
        functools.partial(_sam_kernel, H=H, W=W, C=C),
        out_shape=jax.ShapeDtypeStruct((N, H, W, C), lr_nchw.dtype),
        grid_spec=pltpu.PrefetchScalarGridSpec(
            num_scalar_prefetch=0,
            grid=(N,),
            in_specs=[
                pl.BlockSpec((1, pad_rows, 2 * C), lambda n: (n, 0, 0)),  # xcat
                pl.BlockSpec((9, 2 * C, C), lambda n: (0, 0, 0)),         # ws
                pl.BlockSpec((1, C), lambda n: (0, 0)),                   # bs
                pl.BlockSpec((9, C, 2 * C), lambda n: (0, 0, 0)),         # wgb
                pl.BlockSpec((1, 2 * C), lambda n: (0, 0)),               # bgb
            ],
            out_specs=pl.BlockSpec((1, H, W, C), lambda n: (n, 0, 0, 0)),
            scratch_shapes=[
                pltpu.VMEM((pad_rows, 2 * C), jnp.bfloat16),  # bf16 xcat copy
                pltpu.VMEM((pad_rows, C), jnp.bfloat16),      # padded style
            ],
        ),
        compiler_params=pltpu.CompilerParams(
            dimension_semantics=("parallel",),
            vmem_limit_bytes=64 * 1024 * 1024,
        ),
    )(xcat, ws, bs, wgb, bgb)

    return jnp.transpose(out_nhwc, (0, 3, 1, 2))


def sam_reference(lr_nchw, ref_nchw, params):
    """Pure-JAX (f32) reference matching the PyTorch module semantics."""
    lr = jnp.transpose(lr_nchw, (0, 2, 3, 1))
    ref = jnp.transpose(ref_nchw, (0, 2, 3, 1))

    mean = jnp.mean(ref, axis=(1, 2), keepdims=True)
    var = jnp.mean((ref - mean) ** 2, axis=(1, 2), keepdims=True)
    ref_normed = (ref - mean) / jnp.sqrt(var + EPS)

    def conv(x, w, b):
        return lax.conv_general_dilated(
            x, w, window_strides=(1, 1), padding="SAME",
            dimension_numbers=("NHWC", "HWIO", "NHWC")) + b

    xcat = jnp.concatenate([lr, ref], axis=-1)
    style = jax.nn.relu(conv(xcat, params["w_shared"], params["b_shared"]))
    gamma = conv(style, params["w_gamma"], params["b_gamma"])
    beta = conv(style, params["w_beta"], params["b_beta"])

    hw = lr.shape[1] * lr.shape[2]
    lr_mean = jnp.mean(lr, axis=(1, 2), keepdims=True)
    lr_std = jnp.sqrt(
        jnp.sum((lr - lr_mean) ** 2, axis=(1, 2), keepdims=True) / (hw - 1))

    out = ref_normed * (gamma + lr_std) + (beta + lr_mean)
    return jnp.transpose(out, (0, 3, 1, 2))


if __name__ == "__main__":
    key = jax.random.PRNGKey(0)
    N, C, H, W = 2, 4, 16, 16
    k1, k2, k3, k4, k5, k6, k7, k8 = jax.random.split(key, 8)

    lr = jax.random.normal(k1, (N, C, H, W), jnp.float32)
    ref = jax.random.normal(k2, (N, C, H, W), jnp.float32)

    # Check 1: parameters exactly as in the PyTorch __init__ (conv_gamma /
    # conv_beta zero-initialized) -- tight tolerance.
    params_init = {
        "w_shared": 0.1 * jax.random.normal(k3, (3, 3, 2 * C, C), jnp.float32),
        "b_shared": 0.05 * jax.random.normal(k4, (C,), jnp.float32),
        "w_gamma": jnp.zeros((3, 3, C, C), jnp.float32),
        "b_gamma": jnp.zeros((C,), jnp.float32),
        "w_beta": jnp.zeros((3, 3, C, C), jnp.float32),
        "b_beta": jnp.zeros((C,), jnp.float32),
    }
    out = sam_forward(lr, ref, params_init)
    jax.block_until_ready(out)
    exp = sam_reference(lr, ref, params_init)
    assert out.shape == (N, C, H, W)
    assert jnp.allclose(out, exp, atol=1e-3, rtol=1e-3)

    # Check 2: non-zero gamma/beta weights to exercise the fused conv path.
    # The kernel uses bf16 MXU operands, so compare to the f32 reference at a
    # correspondingly looser tolerance.
    params_rand = {
        "w_shared": 0.1 * jax.random.normal(k3, (3, 3, 2 * C, C), jnp.float32),
        "b_shared": 0.05 * jax.random.normal(k4, (C,), jnp.float32),
        "w_gamma": 0.05 * jax.random.normal(k5, (3, 3, C, C), jnp.float32),
        "b_gamma": 0.05 * jax.random.normal(k6, (C,), jnp.float32),
        "w_beta": 0.05 * jax.random.normal(k7, (3, 3, C, C), jnp.float32),
        "b_beta": 0.05 * jax.random.normal(k8, (C,), jnp.float32),
    }
    out2 = sam_forward(lr, ref, params_rand)
    jax.block_until_ready(out2)
    exp2 = sam_reference(lr, ref, params_rand)
    assert jnp.allclose(out2, exp2, atol=5e-2, rtol=5e-2)

    print("KERNEL_OK")
</pallas_src>

<mosaic_0001>
module attributes {stable_mosaic.version = 11 : i64} {
  func.func @_sam_kernel(%arg0: i32, %arg1: memref<1x328x8xf32, #tpu.memory_space<vmem>>, %arg2: memref<9x8x4xbf16, #tpu.memory_space<vmem>>, %arg3: memref<1x4xf32, #tpu.memory_space<vmem>>, %arg4: memref<9x4x8xbf16, #tpu.memory_space<vmem>>, %arg5: memref<1x8xf32, #tpu.memory_space<vmem>>, %arg6: memref<1x16x16x4xf32, #tpu.memory_space<vmem>>, %arg7: memref<328x8xbf16, #tpu.memory_space<vmem>>, %arg8: memref<328x4xbf16, #tpu.memory_space<vmem>>) attributes {dimension_semantics = [#tpu.dimension_semantics<parallel>], iteration_bounds = array<i64: 2>, scalar_prefetch = 0 : i64, scratch_operands = 2 : i64, tpu.core_type = #tpu.core_type<tc>, window_params = [{transform_indices = @transform_0, window_bounds = array<i64: 1, 328, 8>}, {pipeline_mode = #tpu.pipeline_mode<synchronous>, transform_indices = @transform_1, window_bounds = array<i64: 9, 8, 4>}, {pipeline_mode = #tpu.pipeline_mode<synchronous>, transform_indices = @transform_2, window_bounds = array<i64: 1, 4>}, {pipeline_mode = #tpu.pipeline_mode<synchronous>, transform_indices = @transform_3, window_bounds = array<i64: 9, 4, 8>}, {pipeline_mode = #tpu.pipeline_mode<synchronous>, transform_indices = @transform_4, window_bounds = array<i64: 1, 8>}, {transform_indices = @transform_5, window_bounds = array<i64: 1, 16, 16, 4>}]} {
    %c0 = arith.constant 0 : index
    %c0_0 = arith.constant 0 : index
    %c0_1 = arith.constant 0 : index
    %0 = vector.load %arg1[%c0, %c0_0, %c0_1] : memref<1x328x8xf32, #tpu.memory_space<vmem>>, vector<1x328x8xf32>
    %1 = vector.shape_cast %0 : vector<1x328x8xf32> to vector<328x8xf32>
    %2 = arith.truncf %1 : vector<328x8xf32> to vector<328x8xbf16>
    %c0_2 = arith.constant 0 : index
    %c0_3 = arith.constant 0 : index
    %3 = vector.load %arg7[%c0_2, %c0_3] : memref<328x8xbf16, #tpu.memory_space<vmem>>, vector<328x8xbf16>
    tpu.vector_store %arg7[%c0_2, %c0_3], %2 {strides = array<i32>} : memref<328x8xbf16, #tpu.memory_space<vmem>>, vector<328x8xbf16>,
    %cst = arith.constant dense<0.000000e+00> : vector<8xf32>
    %4 = vector.multi_reduction <add>, %1, %cst [0] : vector<328x8xf32> to vector<8xf32>
    %5 = vector.shape_cast %4 : vector<8xf32> to vector<1x8xf32>
    %6 = arith.mulf %1, %1 : vector<328x8xf32>
    %cst_4 = arith.constant dense<0.000000e+00> : vector<8xf32>
    %7 = vector.multi_reduction <add>, %6, %cst_4 [0] : vector<328x8xf32> to vector<8xf32>
    %8 = vector.shape_cast %7 : vector<8xf32> to vector<1x8xf32>
    %9 = vector.extract_strided_slice %5 {offsets = [0, 0], sizes = [1, 4], strides = [1, 1]} : vector<1x8xf32> to vector<1x4xf32>
    %10 = vector.extract_strided_slice %5 {offsets = [0, 4], sizes = [1, 4], strides = [1, 1]} : vector<1x8xf32> to vector<1x4xf32>
    %11 = vector.extract_strided_slice %8 {offsets = [0, 0], sizes = [1, 4], strides = [1, 1]} : vector<1x8xf32> to vector<1x4xf32>
    %12 = vector.extract_strided_slice %8 {offsets = [0, 4], sizes = [1, 4], strides = [1, 1]} : vector<1x8xf32> to vector<1x4xf32>
    %cst_5 = arith.constant 2.560000e+02 : f32
    %13 = vector.broadcast %cst_5 : f32 to vector<1x4xf32>
    %14 = arith.divf %9, %13 : vector<1x4xf32>
    %cst_6 = arith.constant 2.560000e+02 : f32
    %15 = vector.broadcast %cst_6 : f32 to vector<1x4xf32>
    %16 = arith.divf %10, %15 : vector<1x4xf32>
    %cst_7 = arith.constant 2.560000e+02 : f32
    %17 = vector.broadcast %cst_7 : f32 to vector<1x4xf32>
    %18 = arith.divf %12, %17 : vector<1x4xf32>
    %19 = arith.mulf %16, %16 : vector<1x4xf32>
    %20 = arith.subf %18, %19 : vector<1x4xf32>
    %cst_8 = arith.constant 0.000000e+00 : f32
    %21 = vector.broadcast %cst_8 : f32 to vector<1x4xf32>
    %22 = arith.maximumf %20, %21 : vector<1x4xf32>
    %cst_9 = arith.constant 2.560000e+02 : f32
    %23 = vector.broadcast %cst_9 : f32 to vector<1x4xf32>
    %24 = arith.mulf %23, %14 : vector<1x4xf32>
    %25 = arith.mulf %24, %14 : vector<1x4xf32>
    %26 = arith.subf %11, %25 : vector<1x4xf32>
    %cst_10 = arith.constant 2.550000e+02 : f32
    %27 = vector.broadcast %cst_10 : f32 to vector<1x4xf32>
    %28 = arith.divf %26, %27 : vector<1x4xf32>
    %cst_11 = arith.constant 0.000000e+00 : f32
    %29 = vector.broadcast %cst_11 : f32 to vector<1x4xf32>
    %30 = arith.maximumf %28, %29 : vector<1x4xf32>
    %31 = math.sqrt %30 : vector<1x4xf32>
    %cst_12 = arith.constant 0.000000e+00 : f32
    %32 = vector.broadcast %cst_12 : f32 to vector<288x4xf32>
    %c0_13 = arith.constant 0 : index
    %c0_14 = arith.constant 0 : index
    %33 = vector.load %arg7[%c0_13, %c0_14] : memref<328x8xbf16, #tpu.memory_space<vmem>>, vector<288x8xbf16>
    %c0_15 = arith.constant 0 : index
    %c0_16 = arith.constant 0 : index
    %c0_17 = arith.constant 0 : index
    %34 = vector.load %arg2[%c0_15, %c0_16, %c0_17] : memref<9x8x4xbf16, #tpu.memory_space<vmem>>, vector<1x8x4xbf16>
    %35 = vector.shape_cast %34 : vector<1x8x4xbf16> to vector<8x4xbf16>
    %cst_18 = arith.constant dense<0.000000e+00> : vector<288x4xf32>
    %36 = tpu.matmul %33, %35, %cst_18 {dimension_numbers = #tpu.dot_dimension_numbers<[1], [0], [0], [1], [0, 0, 1, 1], [], []>} : vector<288x8xbf16>, vector<8x4xbf16>, vector<288x4xf32> -> vector<288x4xf32>
    %37 = arith.addf %32, %36 : vector<288x4xf32>
    %c1 = arith.constant 1 : index
    %c0_19 = arith.constant 0 : index
    %38 = vector.load %arg7[%c1, %c0_19] : memref<328x8xbf16, #tpu.memory_space<vmem>>, vector<288x8xbf16>
    %c1_20 = arith.constant 1 : index
    %c0_21 = arith.constant 0 : index
    %c0_22 = arith.constant 0 : index
    %39 = vector.load %arg2[%c1_20, %c0_21, %c0_22] : memref<9x8x4xbf16, #tpu.memory_space<vmem>>, vector<1x8x4xbf16>
    %40 = vector.shape_cast %39 : vector<1x8x4xbf16> to vector<8x4xbf16>
    %cst_23 = arith.constant dense<0.000000e+00> : vector<288x4xf32>
    %41 = tpu.matmul %38, %40, %cst_23 {dimension_numbers = #tpu.dot_dimension_numbers<[1], [0], [0], [1], [0, 0, 1, 1], [], []>} : vector<288x8xbf16>, vector<8x4xbf16>, vector<288x4xf32> -> vector<288x4xf32>
    %42 = arith.addf %37, %41 : vector<288x4xf32>
    %c2 = arith.constant 2 : index
    %c0_24 = arith.constant 0 : index
    %43 = vector.load %arg7[%c2, %c0_24] : memref<328x8xbf16, #tpu.memory_space<vmem>>, vector<288x8xbf16>
    %c2_25 = arith.constant 2 : index
    %c0_26 = arith.constant 0 : index
    %c0_27 = arith.constant 0 : index
    %44 = vector.load %arg2[%c2_25, %c0_26, %c0_27] : memref<9x8x4xbf16, #tpu.memory_space<vmem>>, vector<1x8x4xbf16>
    %45 = vector.shape_cast %44 : vector<1x8x4xbf16> to vector<8x4xbf16>
    %cst_28 = arith.constant dense<0.000000e+00> : vector<288x4xf32>
    %46 = tpu.matmul %43, %45, %cst_28 {dimension_numbers = #tpu.dot_dimension_numbers<[1], [0], [0], [1], [0, 0, 1, 1], [], []>} : vector<288x8xbf16>, vector<8x4xbf16>, vector<288x4xf32> -> vector<288x4xf32>
    %47 = arith.addf %42, %46 : vector<288x4xf32>
    %c18 = arith.constant 18 : index
    %c0_29 = arith.constant 0 : index
    %48 = vector.load %arg7[%c18, %c0_29] : memref<328x8xbf16, #tpu.memory_space<vmem>>, vector<288x8xbf16>
    %c3 = arith.constant 3 : index
    %c0_30 = arith.constant 0 : index
    %c0_31 = arith.constant 0 : index
    %49 = vector.load %arg2[%c3, %c0_30, %c0_31] : memref<9x8x4xbf16, #tpu.memory_space<vmem>>, vector<1x8x4xbf16>
    %50 = vector.shape_cast %49 : vector<1x8x4xbf16> to vector<8x4xbf16>
    %cst_32 = arith.constant dense<0.000000e+00> : vector<288x4xf32>
    %51 = tpu.matmul %48, %50, %cst_32 {dimension_numbers = #tpu.dot_dimension_numbers<[1], [0], [0], [1], [0, 0, 1, 1], [], []>} : vector<288x8xbf16>, vector<8x4xbf16>, vector<288x4xf32> -> vector<288x4xf32>
    %52 = arith.addf %47, %51 : vector<288x4xf32>
    %c19 = arith.constant 19 : index
    %c0_33 = arith.constant 0 : index
    %53 = vector.load %arg7[%c19, %c0_33] : memref<328x8xbf16, #tpu.memory_space<vmem>>, vector<288x8xbf16>
    %c4 = arith.constant 4 : index
    %c0_34 = arith.constant 0 : index
    %c0_35 = arith.constant 0 : index
    %54 = vector.load %arg2[%c4, %c0_34, %c0_35] : memref<9x8x4xbf16, #tpu.memory_space<vmem>>, vector<1x8x4xbf16>
    %55 = vector.shape_cast %54 : vector<1x8x4xbf16> to vector<8x4xbf16>
    %cst_36 = arith.constant dense<0.000000e+00> : vector<288x4xf32>
    %56 = tpu.matmul %53, %55, %cst_36 {dimension_numbers = #tpu.dot_dimension_numbers<[1], [0], [0], [1], [0, 0, 1, 1], [], []>} : vector<288x8xbf16>, vector<8x4xbf16>, vector<288x4xf32> -> vector<288x4xf32>
    %57 = arith.addf %52, %56 : vector<288x4xf32>
    %c20 = arith.constant 20 : index
    %c0_37 = arith.constant 0 : index
    %58 = vector.load %arg7[%c20, %c0_37] : memref<328x8xbf16, #tpu.memory_space<vmem>>, vector<288x8xbf16>
    %c5 = arith.constant 5 : index
    %c0_38 = arith.constant 0 : index
    %c0_39 = arith.constant 0 : index
    %59 = vector.load %arg2[%c5, %c0_38, %c0_39] : memref<9x8x4xbf16, #tpu.memory_space<vmem>>, vector<1x8x4xbf16>
    %60 = vector.shape_cast %59 : vector<1x8x4xbf16> to vector<8x4xbf16>
    %cst_40 = arith.constant dense<0.000000e+00> : vector<288x4xf32>
    %61 = tpu.matmul %58, %60, %cst_40 {dimension_numbers = #tpu.dot_dimension_numbers<[1], [0], [0], [1], [0, 0, 1, 1], [], []>} : vector<288x8xbf16>, vector<8x4xbf16>, vector<288x4xf32> -> vector<288x4xf32>
    %62 = arith.addf %57, %61 : vector<288x4xf32>
    %c36 = arith.constant 36 : index
    %c0_41 = arith.constant 0 : index
    %63 = vector.load %arg7[%c36, %c0_41] : memref<328x8xbf16, #tpu.memory_space<vmem>>, vector<288x8xbf16>
    %c6 = arith.constant 6 : index
    %c0_42 = arith.constant 0 : index
    %c0_43 = arith.constant 0 : index
    %64 = vector.load %arg2[%c6, %c0_42, %c0_43] : memref<9x8x4xbf16, #tpu.memory_space<vmem>>, vector<1x8x4xbf16>
    %65 = vector.shape_cast %64 : vector<1x8x4xbf16> to vector<8x4xbf16>
    %cst_44 = arith.constant dense<0.000000e+00> : vector<288x4xf32>
    %66 = tpu.matmul %63, %65, %cst_44 {dimension_numbers = #tpu.dot_dimension_numbers<[1], [0], [0], [1], [0, 0, 1, 1], [], []>} : vector<288x8xbf16>, vector<8x4xbf16>, vector<288x4xf32> -> vector<288x4xf32>
    %67 = arith.addf %62, %66 : vector<288x4xf32>
    %c37 = arith.constant 37 : index
    %c0_45 = arith.constant 0 : index
    %68 = vector.load %arg7[%c37, %c0_45] : memref<328x8xbf16, #tpu.memory_space<vmem>>, vector<288x8xbf16>
    %c7 = arith.constant 7 : index
    %c0_46 = arith.constant 0 : index
    %c0_47 = arith.constant 0 : index
    %69 = vector.load %arg2[%c7, %c0_46, %c0_47] : memref<9x8x4xbf16, #tpu.memory_space<vmem>>, vector<1x8x4xbf16>
    %70 = vector.shape_cast %69 : vector<1x8x4xbf16> to vector<8x4xbf16>
    %cst_48 = arith.constant dense<0.000000e+00> : vector<288x4xf32>
    %71 = tpu.matmul %68, %70, %cst_48 {dimension_numbers = #tpu.dot_dimension_numbers<[1], [0], [0], [1], [0, 0, 1, 1], [], []>} : vector<288x8xbf16>, vector<8x4xbf16>, vector<288x4xf32> -> vector<288x4xf32>
    %72 = arith.addf %67, %71 : vector<288x4xf32>
    %c38 = arith.constant 38 : index
    %c0_49 = arith.constant 0 : index
    %73 = vector.load %arg7[%c38, %c0_49] : memref<328x8xbf16, #tpu.memory_space<vmem>>, vector<288x8xbf16>
    %c8 = arith.constant 8 : index
    %c0_50 = arith.constant 0 : index
    %c0_51 = arith.constant 0 : index
    %74 = vector.load %arg2[%c8, %c0_50, %c0_51] : memref<9x8x4xbf16, #tpu.memory_space<vmem>>, vector<1x8x4xbf16>
    %75 = vector.shape_cast %74 : vector<1x8x4xbf16> to vector<8x4xbf16>
    %cst_52 = arith.constant dense<0.000000e+00> : vector<288x4xf32>
    %76 = tpu.matmul %73, %75, %cst_52 {dimension_numbers = #tpu.dot_dimension_numbers<[1], [0], [0], [1], [0, 0, 1, 1], [], []>} : vector<288x8xbf16>, vector<8x4xbf16>, vector<288x4xf32> -> vector<288x4xf32>
    %77 = arith.addf %72, %76 : vector<288x4xf32>
    %78 = tpu.iota {dimensions = array<i32: 0>} : vector<288x1xi32>
    %c18_i32 = arith.constant 18 : i32
    %c0_i32 = arith.constant 0 : i32
    %79 = arith.cmpi eq, %c18_i32, %c0_i32 : i32
    %c1_i32 = arith.constant 1 : i32
    %80 = arith.select %79, %c1_i32, %c18_i32 : i32
    %81 = vector.broadcast %80 : i32 to vector<288x1xi32>
    %82 = arith.remsi %78, %81 : vector<288x1xi32>
    %c0_i32_53 = arith.constant 0 : i32
    %83 = vector.broadcast %c0_i32_53 : i32 to vector<288x1xi32>
    %84 = arith.cmpi ne, %82, %83 : vector<288x1xi32>
    %c0_i32_54 = arith.constant 0 : i32
    %85 = vector.broadcast %c0_i32_54 : i32 to vector<288x1xi32>
    %86 = arith.cmpi slt, %82, %85 : vector<288x1xi32>
    %c0_i32_55 = arith.constant 0 : i32
    %87 = arith.cmpi slt, %80, %c0_i32_55 : i32
    %88 = vector.broadcast %87 : i1 to vector<288x1xi1>
    %89 = vector.broadcast %88 : vector<288x1xi1> to vector<288x1xi1>
    %90 = arith.xori %86, %89 : vector<288x1xi1>
    %91 = arith.andi %90, %84 : vector<288x1xi1>
    %92 = vector.broadcast %80 : i32 to vector<288x1xi32>
    %93 = arith.addi %82, %92 : vector<288x1xi32>
    %94 = arith.select %91, %93, %82 : vector<288x1xi1>, vector<288x1xi32>
    %c16_i32 = arith.constant 16 : i32
    %95 = vector.broadcast %c16_i32 : i32 to vector<288x1xi32>
    %96 = arith.cmpi slt, %94, %95 : vector<288x1xi32>
    %c0_56 = arith.constant 0 : index
    %c0_57 = arith.constant 0 : index
    %97 = vector.load %arg3[%c0_56, %c0_57] : memref<1x4xf32, #tpu.memory_space<vmem>>, vector<1x4xf32>
    %98 = vector.broadcast %97 : vector<1x4xf32> to vector<288x4xf32>
    %99 = arith.addf %77, %98 : vector<288x4xf32>
    %cst_58 = arith.constant 0.000000e+00 : f32
    %100 = vector.broadcast %cst_58 : f32 to vector<288x4xf32>
    %101 = arith.maximumf %99, %100 : vector<288x4xf32>
    %cst_59 = arith.constant 0.000000e+00 : f32
    %102 = vector.shape_cast %96 : vector<288x1xi1> to vector<288x1xi1>
    %103 = vector.broadcast %102 : vector<288x1xi1> to vector<288x4xi1>
    %104 = vector.broadcast %cst_59 : f32 to vector<288x4xf32>
    %105 = arith.select %103, %101, %104 : vector<288x4xi1>, vector<288x4xf32>
    %cst_60 = arith.constant 0.000000e+00 : bf16
    %106 = vector.broadcast %cst_60 : bf16 to vector<19x4xbf16>
    %c0_61 = arith.constant 0 : index
    %c0_62 = arith.constant 0 : index
    %107 = vector.load %arg8[%c0_61, %c0_62] : memref<328x4xbf16, #tpu.memory_space<vmem>>, vector<19x4xbf16>
    tpu.vector_store %arg8[%c0_61, %c0_62], %106 {strides = array<i32>} : memref<328x4xbf16, #tpu.memory_space<vmem>>, vector<19x4xbf16>,
    %cst_63 = arith.constant 0.000000e+00 : bf16
    %108 = vector.broadcast %cst_63 : bf16 to vector<21x4xbf16>
    %c307 = arith.constant 307 : index
    %c0_64 = arith.constant 0 : index
    %109 = vector.load %arg8[%c307, %c0_64] : memref<328x4xbf16, #tpu.memory_space<vmem>>, vector<21x4xbf16>
    tpu.vector_store %arg8[%c307, %c0_64], %108 {strides = array<i32>} : memref<328x4xbf16, #tpu.memory_space<vmem>>, vector<21x4xbf16>,
    %110 = arith.truncf %105 : vector<288x4xf32> to vector<288x4xbf16>
    %c19_65 = arith.constant 19 : index
    %c0_66 = arith.constant 0 : index
    %111 = vector.load %arg8[%c19_65, %c0_66] : memref<328x4xbf16, #tpu.memory_space<vmem>>, vector<288x4xbf16>
    tpu.vector_store %arg8[%c19_65, %c0_66], %110 {strides = array<i32>} : memref<328x4xbf16, #tpu.memory_space<vmem>>, vector<288x4xbf16>,
    %cst_67 = arith.constant 0.000000e+00 : f32
    %112 = vector.broadcast %cst_67 : f32 to vector<288x8xf32>
    %c0_68 = arith.constant 0 : index
    %c0_69 = arith.constant 0 : index
    %113 = vector.load %arg8[%c0_68, %c0_69] : memref<328x4xbf16, #tpu.memory_space<vmem>>, vector<288x4xbf16>
    %c0_70 = arith.constant 0 : index
    %c0_71 = arith.constant 0 : index
    %c0_72 = arith.constant 0 : index
    %114 = vector.load %arg4[%c0_70, %c0_71, %c0_72] : memref<9x4x8xbf16, #tpu.memory_space<vmem>>, vector<1x4x8xbf16>
    %115 = vector.shape_cast %114 : vector<1x4x8xbf16> to vector<4x8xbf16>
    %cst_73 = arith.constant dense<0.000000e+00> : vector<288x8xf32>
    %116 = tpu.matmul %113, %115, %cst_73 {dimension_numbers = #tpu.dot_dimension_numbers<[1], [0], [0], [1], [0, 0, 1, 1], [], []>} : vector<288x4xbf16>, vector<4x8xbf16>, vector<288x8xf32> -> vector<288x8xf32>
    %117 = arith.addf %112, %116 : vector<288x8xf32>
    %c1_74 = arith.constant 1 : index
    %c0_75 = arith.constant 0 : index
    %118 = vector.load %arg8[%c1_74, %c0_75] : memref<328x4xbf16, #tpu.memory_space<vmem>>, vector<288x4xbf16>
    %c1_76 = arith.constant 1 : index
    %c0_77 = arith.constant 0 : index
    %c0_78 = arith.constant 0 : index
    %119 = vector.load %arg4[%c1_76, %c0_77, %c0_78] : memref<9x4x8xbf16, #tpu.memory_space<vmem>>, vector<1x4x8xbf16>
    %120 = vector.shape_cast %119 : vector<1x4x8xbf16> to vector<4x8xbf16>
    %cst_79 = arith.constant dense<0.000000e+00> : vector<288x8xf32>
    %121 = tpu.matmul %118, %120, %cst_79 {dimension_numbers = #tpu.dot_dimension_numbers<[1], [0], [0], [1], [0, 0, 1, 1], [], []>} : vector<288x4xbf16>, vector<4x8xbf16>, vector<288x8xf32> -> vector<288x8xf32>
    %122 = arith.addf %117, %121 : vector<288x8xf32>
    %c2_80 = arith.constant 2 : index
    %c0_81 = arith.constant 0 : index
    %123 = vector.load %arg8[%c2_80, %c0_81] : memref<328x4xbf16, #tpu.memory_space<vmem>>, vector<288x4xbf16>
    %c2_82 = arith.constant 2 : index
    %c0_83 = arith.constant 0 : index
    %c0_84 = arith.constant 0 : index
    %124 = vector.load %arg4[%c2_82, %c0_83, %c0_84] : memref<9x4x8xbf16, #tpu.memory_space<vmem>>, vector<1x4x8xbf16>
    %125 = vector.shape_cast %124 : vector<1x4x8xbf16> to vector<4x8xbf16>
    %cst_85 = arith.constant dense<0.000000e+00> : vector<288x8xf32>
    %126 = tpu.matmul %123, %125, %cst_85 {dimension_numbers = #tpu.dot_dimension_numbers<[1], [0], [0], [1], [0, 0, 1, 1], [], []>} : vector<288x4xbf16>, vector<4x8xbf16>, vector<288x8xf32> -> vector<288x8xf32>
    %127 = arith.addf %122, %126 : vector<288x8xf32>
    %c18_86 = arith.constant 18 : index
    %c0_87 = arith.constant 0 : index
    %128 = vector.load %arg8[%c18_86, %c0_87] : memref<328x4xbf16, #tpu.memory_space<vmem>>, vector<288x4xbf16>
    %c3_88 = arith.constant 3 : index
    %c0_89 = arith.constant 0 : index
    %c0_90 = arith.constant 0 : index
    %129 = vector.load %arg4[%c3_88, %c0_89, %c0_90] : memref<9x4x8xbf16, #tpu.memory_space<vmem>>, vector<1x4x8xbf16>
    %130 = vector.shape_cast %129 : vector<1x4x8xbf16> to vector<4x8xbf16>
    %cst_91 = arith.constant dense<0.000000e+00> : vector<288x8xf32>
    %131 = tpu.matmul %128, %130, %cst_91 {dimension_numbers = #tpu.dot_dimension_numbers<[1], [0], [0], [1], [0, 0, 1, 1], [], []>} : vector<288x4xbf16>, vector<4x8xbf16>, vector<288x8xf32> -> vector<288x8xf32>
    %132 = arith.addf %127, %131 : vector<288x8xf32>
    %c19_92 = arith.constant 19 : index
    %c0_93 = arith.constant 0 : index
    %133 = vector.load %arg8[%c19_92, %c0_93] : memref<328x4xbf16, #tpu.memory_space<vmem>>, vector<288x4xbf16>
    %c4_94 = arith.constant 4 : index
    %c0_95 = arith.constant 0 : index
    %c0_96 = arith.constant 0 : index
    %134 = vector.load %arg4[%c4_94, %c0_95, %c0_96] : memref<9x4x8xbf16, #tpu.memory_space<vmem>>, vector<1x4x8xbf16>
    %135 = vector.shape_cast %134 : vector<1x4x8xbf16> to vector<4x8xbf16>
    %cst_97 = arith.constant dense<0.000000e+00> : vector<288x8xf32>
    %136 = tpu.matmul %133, %135, %cst_97 {dimension_numbers = #tpu.dot_dimension_numbers<[1], [0], [0], [1], [0, 0, 1, 1], [], []>} : vector<288x4xbf16>, vector<4x8xbf16>, vector<288x8xf32> -> vector<288x8xf32>
    %137 = arith.addf %132, %136 : vector<288x8xf32>
    %c20_98 = arith.constant 20 : index
    %c0_99 = arith.constant 0 : index
    %138 = vector.load %arg8[%c20_98, %c0_99] : memref<328x4xbf16, #tpu.memory_space<vmem>>, vector<288x4xbf16>
    %c5_100 = arith.constant 5 : index
    %c0_101 = arith.constant 0 : index
    %c0_102 = arith.constant 0 : index
    %139 = vector.load %arg4[%c5_100, %c0_101, %c0_102] : memref<9x4x8xbf16, #tpu.memory_space<vmem>>, vector<1x4x8xbf16>
    %140 = vector.shape_cast %139 : vector<1x4x8xbf16> to vector<4x8xbf16>
    %cst_103 = arith.constant dense<0.000000e+00> : vector<288x8xf32>
    %141 = tpu.matmul %138, %140, %cst_103 {dimension_numbers = #tpu.dot_dimension_numbers<[1], [0], [0], [1], [0, 0, 1, 1], [], []>} : vector<288x4xbf16>, vector<4x8xbf16>, vector<288x8xf32> -> vector<288x8xf32>
    %142 = arith.addf %137, %141 : vector<288x8xf32>
    %c36_104 = arith.constant 36 : index
    %c0_105 = arith.constant 0 : index
    %143 = vector.load %arg8[%c36_104, %c0_105] : memref<328x4xbf16, #tpu.memory_space<vmem>>, vector<288x4xbf16>
    %c6_106 = arith.constant 6 : index
    %c0_107 = arith.constant 0 : index
    %c0_108 = arith.constant 0 : index
    %144 = vector.load %arg4[%c6_106, %c0_107, %c0_108] : memref<9x4x8xbf16, #tpu.memory_space<vmem>>, vector<1x4x8xbf16>
    %145 = vector.shape_cast %144 : vector<1x4x8xbf16> to vector<4x8xbf16>
    %cst_109 = arith.constant dense<0.000000e+00> : vector<288x8xf32>
    %146 = tpu.matmul %143, %145, %cst_109 {dimension_numbers = #tpu.dot_dimension_numbers<[1], [0], [0], [1], [0, 0, 1, 1], [], []>} : vector<288x4xbf16>, vector<4x8xbf16>, vector<288x8xf32> -> vector<288x8xf32>
    %147 = arith.addf %142, %146 : vector<288x8xf32>
    %c37_110 = arith.constant 37 : index
    %c0_111 = arith.constant 0 : index
    %148 = vector.load %arg8[%c37_110, %c0_111] : memref<328x4xbf16, #tpu.memory_space<vmem>>, vector<288x4xbf16>
    %c7_112 = arith.constant 7 : index
    %c0_113 = arith.constant 0 : index
    %c0_114 = arith.constant 0 : index
    %149 = vector.load %arg4[%c7_112, %c0_113, %c0_114] : memref<9x4x8xbf16, #tpu.memory_space<vmem>>, vector<1x4x8xbf16>
    %150 = vector.shape_cast %149 : vector<1x4x8xbf16> to vector<4x8xbf16>
    %cst_115 = arith.constant dense<0.000000e+00> : vector<288x8xf32>
    %151 = tpu.matmul %148, %150, %cst_115 {dimension_numbers = #tpu.dot_dimension_numbers<[1], [0], [0], [1], [0, 0, 1, 1], [], []>} : vector<288x4xbf16>, vector<4x8xbf16>, vector<288x8xf32> -> vector<288x8xf32>
    %152 = arith.addf %147, %151 : vector<288x8xf32>
    %c38_116 = arith.constant 38 : index
    %c0_117 = arith.constant 0 : index
    %153 = vector.load %arg8[%c38_116, %c0_117] : memref<328x4xbf16, #tpu.memory_space<vmem>>, vector<288x4xbf16>
    %c8_118 = arith.constant 8 : index
    %c0_119 = arith.constant 0 : index
    %c0_120 = arith.constant 0 : index
    %154 = vector.load %arg4[%c8_118, %c0_119, %c0_120] : memref<9x4x8xbf16, #tpu.memory_space<vmem>>, vector<1x4x8xbf16>
    %155 = vector.shape_cast %154 : vector<1x4x8xbf16> to vector<4x8xbf16>
    %cst_121 = arith.constant dense<0.000000e+00> : vector<288x8xf32>
    %156 = tpu.matmul %153, %155, %cst_121 {dimension_numbers = #tpu.dot_dimension_numbers<[1], [0], [0], [1], [0, 0, 1, 1], [], []>} : vector<288x4xbf16>, vector<4x8xbf16>, vector<288x8xf32> -> vector<288x8xf32>
    %157 = arith.addf %152, %156 : vector<288x8xf32>
    %c0_122 = arith.constant 0 : index
    %c0_123 = arith.constant 0 : index
    %158 = vector.load %arg5[%c0_122, %c0_123] : memref<1x8xf32, #tpu.memory_space<vmem>>, vector<1x8xf32>
    %159 = vector.broadcast %158 : vector<1x8xf32> to vector<288x8xf32>
    %160 = arith.addf %157, %159 : vector<288x8xf32>
    %161 = vector.extract_strided_slice %160 {offsets = [0, 0], sizes = [288, 4], strides = [1, 1]} : vector<288x8xf32> to vector<288x4xf32>
    %162 = vector.broadcast %31 : vector<1x4xf32> to vector<288x4xf32>
    %163 = arith.addf %161, %162 : vector<288x4xf32>
    %164 = vector.extract_strided_slice %160 {offsets = [0, 4], sizes = [288, 4], strides = [1, 1]} : vector<288x8xf32> to vector<288x4xf32>
    %165 = vector.broadcast %14 : vector<1x4xf32> to vector<288x4xf32>
    %166 = arith.addf %164, %165 : vector<288x4xf32>
    %167 = vector.extract_strided_slice %1 {offsets = [19, 4], sizes = [288, 4], strides = [1, 1]} : vector<328x8xf32> to vector<288x4xf32>
    %168 = vector.broadcast %16 : vector<1x4xf32> to vector<288x4xf32>
    %169 = arith.subf %167, %168 : vector<288x4xf32>
    %cst_124 = arith.constant 9.99999974E-6 : f32
    %170 = vector.broadcast %cst_124 : f32 to vector<1x4xf32>
    %171 = arith.addf %22, %170 : vector<1x4xf32>
    %172 = math.rsqrt %171 : vector<1x4xf32>
    %173 = vector.broadcast %172 : vector<1x4xf32> to vector<288x4xf32>
    %174 = arith.mulf %169, %173 : vector<288x4xf32>
    %175 = arith.mulf %174, %163 : vector<288x4xf32>
    %176 = arith.addf %175, %166 : vector<288x4xf32>
    %177 = vector.shape_cast %176 : vector<288x4xf32> to vector<16x18x4xf32>
    %178 = vector.extract_strided_slice %177 {offsets = [0, 0, 0], sizes = [16, 16, 4], strides = [1, 1, 1]} : vector<16x18x4xf32> to vector<16x16x4xf32>
    %c0_125 = arith.constant 0 : index
    %c0_126 = arith.constant 0 : index
    %c0_127 = arith.constant 0 : index
    %c0_128 = arith.constant 0 : index
    %179 = vector.load %arg6[%c0_125, %c0_126, %c0_127, %c0_128] : memref<1x16x16x4xf32, #tpu.memory_space<vmem>>, vector<1x16x16x4xf32>
    %180 = vector.shape_cast %179 : vector<1x16x16x4xf32> to vector<16x16x4xf32>
    %181 = vector.shape_cast %178 : vector<16x16x4xf32> to vector<1x16x16x4xf32>
    tpu.vector_store %arg6[%c0_125, %c0_126, %c0_127, %c0_128], %181 {strides = array<i32>} : memref<1x16x16x4xf32, #tpu.memory_space<vmem>>, vector<1x16x16x4xf32>,
    return
  }
  func.func @transform_0(%arg0: i32) -> (i32, i32, i32) {
    %c0_i32 = arith.constant 0 : i32
    %c0_i32_0 = arith.constant 0 : i32
    %c0_i32_1 = arith.constant 0 : i32
    return %arg0, %c0_i32, %c0_i32_0 : i32, i32, i32
  }
  func.func @transform_1(%arg0: i32) -> (i32, i32, i32) {
    %c0_i32 = arith.constant 0 : i32
    %c0_i32_0 = arith.constant 0 : i32
    %c0_i32_1 = arith.constant 0 : i32
    %c0_i32_2 = arith.constant 0 : i32
    return %c0_i32, %c0_i32_0, %c0_i32_1 : i32, i32, i32
  }
  func.func @transform_2(%arg0: i32) -> (i32, i32) {
    %c0_i32 = arith.constant 0 : i32
    %c0_i32_0 = arith.constant 0 : i32
    %c0_i32_1 = arith.constant 0 : i32
    return %c0_i32, %c0_i32_0 : i32, i32
  }
  func.func @transform_3(%arg0: i32) -> (i32, i32, i32) {
    %c0_i32 = arith.constant 0 : i32
    %c0_i32_0 = arith.constant 0 : i32
    %c0_i32_1 = arith.constant 0 : i32
    %c0_i32_2 = arith.constant 0 : i32
    return %c0_i32, %c0_i32_0, %c0_i32_1 : i32, i32, i32
  }
  func.func @transform_4(%arg0: i32) -> (i32, i32) {
    %c0_i32 = arith.constant 0 : i32
    %c0_i32_0 = arith.constant 0 : i32
    %c0_i32_1 = arith.constant 0 : i32
    return %c0_i32, %c0_i32_0 : i32, i32
  }
  func.func @transform_5(%arg0: i32) -> (i32, i32, i32, i32) {
    %c0_i32 = arith.constant 0 : i32
    %c0_i32_0 = arith.constant 0 : i32
    %c0_i32_1 = arith.constant 0 : i32
    %c0_i32_2 = arith.constant 0 : i32
    return %arg0, %c0_i32, %c0_i32_0, %c0_i32_1 : i32, i32, i32, i32
  }
}

</mosaic_0001>

<llo_original>
// kernel: tpu_custom_call.1
$region0: #{tpu_custom_call.1}
  #allocation0 [shape = 'u32[]', space=smem, size = 0x4, offset = 0x4, fixed_abs, tag = 'smem constant byte address 0x4 - core index']
  #allocation1 [shape = 'u32[144,128]{1,0:T(1,128)}', space=vmem, size = 0x12000, scoped, tag = 'internal scratch']
  #allocation2 [shape = 'bf16[328,8]{1,0:T(8,128)(2,1)}', space=vmem, size = 0x14800, scoped, tag = 'scratch operand']
  #allocation3 [shape = 'bf16[328,4]{1,0:T(8,128)(2,1)}', space=vmem, size = 0x14800, scoped, tag = 'scratch operand']
  %s0 = inlined_call_operand.hbm [shape: f32[2,328,8], index: 0, kind: input, shape index: {}]
  %s1 = inlined_call_operand.hbm [shape: bf16[9,8,4], index: 1, kind: input, shape index: {}]
  %s2 = inlined_call_operand.hbm [shape: f32[1,4], index: 2, kind: input, shape index: {}]
  %s3 = inlined_call_operand.hbm [shape: bf16[9,4,8], index: 3, kind: input, shape index: {}]
  %s4 = inlined_call_operand.hbm [shape: f32[1,8], index: 4, kind: input, shape index: {}]
  %s5 = inlined_call_operand.hbm [shape: f32[2,16,16,4], index: 5, kind: output, shape index: {}]
  %s6 = sld [smem:[#allocation0]]
  $region73: #{tpu_custom_call.1} parent=0
    _
  %s8 = ssub.s32 1, %s6
  %s9 = scalar_select 0, %s8, %s6
  $region1: #{tpu_custom_call.1} parent=0
    #allocation4 [shape = 'u8[335872]{0}', space=vmem, size = 0x52000, scoped, tag = 'input window, operand 0']
    #allocation5 [shape = 's32[2]{0}', space=sflag, size = 0x8, scoped, tag = 'scoped memory for tpu_custom_call.1']
    #allocation6 [shape = 's32[2]{0}', space=sflag, size = 0x8, scoped, tag = 'scoped memory for tpu_custom_call.1']
    #allocation7 [shape = 'u8[18432]{0}', space=vmem, size = 0x4800, scoped, tag = 'input window, operand 1, single buffered']
    #allocation8 [shape = 's32[1]{0}', space=sflag, size = 0x4, scoped, tag = 'scoped memory for tpu_custom_call.1']
    #allocation9 [shape = 'u8[512]{0}', space=vmem, size = 0x400, scoped, tag = 'input window, operand 2, single buffered']
    #allocation10 [shape = 'u8[9216]{0}', space=vmem, size = 0x2400, scoped, tag = 'input window, operand 3, single buffered']
    #allocation11 [shape = 's32[1]{0}', space=sflag, size = 0x4, scoped, tag = 'scoped memory for tpu_custom_call.1']
    #allocation12 [shape = 'u8[512]{0}', space=vmem, size = 0x400, scoped, tag = 'input window, operand 4, single buffered']
    #allocation13 [shape = 'u8[262144]{0}', space=vmem, size = 0x40000, scoped, tag = 'output window, operand 0']
    %10 = vsyncpa [#allocation5], 0
    %s11 = scalar_lea.sflag [#allocation5], 1
    %12 = vsyncpa %s11, 0
    %13 = vsyncpa [#allocation8], 0
    %14 = vsyncpa [#allocation11], 0
    %15 = vsyncpa [#allocation6], 0
    %s16 = scalar_lea.sflag [#allocation6], 1
    %17 = vsyncpa %s16, 0
    loop: start=0, step=1, limit=4
    $region2: #{tpu_custom_call.1} parent=1 // loop_pre_header
      _
    $region3: #{tpu_custom_call.1} parent=1 // loop_header
      %s19 = sphi 0, %s23
      %p20 = scmp.ge.s32.totalorder %s19, 4
      %s29 = sphi 0, %s31
      %s32 = sphi 0, %s29
      %s33 = sphi 0, %s32
      %s49 = sphi 0, %s33
      %s53 = sphi 0, %s53
      %s55 = sphi 0, %s53
      %s56 = sphi 0, %s55
      %s70 = sphi 0, %s56
      %s74 = sphi 0, %s74
      %s76 = sphi 0, %s74
      %s77 = sphi 0, %s76
      %s91 = sphi 0, %s77
      %s95 = sphi 0, %s95
      %s97 = sphi 0, %s95
      %s98 = sphi 0, %s97
      %s112 = sphi 0, %s98
      %s116 = sphi 0, %s116
      %s118 = sphi 0, %s116
      %s119 = sphi 0, %s118
      %s133 = sphi 0, %s119
      %s139 = sphi 0, %s141
      %s142 = sphi 0, %s139
      %s143 = sphi 0, %s142
      %s159 = sphi 0, %s143
    $region4: #{tpu_custom_call.1} parent=1 // loop_header_branch
      %22 = sbr.rel (%p20) target = $region8
    $region5: #{tpu_custom_call.1} parent=1 // loop_body
      %s24 = ssub.s32 %s19, 1
      %s25 = ssub.s32 %s19, 2
      %s26 = sadd.s32 %s19, 1
      %s27 = ssub.s32 %s19, %s26
      %p28 = scmp.eq.s32.totalorder %s27, 0
      %s30 = sadd.s32 %s29, 1
      %s31 = scalar_select %p28, %s29, %s30
      %p34 = pneg %p28
      %p35 = scmp.eq.s32.totalorder %s19, 1
      %p36 = por %p34, %p35
      %p37 = scmp.ne.s32.totalorder %s29, %s32
      %p38 = scmp.eq.s32.totalorder %s19, 0
      %p39 = por %p37, %p38
      %p40 = scmp.ne.s32.totalorder %s29, %s32
      %p41 = scmp.eq.s32.totalorder %s24, 1
      %p42 = por %p40, %p41
      %p43 = scmp.ne.s32.totalorder %s32, %s33
      %p44 = scmp.eq.s32.totalorder %s24, 0
      %p45 = por %p43, %p44
      %p46 = scmp.ne.s32.totalorder %s32, %s33
      %p47 = scmp.eq.s32.totalorder %s25, 1
      %p48 = por %p46, %p47
      %p50 = scmp.ne.s32.totalorder %s33, %s49
      %p51 = scmp.eq.s32.totalorder %s25, 0
      %p52 = por %p50, %p51
      %s54 = sadd.s32 %s53, 1
      %p57 = scmp.eq.s32.totalorder %s19, 1
      %p58 = scmp.ne.s32.totalorder %s53, %s55
      %p59 = scmp.eq.s32.totalorder %s19, 0
      %p60 = por %p58, %p59
      %p61 = scmp.ne.s32.totalorder %s53, %s55
      %p62 = scmp.eq.s32.totalorder %s24, 1
      %p63 = por %p61, %p62
      %p64 = scmp.ne.s32.totalorder %s55, %s56
      %p65 = scmp.eq.s32.totalorder %s24, 0
      %p66 = por %p64, %p65
      %p67 = scmp.ne.s32.totalorder %s55, %s56
      %p68 = scmp.eq.s32.totalorder %s25, 1
      %p69 = por %p67, %p68
      %p71 = scmp.ne.s32.totalorder %s56, %s70
      %p72 = scmp.eq.s32.totalorder %s25, 0
      %p73 = por %p71, %p72
      %s75 = sadd.s32 %s74, 1
      %p78 = scmp.eq.s32.totalorder %s19, 1
      %p79 = scmp.ne.s32.totalorder %s74, %s76
      %p80 = scmp.eq.s32.totalorder %s19, 0
      %p81 = por %p79, %p80
      %p82 = scmp.ne.s32.totalorder %s74, %s76
      %p83 = scmp.eq.s32.totalorder %s24, 1
      %p84 = por %p82, %p83
      %p85 = scmp.ne.s32.totalorder %s76, %s77
      %p86 = scmp.eq.s32.totalorder %s24, 0
      %p87 = por %p85, %p86
      %p88 = scmp.ne.s32.totalorder %s76, %s77
      %p89 = scmp.eq.s32.totalorder %s25, 1
      %p90 = por %p88, %p89
      %p92 = scmp.ne.s32.totalorder %s77, %s91
      %p93 = scmp.eq.s32.totalorder %s25, 0
      %p94 = por %p92, %p93
      %s96 = sadd.s32 %s95, 1
      %p99 = scmp.eq.s32.totalorder %s19, 1
      %p100 = scmp.ne.s32.totalorder %s95, %s97
      %p101 = scmp.eq.s32.totalorder %s19, 0
      %p102 = por %p100, %p101
      %p103 = scmp.ne.s32.totalorder %s95, %s97
      %p104 = scmp.eq.s32.totalorder %s24, 1
      %p105 = por %p103, %p104
      %p106 = scmp.ne.s32.totalorder %s97, %s98
      %p107 = scmp.eq.s32.totalorder %s24, 0
      %p108 = por %p106, %p107
      %p109 = scmp.ne.s32.totalorder %s97, %s98
      %p110 = scmp.eq.s32.totalorder %s25, 1
      %p111 = por %p109, %p110
      %p113 = scmp.ne.s32.totalorder %s98, %s112
      %p114 = scmp.eq.s32.totalorder %s25, 0
      %p115 = por %p113, %p114
      %s117 = sadd.s32 %s116, 1
      %p120 = scmp.eq.s32.totalorder %s19, 1
      %p121 = scmp.ne.s32.totalorder %s116, %s118
      %p122 = scmp.eq.s32.totalorder %s19, 0
      %p123 = por %p121, %p122
      %p124 = scmp.ne.s32.totalorder %s116, %s118
      %p125 = scmp.eq.s32.totalorder %s24, 1
      %p126 = por %p124, %p125
      %p127 = scmp.ne.s32.totalorder %s118, %s119
      %p128 = scmp.eq.s32.totalorder %s24, 0
      %p129 = por %p127, %p128
      %p130 = scmp.ne.s32.totalorder %s118, %s119
      %p131 = scmp.eq.s32.totalorder %s25, 1
      %p132 = por %p130, %p131
      %p134 = scmp.ne.s32.totalorder %s119, %s133
      %p135 = scmp.eq.s32.totalorder %s25, 0
      %p136 = por %p134, %p135
      %s137 = ssub.s32 %s19, %s26
      %p138 = scmp.eq.s32.totalorder %s137, 0
      %s140 = sadd.s32 %s139, 1
      %s141 = scalar_select %p138, %s139, %s140
      %p144 = pneg %p138
      %p145 = scmp.eq.s32.totalorder %s19, 1
      %p146 = por %p144, %p145
      %p147 = scmp.ne.s32.totalorder %s139, %s142
      %p148 = scmp.eq.s32.totalorder %s19, 0
      %p149 = por %p147, %p148
      %p150 = scmp.ne.s32.totalorder %s139, %s142
      %p151 = scmp.eq.s32.totalorder %s24, 1
      %p152 = por %p150, %p151
      %p153 = scmp.ne.s32.totalorder %s142, %s143
      %p154 = scmp.eq.s32.totalorder %s24, 0
      %p155 = por %p153, %p154
      %p156 = scmp.ne.s32.totalorder %s142, %s143
      %p157 = scmp.eq.s32.totalorder %s25, 1
      %p158 = por %p156, %p157
      %p160 = scmp.ne.s32.totalorder %s143, %s159
      %p161 = scmp.eq.s32.totalorder %s25, 0
      %p162 = por %p160, %p161
      %p163 = scmp.le.s32.totalorder 1, %s19
      %p164 = scmp.lt.s32.totalorder %s19, 3
      %p165 = pnand %p163, %p164
      %p166 = pneg %p165
      // Predicated region
      $region9: #{tpu_custom_call.1} parent=5 // pred_check
        _
      $region10: #{tpu_custom_call.1} parent=5 // pred_check_branch
        %168 = sbr.rel (%p165) target = $region12
      $region11: #{tpu_custom_call.1} parent=5 // pred_region
        %s169 = ssub.s32 %s19, 1
        // Predicated region
        $region13: #{tpu_custom_call.1} parent=11 // pred_check
          %p170 = pneg %p66
        $region14: #{tpu_custom_call.1} parent=11 // pred_check_branch
          %172 = sbr.rel (%p170) target = $region16
        $region15: #{tpu_custom_call.1} parent=11 // pred_region
          %s174 = ssub.s32 576, 576
          %175 = vsyncadd [#allocation8], %s174
          %s176 = sshll.u32 [#allocation7], 4
          %s177 = int_to_ptr.vmem [resolvable:$true] %s176
          %182 = dma.hbm_to_vmem [thread:$0]  %s1, 576, %s177, [#allocation8], 64, 64, 4
        $region16: #{tpu_custom_call.1} parent=11 // pred_fallthru
          _
        // Predicated region
        $region17: #{tpu_custom_call.1} parent=11 // pred_check
          %p183 = pneg %p87
        $region18: #{tpu_custom_call.1} parent=11 // pred_check_branch
          %185 = sbr.rel (%p183) target = $region20
        $region19: #{tpu_custom_call.1} parent=11 // pred_region
          %s187 = ssub.s32 16, 16
          %188 = vsyncadd [#allocation8], %s187
          %s190 = sshll.u32 [#allocation9], 4
          %s191 = int_to_ptr.vmem [resolvable:$true] %s190
          %193 = dma.hbm_to_vmem [thread:$0]  %s2, 16, %s191, [#allocation8]
        $region20: #{tpu_custom_call.1} parent=11 // pred_fallthru
          _
        // Predicated region
        $region21: #{tpu_custom_call.1} parent=11 // pred_check
          %p194 = pneg %p108
        $region22: #{tpu_custom_call.1} parent=11 // pred_check_branch
          %196 = sbr.rel (%p194) target = $region24
        $region23: #{tpu_custom_call.1} parent=11 // pred_region
          %s198 = ssub.s32 288, 288
          %199 = vsyncadd [#allocation11], %s198
          %s200 = sshll.u32 [#allocation10], 4
          %s201 = int_to_ptr.vmem [resolvable:$true] %s200
          %206 = dma.hbm_to_vmem [thread:$0]  %s3, 288, %s201, [#allocation11], 32, 32, 2
        $region24: #{tpu_custom_call.1} parent=11 // pred_fallthru
          _
        // Predicated region
        $region25: #{tpu_custom_call.1} parent=11 // pred_check
          %p207 = pneg %p129
        $region26: #{tpu_custom_call.1} parent=11 // pred_check_branch
          %209 = sbr.rel (%p207) target = $region28
        $region27: #{tpu_custom_call.1} parent=11 // pred_region
          %s211 = ssub.s32 16, 16
          %212 = vsyncadd [#allocation11], %s211
          %s214 = sshll.u32 [#allocation12], 4
          %s215 = int_to_ptr.vmem [resolvable:$true] %s214
          %217 = dma.hbm_to_vmem [thread:$0]  %s4, 16, %s215, [#allocation11]
        $region28: #{tpu_custom_call.1} parent=11 // pred_fallthru
          _
      $region12: #{tpu_custom_call.1} parent=5 // pred_fallthru
        _
      %p218 = scmp.lt.s32.totalorder %s19, 2
      // Predicated region
      $region29: #{tpu_custom_call.1} parent=5 // pred_check
        %p219 = pneg %p218
      $region30: #{tpu_custom_call.1} parent=5 // pred_check_branch
        %221 = sbr.rel (%p219) target = $region32
      $region31: #{tpu_custom_call.1} parent=5 // pred_region
        // Predicated region
        $region33: #{tpu_custom_call.1} parent=31 // pred_check
          %p222 = pneg %p39
        $region34: #{tpu_custom_call.1} parent=31 // pred_check_branch
          %224 = sbr.rel (%p222) target = $region36
        $region35: #{tpu_custom_call.1} parent=31 // pred_region
          %s225 = sand.u32 %s29, 1
          %s226 = scalar_lea.sflag [#allocation5], %s225
          %s227 = sand.u32 %s29, 1
          %s228 = smul.addr %s227, 328
          %s229 = scalar_lea.vmem [#allocation4], %s228
          %s231 = ssub.s32 5248, 5248
          %232 = vsyncadd %s226, %s231
          %s233 = smul.addr %s19, 41
          %s234 = smul.addr %s233, 128
          %s235 = scalar_lea.hbm %s0, %s234
          %s236 = sshll.u32 %s229, 4
          %s237 = int_to_ptr.vmem [resolvable:$true] %s236
          %242 = dma.hbm_to_vmem [thread:$0]  %s235, 5248, %s237, %s226, 128, 128, 8
        $region36: #{tpu_custom_call.1} parent=31 // pred_fallthru
          _
      $region32: #{tpu_custom_call.1} parent=5 // pred_fallthru
        _
      %p243 = scmp.le.s32.totalorder 1, %s19
      %p244 = scmp.lt.s32.totalorder %s19, 3
      %p245 = pnand %p243, %p244
      %p246 = pneg %p245
      // Predicated region
      $region37: #{tpu_custom_call.1} parent=5 // pred_check
        _
      $region38: #{tpu_custom_call.1} parent=5 // pred_check_branch
        %248 = sbr.rel (%p245) target = $region40
      $region39: #{tpu_custom_call.1} parent=5 // pred_region
        %s249 = ssub.s32 %s19, 1
        %s250 = sand.u32 %s32, 1
        %s251 = scalar_lea.sflag [#allocation5], %s250
        %s252 = sand.u32 %s32, 1
        %s253 = smul.addr %s252, 328
        %s254 = scalar_lea.vmem [#allocation4], %s253
        // Predicated region
        $region41: #{tpu_custom_call.1} parent=39 // pred_check
          %p255 = pneg %p45
        $region42: #{tpu_custom_call.1} parent=39 // pred_check_branch
          %257 = sbr.rel (%p255) target = $region44
        $region43: #{tpu_custom_call.1} parent=39 // pred_region
          %258 = dma.done %s251, 5248
        $region44: #{tpu_custom_call.1} parent=39 // pred_fallthru
          _
        // Predicated region
        $region45: #{tpu_custom_call.1} parent=39 // pred_check
          %p259 = pneg %p66
        $region46: #{tpu_custom_call.1} parent=39 // pred_check_branch
          %261 = sbr.rel (%p259) target = $region48
        $region47: #{tpu_custom_call.1} parent=39 // pred_region
          %262 = dma.done [#allocation8], 576
        $region48: #{tpu_custom_call.1} parent=39 // pred_fallthru
          _
        // Predicated region
        $region49: #{tpu_custom_call.1} parent=39 // pred_check
          %p263 = pneg %p87
        $region50: #{tpu_custom_call.1} parent=39 // pred_check_branch
          %265 = sbr.rel (%p263) target = $region52
        $region51: #{tpu_custom_call.1} parent=39 // pred_region
          %266 = dma.done [#allocation8], 16
        $region52: #{tpu_custom_call.1} parent=39 // pred_fallthru
          _
        // Predicated region
        $region53: #{tpu_custom_call.1} parent=39 // pred_check
          %p267 = pneg %p108
        $region54: #{tpu_custom_call.1} parent=39 // pred_check_branch
          %269 = sbr.rel (%p267) target = $region56
        $region55: #{tpu_custom_call.1} parent=39 // pred_region
          %270 = dma.done [#allocation11], 288
        $region56: #{tpu_custom_call.1} parent=39 // pred_fallthru
          _
        // Predicated region
        $region57: #{tpu_custom_call.1} parent=39 // pred_check
          %p271 = pneg %p129
        $region58: #{tpu_custom_call.1} parent=39 // pred_check_branch
          %273 = sbr.rel (%p271) target = $region60
        $region59: #{tpu_custom_call.1} parent=39 // pred_region
          %274 = dma.done [#allocation11], 16
        $region60: #{tpu_custom_call.1} parent=39 // pred_fallthru
          _
        %s275 = sand.u32 %s32, 1
        %s276 = scalar_lea.sflag [#allocation5], %s275
        %s277 = sand.u32 %s32, 1
        %s278 = smul.addr %s277, 328
        %s279 = scalar_lea.vmem [#allocation4], %s278
        %p280 = pneg %p45
        %p281 = pneg %p42
        %p282 = pneg %p66
        %p283 = pneg %p63
        %p284 = pneg %p87
        %p285 = pneg %p84
        %p286 = pneg %p108
        %p287 = pneg %p105
        %p288 = pneg %p129
        %p289 = pneg %p126
        %p290 = pneg %p155
        %p291 = pneg %p152
        %s292 = sand.u32 %s142, 1
        %s293 = scalar_lea.sflag [#allocation6], %s292
        %s294 = sand.u32 %s142, 1
        %s295 = smul.addr %s294, 256
        %s296 = scalar_lea.vmem [#allocation13], %s295
        %v298 = vld [vmem:[%s254] sm:$0xff]
        %v299 = vld [vmem:[%s254 + $0x8] sm:$0xff]
        %v300 = vld [vmem:[%s254 + $0x10] sm:$0xff]
        %v301 = vld [vmem:[%s254 + $0x18] sm:$0xff]
        %v302 = vld [vmem:[%s254 + $0x20] sm:$0xff]
        %v303 = vld [vmem:[%s254 + $0x28] sm:$0xff]
        %v304 = vld [vmem:[%s254 + $0x30] sm:$0xff]
        %v305 = vld [vmem:[%s254 + $0x38] sm:$0xff]
        %v306 = vld [vmem:[%s254 + $0x40] sm:$0xff]
        %v307 = vld [vmem:[%s254 + $0x48] sm:$0xff]
        %v308 = vld [vmem:[%s254 + $0x50] sm:$0xff]
        %v309 = vld [vmem:[%s254 + $0x58] sm:$0xff]
        %v310 = vld [vmem:[%s254 + $0x60] sm:$0xff]
        %v311 = vld [vmem:[%s254 + $0x68] sm:$0xff]
        %v312 = vld [vmem:[%s254 + $0x70] sm:$0xff]
        %v313 = vld [vmem:[%s254 + $0x78] sm:$0xff]
        %v314 = vld [vmem:[%s254 + $0x80] sm:$0xff]
        %v315 = vld [vmem:[%s254 + $0x88] sm:$0xff]
        %v316 = vld [vmem:[%s254 + $0x90] sm:$0xff]
        %v317 = vld [vmem:[%s254 + $0x98] sm:$0xff]
        %v318 = vld [vmem:[%s254 + $0xa0] sm:$0xff]
        %v319 = vld [vmem:[%s254 + $0xa8] sm:$0xff]
        %v320 = vld [vmem:[%s254 + $0xb0] sm:$0xff]
        %v321 = vld [vmem:[%s254 + $0xb8] sm:$0xff]
        %v322 = vld [vmem:[%s254 + $0xc0] sm:$0xff]
        %v323 = vld [vmem:[%s254 + $0xc8] sm:$0xff]
        %v324 = vld [vmem:[%s254 + $0xd0] sm:$0xff]
        %v325 = vld [vmem:[%s254 + $0xd8] sm:$0xff]
        %v326 = vld [vmem:[%s254 + $0xe0] sm:$0xff]
        %v327 = vld [vmem:[%s254 + $0xe8] sm:$0xff]
        %v328 = vld [vmem:[%s254 + $0xf0] sm:$0xff]
        %v329 = vld [vmem:[%s254 + $0xf8] sm:$0xff]
        %v330 = vld [vmem:[%s254 + $0x100] sm:$0xff]
        %v331 = vld [vmem:[%s254 + $0x108] sm:$0xff]
        %v332 = vld [vmem:[%s254 + $0x110] sm:$0xff]
        %v333 = vld [vmem:[%s254 + $0x118] sm:$0xff]
        %v334 = vld [vmem:[%s254 + $0x120] sm:$0xff]
        %v335 = vld [vmem:[%s254 + $0x128] sm:$0xff]
        %v336 = vld [vmem:[%s254 + $0x130] sm:$0xff]
        %v337 = vld [vmem:[%s254 + $0x138] sm:$0xff]
        %v338 = vld [vmem:[%s254 + $0x140] sm:$0xff]
        %v339 = vpack.c.bf16 %v299, %v298
        %v340 = vpack.c.bf16 %v301, %v300
        %v341 = vpack.c.bf16 %v303, %v302
        %v342 = vpack.c.bf16 %v305, %v304
        %v343 = vpack.c.bf16 %v307, %v306
        %v344 = vpack.c.bf16 %v309, %v308
        %v345 = vpack.c.bf16 %v311, %v310
        %v346 = vpack.c.bf16 %v313, %v312
        %v347 = vpack.c.bf16 %v315, %v314
        %v348 = vpack.c.bf16 %v317, %v316
        %v349 = vpack.c.bf16 %v319, %v318
        %v350 = vpack.c.bf16 %v321, %v320
        %v351 = vpack.c.bf16 %v323, %v322
        %v352 = vpack.c.bf16 %v325, %v324
        %v353 = vpack.c.bf16 %v327, %v326
        %v354 = vpack.c.bf16 %v329, %v328
        %v355 = vpack.c.bf16 %v331, %v330
        %v356 = vpack.c.bf16 %v333, %v332
        %v357 = vpack.c.bf16 %v335, %v334
        %v358 = vpack.c.bf16 %v337, %v336
        %v359 = vpack.c.bf16 %v338, %v338
        %v381 = vunpack.c.l.b16 %v339
        %v382 = vunpack.c.h.b16 %v339
        %v383 = vunpack.c.l.b16 %v340
        %v384 = vunpack.c.h.b16 %v340
        %v385 = vunpack.c.l.b16 %v341
        %v386 = vunpack.c.h.b16 %v341
        %v387 = vunpack.c.l.b16 %v342
        %v388 = vunpack.c.h.b16 %v342
        %v389 = vunpack.c.l.b16 %v343
        %v390 = vunpack.c.h.b16 %v343
        %v391 = vunpack.c.l.b16 %v344
        %v392 = vunpack.c.h.b16 %v344
        %v393 = vunpack.c.l.b16 %v345
        %v394 = vunpack.c.h.b16 %v345
        %v395 = vunpack.c.l.b16 %v346
        %v396 = vunpack.c.h.b16 %v346
        %v397 = vunpack.c.l.b16 %v347
        %v398 = vunpack.c.h.b16 %v347
        %v399 = vunpack.c.l.b16 %v348
        %v400 = vunpack.c.h.b16 %v348
        %v401 = vunpack.c.l.b16 %v349
        %v402 = vunpack.c.h.b16 %v349
        %v403 = vunpack.c.l.b16 %v350
        %v404 = vunpack.c.h.b16 %v350
        %v405 = vunpack.c.l.b16 %v351
        %v406 = vunpack.c.h.b16 %v351
        %v407 = vunpack.c.l.b16 %v352
        %v408 = vunpack.c.h.b16 %v352
        %v409 = vunpack.c.l.b16 %v353
        %v410 = vunpack.c.h.b16 %v353
        %v411 = vunpack.c.l.b16 %v354
        %v412 = vunpack.c.h.b16 %v354
        %v413 = vunpack.c.l.b16 %v355
        %v414 = vunpack.c.h.b16 %v355
        %v415 = vunpack.c.l.b16 %v356
        %v416 = vunpack.c.h.b16 %v356
        %v417 = vunpack.c.l.b16 %v357
        %v418 = vunpack.c.h.b16 %v357
        %v419 = vunpack.c.l.b16 %v358
        %v420 = vunpack.c.h.b16 %v358
        %v421 = vunpack.c.l.b16 %v359
        %v422 = vpack.c.b16 %v381, %v381
        %v423 = vpack.c.b16 %v382, %v382
        %v424 = vpack.c.b16 %v383, %v383
        %v425 = vpack.c.b16 %v384, %v384
        %v426 = vpack.c.b16 %v385, %v385
        %v427 = vpack.c.b16 %v386, %v386
        %v428 = vpack.c.b16 %v387, %v387
        %v429 = vpack.c.b16 %v388, %v388
        %v430 = vpack.c.b16 %v389, %v389
        %v431 = vpack.c.b16 %v390, %v390
        %v432 = vpack.c.b16 %v391, %v391
        %v433 = vpack.c.b16 %v392, %v392
        %v434 = vpack.c.b16 %v393, %v393
        %v435 = vpack.c.b16 %v394, %v394
        %v436 = vpack.c.b16 %v395, %v395
        %v437 = vpack.c.b16 %v396, %v396
        %v438 = vpack.c.b16 %v397, %v397
        %v439 = vpack.c.b16 %v398, %v398
        %v440 = vpack.c.b16 %v399, %v399
        %v441 = vpack.c.b16 %v400, %v400
        %v442 = vpack.c.b16 %v401, %v401
        %v443 = vpack.c.b16 %v402, %v402
        %v444 = vpack.c.b16 %v403, %v403
        %v445 = vpack.c.b16 %v404, %v404
        %v446 = vpack.c.b16 %v405, %v405
        %v447 = vpack.c.b16 %v406, %v406
        %v448 = vpack.c.b16 %v407, %v407
        %v449 = vpack.c.b16 %v408, %v408
        %v450 = vpack.c.b16 %v409, %v409
        %v451 = vpack.c.b16 %v410, %v410
        %v452 = vpack.c.b16 %v411, %v411
        %v453 = vpack.c.b16 %v412, %v412
        %v454 = vpack.c.b16 %v413, %v413
        %v455 = vpack.c.b16 %v414, %v414
        %v456 = vpack.c.b16 %v415, %v415
        %v457 = vpack.c.b16 %v416, %v416
        %v458 = vpack.c.b16 %v417, %v417
        %v459 = vpack.c.b16 %v418, %v418
        %v460 = vpack.c.b16 %v419, %v419
        %v461 = vpack.c.b16 %v420, %v420
        %v462 = vpack.c.b16 %v421, %v421
        %vm504 = vcmask 60416
        %505 = vst.msk [vmem:[#allocation2] sm:$0xf] %vm504, %v422
        %506 = vst.msk [vmem:[#allocation2 + $0x4] sm:$0xf] %vm504, %v423
        %507 = vst.msk [vmem:[#allocation2 + $0x8] sm:$0xf] %vm504, %v424
        %508 = vst.msk [vmem:[#allocation2 + $0xc] sm:$0xf] %vm504, %v425
        %509 = vst.msk [vmem:[#allocation2 + $0x10] sm:$0xf] %vm504, %v426
        %510 = vst.msk [vmem:[#allocation2 + $0x14] sm:$0xf] %vm504, %v427
        %511 = vst.msk [vmem:[#allocation2 + $0x18] sm:$0xf] %vm504, %v428
        %512 = vst.msk [vmem:[#allocation2 + $0x1c] sm:$0xf] %vm504, %v429
        %513 = vst.msk [vmem:[#allocation2 + $0x20] sm:$0xf] %vm504, %v430
        %514 = vst.msk [vmem:[#allocation2 + $0x24] sm:$0xf] %vm504, %v431
        %515 = vst.msk [vmem:[#allocation2 + $0x28] sm:$0xf] %vm504, %v432
        %516 = vst.msk [vmem:[#allocation2 + $0x2c] sm:$0xf] %vm504, %v433
        %517 = vst.msk [vmem:[#allocation2 + $0x30] sm:$0xf] %vm504, %v434
        %518 = vst.msk [vmem:[#allocation2 + $0x34] sm:$0xf] %vm504, %v435
        %519 = vst.msk [vmem:[#allocation2 + $0x38] sm:$0xf] %vm504, %v436
        %520 = vst.msk [vmem:[#allocation2 + $0x3c] sm:$0xf] %vm504, %v437
        %521 = vst.msk [vmem:[#allocation2 + $0x40] sm:$0xf] %vm504, %v438
        %522 = vst.msk [vmem:[#allocation2 + $0x44] sm:$0xf] %vm504, %v439
        %523 = vst.msk [vmem:[#allocation2 + $0x48] sm:$0xf] %vm504, %v440
        %524 = vst.msk [vmem:[#allocation2 + $0x4c] sm:$0xf] %vm504, %v441
        %525 = vst.msk [vmem:[#allocation2 + $0x50] sm:$0xf] %vm504, %v442
        %526 = vst.msk [vmem:[#allocation2 + $0x54] sm:$0xf] %vm504, %v443
        %527 = vst.msk [vmem:[#allocation2 + $0x58] sm:$0xf] %vm504, %v444
        %528 = vst.msk [vmem:[#allocation2 + $0x5c] sm:$0xf] %vm504, %v445
        %529 = vst.msk [vmem:[#allocation2 + $0x60] sm:$0xf] %vm504, %v446
        %530 = vst.msk [vmem:[#allocation2 + $0x64] sm:$0xf] %vm504, %v447
        %531 = vst.msk [vmem:[#allocation2 + $0x68] sm:$0xf] %vm504, %v448
        %532 = vst.msk [vmem:[#allocation2 + $0x6c] sm:$0xf] %vm504, %v449
        %533 = vst.msk [vmem:[#allocation2 + $0x70] sm:$0xf] %vm504, %v450
        %534 = vst.msk [vmem:[#allocation2 + $0x74] sm:$0xf] %vm504, %v451
        %535 = vst.msk [vmem:[#allocation2 + $0x78] sm:$0xf] %vm504, %v452
        %536 = vst.msk [vmem:[#allocation2 + $0x7c] sm:$0xf] %vm504, %v453
        %537 = vst.msk [vmem:[#allocation2 + $0x80] sm:$0xf] %vm504, %v454
        %538 = vst.msk [vmem:[#allocation2 + $0x84] sm:$0xf] %vm504, %v455
        %539 = vst.msk [vmem:[#allocation2 + $0x88] sm:$0xf] %vm504, %v456
        %540 = vst.msk [vmem:[#allocation2 + $0x8c] sm:$0xf] %vm504, %v457
        %541 = vst.msk [vmem:[#allocation2 + $0x90] sm:$0xf] %vm504, %v458
        %542 = vst.msk [vmem:[#allocation2 + $0x94] sm:$0xf] %vm504, %v459
        %543 = vst.msk [vmem:[#allocation2 + $0x98] sm:$0xf] %vm504, %v460
        %544 = vst.msk [vmem:[#allocation2 + $0x9c] sm:$0xf] %vm504, %v461
        %545 = vst.msk [vmem:[#allocation2 + $0xa0] sm:$0xf] %vm504, %v462
        %vm546 = vcmask 64512
        %v547 = vsel %vm546, %v298, 0.0
        %v548 = vsel %vm546, %v299, 0.0
        %v549 = vadd.f32 %v547, %v548
        %v550 = vsel %vm546, %v300, 0.0
        %v551 = vadd.f32 %v549, %v550
        %v552 = vsel %vm546, %v301, 0.0
        %v553 = vadd.f32 %v551, %v552
        %v554 = vsel %vm546, %v302, 0.0
        %v555 = vadd.f32 %v553, %v554
        %v556 = vsel %vm546, %v303, 0.0
        %v557 = vadd.f32 %v555, %v556
        %v558 = vsel %vm546, %v304, 0.0
        %v559 = vadd.f32 %v557, %v558
        %v560 = vsel %vm546, %v305, 0.0
        %v561 = vadd.f32 %v559, %v560
        %v562 = vsel %vm546, %v306, 0.0
        %v563 = vadd.f32 %v561, %v562
        %v564 = vsel %vm546, %v307, 0.0
        %v565 = vadd.f32 %v563, %v564
        %v566 = vsel %vm546, %v308, 0.0
        %v567 = vadd.f32 %v565, %v566
        %v568 = vsel %vm546, %v309, 0.0
        %v569 = vadd.f32 %v567, %v568
        %v570 = vsel %vm546, %v310, 0.0
        %v571 = vadd.f32 %v569, %v570
        %v572 = vsel %vm546, %v311, 0.0
        %v573 = vadd.f32 %v571, %v572
        %v574 = vsel %vm546, %v312, 0.0
        %v575 = vadd.f32 %v573, %v574
        %v576 = vsel %vm546, %v313, 0.0
        %v577 = vadd.f32 %v575, %v576
        %v578 = vsel %vm546, %v314, 0.0
        %v579 = vadd.f32 %v577, %v578
        %v580 = vsel %vm546, %v315, 0.0
        %v581 = vadd.f32 %v579, %v580
        %v582 = vsel %vm546, %v316, 0.0
        %v583 = vadd.f32 %v581, %v582
        %v584 = vsel %vm546, %v317, 0.0
        %v585 = vadd.f32 %v583, %v584
        %v586 = vsel %vm546, %v318, 0.0
        %v587 = vadd.f32 %v585, %v586
        %v588 = vsel %vm546, %v319, 0.0
        %v589 = vadd.f32 %v587, %v588
        %v590 = vsel %vm546, %v320, 0.0
        %v591 = vadd.f32 %v589, %v590
        %v592 = vsel %vm546, %v321, 0.0
        %v593 = vadd.f32 %v591, %v592
        %v594 = vsel %vm546, %v322, 0.0
        %v595 = vadd.f32 %v593, %v594
        %v596 = vsel %vm546, %v323, 0.0
        %v597 = vadd.f32 %v595, %v596
        %v598 = vsel %vm546, %v324, 0.0
        %v599 = vadd.f32 %v597, %v598
        %v600 = vsel %vm546, %v325, 0.0
        %v601 = vadd.f32 %v599, %v600
        %v602 = vsel %vm546, %v326, 0.0
        %v603 = vadd.f32 %v601, %v602
        %v604 = vsel %vm546, %v327, 0.0
        %v605 = vadd.f32 %v603, %v604
        %v606 = vsel %vm546, %v328, 0.0
        %v607 = vadd.f32 %v605, %v606
        %v608 = vsel %vm546, %v329, 0.0
        %v609 = vadd.f32 %v607, %v608
        %v610 = vsel %vm546, %v330, 0.0
        %v611 = vadd.f32 %v609, %v610
        %v612 = vsel %vm546, %v331, 0.0
        %v613 = vadd.f32 %v611, %v612
        %v614 = vsel %vm546, %v332, 0.0
        %v615 = vadd.f32 %v613, %v614
        %v616 = vsel %vm546, %v333, 0.0
        %v617 = vadd.f32 %v615, %v616
        %v618 = vsel %vm546, %v334, 0.0
        %v619 = vadd.f32 %v617, %v618
        %v620 = vsel %vm546, %v335, 0.0
        %v621 = vadd.f32 %v619, %v620
        %v622 = vsel %vm546, %v336, 0.0
        %v623 = vadd.f32 %v621, %v622
        %v624 = vsel %vm546, %v337, 0.0
        %v625 = vadd.f32 %v623, %v624
        %v626 = vsel %vm546, %v338, 0.0
        %v627 = vadd.f32 %v625, %v626
        %v628 = vrot.slane %v627, 4
        %v629 = vadd.f32 %v627, %v628
        %v630 = vrot.slane %v629, 2
        %v631 = vadd.f32 %v629, %v630
        %v632 = vrot.slane %v631, 1
        %v633 = vadd.f32 %v631, %v632
        %v634 = vmul.f32 %v298, %v298
        %v635 = vmul.f32 %v299, %v299
        %v636 = vmul.f32 %v300, %v300
        %v637 = vmul.f32 %v301, %v301
        %v638 = vmul.f32 %v302, %v302
        %v639 = vmul.f32 %v303, %v303
        %v640 = vmul.f32 %v304, %v304
        %v641 = vmul.f32 %v305, %v305
        %v642 = vmul.f32 %v306, %v306
        %v643 = vmul.f32 %v307, %v307
        %v644 = vmul.f32 %v308, %v308
        %v645 = vmul.f32 %v309, %v309
        %v646 = vmul.f32 %v310, %v310
        %v647 = vmul.f32 %v311, %v311
        %v648 = vmul.f32 %v312, %v312
        %v649 = vmul.f32 %v313, %v313
        %v650 = vmul.f32 %v314, %v314
        %v651 = vmul.f32 %v315, %v315
        %v652 = vmul.f32 %v316, %v316
        %v653 = vmul.f32 %v317, %v317
        %v654 = vmul.f32 %v318, %v318
        %v655 = vmul.f32 %v319, %v319
        %v656 = vmul.f32 %v320, %v320
        %v657 = vmul.f32 %v321, %v321
        %v658 = vmul.f32 %v322, %v322
        %v659 = vmul.f32 %v323, %v323
        %v660 = vmul.f32 %v324, %v324
        %v661 = vmul.f32 %v325, %v325
        %v662 = vmul.f32 %v326, %v326
        %v663 = vmul.f32 %v327, %v327
        %v664 = vmul.f32 %v328, %v328
        %v665 = vmul.f32 %v329, %v329
        %v666 = vmul.f32 %v330, %v330
        %v667 = vmul.f32 %v331, %v331
        %v668 = vmul.f32 %v332, %v332
        %v669 = vmul.f32 %v333, %v333
        %v670 = vmul.f32 %v334, %v334
        %v671 = vmul.f32 %v335, %v335
        %v672 = vmul.f32 %v336, %v336
        %v673 = vmul.f32 %v337, %v337
        %v674 = vmul.f32 %v338, %v338
        %v675 = vsel %vm546, %v634, 0.0
        %v676 = vsel %vm546, %v635, 0.0
        %v677 = vadd.f32 %v675, %v676
        %v678 = vsel %vm546, %v636, 0.0
        %v679 = vadd.f32 %v677, %v678
        %v680 = vsel %vm546, %v637, 0.0
        %v681 = vadd.f32 %v679, %v680
        %v682 = vsel %vm546, %v638, 0.0
        %v683 = vadd.f32 %v681, %v682
        %v684 = vsel %vm546, %v639, 0.0
        %v685 = vadd.f32 %v683, %v684
        %v686 = vsel %vm546, %v640, 0.0
        %v687 = vadd.f32 %v685, %v686
        %v688 = vsel %vm546, %v641, 0.0
        %v689 = vadd.f32 %v687, %v688
        %v690 = vsel %vm546, %v642, 0.0
        %v691 = vadd.f32 %v689, %v690
        %v692 = vsel %vm546, %v643, 0.0
        %v693 = vadd.f32 %v691, %v692
        %v694 = vsel %vm546, %v644, 0.0
        %v695 = vadd.f32 %v693, %v694
        %v696 = vsel %vm546, %v645, 0.0
        %v697 = vadd.f32 %v695, %v696
        %v698 = vsel %vm546, %v646, 0.0
        %v699 = vadd.f32 %v697, %v698
        %v700 = vsel %vm546, %v647, 0.0
        %v701 = vadd.f32 %v699, %v700
        %v702 = vsel %vm546, %v648, 0.0
        %v703 = vadd.f32 %v701, %v702
        %v704 = vsel %vm546, %v649, 0.0
        %v705 = vadd.f32 %v703, %v704
        %v706 = vsel %vm546, %v650, 0.0
        %v707 = vadd.f32 %v705, %v706
        %v708 = vsel %vm546, %v651, 0.0
        %v709 = vadd.f32 %v707, %v708
        %v710 = vsel %vm546, %v652, 0.0
        %v711 = vadd.f32 %v709, %v710
        %v712 = vsel %vm546, %v653, 0.0
        %v713 = vadd.f32 %v711, %v712
        %v714 = vsel %vm546, %v654, 0.0
        %v715 = vadd.f32 %v713, %v714
        %v716 = vsel %vm546, %v655, 0.0
        %v717 = vadd.f32 %v715, %v716
        %v718 = vsel %vm546, %v656, 0.0
        %v719 = vadd.f32 %v717, %v718
        %v720 = vsel %vm546, %v657, 0.0
        %v721 = vadd.f32 %v719, %v720
        %v722 = vsel %vm546, %v658, 0.0
        %v723 = vadd.f32 %v721, %v722
        %v724 = vsel %vm546, %v659, 0.0
        %v725 = vadd.f32 %v723, %v724
        %v726 = vsel %vm546, %v660, 0.0
        %v727 = vadd.f32 %v725, %v726
        %v728 = vsel %vm546, %v661, 0.0
        %v729 = vadd.f32 %v727, %v728
        %v730 = vsel %vm546, %v662, 0.0
        %v731 = vadd.f32 %v729, %v730
        %v732 = vsel %vm546, %v663, 0.0
        %v733 = vadd.f32 %v731, %v732
        %v734 = vsel %vm546, %v664, 0.0
        %v735 = vadd.f32 %v733, %v734
        %v736 = vsel %vm546, %v665, 0.0
        %v737 = vadd.f32 %v735, %v736
        %v738 = vsel %vm546, %v666, 0.0
        %v739 = vadd.f32 %v737, %v738
        %v740 = vsel %vm546, %v667, 0.0
        %v741 = vadd.f32 %v739, %v740
        %v742 = vsel %vm546, %v668, 0.0
        %v743 = vadd.f32 %v741, %v742
        %v744 = vsel %vm546, %v669, 0.0
        %v745 = vadd.f32 %v743, %v744
        %v746 = vsel %vm546, %v670, 0.0
        %v747 = vadd.f32 %v745, %v746
        %v748 = vsel %vm546, %v671, 0.0
        %v749 = vadd.f32 %v747, %v748
        %v750 = vsel %vm546, %v672, 0.0
        %v751 = vadd.f32 %v749, %v750
        %v752 = vsel %vm546, %v673, 0.0
        %v753 = vadd.f32 %v751, %v752
        %v754 = vsel %vm546, %v674, 0.0
        %v755 = vadd.f32 %v753, %v754
        %v756 = vrot.slane %v755, 4
        %v757 = vadd.f32 %v755, %v756
        %v758 = vrot.slane %v757, 2
        %v759 = vadd.f32 %v757, %v758
        %v760 = vrot.slane %v759, 1
        %v761 = vadd.f32 %v759, %v760
        %v762 = vrcp.pop 256.0
        %v763 = vmul.f32 %v633, %v762
        %v764 = vmul.f32 %v761, %v762
        %v765 = vmul.f32 %v763, %v763
        %v766 = vsub.f32 %v764, %v765
        %v767 = vmax.f32 %v766, 0.0
        %v768 = vmul.f32 %v763, 256.0
        %v769 = vmul.f32 %v768, %v763
        %v770 = vsub.f32 %v761, %v769
        %v771 = vrcp.pop 255.0
        %v772 = vmul.f32 %v770, %v771
        %v773 = vmax.f32 %v772, 0.0
        %v774 = vrsqrt.pop %v773
        %v775 = vmul.f32 %v773, %v774
        %vm776 = vcmp.eq.f32.partialorder %v773, inf
        %v777 = vsel %vm776, %v773, %v775
        %vm778 = vcmp.eq.f32.partialorder %v773, 0.0
        %v779 = vand.u32 %v773, 2147483648
        %v780 = vsel %vm778, %v779, %v777
        %v781 = vld [vmem:[#allocation2] sm:$0xf]
        %v782 = vld [vmem:[#allocation2 + $0x4] sm:$0xf]
        %v783 = vld [vmem:[#allocation2 + $0x8] sm:$0xf]
        %v784 = vld [vmem:[#allocation2 + $0xc] sm:$0xf]
        %v785 = vld [vmem:[#allocation2 + $0x10] sm:$0xf]
        %v786 = vld [vmem:[#allocation2 + $0x14] sm:$0xf]
        %v787 = vld [vmem:[#allocation2 + $0x18] sm:$0xf]
        %v788 = vld [vmem:[#allocation2 + $0x1c] sm:$0xf]
        %v789 = vld [vmem:[#allocation2 + $0x20] sm:$0xf]
        %v790 = vld [vmem:[#allocation2 + $0x24] sm:$0xf]
        %v791 = vld [vmem:[#allocation2 + $0x28] sm:$0xf]
        %v792 = vld [vmem:[#allocation2 + $0x2c] sm:$0xf]
        %v793 = vld [vmem:[#allocation2 + $0x30] sm:$0xf]
        %v794 = vld [vmem:[#allocation2 + $0x34] sm:$0xf]
        %v795 = vld [vmem:[#allocation2 + $0x38] sm:$0xf]
        %v796 = vld [vmem:[#allocation2 + $0x3c] sm:$0xf]
        %v797 = vld [vmem:[#allocation2 + $0x40] sm:$0xf]
        %v798 = vld [vmem:[#allocation2 + $0x44] sm:$0xf]
        %v799 = vld [vmem:[#allocation2 + $0x48] sm:$0xf]
        %v800 = vld [vmem:[#allocation2 + $0x4c] sm:$0xf]
        %v801 = vld [vmem:[#allocation2 + $0x50] sm:$0xf]
        %v802 = vld [vmem:[#allocation2 + $0x54] sm:$0xf]
        %v803 = vld [vmem:[#allocation2 + $0x58] sm:$0xf]
        %v804 = vld [vmem:[#allocation2 + $0x5c] sm:$0xf]
        %v805 = vld [vmem:[#allocation2 + $0x60] sm:$0xf]
        %v806 = vld [vmem:[#allocation2 + $0x64] sm:$0xf]
        %v807 = vld [vmem:[#allocation2 + $0x68] sm:$0xf]
        %v808 = vld [vmem:[#allocation2 + $0x6c] sm:$0xf]
        %v809 = vld [vmem:[#allocation2 + $0x70] sm:$0xf]
        %v810 = vld [vmem:[#allocation2 + $0x74] sm:$0xf]
        %v811 = vld [vmem:[#allocation2 + $0x78] sm:$0xf]
        %v812 = vld [vmem:[#allocation2 + $0x7c] sm:$0xf]
        %v813 = vld [vmem:[#allocation2 + $0x80] sm:$0xf]
        %v814 = vld [vmem:[#allocation2 + $0x84] sm:$0xf]
        %v815 = vld [vmem:[#allocation2 + $0x88] sm:$0xf]
        %v816 = vld [vmem:[#allocation2 + $0x8c] sm:$0xf]
        %v817 = vld [vmem:[#allocation7] sm:$0xf]
        %v818 = vld [vmem:[#allocation2 + $0x90] sm:$0x1]
        %s819 = scalar_lea.vmem [#allocation7], 4
        %v820 = vld [vmem:[%s819] sm:$0xf]
        %v858 = vunpack.c.l.b16 %v781
        %v859 = vunpack.c.l.b16 %v782
        %v860 = vunpack.c.l.b16 %v783
        %v861 = vunpack.c.l.b16 %v784
        %v862 = vunpack.c.l.b16 %v785
        %v863 = vunpack.c.l.b16 %v786
        %v864 = vunpack.c.l.b16 %v787
        %v865 = vunpack.c.l.b16 %v788
        %v866 = vunpack.c.l.b16 %v789
        %v867 = vunpack.c.l.b16 %v790
        %v868 = vunpack.c.l.b16 %v791
        %v869 = vunpack.c.l.b16 %v792
        %v870 = vunpack.c.l.b16 %v793
        %v871 = vunpack.c.l.b16 %v794
        %v872 = vunpack.c.l.b16 %v795
        %v873 = vunpack.c.l.b16 %v796
        %v874 = vunpack.c.l.b16 %v797
        %v875 = vunpack.c.l.b16 %v798
        %v876 = vunpack.c.l.b16 %v799
        %v877 = vunpack.c.l.b16 %v800
        %v878 = vunpack.c.l.b16 %v801
        %v879 = vunpack.c.l.b16 %v802
        %v880 = vunpack.c.l.b16 %v803
        %v881 = vunpack.c.l.b16 %v804
        %v882 = vunpack.c.l.b16 %v805
        %v883 = vunpack.c.l.b16 %v806
        %v884 = vunpack.c.l.b16 %v807
        %v885 = vunpack.c.l.b16 %v808
        %v886 = vunpack.c.l.b16 %v809
        %v887 = vunpack.c.l.b16 %v810
        %v888 = vunpack.c.l.b16 %v811
        %v889 = vunpack.c.l.b16 %v812
        %v890 = vunpack.c.l.b16 %v813
        %v891 = vunpack.c.l.b16 %v814
        %v892 = vunpack.c.l.b16 %v815
        %v893 = vunpack.c.l.b16 %v816
        %v894 = vunpack.c.l.b16 %v818
        %v895 = vpack.c.b16 %v859, %v858
        %v896 = vpack.c.b16 %v861, %v860
        %v897 = vpack.c.b16 %v863, %v862
        %v898 = vpack.c.b16 %v865, %v864
        %v899 = vpack.c.b16 %v867, %v866
        %v900 = vpack.c.b16 %v869, %v868
        %v901 = vpack.c.b16 %v871, %v870
        %v902 = vpack.c.b16 %v873, %v872
        %v903 = vpack.c.b16 %v875, %v874
        %v904 = vpack.c.b16 %v877, %v876
        %v905 = vpack.c.b16 %v879, %v878
        %v906 = vpack.c.b16 %v881, %v880
        %v907 = vpack.c.b16 %v883, %v882
        %v908 = vpack.c.b16 %v885, %v884
        %v909 = vpack.c.b16 %v887, %v886
        %v910 = vpack.c.b16 %v889, %v888
        %v911 = vpack.c.b16 %v891, %v890
        %v912 = vpack.c.b16 %v893, %v892
        %v913 = vpack.c.b16 %v894, %v894
        %vm914 = vsmask.f32 7424
        %v916 = vshrl.u32 %v895, 16
        %v918 = vshll.u32 %v895, 16
        %v920 = vrot.slane %v918, 1
        %v921 = vor.u32 %v916, %v920
        %v923 = vshll.u32 %v896, 16
        %v925 = vrot.slane %v923, 1
        %v926 = vsel %vm914, %v921, %v925
        %v927 = vshrl.u32 %v896, 16
        %v929 = vor.u32 %v927, %v925
        %v931 = vshll.u32 %v897, 16
        %v933 = vrot.slane %v931, 1
        %v934 = vsel %vm914, %v929, %v933
        %v935 = vshrl.u32 %v897, 16
        %v937 = vor.u32 %v935, %v933
        %v939 = vshll.u32 %v898, 16
        %v941 = vrot.slane %v939, 1
        %v942 = vsel %vm914, %v937, %v941
        %v943 = vshrl.u32 %v898, 16
        %v945 = vor.u32 %v943, %v941
        %v947 = vshll.u32 %v899, 16
        %v949 = vrot.slane %v947, 1
        %v950 = vsel %vm914, %v945, %v949
        %v951 = vshrl.u32 %v899, 16
        %v953 = vor.u32 %v951, %v949
        %v955 = vshll.u32 %v900, 16
        %v957 = vrot.slane %v955, 1
        %v958 = vsel %vm914, %v953, %v957
        %v959 = vshrl.u32 %v900, 16
        %v961 = vor.u32 %v959, %v957
        %v963 = vshll.u32 %v901, 16
        %v965 = vrot.slane %v963, 1
        %v966 = vsel %vm914, %v961, %v965
        %v967 = vshrl.u32 %v901, 16
        %v969 = vor.u32 %v967, %v965
        %v971 = vshll.u32 %v902, 16
        %v973 = vrot.slane %v971, 1
        %v974 = vsel %vm914, %v969, %v973
        %v975 = vshrl.u32 %v902, 16
        %v977 = vor.u32 %v975, %v973
        %v979 = vshll.u32 %v903, 16
        %v981 = vrot.slane %v979, 1
        %v982 = vsel %vm914, %v977, %v981
        %v983 = vshrl.u32 %v903, 16
        %v985 = vor.u32 %v983, %v981
        %v987 = vshll.u32 %v904, 16
        %v989 = vrot.slane %v987, 1
        %v990 = vsel %vm914, %v985, %v989
        %v991 = vshrl.u32 %v904, 16
        %v993 = vor.u32 %v991, %v989
        %v995 = vshll.u32 %v905, 16
        %v997 = vrot.slane %v995, 1
        %v998 = vsel %vm914, %v993, %v997
        %v999 = vshrl.u32 %v905, 16
        %v1001 = vor.u32 %v999, %v997
        %v1003 = vshll.u32 %v906, 16
        %v1005 = vrot.slane %v1003, 1
        %v1006 = vsel %vm914, %v1001, %v1005
        %v1007 = vshrl.u32 %v906, 16
        %v1009 = vor.u32 %v1007, %v1005
        %v1011 = vshll.u32 %v907, 16
        %v1013 = vrot.slane %v1011, 1
        %v1014 = vsel %vm914, %v1009, %v1013
        %v1015 = vshrl.u32 %v907, 16
        %v1017 = vor.u32 %v1015, %v1013
        %v1019 = vshll.u32 %v908, 16
        %v1021 = vrot.slane %v1019, 1
        %v1022 = vsel %vm914, %v1017, %v1021
        %v1023 = vshrl.u32 %v908, 16
        %v1025 = vor.u32 %v1023, %v1021
        %v1027 = vshll.u32 %v909, 16
        %v1029 = vrot.slane %v1027, 1
        %v1030 = vsel %vm914, %v1025, %v1029
        %v1031 = vshrl.u32 %v909, 16
        %v1033 = vor.u32 %v1031, %v1029
        %v1035 = vshll.u32 %v910, 16
        %v1037 = vrot.slane %v1035, 1
        %v1038 = vsel %vm914, %v1033, %v1037
        %v1039 = vshrl.u32 %v910, 16
        %v1041 = vor.u32 %v1039, %v1037
        %v1043 = vshll.u32 %v911, 16
        %v1045 = vrot.slane %v1043, 1
        %v1046 = vsel %vm914, %v1041, %v1045
        %v1047 = vshrl.u32 %v911, 16
        %v1049 = vor.u32 %v1047, %v1045
        %v1051 = vshll.u32 %v912, 16
        %v1053 = vrot.slane %v1051, 1
        %v1054 = vsel %vm914, %v1049, %v1053
        %v1055 = vshrl.u32 %v912, 16
        %v1057 = vor.u32 %v1055, %v1053
        %v1059 = vshll.u32 %v913, 16
        %v1061 = vrot.slane %v1059, 1
        %v1062 = vsel %vm914, %v1057, %v1061
        %v1064 = vsel %vm546, %v926, 0
        %v1067 = vsel %vm546, %v934, 0
        %v1070 = vsel %vm546, %v942, 0
        %v1073 = vsel %vm546, %v950, 0
        %v1076 = vsel %vm546, %v958, 0
        %v1079 = vsel %vm546, %v966, 0
        %v1082 = vsel %vm546, %v974, 0
        %v1085 = vsel %vm546, %v982, 0
        %v1088 = vsel %vm546, %v990, 0
        %v1091 = vsel %vm546, %v998, 0
        %v1094 = vsel %vm546, %v1006, 0
        %v1097 = vsel %vm546, %v1014, 0
        %v1100 = vsel %vm546, %v1022, 0
        %v1103 = vsel %vm546, %v1030, 0
        %v1106 = vsel %vm546, %v1038, 0
        %v1109 = vsel %vm546, %v1046, 0
        %v1112 = vsel %vm546, %v1054, 0
        %v1115 = vsel %vm546, %v1062, 0
        %vm1117 = vcmask 1043456
        %v1119 = vsel %vm1117, %v820, 0
        %1121 = vmatprep.subr.bf16.mxu0 0
        %1122 = vmatpush1.bf16.msra.mxu0 %v1119
        %1123 = vmatprep.subr.bf16.mxu0 0
        %1124 = vmatpush1.bf16.msra.mxu0 0
        %1125 = vmatprep.subr.bf16.mxu0 0
        %1126 = vmatpush1.bf16.msra.mxu0 0
        %1127 = vmatprep.subr.bf16.mxu0 0
        %1128 = vmatpush1.bf16.msra.mxu0 0
        %1129 = vmatprep.subr.bf16.mxu0 0
        %1130 = vmatpush1.bf16.msra.mxu0 0
        %1131 = vmatprep.subr.bf16.mxu0 0
        %1132 = vmatpush1.bf16.msra.mxu0 0
        %1133 = vmatprep.subr.bf16.mxu0 0
        %1134 = vmatpush1.bf16.msra.mxu0 0
        %1135 = vmatprep.subr.bf16.mxu0 0
        %1136 = vmatpush1.bf16.msra.mxu0 0
        %1137 = vmatprep.subr.bf16.mxu0 0
        %1138 = vmatpush1.bf16.msra.mxu0 0
        %1139 = vmatprep.subr.bf16.mxu0 0
        %1140 = vmatpush1.bf16.msra.mxu0 0
        %1141 = vmatprep.subr.bf16.mxu0 0
        %1142 = vmatpush1.bf16.msra.mxu0 0
        %1143 = vmatprep.subr.bf16.mxu0 0
        %1144 = vmatpush1.bf16.msra.mxu0 0
        %1145 = vmatprep.subr.bf16.mxu0 0
        %1146 = vmatpush1.bf16.msra.mxu0 0
        %1147 = vmatprep.subr.bf16.mxu0 0
        %1148 = vmatpush1.bf16.msra.mxu0 0
        %1149 = vmatprep.subr.bf16.mxu0 0
        %1150 = vmatpush1.bf16.msra.mxu0 0
        %1151 = vmatprep.subr.bf16.mxu0 0
        %1152 = vmatpush1.bf16.msra.mxu0 0
        %1153 = vmatprep.mubr.bf16.mxu0 0
        %1154 = vmatmul.mubr.bf16.gmra.mrb[0].mxu0 %v1064
        %v1155 = vpop.f32.mrb[0].mxu0
        %v1156 = vadd.f32 0.0, %v1155
        %v1157 = vpop.f32.mrb[0].mxu0
        %v1158 = vpop.f32.mrb[0].mxu0
        %v1159 = vadd.f32 0.0, %v1158
        %v1160 = vpop.f32.mrb[0].mxu0
        %1161 = vmatprep.mubr.bf16.mxu0 0
        %1162 = vmatmul.mubr.bf16.gmra.mrb[0].mxu0 %v1067
        %v1163 = vpop.f32.mrb[0].mxu0
        %v1164 = vadd.f32 0.0, %v1163
        %v1165 = vpop.f32.mrb[0].mxu0
        %v1166 = vpop.f32.mrb[0].mxu0
        %v1167 = vadd.f32 0.0, %v1166
        %v1168 = vpop.f32.mrb[0].mxu0
        %1169 = vmatprep.mubr.bf16.mxu0 0
        %1170 = vmatmul.mubr.bf16.gmra.mrb[0].mxu0 %v1070
        %v1171 = vpop.f32.mrb[0].mxu0
        %v1172 = vadd.f32 0.0, %v1171
        %v1173 = vpop.f32.mrb[0].mxu0
        %v1174 = vpop.f32.mrb[0].mxu0
        %v1175 = vadd.f32 0.0, %v1174
        %v1176 = vpop.f32.mrb[0].mxu0
        %1177 = vmatprep.mubr.bf16.mxu0 0
        %1178 = vmatmul.mubr.bf16.gmra.mrb[0].mxu0 %v1073
        %v1179 = vpop.f32.mrb[0].mxu0
        %v1180 = vadd.f32 0.0, %v1179
        %v1181 = vpop.f32.mrb[0].mxu0
        %v1182 = vpop.f32.mrb[0].mxu0
        %v1183 = vadd.f32 0.0, %v1182
        %v1184 = vpop.f32.mrb[0].mxu0
        %1185 = vmatprep.mubr.bf16.mxu0 0
        %1186 = vmatmul.mubr.bf16.gmra.mrb[0].mxu0 %v1076
        %v1187 = vpop.f32.mrb[0].mxu0
        %v1188 = vadd.f32 0.0, %v1187
        %v1189 = vpop.f32.mrb[0].mxu0
        %v1190 = vpop.f32.mrb[0].mxu0
        %v1191 = vadd.f32 0.0, %v1190
        %v1192 = vpop.f32.mrb[0].mxu0
        %1193 = vmatprep.mubr.bf16.mxu0 0
        %1194 = vmatmul.mubr.bf16.gmra.mrb[0].mxu0 %v1079
        %v1195 = vpop.f32.mrb[0].mxu0
        %v1196 = vadd.f32 0.0, %v1195
        %v1197 = vpop.f32.mrb[0].mxu0
        %v1198 = vpop.f32.mrb[0].mxu0
        %v1199 = vadd.f32 0.0, %v1198
        %v1200 = vpop.f32.mrb[0].mxu0
        %1201 = vmatprep.mubr.bf16.mxu0 0
        %1202 = vmatmul.mubr.bf16.gmra.mrb[0].mxu0 %v1082
        %v1203 = vpop.f32.mrb[0].mxu0
        %v1204 = vadd.f32 0.0, %v1203
        %v1205 = vpop.f32.mrb[0].mxu0
        %v1206 = vpop.f32.mrb[0].mxu0
        %v1207 = vadd.f32 0.0, %v1206
        %v1208 = vpop.f32.mrb[0].mxu0
        %1209 = vmatprep.mubr.bf16.mxu0 0
        %1210 = vmatmul.mubr.bf16.gmra.mrb[0].mxu0 %v1085
        %v1211 = vpop.f32.mrb[0].mxu0
        %v1212 = vadd.f32 0.0, %v1211
        %v1213 = vpop.f32.mrb[0].mxu0
        %v1214 = vpop.f32.mrb[0].mxu0
        %v1215 = vadd.f32 0.0, %v1214
        %v1216 = vpop.f32.mrb[0].mxu0
        %1217 = vmatprep.mubr.bf16.mxu0 0
        %1218 = vmatmul.mubr.bf16.gmra.mrb[0].mxu0 %v1088
        %v1219 = vpop.f32.mrb[0].mxu0
        %v1220 = vadd.f32 0.0, %v1219
        %v1221 = vpop.f32.mrb[0].mxu0
        %v1222 = vpop.f32.mrb[0].mxu0
        %v1223 = vadd.f32 0.0, %v1222
        %v1224 = vpop.f32.mrb[0].mxu0
        %1225 = vmatprep.mubr.bf16.mxu0 0
        %1226 = vmatmul.mubr.bf16.gmra.mrb[0].mxu0 %v1091
        %v1227 = vpop.f32.mrb[0].mxu0
        %v1228 = vadd.f32 0.0, %v1227
        %v1229 = vpop.f32.mrb[0].mxu0
        %v1230 = vpop.f32.mrb[0].mxu0
        %v1231 = vadd.f32 0.0, %v1230
        %v1232 = vpop.f32.mrb[0].mxu0
        %1233 = vmatprep.mubr.bf16.mxu0 0
        %1234 = vmatmul.mubr.bf16.gmra.mrb[0].mxu0 %v1094
        %v1235 = vpop.f32.mrb[0].mxu0
        %v1236 = vadd.f32 0.0, %v1235
        %v1237 = vpop.f32.mrb[0].mxu0
        %v1238 = vpop.f32.mrb[0].mxu0
        %v1239 = vadd.f32 0.0, %v1238
        %v1240 = vpop.f32.mrb[0].mxu0
        %1241 = vmatprep.mubr.bf16.mxu0 0
        %1242 = vmatmul.mubr.bf16.gmra.mrb[0].mxu0 %v1097
        %v1243 = vpop.f32.mrb[0].mxu0
        %v1244 = vadd.f32 0.0, %v1243
        %v1245 = vpop.f32.mrb[0].mxu0
        %v1246 = vpop.f32.mrb[0].mxu0
        %v1247 = vadd.f32 0.0, %v1246
        %v1248 = vpop.f32.mrb[0].mxu0
        %1249 = vmatprep.mubr.bf16.mxu0 0
        %1250 = vmatmul.mubr.bf16.gmra.mrb[0].mxu0 %v1100
        %v1251 = vpop.f32.mrb[0].mxu0
        %v1252 = vadd.f32 0.0, %v1251
        %v1253 = vpop.f32.mrb[0].mxu0
        %v1254 = vpop.f32.mrb[0].mxu0
        %v1255 = vadd.f32 0.0, %v1254
        %v1256 = vpop.f32.mrb[0].mxu0
        %1257 = vmatprep.mubr.bf16.mxu0 0
        %1258 = vmatmul.mubr.bf16.gmra.mrb[0].mxu0 %v1103
        %v1259 = vpop.f32.mrb[0].mxu0
        %v1260 = vadd.f32 0.0, %v1259
        %v1261 = vpop.f32.mrb[0].mxu0
        %v1262 = vpop.f32.mrb[0].mxu0
        %v1263 = vadd.f32 0.0, %v1262
        %v1264 = vpop.f32.mrb[0].mxu0
        %1265 = vmatprep.mubr.bf16.mxu0 0
        %1266 = vmatmul.mubr.bf16.gmra.mrb[0].mxu0 %v1106
        %v1267 = vpop.f32.mrb[0].mxu0
        %v1268 = vadd.f32 0.0, %v1267
        %v1269 = vpop.f32.mrb[0].mxu0
        %v1270 = vpop.f32.mrb[0].mxu0
        %v1271 = vadd.f32 0.0, %v1270
        %v1272 = vpop.f32.mrb[0].mxu0
        %1273 = vmatprep.mubr.bf16.mxu0 0
        %1274 = vmatmul.mubr.bf16.gmra.mrb[0].mxu0 %v1109
        %v1275 = vpop.f32.mrb[0].mxu0
        %v1276 = vadd.f32 0.0, %v1275
        %v1277 = vpop.f32.mrb[0].mxu0
        %v1278 = vpop.f32.mrb[0].mxu0
        %v1279 = vadd.f32 0.0, %v1278
        %v1280 = vpop.f32.mrb[0].mxu0
        %1281 = vmatprep.mubr.bf16.mxu0 0
        %1282 = vmatmul.mubr.bf16.gmra.mrb[0].mxu0 %v1112
        %v1283 = vpop.f32.mrb[0].mxu0
        %v1284 = vadd.f32 0.0, %v1283
        %v1285 = vpop.f32.mrb[0].mxu0
        %v1286 = vpop.f32.mrb[0].mxu0
        %v1287 = vadd.f32 0.0, %v1286
        %v1288 = vpop.f32.mrb[0].mxu0
        %1289 = vmatprep.mubr.bf16.mxu0 0
        %1290 = vmatmul.mubr.bf16.gmra.mrb[0].mxu0 %v1115
        %v1291 = vpop.f32.mrb[0].mxu0
        %v1292 = vadd.f32 0.0, %v1291
        %v1293 = vpop.f32.mrb[0].mxu0
        %v1294 = vpop.f32.mrb[0].mxu0
        %v1295 = vadd.f32 0.0, %v1294
        %v1296 = vpop.f32.mrb[0].mxu0
        %1297 = vdwg.mxu0
        %v1298 = vsel %vm546, %v895, 0
        %v1300 = vsel %vm546, %v896, 0
        %v1302 = vsel %vm546, %v897, 0
        %v1304 = vsel %vm546, %v898, 0
        %v1306 = vsel %vm546, %v899, 0
        %v1308 = vsel %vm546, %v900, 0
        %v1310 = vsel %vm546, %v901, 0
        %v1312 = vsel %vm546, %v902, 0
        %v1314 = vsel %vm546, %v903, 0
        %v1316 = vsel %vm546, %v904, 0
        %v1318 = vsel %vm546, %v905, 0
        %v1320 = vsel %vm546, %v906, 0
        %v1322 = vsel %vm546, %v907, 0
        %v1324 = vsel %vm546, %v908, 0
        %v1326 = vsel %vm546, %v909, 0
        %v1328 = vsel %vm546, %v910, 0
        %v1330 = vsel %vm546, %v911, 0
        %v1332 = vsel %vm546, %v912, 0
        %v1335 = vsel %vm1117, %v817, 0
        %1337 = vmatprep.subr.bf16.mxu0 0
        %1338 = vmatpush1.bf16.msra.mxu0 %v1335
        %1339 = vmatprep.subr.bf16.mxu0 0
        %1340 = vmatpush1.bf16.msra.mxu0 0
        %1341 = vmatprep.subr.bf16.mxu0 0
        %1342 = vmatpush1.bf16.msra.mxu0 0
        %1343 = vmatprep.subr.bf16.mxu0 0
        %1344 = vmatpush1.bf16.msra.mxu0 0
        %1345 = vmatprep.subr.bf16.mxu0 0
        %1346 = vmatpush1.bf16.msra.mxu0 0
        %1347 = vmatprep.subr.bf16.mxu0 0
        %1348 = vmatpush1.bf16.msra.mxu0 0
        %1349 = vmatprep.subr.bf16.mxu0 0
        %1350 = vmatpush1.bf16.msra.mxu0 0
        %1351 = vmatprep.subr.bf16.mxu0 0
        %1352 = vmatpush1.bf16.msra.mxu0 0
        %1353 = vmatprep.subr.bf16.mxu0 0
        %1354 = vmatpush1.bf16.msra.mxu0 0
        %1355 = vmatprep.subr.bf16.mxu0 0
        %1356 = vmatpush1.bf16.msra.mxu0 0
        %1357 = vmatprep.subr.bf16.mxu0 0
        %1358 = vmatpush1.bf16.msra.mxu0 0
        %1359 = vmatprep.subr.bf16.mxu0 0
        %1360 = vmatpush1.bf16.msra.mxu0 0
        %1361 = vmatprep.subr.bf16.mxu0 0
        %1362 = vmatpush1.bf16.msra.mxu0 0
        %1363 = vmatprep.subr.bf16.mxu0 0
        %1364 = vmatpush1.bf16.msra.mxu0 0
        %1365 = vmatprep.subr.bf16.mxu0 0
        %1366 = vmatpush1.bf16.msra.mxu0 0
        %1367 = vmatprep.subr.bf16.mxu0 0
        %1368 = vmatpush1.bf16.msra.mxu0 0
        %1369 = vmatprep.mubr.bf16.mxu0 0
        %1370 = vmatmul.mubr.bf16.gmra.mrb[0].mxu0 %v1298
        %v1371 = vpop.f32.mrb[0].mxu0
        %v1372 = vadd.f32 %v1156, %v1371
        %v1373 = vpop.f32.mrb[0].mxu0
        %v1374 = vpop.f32.mrb[0].mxu0
        %v1375 = vadd.f32 %v1159, %v1374
        %v1376 = vpop.f32.mrb[0].mxu0
        %1377 = vmatprep.mubr.bf16.mxu0 0
        %1378 = vmatmul.mubr.bf16.gmra.mrb[0].mxu0 %v1300
        %v1379 = vpop.f32.mrb[0].mxu0
        %v1380 = vadd.f32 %v1164, %v1379
        %v1381 = vpop.f32.mrb[0].mxu0
        %v1382 = vpop.f32.mrb[0].mxu0
        %v1383 = vadd.f32 %v1167, %v1382
        %v1384 = vpop.f32.mrb[0].mxu0
        %1385 = vmatprep.mubr.bf16.mxu0 0
        %1386 = vmatmul.mubr.bf16.gmra.mrb[0].mxu0 %v1302
        %v1387 = vpop.f32.mrb[0].mxu0
        %v1388 = vadd.f32 %v1172, %v1387
        %v1389 = vpop.f32.mrb[0].mxu0
        %v1390 = vpop.f32.mrb[0].mxu0
        %v1391 = vadd.f32 %v1175, %v1390
        %v1392 = vpop.f32.mrb[0].mxu0
        %1393 = vmatprep.mubr.bf16.mxu0 0
        %1394 = vmatmul.mubr.bf16.gmra.mrb[0].mxu0 %v1304
        %v1395 = vpop.f32.mrb[0].mxu0
        %v1396 = vadd.f32 %v1180, %v1395
        %v1397 = vpop.f32.mrb[0].mxu0
        %v1398 = vpop.f32.mrb[0].mxu0
        %v1399 = vadd.f32 %v1183, %v1398
        %v1400 = vpop.f32.mrb[0].mxu0
        %1401 = vmatprep.mubr.bf16.mxu0 0
        %1402 = vmatmul.mubr.bf16.gmra.mrb[0].mxu0 %v1306
        %v1403 = vpop.f32.mrb[0].mxu0
        %v1404 = vadd.f32 %v1188, %v1403
        %v1405 = vpop.f32.mrb[0].mxu0
        %v1406 = vpop.f32.mrb[0].mxu0
        %v1407 = vadd.f32 %v1191, %v1406
        %v1408 = vpop.f32.mrb[0].mxu0
        %1409 = vmatprep.mubr.bf16.mxu0 0
        %1410 = vmatmul.mubr.bf16.gmra.mrb[0].mxu0 %v1308
        %v1411 = vpop.f32.mrb[0].mxu0
        %v1412 = vadd.f32 %v1196, %v1411
        %v1413 = vpop.f32.mrb[0].mxu0
        %v1414 = vpop.f32.mrb[0].mxu0
        %v1415 = vadd.f32 %v1199, %v1414
        %v1416 = vpop.f32.mrb[0].mxu0
        %1417 = vmatprep.mubr.bf16.mxu0 0
        %1418 = vmatmul.mubr.bf16.gmra.mrb[0].mxu0 %v1310
        %v1419 = vpop.f32.mrb[0].mxu0
        %v1420 = vadd.f32 %v1204, %v1419
        %v1421 = vpop.f32.mrb[0].mxu0
        %v1422 = vpop.f32.mrb[0].mxu0
        %v1423 = vadd.f32 %v1207, %v1422
        %v1424 = vpop.f32.mrb[0].mxu0
        %1425 = vmatprep.mubr.bf16.mxu0 0
        %1426 = vmatmul.mubr.bf16.gmra.mrb[0].mxu0 %v1312
        %v1427 = vpop.f32.mrb[0].mxu0
        %v1428 = vadd.f32 %v1212, %v1427
        %v1429 = vpop.f32.mrb[0].mxu0
        %v1430 = vpop.f32.mrb[0].mxu0
        %v1431 = vadd.f32 %v1215, %v1430
        %v1432 = vpop.f32.mrb[0].mxu0
        %1433 = vmatprep.mubr.bf16.mxu0 0
        %1434 = vmatmul.mubr.bf16.gmra.mrb[0].mxu0 %v1314
        %v1435 = vpop.f32.mrb[0].mxu0
        %v1436 = vadd.f32 %v1220, %v1435
        %v1437 = vpop.f32.mrb[0].mxu0
        %v1438 = vpop.f32.mrb[0].mxu0
        %v1439 = vadd.f32 %v1223, %v1438
        %v1440 = vpop.f32.mrb[0].mxu0
        %1441 = vmatprep.mubr.bf16.mxu0 0
        %1442 = vmatmul.mubr.bf16.gmra.mrb[0].mxu0 %v1316
        %v1443 = vpop.f32.mrb[0].mxu0
        %v1444 = vadd.f32 %v1228, %v1443
        %v1445 = vpop.f32.mrb[0].mxu0
        %v1446 = vpop.f32.mrb[0].mxu0
        %v1447 = vadd.f32 %v1231, %v1446
        %v1448 = vpop.f32.mrb[0].mxu0
        %1449 = vmatprep.mubr.bf16.mxu0 0
        %1450 = vmatmul.mubr.bf16.gmra.mrb[0].mxu0 %v1318
        %v1451 = vpop.f32.mrb[0].mxu0
        %v1452 = vadd.f32 %v1236, %v1451
        %v1453 = vpop.f32.mrb[0].mxu0
        %v1454 = vpop.f32.mrb[0].mxu0
        %v1455 = vadd.f32 %v1239, %v1454
        %v1456 = vpop.f32.mrb[0].mxu0
        %1457 = vmatprep.mubr.bf16.mxu0 0
        %1458 = vmatmul.mubr.bf16.gmra.mrb[0].mxu0 %v1320
        %v1459 = vpop.f32.mrb[0].mxu0
        %v1460 = vadd.f32 %v1244, %v1459
        %v1461 = vpop.f32.mrb[0].mxu0
        %v1462 = vpop.f32.mrb[0].mxu0
        %v1463 = vadd.f32 %v1247, %v1462
        %v1464 = vpop.f32.mrb[0].mxu0
        %1465 = vmatprep.mubr.bf16.mxu0 0
        %1466 = vmatmul.mubr.bf16.gmra.mrb[0].mxu0 %v1322
        %v1467 = vpop.f32.mrb[0].mxu0
        %v1468 = vadd.f32 %v1252, %v1467
        %v1469 = vpop.f32.mrb[0].mxu0
        %v1470 = vpop.f32.mrb[0].mxu0
        %v1471 = vadd.f32 %v1255, %v1470
        %v1472 = vpop.f32.mrb[0].mxu0
        %1473 = vmatprep.mubr.bf16.mxu0 0
        %1474 = vmatmul.mubr.bf16.gmra.mrb[0].mxu0 %v1324
        %v1475 = vpop.f32.mrb[0].mxu0
        %v1476 = vadd.f32 %v1260, %v1475
        %v1477 = vpop.f32.mrb[0].mxu0
        %v1478 = vpop.f32.mrb[0].mxu0
        %v1479 = vadd.f32 %v1263, %v1478
        %v1480 = vpop.f32.mrb[0].mxu0
        %1481 = vmatprep.mubr.bf16.mxu0 0
        %1482 = vmatmul.mubr.bf16.gmra.mrb[0].mxu0 %v1326
        %v1483 = vpop.f32.mrb[0].mxu0
        %v1484 = vadd.f32 %v1268, %v1483
        %v1485 = vpop.f32.mrb[0].mxu0
        %v1486 = vpop.f32.mrb[0].mxu0
        %v1487 = vadd.f32 %v1271, %v1486
        %v1488 = vpop.f32.mrb[0].mxu0
        %1489 = vmatprep.mubr.bf16.mxu0 0
        %1490 = vmatmul.mubr.bf16.gmra.mrb[0].mxu0 %v1328
        %v1491 = vpop.f32.mrb[0].mxu0
        %v1492 = vadd.f32 %v1276, %v1491
        %v1493 = vpop.f32.mrb[0].mxu0
        %v1494 = vpop.f32.mrb[0].mxu0
        %v1495 = vadd.f32 %v1279, %v1494
        %v1496 = vpop.f32.mrb[0].mxu0
        %1497 = vmatprep.mubr.bf16.mxu0 0
        %1498 = vmatmul.mubr.bf16.gmra.mrb[0].mxu0 %v1330
        %v1499 = vpop.f32.mrb[0].mxu0
        %v1500 = vadd.f32 %v1284, %v1499
        %v1501 = vpop.f32.mrb[0].mxu0
        %v1502 = vpop.f32.mrb[0].mxu0
        %v1503 = vadd.f32 %v1287, %v1502
        %v1504 = vpop.f32.mrb[0].mxu0
        %1505 = vmatprep.mubr.bf16.mxu0 0
        %1506 = vmatmul.mubr.bf16.gmra.mrb[0].mxu0 %v1332
        %v1507 = vpop.f32.mrb[0].mxu0
        %v1508 = vadd.f32 %v1292, %v1507
        %v1509 = vpop.f32.mrb[0].mxu0
        %v1510 = vpop.f32.mrb[0].mxu0
        %v1511 = vadd.f32 %v1295, %v1510
        %v1512 = vpop.f32.mrb[0].mxu0
        %1513 = vdwg.mxu0
        %v1514 = vld [vmem:[#allocation2] sm:$0xe]
        %s1515 = scalar_lea.vmem [#allocation7], 8
        %v1516 = vld [vmem:[%s1515] sm:$0xf]
        %v1518 = vunpack.c.l.b16 %v1514
        %v1519 = vpack.c.b16 %v859, %v1518
        %vm1520 = vcmask 1046528
        %v1521 = vrot.slane %v1519, 1
        %v1522 = vrot.slane %v896, 1
        %v1523 = vsel %vm1520, %v1521, %v1522
        %v1524 = vrot.slane %v897, 1
        %v1525 = vsel %vm1520, %v1522, %v1524
        %v1526 = vrot.slane %v898, 1
        %v1527 = vsel %vm1520, %v1524, %v1526
        %v1528 = vrot.slane %v899, 1
        %v1529 = vsel %vm1520, %v1526, %v1528
        %v1530 = vrot.slane %v900, 1
        %v1531 = vsel %vm1520, %v1528, %v1530
        %v1532 = vrot.slane %v901, 1
        %v1533 = vsel %vm1520, %v1530, %v1532
        %v1534 = vrot.slane %v902, 1
        %v1535 = vsel %vm1520, %v1532, %v1534
        %v1536 = vrot.slane %v903, 1
        %v1537 = vsel %vm1520, %v1534, %v1536
        %v1538 = vrot.slane %v904, 1
        %v1539 = vsel %vm1520, %v1536, %v1538
        %v1540 = vrot.slane %v905, 1
        %v1541 = vsel %vm1520, %v1538, %v1540
        %v1542 = vrot.slane %v906, 1
        %v1543 = vsel %vm1520, %v1540, %v1542
        %v1544 = vrot.slane %v907, 1
        %v1545 = vsel %vm1520, %v1542, %v1544
        %v1546 = vrot.slane %v908, 1
        %v1547 = vsel %vm1520, %v1544, %v1546
        %v1548 = vrot.slane %v909, 1
        %v1549 = vsel %vm1520, %v1546, %v1548
        %v1550 = vrot.slane %v910, 1
        %v1551 = vsel %vm1520, %v1548, %v1550
        %v1552 = vrot.slane %v911, 1
        %v1553 = vsel %vm1520, %v1550, %v1552
        %v1554 = vrot.slane %v912, 1
        %v1555 = vsel %vm1520, %v1552, %v1554
        %v1556 = vrot.slane %v913, 1
        %v1557 = vsel %vm1520, %v1554, %v1556
        %v1559 = vsel %vm546, %v1523, 0
        %v1562 = vsel %vm546, %v1525, 0
        %v1565 = vsel %vm546, %v1527, 0
        %v1568 = vsel %vm546, %v1529, 0
        %v1571 = vsel %vm546, %v1531, 0
        %v1574 = vsel %vm546, %v1533, 0
        %v1577 = vsel %vm546, %v1535, 0
        %v1580 = vsel %vm546, %v1537, 0
        %v1583 = vsel %vm546, %v1539, 0
        %v1586 = vsel %vm546, %v1541, 0
        %v1589 = vsel %vm546, %v1543, 0
        %v1592 = vsel %vm546, %v1545, 0
        %v1595 = vsel %vm546, %v1547, 0
        %v1598 = vsel %vm546, %v1549, 0
        %v1601 = vsel %vm546, %v1551, 0
        %v1604 = vsel %vm546, %v1553, 0
        %v1607 = vsel %vm546, %v1555, 0
        %v1610 = vsel %vm546, %v1557, 0
        %v1613 = vsel %vm1117, %v1516, 0
        %1615 = vmatprep.subr.bf16.mxu0 0
        %1616 = vmatpush1.bf16.msra.mxu0 %v1613
        %1617 = vmatprep.subr.bf16.mxu0 0
        %1618 = vmatpush1.bf16.msra.mxu0 0
        %1619 = vmatprep.subr.bf16.mxu0 0
        %1620 = vmatpush1.bf16.msra.mxu0 0
        %1621 = vmatprep.subr.bf16.mxu0 0
        %1622 = vmatpush1.bf16.msra.mxu0 0
        %1623 = vmatprep.subr.bf16.mxu0 0
        %1624 = vmatpush1.bf16.msra.mxu0 0
        %1625 = vmatprep.subr.bf16.mxu0 0
        %1626 = vmatpush1.bf16.msra.mxu0 0
        %1627 = vmatprep.subr.bf16.mxu0 0
        %1628 = vmatpush1.bf16.msra.mxu0 0
        %1629 = vmatprep.subr.bf16.mxu0 0
        %1630 = vmatpush1.bf16.msra.mxu0 0
        %1631 = vmatprep.subr.bf16.mxu0 0
        %1632 = vmatpush1.bf16.msra.mxu0 0
        %1633 = vmatprep.subr.bf16.mxu0 0
        %1634 = vmatpush1.bf16.msra.mxu0 0
        %1635 = vmatprep.subr.bf16.mxu0 0
        %1636 = vmatpush1.bf16.msra.mxu0 0
        %1637 = vmatprep.subr.bf16.mxu0 0
        %1638 = vmatpush1.bf16.msra.mxu0 0
        %1639 = vmatprep.subr.bf16.mxu0 0
        %1640 = vmatpush1.bf16.msra.mxu0 0
        %1641 = vmatprep.subr.bf16.mxu0 0
        %1642 = vmatpush1.bf16.msra.mxu0 0
        %1643 = vmatprep.subr.bf16.mxu0 0
        %1644 = vmatpush1.bf16.msra.mxu0 0
        %1645 = vmatprep.subr.bf16.mxu0 0
        %1646 = vmatpush1.bf16.msra.mxu0 0
        %1647 = vmatprep.mubr.bf16.mxu0 0
        %1648 = vmatmul.mubr.bf16.gmra.mrb[0].mxu0 %v1559
        %v1649 = vpop.f32.mrb[0].mxu0
        %v1650 = vadd.f32 0.0, %v1649
        %v1651 = vpop.f32.mrb[0].mxu0
        %v1652 = vpop.f32.mrb[0].mxu0
        %v1653 = vadd.f32 0.0, %v1652
        %v1654 = vpop.f32.mrb[0].mxu0
        %1655 = vmatprep.mubr.bf16.mxu0 0
        %1656 = vmatmul.mubr.bf16.gmra.mrb[0].mxu0 %v1562
        %v1657 = vpop.f32.mrb[0].mxu0
        %v1658 = vadd.f32 0.0, %v1657
        %v1659 = vpop.f32.mrb[0].mxu0
        %v1660 = vpop.f32.mrb[0].mxu0
        %v1661 = vadd.f32 0.0, %v1660
        %v1662 = vpop.f32.mrb[0].mxu0
        %1663 = vmatprep.mubr.bf16.mxu0 0
        %1664 = vmatmul.mubr.bf16.gmra.mrb[0].mxu0 %v1565
        %v1665 = vpop.f32.mrb[0].mxu0
        %v1666 = vadd.f32 0.0, %v1665
        %v1667 = vpop.f32.mrb[0].mxu0
        %v1668 = vpop.f32.mrb[0].mxu0
        %v1669 = vadd.f32 0.0, %v1668
        %v1670 = vpop.f32.mrb[0].mxu0
        %1671 = vmatprep.mubr.bf16.mxu0 0
        %1672 = vmatmul.mubr.bf16.gmra.mrb[0].mxu0 %v1568
        %v1673 = vpop.f32.mrb[0].mxu0
        %v1674 = vadd.f32 0.0, %v1673
        %v1675 = vpop.f32.mrb[0].mxu0
        %v1676 = vpop.f32.mrb[0].mxu0
        %v1677 = vadd.f32 0.0, %v1676
        %v1678 = vpop.f32.mrb[0].mxu0
        %1679 = vmatprep.mubr.bf16.mxu0 0
        %1680 = vmatmul.mubr.bf16.gmra.mrb[0].mxu0 %v1571
        %v1681 = vpop.f32.mrb[0].mxu0
        %v1682 = vadd.f32 0.0, %v1681
        %v1683 = vpop.f32.mrb[0].mxu0
        %v1684 = vpop.f32.mrb[0].mxu0
        %v1685 = vadd.f32 0.0, %v1684
        %v1686 = vpop.f32.mrb[0].mxu0
        %1687 = vmatprep.mubr.bf16.mxu0 0
        %1688 = vmatmul.mubr.bf16.gmra.mrb[0].mxu0 %v1574
        %v1689 = vpop.f32.mrb[0].mxu0
        %v1690 = vadd.f32 0.0, %v1689
        %v1691 = vpop.f32.mrb[0].mxu0
        %v1692 = vpop.f32.mrb[0].mxu0
        %v1693 = vadd.f32 0.0, %v1692
        %v1694 = vpop.f32.mrb[0].mxu0
        %1695 = vmatprep.mubr.bf16.mxu0 0
        %1696 = vmatmul.mubr.bf16.gmra.mrb[0].mxu0 %v1577
        %v1697 = vpop.f32.mrb[0].mxu0
        %v1698 = vadd.f32 0.0, %v1697
        %v1699 = vpop.f32.mrb[0].mxu0
        %v1700 = vpop.f32.mrb[0].mxu0
        %v1701 = vadd.f32 0.0, %v1700
        %v1702 = vpop.f32.mrb[0].mxu0
        %1703 = vmatprep.mubr.bf16.mxu0 0
        %1704 = vmatmul.mubr.bf16.gmra.mrb[0].mxu0 %v1580
        %v1705 = vpop.f32.mrb[0].mxu0
        %v1706 = vadd.f32 0.0, %v1705
        %v1707 = vpop.f32.mrb[0].mxu0
        %v1708 = vpop.f32.mrb[0].mxu0
        %v1709 = vadd.f32 0.0, %v1708
        %v1710 = vpop.f32.mrb[0].mxu0
        %1711 = vmatprep.mubr.bf16.mxu0 0
        %1712 = vmatmul.mubr.bf16.gmra.mrb[0].mxu0 %v1583
        %v1713 = vpop.f32.mrb[0].mxu0
        %v1714 = vadd.f32 0.0, %v1713
        %v1715 = vpop.f32.mrb[0].mxu0
        %v1716 = vpop.f32.mrb[0].mxu0
        %v1717 = vadd.f32 0.0, %v1716
        %v1718 = vpop.f32.mrb[0].mxu0
        %1719 = vmatprep.mubr.bf16.mxu0 0
        %1720 = vmatmul.mubr.bf16.gmra.mrb[0].mxu0 %v1586
        %v1721 = vpop.f32.mrb[0].mxu0
        %v1722 = vadd.f32 0.0, %v1721
        %v1723 = vpop.f32.mrb[0].mxu0
        %v1724 = vpop.f32.mrb[0].mxu0
        %v1725 = vadd.f32 0.0, %v1724
        %v1726 = vpop.f32.mrb[0].mxu0
        %1727 = vmatprep.mubr.bf16.mxu0 0
        %1728 = vmatmul.mubr.bf16.gmra.mrb[0].mxu0 %v1589
        %v1729 = vpop.f32.mrb[0].mxu0
        %v1730 = vadd.f32 0.0, %v1729
        %v1731 = vpop.f32.mrb[0].mxu0
        %v1732 = vpop.f32.mrb[0].mxu0
        %v1733 = vadd.f32 0.0, %v1732
        %v1734 = vpop.f32.mrb[0].mxu0
        %1735 = vmatprep.mubr.bf16.mxu0 0
        %1736 = vmatmul.mubr.bf16.gmra.mrb[0].mxu0 %v1592
        %v1737 = vpop.f32.mrb[0].mxu0
        %v1738 = vadd.f32 0.0, %v1737
        %v1739 = vpop.f32.mrb[0].mxu0
        %v1740 = vpop.f32.mrb[0].mxu0
        %v1741 = vadd.f32 0.0, %v1740
        %v1742 = vpop.f32.mrb[0].mxu0
        %1743 = vmatprep.mubr.bf16.mxu0 0
        %1744 = vmatmul.mubr.bf16.gmra.mrb[0].mxu0 %v1595
        %v1745 = vpop.f32.mrb[0].mxu0
        %v1746 = vadd.f32 0.0, %v1745
        %v1747 = vpop.f32.mrb[0].mxu0
        %v1748 = vpop.f32.mrb[0].mxu0
        %v1749 = vadd.f32 0.0, %v1748
        %v1750 = vpop.f32.mrb[0].mxu0
        %1751 = vmatprep.mubr.bf16.mxu0 0
        %1752 = vmatmul.mubr.bf16.gmra.mrb[0].mxu0 %v1598
        %v1753 = vpop.f32.mrb[0].mxu0
        %v1754 = vadd.f32 0.0, %v1753
        %v1755 = vpop.f32.mrb[0].mxu0
        %v1756 = vpop.f32.mrb[0].mxu0
        %v1757 = vadd.f32 0.0, %v1756
        %v1758 = vpop.f32.mrb[0].mxu0
        %1759 = vmatprep.mubr.bf16.mxu0 0
        %1760 = vmatmul.mubr.bf16.gmra.mrb[0].mxu0 %v1601
        %v1761 = vpop.f32.mrb[0].mxu0
        %v1762 = vadd.f32 0.0, %v1761
        %v1763 = vpop.f32.mrb[0].mxu0
        %v1764 = vpop.f32.mrb[0].mxu0
        %v1765 = vadd.f32 0.0, %v1764
        %v1766 = vpop.f32.mrb[0].mxu0
        %1767 = vmatprep.mubr.bf16.mxu0 0
        %1768 = vmatmul.mubr.bf16.gmra.mrb[0].mxu0 %v1604
        %v1769 = vpop.f32.mrb[0].mxu0
        %v1770 = vadd.f32 0.0, %v1769
        %v1771 = vpop.f32.mrb[0].mxu0
        %v1772 = vpop.f32.mrb[0].mxu0
        %v1773 = vadd.f32 0.0, %v1772
        %v1774 = vpop.f32.mrb[0].mxu0
        %1775 = vmatprep.mubr.bf16.mxu0 0
        %1776 = vmatmul.mubr.bf16.gmra.mrb[0].mxu0 %v1607
        %v1777 = vpop.f32.mrb[0].mxu0
        %v1778 = vadd.f32 0.0, %v1777
        %v1779 = vpop.f32.mrb[0].mxu0
        %v1780 = vpop.f32.mrb[0].mxu0
        %v1781 = vadd.f32 0.0, %v1780
        %v1782 = vpop.f32.mrb[0].mxu0
        %1783 = vmatprep.mubr.bf16.mxu0 0
        %1784 = vmatmul.mubr.bf16.gmra.mrb[0].mxu0 %v1610
        %v1785 = vpop.f32.mrb[0].mxu0
        %v1786 = vadd.f32 0.0, %v1785
        %v1787 = vpop.f32.mrb[0].mxu0
        %v1788 = vpop.f32.mrb[0].mxu0
        %v1789 = vadd.f32 0.0, %v1788
        %v1790 = vpop.f32.mrb[0].mxu0
        %1791 = vdwg.mxu0
        %v1792 = vadd.f32 %v1372, %v1650
        %v1793 = vadd.f32 %v1375, %v1653
        %v1794 = vadd.f32 %v1380, %v1658
        %v1795 = vadd.f32 %v1383, %v1661
        %v1796 = vadd.f32 %v1388, %v1666
        %v1797 = vadd.f32 %v1391, %v1669
        %v1798 = vadd.f32 %v1396, %v1674
        %v1799 = vadd.f32 %v1399, %v1677
        %v1800 = vadd.f32 %v1404, %v1682
        %v1801 = vadd.f32 %v1407, %v1685
        %v1802 = vadd.f32 %v1412, %v1690
        %v1803 = vadd.f32 %v1415, %v1693
        %v1804 = vadd.f32 %v1420, %v1698
        %v1805 = vadd.f32 %v1423, %v1701
        %v1806 = vadd.f32 %v1428, %v1706
        %v1807 = vadd.f32 %v1431, %v1709
        %v1808 = vadd.f32 %v1436, %v1714
        %v1809 = vadd.f32 %v1439, %v1717
        %v1810 = vadd.f32 %v1444, %v1722
        %v1811 = vadd.f32 %v1447, %v1725
        %v1812 = vadd.f32 %v1452, %v1730
        %v1813 = vadd.f32 %v1455, %v1733
        %v1814 = vadd.f32 %v1460, %v1738
        %v1815 = vadd.f32 %v1463, %v1741
        %v1816 = vadd.f32 %v1468, %v1746
        %v1817 = vadd.f32 %v1471, %v1749
        %v1818 = vadd.f32 %v1476, %v1754
        %v1819 = vadd.f32 %v1479, %v1757
        %v1820 = vadd.f32 %v1484, %v1762
        %v1821 = vadd.f32 %v1487, %v1765
        %v1822 = vadd.f32 %v1492, %v1770
        %v1823 = vadd.f32 %v1495, %v1773
        %v1824 = vadd.f32 %v1500, %v1778
        %v1825 = vadd.f32 %v1503, %v1781
        %v1826 = vadd.f32 %v1508, %v1786
        %v1827 = vadd.f32 %v1511, %v1789
        %v1828 = vld [vmem:[#allocation2 + $0x8] sm:$0xe]
        %v1829 = vld [vmem:[#allocation2 + $0xc] sm:$0xf]
        %v1830 = vld [vmem:[#allocation2 + $0x10] sm:$0xf]
        %v1831 = vld [vmem:[#allocation2 + $0x14] sm:$0xf]
        %v1832 = vld [vmem:[#allocation2 + $0x18] sm:$0xf]
        %v1833 = vld [vmem:[#allocation2 + $0x1c] sm:$0xf]
        %v1834 = vld [vmem:[#allocation2 + $0x20] sm:$0xf]
        %v1835 = vld [vmem:[#allocation2 + $0x24] sm:$0xf]
        %v1836 = vld [vmem:[#allocation2 + $0x28] sm:$0xf]
        %v1837 = vld [vmem:[#allocation2 + $0x2c] sm:$0xf]
        %v1838 = vld [vmem:[#allocation2 + $0x30] sm:$0xf]
        %v1839 = vld [vmem:[#allocation2 + $0x34] sm:$0xf]
        %v1840 = vld [vmem:[#allocation2 + $0x38] sm:$0xf]
        %v1841 = vld [vmem:[#allocation2 + $0x3c] sm:$0xf]
        %v1842 = vld [vmem:[#allocation2 + $0x40] sm:$0xf]
        %v1843 = vld [vmem:[#allocation2 + $0x44] sm:$0xf]
        %v1844 = vld [vmem:[#allocation2 + $0x48] sm:$0xf]
        %v1845 = vld [vmem:[#allocation2 + $0x4c] sm:$0xf]
        %v1846 = vld [vmem:[#allocation2 + $0x50] sm:$0xf]
        %v1847 = vld [vmem:[#allocation2 + $0x54] sm:$0xf]
        %v1848 = vld [vmem:[#allocation2 + $0x58] sm:$0xf]
        %v1849 = vld [vmem:[#allocation2 + $0x5c] sm:$0xf]
        %v1850 = vld [vmem:[#allocation2 + $0x60] sm:$0xf]
        %v1851 = vld [vmem:[#allocation2 + $0x64] sm:$0xf]
        %v1852 = vld [vmem:[#allocation2 + $0x68] sm:$0xf]
        %v1853 = vld [vmem:[#allocation2 + $0x6c] sm:$0xf]
        %v1854 = vld [vmem:[#allocation2 + $0x70] sm:$0xf]
        %v1855 = vld [vmem:[#allocation2 + $0x74] sm:$0xf]
        %v1856 = vld [vmem:[#allocation2 + $0x78] sm:$0xf]
        %v1857 = vld [vmem:[#allocation2 + $0x7c] sm:$0xf]
        %v1858 = vld [vmem:[#allocation2 + $0x80] sm:$0xf]
        %v1859 = vld [vmem:[#allocation2 + $0x84] sm:$0xf]
        %v1860 = vld [vmem:[#allocation2 + $0x88] sm:$0xf]
        %v1861 = vld [vmem:[#allocation2 + $0x8c] sm:$0xf]
        %v1862 = vld [vmem:[#allocation2 + $0x90] sm:$0xf]
        %v1863 = vld [vmem:[#allocation2 + $0x94] sm:$0xf]
        %v1864 = vld [vmem:[#allocation2 + $0x98] sm:$0x1]
        %s1865 = scalar_lea.vmem [#allocation7], 12
        %v1866 = vld [vmem:[%s1865] sm:$0xf]
        %v1904 = vunpack.c.l.b16 %v1828
        %v1905 = vunpack.c.l.b16 %v1829
        %v1906 = vunpack.c.l.b16 %v1830
        %v1907 = vunpack.c.l.b16 %v1831
        %v1908 = vunpack.c.l.b16 %v1832
        %v1909 = vunpack.c.l.b16 %v1833
        %v1910 = vunpack.c.l.b16 %v1834
        %v1911 = vunpack.c.l.b16 %v1835
        %v1912 = vunpack.c.l.b16 %v1836
        %v1913 = vunpack.c.l.b16 %v1837
        %v1914 = vunpack.c.l.b16 %v1838
        %v1915 = vunpack.c.l.b16 %v1839
        %v1916 = vunpack.c.l.b16 %v1840
        %v1917 = vunpack.c.l.b16 %v1841
        %v1918 = vunpack.c.l.b16 %v1842
        %v1919 = vunpack.c.l.b16 %v1843
        %v1920 = vunpack.c.l.b16 %v1844
        %v1921 = vunpack.c.l.b16 %v1845
        %v1922 = vunpack.c.l.b16 %v1846
        %v1923 = vunpack.c.l.b16 %v1847
        %v1924 = vunpack.c.l.b16 %v1848
        %v1925 = vunpack.c.l.b16 %v1849
        %v1926 = vunpack.c.l.b16 %v1850
        %v1927 = vunpack.c.l.b16 %v1851
        %v1928 = vunpack.c.l.b16 %v1852
        %v1929 = vunpack.c.l.b16 %v1853
        %v1930 = vunpack.c.l.b16 %v1854
        %v1931 = vunpack.c.l.b16 %v1855
        %v1932 = vunpack.c.l.b16 %v1856
        %v1933 = vunpack.c.l.b16 %v1857
        %v1934 = vunpack.c.l.b16 %v1858
        %v1935 = vunpack.c.l.b16 %v1859
        %v1936 = vunpack.c.l.b16 %v1860
        %v1937 = vunpack.c.l.b16 %v1861
        %v1938 = vunpack.c.l.b16 %v1862
        %v1939 = vunpack.c.l.b16 %v1863
        %v1940 = vunpack.c.l.b16 %v1864
        %v1941 = vpack.c.b16 %v1905, %v1904
        %v1942 = vpack.c.b16 %v1907, %v1906
        %v1943 = vpack.c.b16 %v1909, %v1908
        %v1944 = vpack.c.b16 %v1911, %v1910
        %v1945 = vpack.c.b16 %v1913, %v1912
        %v1946 = vpack.c.b16 %v1915, %v1914
        %v1947 = vpack.c.b16 %v1917, %v1916
        %v1948 = vpack.c.b16 %v1919, %v1918
        %v1949 = vpack.c.b16 %v1921, %v1920
        %v1950 = vpack.c.b16 %v1923, %v1922
        %v1951 = vpack.c.b16 %v1925, %v1924
        %v1952 = vpack.c.b16 %v1927, %v1926
        %v1953 = vpack.c.b16 %v1929, %v1928
        %v1954 = vpack.c.b16 %v1931, %v1930
        %v1955 = vpack.c.b16 %v1933, %v1932
        %v1956 = vpack.c.b16 %v1935, %v1934
        %v1957 = vpack.c.b16 %v1937, %v1936
        %v1958 = vpack.c.b16 %v1939, %v1938
        %v1959 = vpack.c.b16 %v1940, %v1940
        %v1960 = vrot.slane %v1941, 1
        %v1961 = vrot.slane %v1942, 1
        %v1962 = vsel %vm1520, %v1960, %v1961
        %v1963 = vrot.slane %v1943, 1
        %v1964 = vsel %vm1520, %v1961, %v1963
        %v1965 = vrot.slane %v1944, 1
        %v1966 = vsel %vm1520, %v1963, %v1965
        %v1967 = vrot.slane %v1945, 1
        %v1968 = vsel %vm1520, %v1965, %v1967
        %v1969 = vrot.slane %v1946, 1
        %v1970 = vsel %vm1520, %v1967, %v1969
        %v1971 = vrot.slane %v1947, 1
        %v1972 = vsel %vm1520, %v1969, %v1971
        %v1973 = vrot.slane %v1948, 1
        %v1974 = vsel %vm1520, %v1971, %v1973
        %v1975 = vrot.slane %v1949, 1
        %v1976 = vsel %vm1520, %v1973, %v1975
        %v1977 = vrot.slane %v1950, 1
        %v1978 = vsel %vm1520, %v1975, %v1977
        %v1979 = vrot.slane %v1951, 1
        %v1980 = vsel %vm1520, %v1977, %v1979
        %v1981 = vrot.slane %v1952, 1
        %v1982 = vsel %vm1520, %v1979, %v1981
        %v1983 = vrot.slane %v1953, 1
        %v1984 = vsel %vm1520, %v1981, %v1983
        %v1985 = vrot.slane %v1954, 1
        %v1986 = vsel %vm1520, %v1983, %v1985
        %v1987 = vrot.slane %v1955, 1
        %v1988 = vsel %vm1520, %v1985, %v1987
        %v1989 = vrot.slane %v1956, 1
        %v1990 = vsel %vm1520, %v1987, %v1989
        %v1991 = vrot.slane %v1957, 1
        %v1992 = vsel %vm1520, %v1989, %v1991
        %v1993 = vrot.slane %v1958, 1
        %v1994 = vsel %vm1520, %v1991, %v1993
        %v1995 = vrot.slane %v1959, 1
        %v1996 = vsel %vm1520, %v1993, %v1995
        %v1998 = vsel %vm546, %v1962, 0
        %v2001 = vsel %vm546, %v1964, 0
        %v2004 = vsel %vm546, %v1966, 0
        %v2007 = vsel %vm546, %v1968, 0
        %v2010 = vsel %vm546, %v1970, 0
        %v2013 = vsel %vm546, %v1972, 0
        %v2016 = vsel %vm546, %v1974, 0
        %v2019 = vsel %vm546, %v1976, 0
        %v2022 = vsel %vm546, %v1978, 0
        %v2025 = vsel %vm546, %v1980, 0
        %v2028 = vsel %vm546, %v1982, 0
        %v2031 = vsel %vm546, %v1984, 0
        %v2034 = vsel %vm546, %v1986, 0
        %v2037 = vsel %vm546, %v1988, 0
        %v2040 = vsel %vm546, %v1990, 0
        %v2043 = vsel %vm546, %v1992, 0
        %v2046 = vsel %vm546, %v1994, 0
        %v2049 = vsel %vm546, %v1996, 0
        %v2052 = vsel %vm1117, %v1866, 0
        %2054 = vmatprep.subr.bf16.mxu0 0
        %2055 = vmatpush1.bf16.msra.mxu0 %v2052
        %2056 = vmatprep.subr.bf16.mxu0 0
        %2057 = vmatpush1.bf16.msra.mxu0 0
        %2058 = vmatprep.subr.bf16.mxu0 0
        %2059 = vmatpush1.bf16.msra.mxu0 0
        %2060 = vmatprep.subr.bf16.mxu0 0
        %2061 = vmatpush1.bf16.msra.mxu0 0
        %2062 = vmatprep.subr.bf16.mxu0 0
        %2063 = vmatpush1.bf16.msra.mxu0 0
        %2064 = vmatprep.subr.bf16.mxu0 0
        %2065 = vmatpush1.bf16.msra.mxu0 0
        %2066 = vmatprep.subr.bf16.mxu0 0
        %2067 = vmatpush1.bf16.msra.mxu0 0
        %2068 = vmatprep.subr.bf16.mxu0 0
        %2069 = vmatpush1.bf16.msra.mxu0 0
        %2070 = vmatprep.subr.bf16.mxu0 0
        %2071 = vmatpush1.bf16.msra.mxu0 0
        %2072 = vmatprep.subr.bf16.mxu0 0
        %2073 = vmatpush1.bf16.msra.mxu0 0
        %2074 = vmatprep.subr.bf16.mxu0 0
        %2075 = vmatpush1.bf16.msra.mxu0 0
        %2076 = vmatprep.subr.bf16.mxu0 0
        %2077 = vmatpush1.bf16.msra.mxu0 0
        %2078 = vmatprep.subr.bf16.mxu0 0
        %2079 = vmatpush1.bf16.msra.mxu0 0
        %2080 = vmatprep.subr.bf16.mxu0 0
        %2081 = vmatpush1.bf16.msra.mxu0 0
        %2082 = vmatprep.subr.bf16.mxu0 0
        %2083 = vmatpush1.bf16.msra.mxu0 0
        %2084 = vmatprep.subr.bf16.mxu0 0
        %2085 = vmatpush1.bf16.msra.mxu0 0
        %2086 = vmatprep.mubr.bf16.mxu0 0
        %2087 = vmatmul.mubr.bf16.gmra.mrb[0].mxu0 %v1998
        %v2088 = vpop.f32.mrb[0].mxu0
        %v2089 = vadd.f32 0.0, %v2088
        %v2090 = vpop.f32.mrb[0].mxu0
        %v2091 = vpop.f32.mrb[0].mxu0
        %v2092 = vadd.f32 0.0, %v2091
        %v2093 = vpop.f32.mrb[0].mxu0
        %2094 = vmatprep.mubr.bf16.mxu0 0
        %2095 = vmatmul.mubr.bf16.gmra.mrb[0].mxu0 %v2001
        %v2096 = vpop.f32.mrb[0].mxu0
        %v2097 = vadd.f32 0.0, %v2096
        %v2098 = vpop.f32.mrb[0].mxu0
        %v2099 = vpop.f32.mrb[0].mxu0
        %v2100 = vadd.f32 0.0, %v2099
        %v2101 = vpop.f32.mrb[0].mxu0
        %2102 = vmatprep.mubr.bf16.mxu0 0
        %2103 = vmatmul.mubr.bf16.gmra.mrb[0].mxu0 %v2004
        %v2104 = vpop.f32.mrb[0].mxu0
        %v2105 = vadd.f32 0.0, %v2104
        %v2106 = vpop.f32.mrb[0].mxu0
        %v2107 = vpop.f32.mrb[0].mxu0
        %v2108 = vadd.f32 0.0, %v2107
        %v2109 = vpop.f32.mrb[0].mxu0
        %2110 = vmatprep.mubr.bf16.mxu0 0
        %2111 = vmatmul.mubr.bf16.gmra.mrb[0].mxu0 %v2007
        %v2112 = vpop.f32.mrb[0].mxu0
        %v2113 = vadd.f32 0.0, %v2112
        %v2114 = vpop.f32.mrb[0].mxu0
        %v2115 = vpop.f32.mrb[0].mxu0
        %v2116 = vadd.f32 0.0, %v2115
        %v2117 = vpop.f32.mrb[0].mxu0
        %2118 = vmatprep.mubr.bf16.mxu0 0
        %2119 = vmatmul.mubr.bf16.gmra.mrb[0].mxu0 %v2010
        %v2120 = vpop.f32.mrb[0].mxu0
        %v2121 = vadd.f32 0.0, %v2120
        %v2122 = vpop.f32.mrb[0].mxu0
        %v2123 = vpop.f32.mrb[0].mxu0
        %v2124 = vadd.f32 0.0, %v2123
        %v2125 = vpop.f32.mrb[0].mxu0
        %2126 = vmatprep.mubr.bf16.mxu0 0
        %2127 = vmatmul.mubr.bf16.gmra.mrb[0].mxu0 %v2013
        %v2128 = vpop.f32.mrb[0].mxu0
        %v2129 = vadd.f32 0.0, %v2128
        %v2130 = vpop.f32.mrb[0].mxu0
        %v2131 = vpop.f32.mrb[0].mxu0
        %v2132 = vadd.f32 0.0, %v2131
        %v2133 = vpop.f32.mrb[0].mxu0
        %2134 = vmatprep.mubr.bf16.mxu0 0
        %2135 = vmatmul.mubr.bf16.gmra.mrb[0].mxu0 %v2016
        %v2136 = vpop.f32.mrb[0].mxu0
        %v2137 = vadd.f32 0.0, %v2136
        %v2138 = vpop.f32.mrb[0].mxu0
        %v2139 = vpop.f32.mrb[0].mxu0
        %v2140 = vadd.f32 0.0, %v2139
        %v2141 = vpop.f32.mrb[0].mxu0
        %2142 = vmatprep.mubr.bf16.mxu0 0
        %2143 = vmatmul.mubr.bf16.gmra.mrb[0].mxu0 %v2019
        %v2144 = vpop.f32.mrb[0].mxu0
        %v2145 = vadd.f32 0.0, %v2144
        %v2146 = vpop.f32.mrb[0].mxu0
        %v2147 = vpop.f32.mrb[0].mxu0
        %v2148 = vadd.f32 0.0, %v2147
        %v2149 = vpop.f32.mrb[0].mxu0
        %2150 = vmatprep.mubr.bf16.mxu0 0
        %2151 = vmatmul.mubr.bf16.gmra.mrb[0].mxu0 %v2022
        %v2152 = vpop.f32.mrb[0].mxu0
        %v2153 = vadd.f32 0.0, %v2152
        %v2154 = vpop.f32.mrb[0].mxu0
        %v2155 = vpop.f32.mrb[0].mxu0
        %v2156 = vadd.f32 0.0, %v2155
        %v2157 = vpop.f32.mrb[0].mxu0
        %2158 = vmatprep.mubr.bf16.mxu0 0
        %2159 = vmatmul.mubr.bf16.gmra.mrb[0].mxu0 %v2025
        %v2160 = vpop.f32.mrb[0].mxu0
        %v2161 = vadd.f32 0.0, %v2160
        %v2162 = vpop.f32.mrb[0].mxu0
        %v2163 = vpop.f32.mrb[0].mxu0
        %v2164 = vadd.f32 0.0, %v2163
        %v2165 = vpop.f32.mrb[0].mxu0
        %2166 = vmatprep.mubr.bf16.mxu0 0
        %2167 = vmatmul.mubr.bf16.gmra.mrb[0].mxu0 %v2028
        %v2168 = vpop.f32.mrb[0].mxu0
        %v2169 = vadd.f32 0.0, %v2168
        %v2170 = vpop.f32.mrb[0].mxu0
        %v2171 = vpop.f32.mrb[0].mxu0
        %v2172 = vadd.f32 0.0, %v2171
        %v2173 = vpop.f32.mrb[0].mxu0
        %2174 = vmatprep.mubr.bf16.mxu0 0
        %2175 = vmatmul.mubr.bf16.gmra.mrb[0].mxu0 %v2031
        %v2176 = vpop.f32.mrb[0].mxu0
        %v2177 = vadd.f32 0.0, %v2176
        %v2178 = vpop.f32.mrb[0].mxu0
        %v2179 = vpop.f32.mrb[0].mxu0
        %v2180 = vadd.f32 0.0, %v2179
        %v2181 = vpop.f32.mrb[0].mxu0
        %2182 = vmatprep.mubr.bf16.mxu0 0
        %2183 = vmatmul.mubr.bf16.gmra.mrb[0].mxu0 %v2034
        %v2184 = vpop.f32.mrb[0].mxu0
        %v2185 = vadd.f32 0.0, %v2184
        %v2186 = vpop.f32.mrb[0].mxu0
        %v2187 = vpop.f32.mrb[0].mxu0
        %v2188 = vadd.f32 0.0, %v2187
        %v2189 = vpop.f32.mrb[0].mxu0
        %2190 = vmatprep.mubr.bf16.mxu0 0
        %2191 = vmatmul.mubr.bf16.gmra.mrb[0].mxu0 %v2037
        %v2192 = vpop.f32.mrb[0].mxu0
        %v2193 = vadd.f32 0.0, %v2192
        %v2194 = vpop.f32.mrb[0].mxu0
        %v2195 = vpop.f32.mrb[0].mxu0
        %v2196 = vadd.f32 0.0, %v2195
        %v2197 = vpop.f32.mrb[0].mxu0
        %2198 = vmatprep.mubr.bf16.mxu0 0
        %2199 = vmatmul.mubr.bf16.gmra.mrb[0].mxu0 %v2040
        %v2200 = vpop.f32.mrb[0].mxu0
        %v2201 = vadd.f32 0.0, %v2200
        %v2202 = vpop.f32.mrb[0].mxu0
        %v2203 = vpop.f32.mrb[0].mxu0
        %v2204 = vadd.f32 0.0, %v2203
        %v2205 = vpop.f32.mrb[0].mxu0
        %2206 = vmatprep.mubr.bf16.mxu0 0
        %2207 = vmatmul.mubr.bf16.gmra.mrb[0].mxu0 %v2043
        %v2208 = vpop.f32.mrb[0].mxu0
        %v2209 = vadd.f32 0.0, %v2208
        %v2210 = vpop.f32.mrb[0].mxu0
        %v2211 = vpop.f32.mrb[0].mxu0
        %v2212 = vadd.f32 0.0, %v2211
        %v2213 = vpop.f32.mrb[0].mxu0
        %2214 = vmatprep.mubr.bf16.mxu0 0
        %2215 = vmatmul.mubr.bf16.gmra.mrb[0].mxu0 %v2046
        %v2216 = vpop.f32.mrb[0].mxu0
        %v2217 = vadd.f32 0.0, %v2216
        %v2218 = vpop.f32.mrb[0].mxu0
        %v2219 = vpop.f32.mrb[0].mxu0
        %v2220 = vadd.f32 0.0, %v2219
        %v2221 = vpop.f32.mrb[0].mxu0
        %2222 = vmatprep.mubr.bf16.mxu0 0
        %2223 = vmatmul.mubr.bf16.gmra.mrb[0].mxu0 %v2049
        %v2224 = vpop.f32.mrb[0].mxu0
        %v2225 = vadd.f32 0.0, %v2224
        %v2226 = vpop.f32.mrb[0].mxu0
        %v2227 = vpop.f32.mrb[0].mxu0
        %v2228 = vadd.f32 0.0, %v2227
        %v2229 = vpop.f32.mrb[0].mxu0
        %2230 = vdwg.mxu0
        %v2231 = vadd.f32 %v1792, %v2089
        %v2232 = vadd.f32 %v1793, %v2092
        %v2233 = vadd.f32 %v1794, %v2097
        %v2234 = vadd.f32 %v1795, %v2100
        %v2235 = vadd.f32 %v1796, %v2105
        %v2236 = vadd.f32 %v1797, %v2108
        %v2237 = vadd.f32 %v1798, %v2113
        %v2238 = vadd.f32 %v1799, %v2116
        %v2239 = vadd.f32 %v1800, %v2121
        %v2240 = vadd.f32 %v1801, %v2124
        %v2241 = vadd.f32 %v1802, %v2129
        %v2242 = vadd.f32 %v1803, %v2132
        %v2243 = vadd.f32 %v1804, %v2137
        %v2244 = vadd.f32 %v1805, %v2140
        %v2245 = vadd.f32 %v1806, %v2145
        %v2246 = vadd.f32 %v1807, %v2148
        %v2247 = vadd.f32 %v1808, %v2153
        %v2248 = vadd.f32 %v1809, %v2156
        %v2249 = vadd.f32 %v1810, %v2161
        %v2250 = vadd.f32 %v1811, %v2164
        %v2251 = vadd.f32 %v1812, %v2169
        %v2252 = vadd.f32 %v1813, %v2172
        %v2253 = vadd.f32 %v1814, %v2177
        %v2254 = vadd.f32 %v1815, %v2180
        %v2255 = vadd.f32 %v1816, %v2185
        %v2256 = vadd.f32 %v1817, %v2188
        %v2257 = vadd.f32 %v1818, %v2193
        %v2258 = vadd.f32 %v1819, %v2196
        %v2259 = vadd.f32 %v1820, %v2201
        %v2260 = vadd.f32 %v1821, %v2204
        %v2261 = vadd.f32 %v1822, %v2209
        %v2262 = vadd.f32 %v1823, %v2212
        %v2263 = vadd.f32 %v1824, %v2217
        %v2264 = vadd.f32 %v1825, %v2220
        %v2265 = vadd.f32 %v1826, %v2225
        %v2266 = vadd.f32 %v1827, %v2228
        %v2267 = vld [vmem:[#allocation2 + $0x98] sm:$0x3]
        %s2268 = scalar_lea.vmem [#allocation7], 16
        %v2269 = vld [vmem:[%s2268] sm:$0xf]
        %v2271 = vunpack.c.l.b16 %v2267
        %v2272 = vpack.c.b16 %v2271, %v2271
        %vm2273 = vsmask.f32 6400
        %v2275 = vshrl.u32 %v1941, 16
        %v2277 = vrot.slane %v2275, 1
        %v2278 = vshll.u32 %v1941, 16
        %v2280 = vrot.slane %v2278, 2
        %v2281 = vor.u32 %v2277, %v2280
        %v2283 = vshrl.u32 %v1942, 16
        %v2285 = vrot.slane %v2283, 1
        %v2286 = vshll.u32 %v1942, 16
        %v2288 = vrot.slane %v2286, 2
        %v2289 = vor.u32 %v2285, %v2288
        %v2290 = vsel %vm2273, %v2281, %v2289
        %v2292 = vshrl.u32 %v1943, 16
        %v2294 = vrot.slane %v2292, 1
        %v2295 = vshll.u32 %v1943, 16
        %v2297 = vrot.slane %v2295, 2
        %v2298 = vor.u32 %v2294, %v2297
        %v2299 = vsel %vm2273, %v2289, %v2298
        %v2301 = vshrl.u32 %v1944, 16
        %v2303 = vrot.slane %v2301, 1
        %v2304 = vshll.u32 %v1944, 16
        %v2306 = vrot.slane %v2304, 2
        %v2307 = vor.u32 %v2303, %v2306
        %v2308 = vsel %vm2273, %v2298, %v2307
        %v2310 = vshrl.u32 %v1945, 16
        %v2312 = vrot.slane %v2310, 1
        %v2313 = vshll.u32 %v1945, 16
        %v2315 = vrot.slane %v2313, 2
        %v2316 = vor.u32 %v2312, %v2315
        %v2317 = vsel %vm2273, %v2307, %v2316
        %v2319 = vshrl.u32 %v1946, 16
        %v2321 = vrot.slane %v2319, 1
        %v2322 = vshll.u32 %v1946, 16
        %v2324 = vrot.slane %v2322, 2
        %v2325 = vor.u32 %v2321, %v2324
        %v2326 = vsel %vm2273, %v2316, %v2325
        %v2328 = vshrl.u32 %v1947, 16
        %v2330 = vrot.slane %v2328, 1
        %v2331 = vshll.u32 %v1947, 16
        %v2333 = vrot.slane %v2331, 2
        %v2334 = vor.u32 %v2330, %v2333
        %v2335 = vsel %vm2273, %v2325, %v2334
        %v2337 = vshrl.u32 %v1948, 16
        %v2339 = vrot.slane %v2337, 1
        %v2340 = vshll.u32 %v1948, 16
        %v2342 = vrot.slane %v2340, 2
        %v2343 = vor.u32 %v2339, %v2342
        %v2344 = vsel %vm2273, %v2334, %v2343
        %v2346 = vshrl.u32 %v1949, 16
        %v2348 = vrot.slane %v2346, 1
        %v2349 = vshll.u32 %v1949, 16
        %v2351 = vrot.slane %v2349, 2
        %v2352 = vor.u32 %v2348, %v2351
        %v2353 = vsel %vm2273, %v2343, %v2352
        %v2355 = vshrl.u32 %v1950, 16
        %v2357 = vrot.slane %v2355, 1
        %v2358 = vshll.u32 %v1950, 16
        %v2360 = vrot.slane %v2358, 2
        %v2361 = vor.u32 %v2357, %v2360
        %v2362 = vsel %vm2273, %v2352, %v2361
        %v2364 = vshrl.u32 %v1951, 16
        %v2366 = vrot.slane %v2364, 1
        %v2367 = vshll.u32 %v1951, 16
        %v2369 = vrot.slane %v2367, 2
        %v2370 = vor.u32 %v2366, %v2369
        %v2371 = vsel %vm2273, %v2361, %v2370
        %v2373 = vshrl.u32 %v1952, 16
        %v2375 = vrot.slane %v2373, 1
        %v2376 = vshll.u32 %v1952, 16
        %v2378 = vrot.slane %v2376, 2
        %v2379 = vor.u32 %v2375, %v2378
        %v2380 = vsel %vm2273, %v2370, %v2379
        %v2382 = vshrl.u32 %v1953, 16
        %v2384 = vrot.slane %v2382, 1
        %v2385 = vshll.u32 %v1953, 16
        %v2387 = vrot.slane %v2385, 2
        %v2388 = vor.u32 %v2384, %v2387
        %v2389 = vsel %vm2273, %v2379, %v2388
        %v2391 = vshrl.u32 %v1954, 16
        %v2393 = vrot.slane %v2391, 1
        %v2394 = vshll.u32 %v1954, 16
        %v2396 = vrot.slane %v2394, 2
        %v2397 = vor.u32 %v2393, %v2396
        %v2398 = vsel %vm2273, %v2388, %v2397
        %v2400 = vshrl.u32 %v1955, 16
        %v2402 = vrot.slane %v2400, 1
        %v2403 = vshll.u32 %v1955, 16
        %v2405 = vrot.slane %v2403, 2
        %v2406 = vor.u32 %v2402, %v2405
        %v2407 = vsel %vm2273, %v2397, %v2406
        %v2409 = vshrl.u32 %v1956, 16
        %v2411 = vrot.slane %v2409, 1
        %v2412 = vshll.u32 %v1956, 16
        %v2414 = vrot.slane %v2412, 2
        %v2415 = vor.u32 %v2411, %v2414
        %v2416 = vsel %vm2273, %v2406, %v2415
        %v2418 = vshrl.u32 %v1957, 16
        %v2420 = vrot.slane %v2418, 1
        %v2421 = vshll.u32 %v1957, 16
        %v2423 = vrot.slane %v2421, 2
        %v2424 = vor.u32 %v2420, %v2423
        %v2425 = vsel %vm2273, %v2415, %v2424
        %v2427 = vshrl.u32 %v1958, 16
        %v2429 = vrot.slane %v2427, 1
        %v2430 = vshll.u32 %v1958, 16
        %v2432 = vrot.slane %v2430, 2
        %v2433 = vor.u32 %v2429, %v2432
        %v2434 = vsel %vm2273, %v2424, %v2433
        %v2436 = vshrl.u32 %v2272, 16
        %v2438 = vrot.slane %v2436, 1
        %v2439 = vshll.u32 %v2272, 16
        %v2441 = vrot.slane %v2439, 2
        %v2442 = vor.u32 %v2438, %v2441
        %v2443 = vsel %vm2273, %v2433, %v2442
        %v2445 = vsel %vm546, %v2290, 0
        %v2448 = vsel %vm546, %v2299, 0
        %v2451 = vsel %vm546, %v2308, 0
        %v2454 = vsel %vm546, %v2317, 0
        %v2457 = vsel %vm546, %v2326, 0
        %v2460 = vsel %vm546, %v2335, 0
        %v2463 = vsel %vm546, %v2344, 0
        %v2466 = vsel %vm546, %v2353, 0
        %v2469 = vsel %vm546, %v2362, 0
        %v2472 = vsel %vm546, %v2371, 0
        %v2475 = vsel %vm546, %v2380, 0
        %v2478 = vsel %vm546, %v2389, 0
        %v2481 = vsel %vm546, %v2398, 0
        %v2484 = vsel %vm546, %v2407, 0
        %v2487 = vsel %vm546, %v2416, 0
        %v2490 = vsel %vm546, %v2425, 0
        %v2493 = vsel %vm546, %v2434, 0
        %v2496 = vsel %vm546, %v2443, 0
        %v2499 = vsel %vm1117, %v2269, 0
        %2501 = vmatprep.subr.bf16.mxu0 0
        %2502 = vmatpush1.bf16.msra.mxu0 %v2499
        %2503 = vmatprep.subr.bf16.mxu0 0
        %2504 = vmatpush1.bf16.msra.mxu0 0
        %2505 = vmatprep.subr.bf16.mxu0 0
        %2506 = vmatpush1.bf16.msra.mxu0 0
        %2507 = vmatprep.subr.bf16.mxu0 0
        %2508 = vmatpush1.bf16.msra.mxu0 0
        %2509 = vmatprep.subr.bf16.mxu0 0
        %2510 = vmatpush1.bf16.msra.mxu0 0
        %2511 = vmatprep.subr.bf16.mxu0 0
        %2512 = vmatpush1.bf16.msra.mxu0 0
        %2513 = vmatprep.subr.bf16.mxu0 0
        %2514 = vmatpush1.bf16.msra.mxu0 0
        %2515 = vmatprep.subr.bf16.mxu0 0
        %2516 = vmatpush1.bf16.msra.mxu0 0
        %2517 = vmatprep.subr.bf16.mxu0 0
        %2518 = vmatpush1.bf16.msra.mxu0 0
        %2519 = vmatprep.subr.bf16.mxu0 0
        %2520 = vmatpush1.bf16.msra.mxu0 0
        %2521 = vmatprep.subr.bf16.mxu0 0
        %2522 = vmatpush1.bf16.msra.mxu0 0
        %2523 = vmatprep.subr.bf16.mxu0 0
        %2524 = vmatpush1.bf16.msra.mxu0 0
        %2525 = vmatprep.subr.bf16.mxu0 0
        %2526 = vmatpush1.bf16.msra.mxu0 0
        %2527 = vmatprep.subr.bf16.mxu0 0
        %2528 = vmatpush1.bf16.msra.mxu0 0
        %2529 = vmatprep.subr.bf16.mxu0 0
        %2530 = vmatpush1.bf16.msra.mxu0 0
        %2531 = vmatprep.subr.bf16.mxu0 0
        %2532 = vmatpush1.bf16.msra.mxu0 0
        %2533 = vmatprep.mubr.bf16.mxu0 0
        %2534 = vmatmul.mubr.bf16.gmra.mrb[0].mxu0 %v2445
        %v2535 = vpop.f32.mrb[0].mxu0
        %v2536 = vadd.f32 0.0, %v2535
        %v2537 = vpop.f32.mrb[0].mxu0
        %v2538 = vpop.f32.mrb[0].mxu0
        %v2539 = vadd.f32 0.0, %v2538
        %v2540 = vpop.f32.mrb[0].mxu0
        %2541 = vmatprep.mubr.bf16.mxu0 0
        %2542 = vmatmul.mubr.bf16.gmra.mrb[0].mxu0 %v2448
        %v2543 = vpop.f32.mrb[0].mxu0
        %v2544 = vadd.f32 0.0, %v2543
        %v2545 = vpop.f32.mrb[0].mxu0
        %v2546 = vpop.f32.mrb[0].mxu0
        %v2547 = vadd.f32 0.0, %v2546
        %v2548 = vpop.f32.mrb[0].mxu0
        %2549 = vmatprep.mubr.bf16.mxu0 0
        %2550 = vmatmul.mubr.bf16.gmra.mrb[0].mxu0 %v2451
        %v2551 = vpop.f32.mrb[0].mxu0
        %v2552 = vadd.f32 0.0, %v2551
        %v2553 = vpop.f32.mrb[0].mxu0
        %v2554 = vpop.f32.mrb[0].mxu0
        %v2555 = vadd.f32 0.0, %v2554
        %v2556 = vpop.f32.mrb[0].mxu0
        %2557 = vmatprep.mubr.bf16.mxu0 0
        %2558 = vmatmul.mubr.bf16.gmra.mrb[0].mxu0 %v2454
        %v2559 = vpop.f32.mrb[0].mxu0
        %v2560 = vadd.f32 0.0, %v2559
        %v2561 = vpop.f32.mrb[0].mxu0
        %v2562 = vpop.f32.mrb[0].mxu0
        %v2563 = vadd.f32 0.0, %v2562
        %v2564 = vpop.f32.mrb[0].mxu0
        %2565 = vmatprep.mubr.bf16.mxu0 0
        %2566 = vmatmul.mubr.bf16.gmra.mrb[0].mxu0 %v2457
        %v2567 = vpop.f32.mrb[0].mxu0
        %v2568 = vadd.f32 0.0, %v2567
        %v2569 = vpop.f32.mrb[0].mxu0
        %v2570 = vpop.f32.mrb[0].mxu0
        %v2571 = vadd.f32 0.0, %v2570
        %v2572 = vpop.f32.mrb[0].mxu0
        %2573 = vmatprep.mubr.bf16.mxu0 0
        %2574 = vmatmul.mubr.bf16.gmra.mrb[0].mxu0 %v2460
        %v2575 = vpop.f32.mrb[0].mxu0
        %v2576 = vadd.f32 0.0, %v2575
        %v2577 = vpop.f32.mrb[0].mxu0
        %v2578 = vpop.f32.mrb[0].mxu0
        %v2579 = vadd.f32 0.0, %v2578
        %v2580 = vpop.f32.mrb[0].mxu0
        %2581 = vmatprep.mubr.bf16.mxu0 0
        %2582 = vmatmul.mubr.bf16.gmra.mrb[0].mxu0 %v2463
        %v2583 = vpop.f32.mrb[0].mxu0
        %v2584 = vadd.f32 0.0, %v2583
        %v2585 = vpop.f32.mrb[0].mxu0
        %v2586 = vpop.f32.mrb[0].mxu0
        %v2587 = vadd.f32 0.0, %v2586
        %v2588 = vpop.f32.mrb[0].mxu0
        %2589 = vmatprep.mubr.bf16.mxu0 0
        %2590 = vmatmul.mubr.bf16.gmra.mrb[0].mxu0 %v2466
        %v2591 = vpop.f32.mrb[0].mxu0
        %v2592 = vadd.f32 0.0, %v2591
        %v2593 = vpop.f32.mrb[0].mxu0
        %v2594 = vpop.f32.mrb[0].mxu0
        %v2595 = vadd.f32 0.0, %v2594
        %v2596 = vpop.f32.mrb[0].mxu0
        %2597 = vmatprep.mubr.bf16.mxu0 0
        %2598 = vmatmul.mubr.bf16.gmra.mrb[0].mxu0 %v2469
        %v2599 = vpop.f32.mrb[0].mxu0
        %v2600 = vadd.f32 0.0, %v2599
        %v2601 = vpop.f32.mrb[0].mxu0
        %v2602 = vpop.f32.mrb[0].mxu0
        %v2603 = vadd.f32 0.0, %v2602
        %v2604 = vpop.f32.mrb[0].mxu0
        %2605 = vmatprep.mubr.bf16.mxu0 0
        %2606 = vmatmul.mubr.bf16.gmra.mrb[0].mxu0 %v2472
        %v2607 = vpop.f32.mrb[0].mxu0
        %v2608 = vadd.f32 0.0, %v2607
        %v2609 = vpop.f32.mrb[0].mxu0
        %v2610 = vpop.f32.mrb[0].mxu0
        %v2611 = vadd.f32 0.0, %v2610
        %v2612 = vpop.f32.mrb[0].mxu0
        %2613 = vmatprep.mubr.bf16.mxu0 0
        %2614 = vmatmul.mubr.bf16.gmra.mrb[0].mxu0 %v2475
        %v2615 = vpop.f32.mrb[0].mxu0
        %v2616 = vadd.f32 0.0, %v2615
        %v2617 = vpop.f32.mrb[0].mxu0
        %v2618 = vpop.f32.mrb[0].mxu0
        %v2619 = vadd.f32 0.0, %v2618
        %v2620 = vpop.f32.mrb[0].mxu0
        %2621 = vmatprep.mubr.bf16.mxu0 0
        %2622 = vmatmul.mubr.bf16.gmra.mrb[0].mxu0 %v2478
        %v2623 = vpop.f32.mrb[0].mxu0
        %v2624 = vadd.f32 0.0, %v2623
        %v2625 = vpop.f32.mrb[0].mxu0
        %v2626 = vpop.f32.mrb[0].mxu0
        %v2627 = vadd.f32 0.0, %v2626
        %v2628 = vpop.f32.mrb[0].mxu0
        %2629 = vmatprep.mubr.bf16.mxu0 0
        %2630 = vmatmul.mubr.bf16.gmra.mrb[0].mxu0 %v2481
        %v2631 = vpop.f32.mrb[0].mxu0
        %v2632 = vadd.f32 0.0, %v2631
        %v2633 = vpop.f32.mrb[0].mxu0
        %v2634 = vpop.f32.mrb[0].mxu0
        %v2635 = vadd.f32 0.0, %v2634
        %v2636 = vpop.f32.mrb[0].mxu0
        %2637 = vmatprep.mubr.bf16.mxu0 0
        %2638 = vmatmul.mubr.bf16.gmra.mrb[0].mxu0 %v2484
        %v2639 = vpop.f32.mrb[0].mxu0
        %v2640 = vadd.f32 0.0, %v2639
        %v2641 = vpop.f32.mrb[0].mxu0
        %v2642 = vpop.f32.mrb[0].mxu0
        %v2643 = vadd.f32 0.0, %v2642
        %v2644 = vpop.f32.mrb[0].mxu0
        %2645 = vmatprep.mubr.bf16.mxu0 0
        %2646 = vmatmul.mubr.bf16.gmra.mrb[0].mxu0 %v2487
        %v2647 = vpop.f32.mrb[0].mxu0
        %v2648 = vadd.f32 0.0, %v2647
        %v2649 = vpop.f32.mrb[0].mxu0
        %v2650 = vpop.f32.mrb[0].mxu0
        %v2651 = vadd.f32 0.0, %v2650
        %v2652 = vpop.f32.mrb[0].mxu0
        %2653 = vmatprep.mubr.bf16.mxu0 0
        %2654 = vmatmul.mubr.bf16.gmra.mrb[0].mxu0 %v2490
        %v2655 = vpop.f32.mrb[0].mxu0
        %v2656 = vadd.f32 0.0, %v2655
        %v2657 = vpop.f32.mrb[0].mxu0
        %v2658 = vpop.f32.mrb[0].mxu0
        %v2659 = vadd.f32 0.0, %v2658
        %v2660 = vpop.f32.mrb[0].mxu0
        %2661 = vmatprep.mubr.bf16.mxu0 0
        %2662 = vmatmul.mubr.bf16.gmra.mrb[0].mxu0 %v2493
        %v2663 = vpop.f32.mrb[0].mxu0
        %v2664 = vadd.f32 0.0, %v2663
        %v2665 = vpop.f32.mrb[0].mxu0
        %v2666 = vpop.f32.mrb[0].mxu0
        %v2667 = vadd.f32 0.0, %v2666
        %v2668 = vpop.f32.mrb[0].mxu0
        %2669 = vmatprep.mubr.bf16.mxu0 0
        %2670 = vmatmul.mubr.bf16.gmra.mrb[0].mxu0 %v2496
        %v2671 = vpop.f32.mrb[0].mxu0
        %v2672 = vadd.f32 0.0, %v2671
        %v2673 = vpop.f32.mrb[0].mxu0
        %v2674 = vpop.f32.mrb[0].mxu0
        %v2675 = vadd.f32 0.0, %v2674
        %v2676 = vpop.f32.mrb[0].mxu0
        %2677 = vdwg.mxu0
        %v2678 = vadd.f32 %v2231, %v2536
        %v2679 = vadd.f32 %v2232, %v2539
        %v2680 = vadd.f32 %v2233, %v2544
        %v2681 = vadd.f32 %v2234, %v2547
        %v2682 = vadd.f32 %v2235, %v2552
        %v2683 = vadd.f32 %v2236, %v2555
        %v2684 = vadd.f32 %v2237, %v2560
        %v2685 = vadd.f32 %v2238, %v2563
        %v2686 = vadd.f32 %v2239, %v2568
        %v2687 = vadd.f32 %v2240, %v2571
        %v2688 = vadd.f32 %v2241, %v2576
        %v2689 = vadd.f32 %v2242, %v2579
        %v2690 = vadd.f32 %v2243, %v2584
        %v2691 = vadd.f32 %v2244, %v2587
        %v2692 = vadd.f32 %v2245, %v2592
        %v2693 = vadd.f32 %v2246, %v2595
        %v2694 = vadd.f32 %v2247, %v2600
        %v2695 = vadd.f32 %v2248, %v2603
        %v2696 = vadd.f32 %v2249, %v2608
        %v2697 = vadd.f32 %v2250, %v2611
        %v2698 = vadd.f32 %v2251, %v2616
        %v2699 = vadd.f32 %v2252, %v2619
        %v2700 = vadd.f32 %v2253, %v2624
        %v2701 = vadd.f32 %v2254, %v2627
        %v2702 = vadd.f32 %v2255, %v2632
        %v2703 = vadd.f32 %v2256, %v2635
        %v2704 = vadd.f32 %v2257, %v2640
        %v2705 = vadd.f32 %v2258, %v2643
        %v2706 = vadd.f32 %v2259, %v2648
        %v2707 = vadd.f32 %v2260, %v2651
        %v2708 = vadd.f32 %v2261, %v2656
        %v2709 = vadd.f32 %v2262, %v2659
        %v2710 = vadd.f32 %v2263, %v2664
        %v2711 = vadd.f32 %v2264, %v2667
        %v2712 = vadd.f32 %v2265, %v2672
        %v2713 = vadd.f32 %v2266, %v2675
        %v2714 = vld [vmem:[#allocation2 + $0x8] sm:$0xc]
        %s2715 = scalar_lea.vmem [#allocation7], 20
        %v2716 = vld [vmem:[%s2715] sm:$0xf]
        %v2718 = vunpack.c.l.b16 %v2714
        %v2719 = vpack.c.b16 %v1905, %v2718
        %vm2720 = vcmask 1045504
        %v2721 = vrot.slane %v2719, 2
        %v2722 = vrot.slane %v1942, 2
        %v2723 = vsel %vm2720, %v2721, %v2722
        %v2724 = vrot.slane %v1943, 2
        %v2725 = vsel %vm2720, %v2722, %v2724
        %v2726 = vrot.slane %v1944, 2
        %v2727 = vsel %vm2720, %v2724, %v2726
        %v2728 = vrot.slane %v1945, 2
        %v2729 = vsel %vm2720, %v2726, %v2728
        %v2730 = vrot.slane %v1946, 2
        %v2731 = vsel %vm2720, %v2728, %v2730
        %v2732 = vrot.slane %v1947, 2
        %v2733 = vsel %vm2720, %v2730, %v2732
        %v2734 = vrot.slane %v1948, 2
        %v2735 = vsel %vm2720, %v2732, %v2734
        %v2736 = vrot.slane %v1949, 2
        %v2737 = vsel %vm2720, %v2734, %v2736
        %v2738 = vrot.slane %v1950, 2
        %v2739 = vsel %vm2720, %v2736, %v2738
        %v2740 = vrot.slane %v1951, 2
        %v2741 = vsel %vm2720, %v2738, %v2740
        %v2742 = vrot.slane %v1952, 2
        %v2743 = vsel %vm2720, %v2740, %v2742
        %v2744 = vrot.slane %v1953, 2
        %v2745 = vsel %vm2720, %v2742, %v2744
        %v2746 = vrot.slane %v1954, 2
        %v2747 = vsel %vm2720, %v2744, %v2746
        %v2748 = vrot.slane %v1955, 2
        %v2749 = vsel %vm2720, %v2746, %v2748
        %v2750 = vrot.slane %v1956, 2
        %v2751 = vsel %vm2720, %v2748, %v2750
        %v2752 = vrot.slane %v1957, 2
        %v2753 = vsel %vm2720, %v2750, %v2752
        %v2754 = vrot.slane %v1958, 2
        %v2755 = vsel %vm2720, %v2752, %v2754
        %v2756 = vrot.slane %v2272, 2
        %v2757 = vsel %vm2720, %v2754, %v2756
        %v2759 = vsel %vm546, %v2723, 0
        %v2762 = vsel %vm546, %v2725, 0
        %v2765 = vsel %vm546, %v2727, 0
        %v2768 = vsel %vm546, %v2729, 0
        %v2771 = vsel %vm546, %v2731, 0
        %v2774 = vsel %vm546, %v2733, 0
        %v2777 = vsel %vm546, %v2735, 0
        %v2780 = vsel %vm546, %v2737, 0
        %v2783 = vsel %vm546, %v2739, 0
        %v2786 = vsel %vm546, %v2741, 0
        %v2789 = vsel %vm546, %v2743, 0
        %v2792 = vsel %vm546, %v2745, 0
        %v2795 = vsel %vm546, %v2747, 0
        %v2798 = vsel %vm546, %v2749, 0
        %v2801 = vsel %vm546, %v2751, 0
        %v2804 = vsel %vm546, %v2753, 0
        %v2807 = vsel %vm546, %v2755, 0
        %v2810 = vsel %vm546, %v2757, 0
        %v2813 = vsel %vm1117, %v2716, 0
        %2815 = vmatprep.subr.bf16.mxu0 0
        %2816 = vmatpush1.bf16.msra.mxu0 %v2813
        %2817 = vmatprep.subr.bf16.mxu0 0
        %2818 = vmatpush1.bf16.msra.mxu0 0
        %2819 = vmatprep.subr.bf16.mxu0 0
        %2820 = vmatpush1.bf16.msra.mxu0 0
        %2821 = vmatprep.subr.bf16.mxu0 0
        %2822 = vmatpush1.bf16.msra.mxu0 0
        %2823 = vmatprep.subr.bf16.mxu0 0
        %2824 = vmatpush1.bf16.msra.mxu0 0
        %2825 = vmatprep.subr.bf16.mxu0 0
        %2826 = vmatpush1.bf16.msra.mxu0 0
        %2827 = vmatprep.subr.bf16.mxu0 0
        %2828 = vmatpush1.bf16.msra.mxu0 0
        %2829 = vmatprep.subr.bf16.mxu0 0
        %2830 = vmatpush1.bf16.msra.mxu0 0
        %2831 = vmatprep.subr.bf16.mxu0 0
        %2832 = vmatpush1.bf16.msra.mxu0 0
        %2833 = vmatprep.subr.bf16.mxu0 0
        %2834 = vmatpush1.bf16.msra.mxu0 0
        %2835 = vmatprep.subr.bf16.mxu0 0
        %2836 = vmatpush1.bf16.msra.mxu0 0
        %2837 = vmatprep.subr.bf16.mxu0 0
        %2838 = vmatpush1.bf16.msra.mxu0 0
        %2839 = vmatprep.subr.bf16.mxu0 0
        %2840 = vmatpush1.bf16.msra.mxu0 0
        %2841 = vmatprep.subr.bf16.mxu0 0
        %2842 = vmatpush1.bf16.msra.mxu0 0
        %2843 = vmatprep.subr.bf16.mxu0 0
        %2844 = vmatpush1.bf16.msra.mxu0 0
        %2845 = vmatprep.subr.bf16.mxu0 0
        %2846 = vmatpush1.bf16.msra.mxu0 0
        %2847 = vmatprep.mubr.bf16.mxu0 0
        %2848 = vmatmul.mubr.bf16.gmra.mrb[0].mxu0 %v2759
        %v2849 = vpop.f32.mrb[0].mxu0
        %v2850 = vadd.f32 0.0, %v2849
        %v2851 = vpop.f32.mrb[0].mxu0
        %v2852 = vpop.f32.mrb[0].mxu0
        %v2853 = vadd.f32 0.0, %v2852
        %v2854 = vpop.f32.mrb[0].mxu0
        %2855 = vmatprep.mubr.bf16.mxu0 0
        %2856 = vmatmul.mubr.bf16.gmra.mrb[0].mxu0 %v2762
        %v2857 = vpop.f32.mrb[0].mxu0
        %v2858 = vadd.f32 0.0, %v2857
        %v2859 = vpop.f32.mrb[0].mxu0
        %v2860 = vpop.f32.mrb[0].mxu0
        %v2861 = vadd.f32 0.0, %v2860
        %v2862 = vpop.f32.mrb[0].mxu0
        %2863 = vmatprep.mubr.bf16.mxu0 0
        %2864 = vmatmul.mubr.bf16.gmra.mrb[0].mxu0 %v2765
        %v2865 = vpop.f32.mrb[0].mxu0
        %v2866 = vadd.f32 0.0, %v2865
        %v2867 = vpop.f32.mrb[0].mxu0
        %v2868 = vpop.f32.mrb[0].mxu0
        %v2869 = vadd.f32 0.0, %v2868
        %v2870 = vpop.f32.mrb[0].mxu0
        %2871 = vmatprep.mubr.bf16.mxu0 0
        %2872 = vmatmul.mubr.bf16.gmra.mrb[0].mxu0 %v2768
        %v2873 = vpop.f32.mrb[0].mxu0
        %v2874 = vadd.f32 0.0, %v2873
        %v2875 = vpop.f32.mrb[0].mxu0
        %v2876 = vpop.f32.mrb[0].mxu0
        %v2877 = vadd.f32 0.0, %v2876
        %v2878 = vpop.f32.mrb[0].mxu0
        %2879 = vmatprep.mubr.bf16.mxu0 0
        %2880 = vmatmul.mubr.bf16.gmra.mrb[0].mxu0 %v2771
        %v2881 = vpop.f32.mrb[0].mxu0
        %v2882 = vadd.f32 0.0, %v2881
        %v2883 = vpop.f32.mrb[0].mxu0
        %v2884 = vpop.f32.mrb[0].mxu0
        %v2885 = vadd.f32 0.0, %v2884
        %v2886 = vpop.f32.mrb[0].mxu0
        %2887 = vmatprep.mubr.bf16.mxu0 0
        %2888 = vmatmul.mubr.bf16.gmra.mrb[0].mxu0 %v2774
        %v2889 = vpop.f32.mrb[0].mxu0
        %v2890 = vadd.f32 0.0, %v2889
        %v2891 = vpop.f32.mrb[0].mxu0
        %v2892 = vpop.f32.mrb[0].mxu0
        %v2893 = vadd.f32 0.0, %v2892
        %v2894 = vpop.f32.mrb[0].mxu0
        %2895 = vmatprep.mubr.bf16.mxu0 0
        %2896 = vmatmul.mubr.bf16.gmra.mrb[0].mxu0 %v2777
        %v2897 = vpop.f32.mrb[0].mxu0
        %v2898 = vadd.f32 0.0, %v2897
        %v2899 = vpop.f32.mrb[0].mxu0
        %v2900 = vpop.f32.mrb[0].mxu0
        %v2901 = vadd.f32 0.0, %v2900
        %v2902 = vpop.f32.mrb[0].mxu0
        %2903 = vmatprep.mubr.bf16.mxu0 0
        %2904 = vmatmul.mubr.bf16.gmra.mrb[0].mxu0 %v2780
        %v2905 = vpop.f32.mrb[0].mxu0
        %v2906 = vadd.f32 0.0, %v2905
        %v2907 = vpop.f32.mrb[0].mxu0
        %v2908 = vpop.f32.mrb[0].mxu0
        %v2909 = vadd.f32 0.0, %v2908
        %v2910 = vpop.f32.mrb[0].mxu0
        %2911 = vmatprep.mubr.bf16.mxu0 0
        %2912 = vmatmul.mubr.bf16.gmra.mrb[0].mxu0 %v2783
        %v2913 = vpop.f32.mrb[0].mxu0
        %v2914 = vadd.f32 0.0, %v2913
        %v2915 = vpop.f32.mrb[0].mxu0
        %v2916 = vpop.f32.mrb[0].mxu0
        %v2917 = vadd.f32 0.0, %v2916
        %v2918 = vpop.f32.mrb[0].mxu0
        %2919 = vmatprep.mubr.bf16.mxu0 0
        %2920 = vmatmul.mubr.bf16.gmra.mrb[0].mxu0 %v2786
        %v2921 = vpop.f32.mrb[0].mxu0
        %v2922 = vadd.f32 0.0, %v2921
        %v2923 = vpop.f32.mrb[0].mxu0
        %v2924 = vpop.f32.mrb[0].mxu0
        %v2925 = vadd.f32 0.0, %v2924
        %v2926 = vpop.f32.mrb[0].mxu0
        %2927 = vmatprep.mubr.bf16.mxu0 0
        %2928 = vmatmul.mubr.bf16.gmra.mrb[0].mxu0 %v2789
        %v2929 = vpop.f32.mrb[0].mxu0
        %v2930 = vadd.f32 0.0, %v2929
        %v2931 = vpop.f32.mrb[0].mxu0
        %v2932 = vpop.f32.mrb[0].mxu0
        %v2933 = vadd.f32 0.0, %v2932
        %v2934 = vpop.f32.mrb[0].mxu0
        %2935 = vmatprep.mubr.bf16.mxu0 0
        %2936 = vmatmul.mubr.bf16.gmra.mrb[0].mxu0 %v2792
        %v2937 = vpop.f32.mrb[0].mxu0
        %v2938 = vadd.f32 0.0, %v2937
        %v2939 = vpop.f32.mrb[0].mxu0
        %v2940 = vpop.f32.mrb[0].mxu0
        %v2941 = vadd.f32 0.0, %v2940
        %v2942 = vpop.f32.mrb[0].mxu0
        %2943 = vmatprep.mubr.bf16.mxu0 0
        %2944 = vmatmul.mubr.bf16.gmra.mrb[0].mxu0 %v2795
        %v2945 = vpop.f32.mrb[0].mxu0
        %v2946 = vadd.f32 0.0, %v2945
        %v2947 = vpop.f32.mrb[0].mxu0
        %v2948 = vpop.f32.mrb[0].mxu0
        %v2949 = vadd.f32 0.0, %v2948
        %v2950 = vpop.f32.mrb[0].mxu0
        %2951 = vmatprep.mubr.bf16.mxu0 0
        %2952 = vmatmul.mubr.bf16.gmra.mrb[0].mxu0 %v2798
        %v2953 = vpop.f32.mrb[0].mxu0
        %v2954 = vadd.f32 0.0, %v2953
        %v2955 = vpop.f32.mrb[0].mxu0
        %v2956 = vpop.f32.mrb[0].mxu0
        %v2957 = vadd.f32 0.0, %v2956
        %v2958 = vpop.f32.mrb[0].mxu0
        %2959 = vmatprep.mubr.bf16.mxu0 0
        %2960 = vmatmul.mubr.bf16.gmra.mrb[0].mxu0 %v2801
        %v2961 = vpop.f32.mrb[0].mxu0
        %v2962 = vadd.f32 0.0, %v2961
        %v2963 = vpop.f32.mrb[0].mxu0
        %v2964 = vpop.f32.mrb[0].mxu0
        %v2965 = vadd.f32 0.0, %v2964
        %v2966 = vpop.f32.mrb[0].mxu0
        %2967 = vmatprep.mubr.bf16.mxu0 0
        %2968 = vmatmul.mubr.bf16.gmra.mrb[0].mxu0 %v2804
        %v2969 = vpop.f32.mrb[0].mxu0
        %v2970 = vadd.f32 0.0, %v2969
        %v2971 = vpop.f32.mrb[0].mxu0
        %v2972 = vpop.f32.mrb[0].mxu0
        %v2973 = vadd.f32 0.0, %v2972
        %v2974 = vpop.f32.mrb[0].mxu0
        %2975 = vmatprep.mubr.bf16.mxu0 0
        %2976 = vmatmul.mubr.bf16.gmra.mrb[0].mxu0 %v2807
        %v2977 = vpop.f32.mrb[0].mxu0
        %v2978 = vadd.f32 0.0, %v2977
        %v2979 = vpop.f32.mrb[0].mxu0
        %v2980 = vpop.f32.mrb[0].mxu0
        %v2981 = vadd.f32 0.0, %v2980
        %v2982 = vpop.f32.mrb[0].mxu0
        %2983 = vmatprep.mubr.bf16.mxu0 0
        %2984 = vmatmul.mubr.bf16.gmra.mrb[0].mxu0 %v2810
        %v2985 = vpop.f32.mrb[0].mxu0
        %v2986 = vadd.f32 0.0, %v2985
        %v2987 = vpop.f32.mrb[0].mxu0
        %v2988 = vpop.f32.mrb[0].mxu0
        %v2989 = vadd.f32 0.0, %v2988
        %v2990 = vpop.f32.mrb[0].mxu0
        %2991 = vdwg.mxu0
        %v2992 = vadd.f32 %v2678, %v2850
        %v2993 = vadd.f32 %v2679, %v2853
        %v2994 = vadd.f32 %v2680, %v2858
        %v2995 = vadd.f32 %v2681, %v2861
        %v2996 = vadd.f32 %v2682, %v2866
        %v2997 = vadd.f32 %v2683, %v2869
        %v2998 = vadd.f32 %v2684, %v2874
        %v2999 = vadd.f32 %v2685, %v2877
        %v3000 = vadd.f32 %v2686, %v2882
        %v3001 = vadd.f32 %v2687, %v2885
        %v3002 = vadd.f32 %v2688, %v2890
        %v3003 = vadd.f32 %v2689, %v2893
        %v3004 = vadd.f32 %v2690, %v2898
        %v3005 = vadd.f32 %v2691, %v2901
        %v3006 = vadd.f32 %v2692, %v2906
        %v3007 = vadd.f32 %v2693, %v2909
        %v3008 = vadd.f32 %v2694, %v2914
        %v3009 = vadd.f32 %v2695, %v2917
        %v3010 = vadd.f32 %v2696, %v2922
        %v3011 = vadd.f32 %v2697, %v2925
        %v3012 = vadd.f32 %v2698, %v2930
        %v3013 = vadd.f32 %v2699, %v2933
        %v3014 = vadd.f32 %v2700, %v2938
        %v3015 = vadd.f32 %v2701, %v2941
        %v3016 = vadd.f32 %v2702, %v2946
        %v3017 = vadd.f32 %v2703, %v2949
        %v3018 = vadd.f32 %v2704, %v2954
        %v3019 = vadd.f32 %v2705, %v2957
        %v3020 = vadd.f32 %v2706, %v2962
        %v3021 = vadd.f32 %v2707, %v2965
        %v3022 = vadd.f32 %v2708, %v2970
        %v3023 = vadd.f32 %v2709, %v2973
        %v3024 = vadd.f32 %v2710, %v2978
        %v3025 = vadd.f32 %v2711, %v2981
        %v3026 = vadd.f32 %v2712, %v2986
        %v3027 = vadd.f32 %v2713, %v2989
        %v3028 = vld [vmem:[#allocation2 + $0x10] sm:$0xc]
        %v3029 = vld [vmem:[#allocation2 + $0x14] sm:$0xf]
        %v3030 = vld [vmem:[#allocation2 + $0x18] sm:$0xf]
        %v3031 = vld [vmem:[#allocation2 + $0x1c] sm:$0xf]
        %v3032 = vld [vmem:[#allocation2 + $0x20] sm:$0xf]
        %v3033 = vld [vmem:[#allocation2 + $0x24] sm:$0xf]
        %v3034 = vld [vmem:[#allocation2 + $0x28] sm:$0xf]
        %v3035 = vld [vmem:[#allocation2 + $0x2c] sm:$0xf]
        %v3036 = vld [vmem:[#allocation2 + $0x30] sm:$0xf]
        %v3037 = vld [vmem:[#allocation2 + $0x34] sm:$0xf]
        %v3038 = vld [vmem:[#allocation2 + $0x38] sm:$0xf]
        %v3039 = vld [vmem:[#allocation2 + $0x3c] sm:$0xf]
        %v3040 = vld [vmem:[#allocation2 + $0x40] sm:$0xf]
        %v3041 = vld [vmem:[#allocation2 + $0x44] sm:$0xf]
        %v3042 = vld [vmem:[#allocation2 + $0x48] sm:$0xf]
        %v3043 = vld [vmem:[#allocation2 + $0x4c] sm:$0xf]
        %v3044 = vld [vmem:[#allocation2 + $0x50] sm:$0xf]
        %v3045 = vld [vmem:[#allocation2 + $0x54] sm:$0xf]
        %v3046 = vld [vmem:[#allocation2 + $0x58] sm:$0xf]
        %v3047 = vld [vmem:[#allocation2 + $0x5c] sm:$0xf]
        %v3048 = vld [vmem:[#allocation2 + $0x60] sm:$0xf]
        %v3049 = vld [vmem:[#allocation2 + $0x64] sm:$0xf]
        %v3050 = vld [vmem:[#allocation2 + $0x68] sm:$0xf]
        %v3051 = vld [vmem:[#allocation2 + $0x6c] sm:$0xf]
        %v3052 = vld [vmem:[#allocation2 + $0x70] sm:$0xf]
        %v3053 = vld [vmem:[#allocation2 + $0x74] sm:$0xf]
        %v3054 = vld [vmem:[#allocation2 + $0x78] sm:$0xf]
        %v3055 = vld [vmem:[#allocation2 + $0x7c] sm:$0xf]
        %v3056 = vld [vmem:[#allocation2 + $0x80] sm:$0xf]
        %v3057 = vld [vmem:[#allocation2 + $0x84] sm:$0xf]
        %v3058 = vld [vmem:[#allocation2 + $0x88] sm:$0xf]
        %v3059 = vld [vmem:[#allocation2 + $0x8c] sm:$0xf]
        %v3060 = vld [vmem:[#allocation2 + $0x90] sm:$0xf]
        %v3061 = vld [vmem:[#allocation2 + $0x94] sm:$0xf]
        %v3062 = vld [vmem:[#allocation2 + $0x98] sm:$0xf]
        %v3063 = vld [vmem:[#allocation2 + $0x9c] sm:$0xf]
        %v3064 = vld [vmem:[#allocation2 + $0xa0] sm:$0x3]
        %s3065 = scalar_lea.vmem [#allocation7], 24
        %v3066 = vld [vmem:[%s3065] sm:$0xf]
        %v3104 = vunpack.c.l.b16 %v3028
        %v3105 = vunpack.c.l.b16 %v3029
        %v3106 = vunpack.c.l.b16 %v3030
        %v3107 = vunpack.c.l.b16 %v3031
        %v3108 = vunpack.c.l.b16 %v3032
        %v3109 = vunpack.c.l.b16 %v3033
        %v3110 = vunpack.c.l.b16 %v3034
        %v3111 = vunpack.c.l.b16 %v3035
        %v3112 = vunpack.c.l.b16 %v3036
        %v3113 = vunpack.c.l.b16 %v3037
        %v3114 = vunpack.c.l.b16 %v3038
        %v3115 = vunpack.c.l.b16 %v3039
        %v3116 = vunpack.c.l.b16 %v3040
        %v3117 = vunpack.c.l.b16 %v3041
        %v3118 = vunpack.c.l.b16 %v3042
        %v3119 = vunpack.c.l.b16 %v3043
        %v3120 = vunpack.c.l.b16 %v3044
        %v3121 = vunpack.c.l.b16 %v3045
        %v3122 = vunpack.c.l.b16 %v3046
        %v3123 = vunpack.c.l.b16 %v3047
        %v3124 = vunpack.c.l.b16 %v3048
        %v3125 = vunpack.c.l.b16 %v3049
        %v3126 = vunpack.c.l.b16 %v3050
        %v3127 = vunpack.c.l.b16 %v3051
        %v3128 = vunpack.c.l.b16 %v3052
        %v3129 = vunpack.c.l.b16 %v3053
        %v3130 = vunpack.c.l.b16 %v3054
        %v3131 = vunpack.c.l.b16 %v3055
        %v3132 = vunpack.c.l.b16 %v3056
        %v3133 = vunpack.c.l.b16 %v3057
        %v3134 = vunpack.c.l.b16 %v3058
        %v3135 = vunpack.c.l.b16 %v3059
        %v3136 = vunpack.c.l.b16 %v3060
        %v3137 = vunpack.c.l.b16 %v3061
        %v3138 = vunpack.c.l.b16 %v3062
        %v3139 = vunpack.c.l.b16 %v3063
        %v3140 = vunpack.c.l.b16 %v3064
        %v3141 = vpack.c.b16 %v3105, %v3104
        %v3142 = vpack.c.b16 %v3107, %v3106
        %v3143 = vpack.c.b16 %v3109, %v3108
        %v3144 = vpack.c.b16 %v3111, %v3110
        %v3145 = vpack.c.b16 %v3113, %v3112
        %v3146 = vpack.c.b16 %v3115, %v3114
        %v3147 = vpack.c.b16 %v3117, %v3116
        %v3148 = vpack.c.b16 %v3119, %v3118
        %v3149 = vpack.c.b16 %v3121, %v3120
        %v3150 = vpack.c.b16 %v3123, %v3122
        %v3151 = vpack.c.b16 %v3125, %v3124
        %v3152 = vpack.c.b16 %v3127, %v3126
        %v3153 = vpack.c.b16 %v3129, %v3128
        %v3154 = vpack.c.b16 %v3131, %v3130
        %v3155 = vpack.c.b16 %v3133, %v3132
        %v3156 = vpack.c.b16 %v3135, %v3134
        %v3157 = vpack.c.b16 %v3137, %v3136
        %v3158 = vpack.c.b16 %v3139, %v3138
        %v3159 = vpack.c.b16 %v3140, %v3140
        %v3160 = vrot.slane %v3141, 2
        %v3161 = vrot.slane %v3142, 2
        %v3162 = vsel %vm2720, %v3160, %v3161
        %v3163 = vrot.slane %v3143, 2
        %v3164 = vsel %vm2720, %v3161, %v3163
        %v3165 = vrot.slane %v3144, 2
        %v3166 = vsel %vm2720, %v3163, %v3165
        %v3167 = vrot.slane %v3145, 2
        %v3168 = vsel %vm2720, %v3165, %v3167
        %v3169 = vrot.slane %v3146, 2
        %v3170 = vsel %vm2720, %v3167, %v3169
        %v3171 = vrot.slane %v3147, 2
        %v3172 = vsel %vm2720, %v3169, %v3171
        %v3173 = vrot.slane %v3148, 2
        %v3174 = vsel %vm2720, %v3171, %v3173
        %v3175 = vrot.slane %v3149, 2
        %v3176 = vsel %vm2720, %v3173, %v3175
        %v3177 = vrot.slane %v3150, 2
        %v3178 = vsel %vm2720, %v3175, %v3177
        %v3179 = vrot.slane %v3151, 2
        %v3180 = vsel %vm2720, %v3177, %v3179
        %v3181 = vrot.slane %v3152, 2
        %v3182 = vsel %vm2720, %v3179, %v3181
        %v3183 = vrot.slane %v3153, 2
        %v3184 = vsel %vm2720, %v3181, %v3183
        %v3185 = vrot.slane %v3154, 2
        %v3186 = vsel %vm2720, %v3183, %v3185
        %v3187 = vrot.slane %v3155, 2
        %v3188 = vsel %vm2720, %v3185, %v3187
        %v3189 = vrot.slane %v3156, 2
        %v3190 = vsel %vm2720, %v3187, %v3189
        %v3191 = vrot.slane %v3157, 2
        %v3192 = vsel %vm2720, %v3189, %v3191
        %v3193 = vrot.slane %v3158, 2
        %v3194 = vsel %vm2720, %v3191, %v3193
        %v3195 = vrot.slane %v3159, 2
        %v3196 = vsel %vm2720, %v3193, %v3195
        %v3198 = vsel %vm546, %v3162, 0
        %v3201 = vsel %vm546, %v3164, 0
        %v3204 = vsel %vm546, %v3166, 0
        %v3207 = vsel %vm546, %v3168, 0
        %v3210 = vsel %vm546, %v3170, 0
        %v3213 = vsel %vm546, %v3172, 0
        %v3216 = vsel %vm546, %v3174, 0
        %v3219 = vsel %vm546, %v3176, 0
        %v3222 = vsel %vm546, %v3178, 0
        %v3225 = vsel %vm546, %v3180, 0
        %v3228 = vsel %vm546, %v3182, 0
        %v3231 = vsel %vm546, %v3184, 0
        %v3234 = vsel %vm546, %v3186, 0
        %v3237 = vsel %vm546, %v3188, 0
        %v3240 = vsel %vm546, %v3190, 0
        %v3243 = vsel %vm546, %v3192, 0
        %v3246 = vsel %vm546, %v3194, 0
        %v3249 = vsel %vm546, %v3196, 0
        %v3252 = vsel %vm1117, %v3066, 0
        %3254 = vmatprep.subr.bf16.mxu0 0
        %3255 = vmatpush1.bf16.msra.mxu0 %v3252
        %3256 = vmatprep.subr.bf16.mxu0 0
        %3257 = vmatpush1.bf16.msra.mxu0 0
        %3258 = vmatprep.subr.bf16.mxu0 0
        %3259 = vmatpush1.bf16.msra.mxu0 0
        %3260 = vmatprep.subr.bf16.mxu0 0
        %3261 = vmatpush1.bf16.msra.mxu0 0
        %3262 = vmatprep.subr.bf16.mxu0 0
        %3263 = vmatpush1.bf16.msra.mxu0 0
        %3264 = vmatprep.subr.bf16.mxu0 0
        %3265 = vmatpush1.bf16.msra.mxu0 0
        %3266 = vmatprep.subr.bf16.mxu0 0
        %3267 = vmatpush1.bf16.msra.mxu0 0
        %3268 = vmatprep.subr.bf16.mxu0 0
        %3269 = vmatpush1.bf16.msra.mxu0 0
        %3270 = vmatprep.subr.bf16.mxu0 0
        %3271 = vmatpush1.bf16.msra.mxu0 0
        %3272 = vmatprep.subr.bf16.mxu0 0
        %3273 = vmatpush1.bf16.msra.mxu0 0
        %3274 = vmatprep.subr.bf16.mxu0 0
        %3275 = vmatpush1.bf16.msra.mxu0 0
        %3276 = vmatprep.subr.bf16.mxu0 0
        %3277 = vmatpush1.bf16.msra.mxu0 0
        %3278 = vmatprep.subr.bf16.mxu0 0
        %3279 = vmatpush1.bf16.msra.mxu0 0
        %3280 = vmatprep.subr.bf16.mxu0 0
        %3281 = vmatpush1.bf16.msra.mxu0 0
        %3282 = vmatprep.subr.bf16.mxu0 0
        %3283 = vmatpush1.bf16.msra.mxu0 0
        %3284 = vmatprep.subr.bf16.mxu0 0
        %3285 = vmatpush1.bf16.msra.mxu0 0
        %3286 = vmatprep.mubr.bf16.mxu0 0
        %3287 = vmatmul.mubr.bf16.gmra.mrb[0].mxu0 %v3198
        %v3288 = vpop.f32.mrb[0].mxu0
        %v3289 = vadd.f32 0.0, %v3288
        %v3290 = vpop.f32.mrb[0].mxu0
        %v3291 = vpop.f32.mrb[0].mxu0
        %v3292 = vadd.f32 0.0, %v3291
        %v3293 = vpop.f32.mrb[0].mxu0
        %3294 = vmatprep.mubr.bf16.mxu0 0
        %3295 = vmatmul.mubr.bf16.gmra.mrb[0].mxu0 %v3201
        %v3296 = vpop.f32.mrb[0].mxu0
        %v3297 = vadd.f32 0.0, %v3296
        %v3298 = vpop.f32.mrb[0].mxu0
        %v3299 = vpop.f32.mrb[0].mxu0
        %v3300 = vadd.f32 0.0, %v3299
        %v3301 = vpop.f32.mrb[0].mxu0
        %3302 = vmatprep.mubr.bf16.mxu0 0
        %3303 = vmatmul.mubr.bf16.gmra.mrb[0].mxu0 %v3204
        %v3304 = vpop.f32.mrb[0].mxu0
        %v3305 = vadd.f32 0.0, %v3304
        %v3306 = vpop.f32.mrb[0].mxu0
        %v3307 = vpop.f32.mrb[0].mxu0
        %v3308 = vadd.f32 0.0, %v3307
        %v3309 = vpop.f32.mrb[0].mxu0
        %3310 = vmatprep.mubr.bf16.mxu0 0
        %3311 = vmatmul.mubr.bf16.gmra.mrb[0].mxu0 %v3207
        %v3312 = vpop.f32.mrb[0].mxu0
        %v3313 = vadd.f32 0.0, %v3312
        %v3314 = vpop.f32.mrb[0].mxu0
        %v3315 = vpop.f32.mrb[0].mxu0
        %v3316 = vadd.f32 0.0, %v3315
        %v3317 = vpop.f32.mrb[0].mxu0
        %3318 = vmatprep.mubr.bf16.mxu0 0
        %3319 = vmatmul.mubr.bf16.gmra.mrb[0].mxu0 %v3210
        %v3320 = vpop.f32.mrb[0].mxu0
        %v3321 = vadd.f32 0.0, %v3320
        %v3322 = vpop.f32.mrb[0].mxu0
        %v3323 = vpop.f32.mrb[0].mxu0
        %v3324 = vadd.f32 0.0, %v3323
        %v3325 = vpop.f32.mrb[0].mxu0
        %3326 = vmatprep.mubr.bf16.mxu0 0
        %3327 = vmatmul.mubr.bf16.gmra.mrb[0].mxu0 %v3213
        %v3328 = vpop.f32.mrb[0].mxu0
        %v3329 = vadd.f32 0.0, %v3328
        %v3330 = vpop.f32.mrb[0].mxu0
        %v3331 = vpop.f32.mrb[0].mxu0
        %v3332 = vadd.f32 0.0, %v3331
        %v3333 = vpop.f32.mrb[0].mxu0
        %3334 = vmatprep.mubr.bf16.mxu0 0
        %3335 = vmatmul.mubr.bf16.gmra.mrb[0].mxu0 %v3216
        %v3336 = vpop.f32.mrb[0].mxu0
        %v3337 = vadd.f32 0.0, %v3336
        %v3338 = vpop.f32.mrb[0].mxu0
        %v3339 = vpop.f32.mrb[0].mxu0
        %v3340 = vadd.f32 0.0, %v3339
        %v3341 = vpop.f32.mrb[0].mxu0
        %3342 = vmatprep.mubr.bf16.mxu0 0
        %3343 = vmatmul.mubr.bf16.gmra.mrb[0].mxu0 %v3219
        %v3344 = vpop.f32.mrb[0].mxu0
        %v3345 = vadd.f32 0.0, %v3344
        %v3346 = vpop.f32.mrb[0].mxu0
        %v3347 = vpop.f32.mrb[0].mxu0
        %v3348 = vadd.f32 0.0, %v3347
        %v3349 = vpop.f32.mrb[0].mxu0
        %3350 = vmatprep.mubr.bf16.mxu0 0
        %3351 = vmatmul.mubr.bf16.gmra.mrb[0].mxu0 %v3222
        %v3352 = vpop.f32.mrb[0].mxu0
        %v3353 = vadd.f32 0.0, %v3352
        %v3354 = vpop.f32.mrb[0].mxu0
        %v3355 = vpop.f32.mrb[0].mxu0
        %v3356 = vadd.f32 0.0, %v3355
        %v3357 = vpop.f32.mrb[0].mxu0
        %3358 = vmatprep.mubr.bf16.mxu0 0
        %3359 = vmatmul.mubr.bf16.gmra.mrb[0].mxu0 %v3225
        %v3360 = vpop.f32.mrb[0].mxu0
        %v3361 = vadd.f32 0.0, %v3360
        %v3362 = vpop.f32.mrb[0].mxu0
        %v3363 = vpop.f32.mrb[0].mxu0
        %v3364 = vadd.f32 0.0, %v3363
        %v3365 = vpop.f32.mrb[0].mxu0
        %3366 = vmatprep.mubr.bf16.mxu0 0
        %3367 = vmatmul.mubr.bf16.gmra.mrb[0].mxu0 %v3228
        %v3368 = vpop.f32.mrb[0].mxu0
        %v3369 = vadd.f32 0.0, %v3368
        %v3370 = vpop.f32.mrb[0].mxu0
        %v3371 = vpop.f32.mrb[0].mxu0
        %v3372 = vadd.f32 0.0, %v3371
        %v3373 = vpop.f32.mrb[0].mxu0
        %3374 = vmatprep.mubr.bf16.mxu0 0
        %3375 = vmatmul.mubr.bf16.gmra.mrb[0].mxu0 %v3231
        %v3376 = vpop.f32.mrb[0].mxu0
        %v3377 = vadd.f32 0.0, %v3376
        %v3378 = vpop.f32.mrb[0].mxu0
        %v3379 = vpop.f32.mrb[0].mxu0
        %v3380 = vadd.f32 0.0, %v3379
        %v3381 = vpop.f32.mrb[0].mxu0
        %3382 = vmatprep.mubr.bf16.mxu0 0
        %3383 = vmatmul.mubr.bf16.gmra.mrb[0].mxu0 %v3234
        %v3384 = vpop.f32.mrb[0].mxu0
        %v3385 = vadd.f32 0.0, %v3384
        %v3386 = vpop.f32.mrb[0].mxu0
        %v3387 = vpop.f32.mrb[0].mxu0
        %v3388 = vadd.f32 0.0, %v3387
        %v3389 = vpop.f32.mrb[0].mxu0
        %3390 = vmatprep.mubr.bf16.mxu0 0
        %3391 = vmatmul.mubr.bf16.gmra.mrb[0].mxu0 %v3237
        %v3392 = vpop.f32.mrb[0].mxu0
        %v3393 = vadd.f32 0.0, %v3392
        %v3394 = vpop.f32.mrb[0].mxu0
        %v3395 = vpop.f32.mrb[0].mxu0
        %v3396 = vadd.f32 0.0, %v3395
        %v3397 = vpop.f32.mrb[0].mxu0
        %3398 = vmatprep.mubr.bf16.mxu0 0
        %3399 = vmatmul.mubr.bf16.gmra.mrb[0].mxu0 %v3240
        %v3400 = vpop.f32.mrb[0].mxu0
        %v3401 = vadd.f32 0.0, %v3400
        %v3402 = vpop.f32.mrb[0].mxu0
        %v3403 = vpop.f32.mrb[0].mxu0
        %v3404 = vadd.f32 0.0, %v3403
        %v3405 = vpop.f32.mrb[0].mxu0
        %3406 = vmatprep.mubr.bf16.mxu0 0
        %3407 = vmatmul.mubr.bf16.gmra.mrb[0].mxu0 %v3243
        %v3408 = vpop.f32.mrb[0].mxu0
        %v3409 = vadd.f32 0.0, %v3408
        %v3410 = vpop.f32.mrb[0].mxu0
        %v3411 = vpop.f32.mrb[0].mxu0
        %v3412 = vadd.f32 0.0, %v3411
        %v3413 = vpop.f32.mrb[0].mxu0
        %3414 = vmatprep.mubr.bf16.mxu0 0
        %3415 = vmatmul.mubr.bf16.gmra.mrb[0].mxu0 %v3246
        %v3416 = vpop.f32.mrb[0].mxu0
        %v3417 = vadd.f32 0.0, %v3416
        %v3418 = vpop.f32.mrb[0].mxu0
        %v3419 = vpop.f32.mrb[0].mxu0
        %v3420 = vadd.f32 0.0, %v3419
        %v3421 = vpop.f32.mrb[0].mxu0
        %3422 = vmatprep.mubr.bf16.mxu0 0
        %3423 = vmatmul.mubr.bf16.gmra.mrb[0].mxu0 %v3249
        %v3424 = vpop.f32.mrb[0].mxu0
        %v3425 = vadd.f32 0.0, %v3424
        %v3426 = vpop.f32.mrb[0].mxu0
        %v3427 = vpop.f32.mrb[0].mxu0
        %v3428 = vadd.f32 0.0, %v3427
        %v3429 = vpop.f32.mrb[0].mxu0
        %3430 = vdwg.mxu0
        %v3431 = vadd.f32 %v2992, %v3289
        %v3432 = vadd.f32 %v2993, %v3292
        %v3433 = vadd.f32 %v2994, %v3297
        %v3434 = vadd.f32 %v2995, %v3300
        %v3435 = vadd.f32 %v2996, %v3305
        %v3436 = vadd.f32 %v2997, %v3308
        %v3437 = vadd.f32 %v2998, %v3313
        %v3438 = vadd.f32 %v2999, %v3316
        %v3439 = vadd.f32 %v3000, %v3321
        %v3440 = vadd.f32 %v3001, %v3324
        %v3441 = vadd.f32 %v3002, %v3329
        %v3442 = vadd.f32 %v3003, %v3332
        %v3443 = vadd.f32 %v3004, %v3337
        %v3444 = vadd.f32 %v3005, %v3340
        %v3445 = vadd.f32 %v3006, %v3345
        %v3446 = vadd.f32 %v3007, %v3348
        %v3447 = vadd.f32 %v3008, %v3353
        %v3448 = vadd.f32 %v3009, %v3356
        %v3449 = vadd.f32 %v3010, %v3361
        %v3450 = vadd.f32 %v3011, %v3364
        %v3451 = vadd.f32 %v3012, %v3369
        %v3452 = vadd.f32 %v3013, %v3372
        %v3453 = vadd.f32 %v3014, %v3377
        %v3454 = vadd.f32 %v3015, %v3380
        %v3455 = vadd.f32 %v3016, %v3385
        %v3456 = vadd.f32 %v3017, %v3388
        %v3457 = vadd.f32 %v3018, %v3393
        %v3458 = vadd.f32 %v3019, %v3396
        %v3459 = vadd.f32 %v3020, %v3401
        %v3460 = vadd.f32 %v3021, %v3404
        %v3461 = vadd.f32 %v3022, %v3409
        %v3462 = vadd.f32 %v3023, %v3412
        %v3463 = vadd.f32 %v3024, %v3417
        %v3464 = vadd.f32 %v3025, %v3420
        %v3465 = vadd.f32 %v3026, %v3425
        %v3466 = vadd.f32 %v3027, %v3428
        %v3467 = vld [vmem:[#allocation2 + $0xa0] sm:$0x7]
        %s3468 = scalar_lea.vmem [#allocation7], 28
        %v3469 = vld [vmem:[%s3468] sm:$0xf]
        %v3471 = vunpack.c.l.b16 %v3467
        %v3472 = vpack.c.b16 %v3471, %v3471
        %vm3473 = vsmask.f32 5376
        %v3475 = vshrl.u32 %v3141, 16
        %v3477 = vrot.slane %v3475, 2
        %v3478 = vshll.u32 %v3141, 16
        %v3480 = vrot.slane %v3478, 3
        %v3481 = vor.u32 %v3477, %v3480
        %v3483 = vshrl.u32 %v3142, 16
        %v3485 = vrot.slane %v3483, 2
        %v3486 = vshll.u32 %v3142, 16
        %v3488 = vrot.slane %v3486, 3
        %v3489 = vor.u32 %v3485, %v3488
        %v3490 = vsel %vm3473, %v3481, %v3489
        %v3492 = vshrl.u32 %v3143, 16
        %v3494 = vrot.slane %v3492, 2
        %v3495 = vshll.u32 %v3143, 16
        %v3497 = vrot.slane %v3495, 3
        %v3498 = vor.u32 %v3494, %v3497
        %v3499 = vsel %vm3473, %v3489, %v3498
        %v3501 = vshrl.u32 %v3144, 16
        %v3503 = vrot.slane %v3501, 2
        %v3504 = vshll.u32 %v3144, 16
        %v3506 = vrot.slane %v3504, 3
        %v3507 = vor.u32 %v3503, %v3506
        %v3508 = vsel %vm3473, %v3498, %v3507
        %v3510 = vshrl.u32 %v3145, 16
        %v3512 = vrot.slane %v3510, 2
        %v3513 = vshll.u32 %v3145, 16
        %v3515 = vrot.slane %v3513, 3
        %v3516 = vor.u32 %v3512, %v3515
        %v3517 = vsel %vm3473, %v3507, %v3516
        %v3519 = vshrl.u32 %v3146, 16
        %v3521 = vrot.slane %v3519, 2
        %v3522 = vshll.u32 %v3146, 16
        %v3524 = vrot.slane %v3522, 3
        %v3525 = vor.u32 %v3521, %v3524
        %v3526 = vsel %vm3473, %v3516, %v3525
        %v3528 = vshrl.u32 %v3147, 16
        %v3530 = vrot.slane %v3528, 2
        %v3531 = vshll.u32 %v3147, 16
        %v3533 = vrot.slane %v3531, 3
        %v3534 = vor.u32 %v3530, %v3533
        %v3535 = vsel %vm3473, %v3525, %v3534
        %v3537 = vshrl.u32 %v3148, 16
        %v3539 = vrot.slane %v3537, 2
        %v3540 = vshll.u32 %v3148, 16
        %v3542 = vrot.slane %v3540, 3
        %v3543 = vor.u32 %v3539, %v3542
        %v3544 = vsel %vm3473, %v3534, %v3543
        %v3546 = vshrl.u32 %v3149, 16
        %v3548 = vrot.slane %v3546, 2
        %v3549 = vshll.u32 %v3149, 16
        %v3551 = vrot.slane %v3549, 3
        %v3552 = vor.u32 %v3548, %v3551
        %v3553 = vsel %vm3473, %v3543, %v3552
        %v3555 = vshrl.u32 %v3150, 16
        %v3557 = vrot.slane %v3555, 2
        %v3558 = vshll.u32 %v3150, 16
        %v3560 = vrot.slane %v3558, 3
        %v3561 = vor.u32 %v3557, %v3560
        %v3562 = vsel %vm3473, %v3552, %v3561
        %v3564 = vshrl.u32 %v3151, 16
        %v3566 = vrot.slane %v3564, 2
        %v3567 = vshll.u32 %v3151, 16
        %v3569 = vrot.slane %v3567, 3
        %v3570 = vor.u32 %v3566, %v3569
        %v3571 = vsel %vm3473, %v3561, %v3570
        %v3573 = vshrl.u32 %v3152, 16
        %v3575 = vrot.slane %v3573, 2
        %v3576 = vshll.u32 %v3152, 16
        %v3578 = vrot.slane %v3576, 3
        %v3579 = vor.u32 %v3575, %v3578
        %v3580 = vsel %vm3473, %v3570, %v3579
        %v3582 = vshrl.u32 %v3153, 16
        %v3584 = vrot.slane %v3582, 2
        %v3585 = vshll.u32 %v3153, 16
        %v3587 = vrot.slane %v3585, 3
        %v3588 = vor.u32 %v3584, %v3587
        %v3589 = vsel %vm3473, %v3579, %v3588
        %v3591 = vshrl.u32 %v3154, 16
        %v3593 = vrot.slane %v3591, 2
        %v3594 = vshll.u32 %v3154, 16
        %v3596 = vrot.slane %v3594, 3
        %v3597 = vor.u32 %v3593, %v3596
        %v3598 = vsel %vm3473, %v3588, %v3597
        %v3600 = vshrl.u32 %v3155, 16
        %v3602 = vrot.slane %v3600, 2
        %v3603 = vshll.u32 %v3155, 16
        %v3605 = vrot.slane %v3603, 3
        %v3606 = vor.u32 %v3602, %v3605
        %v3607 = vsel %vm3473, %v3597, %v3606
        %v3609 = vshrl.u32 %v3156, 16
        %v3611 = vrot.slane %v3609, 2
        %v3612 = vshll.u32 %v3156, 16
        %v3614 = vrot.slane %v3612, 3
        %v3615 = vor.u32 %v3611, %v3614
        %v3616 = vsel %vm3473, %v3606, %v3615
        %v3618 = vshrl.u32 %v3157, 16
        %v3620 = vrot.slane %v3618, 2
        %v3621 = vshll.u32 %v3157, 16
        %v3623 = vrot.slane %v3621, 3
        %v3624 = vor.u32 %v3620, %v3623
        %v3625 = vsel %vm3473, %v3615, %v3624
        %v3627 = vshrl.u32 %v3158, 16
        %v3629 = vrot.slane %v3627, 2
        %v3630 = vshll.u32 %v3158, 16
        %v3632 = vrot.slane %v3630, 3
        %v3633 = vor.u32 %v3629, %v3632
        %v3634 = vsel %vm3473, %v3624, %v3633
        %v3636 = vshrl.u32 %v3472, 16
        %v3638 = vrot.slane %v3636, 2
        %v3639 = vshll.u32 %v3472, 16
        %v3641 = vrot.slane %v3639, 3
        %v3642 = vor.u32 %v3638, %v3641
        %v3643 = vsel %vm3473, %v3633, %v3642
        %v3645 = vsel %vm546, %v3490, 0
        %v3648 = vsel %vm546, %v3499, 0
        %v3651 = vsel %vm546, %v3508, 0
        %v3654 = vsel %vm546, %v3517, 0
        %v3657 = vsel %vm546, %v3526, 0
        %v3660 = vsel %vm546, %v3535, 0
        %v3663 = vsel %vm546, %v3544, 0
        %v3666 = vsel %vm546, %v3553, 0
        %v3669 = vsel %vm546, %v3562, 0
        %v3672 = vsel %vm546, %v3571, 0
        %v3675 = vsel %vm546, %v3580, 0
        %v3678 = vsel %vm546, %v3589, 0
        %v3681 = vsel %vm546, %v3598, 0
        %v3684 = vsel %vm546, %v3607, 0
        %v3687 = vsel %vm546, %v3616, 0
        %v3690 = vsel %vm546, %v3625, 0
        %v3693 = vsel %vm546, %v3634, 0
        %v3696 = vsel %vm546, %v3643, 0
        %v3699 = vsel %vm1117, %v3469, 0
        %3701 = vmatprep.subr.bf16.mxu0 0
        %3702 = vmatpush1.bf16.msra.mxu0 %v3699
        %3703 = vmatprep.subr.bf16.mxu0 0
        %3704 = vmatpush1.bf16.msra.mxu0 0
        %3705 = vmatprep.subr.bf16.mxu0 0
        %3706 = vmatpush1.bf16.msra.mxu0 0
        %3707 = vmatprep.subr.bf16.mxu0 0
        %3708 = vmatpush1.bf16.msra.mxu0 0
        %3709 = vmatprep.subr.bf16.mxu0 0
        %3710 = vmatpush1.bf16.msra.mxu0 0
        %3711 = vmatprep.subr.bf16.mxu0 0
        %3712 = vmatpush1.bf16.msra.mxu0 0
        %3713 = vmatprep.subr.bf16.mxu0 0
        %3714 = vmatpush1.bf16.msra.mxu0 0
        %3715 = vmatprep.subr.bf16.mxu0 0
        %3716 = vmatpush1.bf16.msra.mxu0 0
        %3717 = vmatprep.subr.bf16.mxu0 0
        %3718 = vmatpush1.bf16.msra.mxu0 0
        %3719 = vmatprep.subr.bf16.mxu0 0
        %3720 = vmatpush1.bf16.msra.mxu0 0
        %3721 = vmatprep.subr.bf16.mxu0 0
        %3722 = vmatpush1.bf16.msra.mxu0 0
        %3723 = vmatprep.subr.bf16.mxu0 0
        %3724 = vmatpush1.bf16.msra.mxu0 0
        %3725 = vmatprep.subr.bf16.mxu0 0
        %3726 = vmatpush1.bf16.msra.mxu0 0
        %3727 = vmatprep.subr.bf16.mxu0 0
        %3728 = vmatpush1.bf16.msra.mxu0 0
        %3729 = vmatprep.subr.bf16.mxu0 0
        %3730 = vmatpush1.bf16.msra.mxu0 0
        %3731 = vmatprep.subr.bf16.mxu0 0
        %3732 = vmatpush1.bf16.msra.mxu0 0
        %3733 = vmatprep.mubr.bf16.mxu0 0
        %3734 = vmatmul.mubr.bf16.gmra.mrb[0].mxu0 %v3645
        %v3735 = vpop.f32.mrb[0].mxu0
        %v3736 = vadd.f32 0.0, %v3735
        %v3737 = vpop.f32.mrb[0].mxu0
        %v3738 = vpop.f32.mrb[0].mxu0
        %v3739 = vadd.f32 0.0, %v3738
        %v3740 = vpop.f32.mrb[0].mxu0
        %3741 = vmatprep.mubr.bf16.mxu0 0
        %3742 = vmatmul.mubr.bf16.gmra.mrb[0].mxu0 %v3648
        %v3743 = vpop.f32.mrb[0].mxu0
        %v3744 = vadd.f32 0.0, %v3743
        %v3745 = vpop.f32.mrb[0].mxu0
        %v3746 = vpop.f32.mrb[0].mxu0
        %v3747 = vadd.f32 0.0, %v3746
        %v3748 = vpop.f32.mrb[0].mxu0
        %3749 = vmatprep.mubr.bf16.mxu0 0
        %3750 = vmatmul.mubr.bf16.gmra.mrb[0].mxu0 %v3651
        %v3751 = vpop.f32.mrb[0].mxu0
        %v3752 = vadd.f32 0.0, %v3751
        %v3753 = vpop.f32.mrb[0].mxu0
        %v3754 = vpop.f32.mrb[0].mxu0
        %v3755 = vadd.f32 0.0, %v3754
        %v3756 = vpop.f32.mrb[0].mxu0
        %3757 = vmatprep.mubr.bf16.mxu0 0
        %3758 = vmatmul.mubr.bf16.gmra.mrb[0].mxu0 %v3654
        %v3759 = vpop.f32.mrb[0].mxu0
        %v3760 = vadd.f32 0.0, %v3759
        %v3761 = vpop.f32.mrb[0].mxu0
        %v3762 = vpop.f32.mrb[0].mxu0
        %v3763 = vadd.f32 0.0, %v3762
        %v3764 = vpop.f32.mrb[0].mxu0
        %3765 = vmatprep.mubr.bf16.mxu0 0
        %3766 = vmatmul.mubr.bf16.gmra.mrb[0].mxu0 %v3657
        %v3767 = vpop.f32.mrb[0].mxu0
        %v3768 = vadd.f32 0.0, %v3767
        %v3769 = vpop.f32.mrb[0].mxu0
        %v3770 = vpop.f32.mrb[0].mxu0
        %v3771 = vadd.f32 0.0, %v3770
        %v3772 = vpop.f32.mrb[0].mxu0
        %3773 = vmatprep.mubr.bf16.mxu0 0
        %3774 = vmatmul.mubr.bf16.gmra.mrb[0].mxu0 %v3660
        %v3775 = vpop.f32.mrb[0].mxu0
        %v3776 = vadd.f32 0.0, %v3775
        %v3777 = vpop.f32.mrb[0].mxu0
        %v3778 = vpop.f32.mrb[0].mxu0
        %v3779 = vadd.f32 0.0, %v3778
        %v3780 = vpop.f32.mrb[0].mxu0
        %3781 = vmatprep.mubr.bf16.mxu0 0
        %3782 = vmatmul.mubr.bf16.gmra.mrb[0].mxu0 %v3663
        %v3783 = vpop.f32.mrb[0].mxu0
        %v3784 = vadd.f32 0.0, %v3783
        %v3785 = vpop.f32.mrb[0].mxu0
        %v3786 = vpop.f32.mrb[0].mxu0
        %v3787 = vadd.f32 0.0, %v3786
        %v3788 = vpop.f32.mrb[0].mxu0
        %3789 = vmatprep.mubr.bf16.mxu0 0
        %3790 = vmatmul.mubr.bf16.gmra.mrb[0].mxu0 %v3666
        %v3791 = vpop.f32.mrb[0].mxu0
        %v3792 = vadd.f32 0.0, %v3791
        %v3793 = vpop.f32.mrb[0].mxu0
        %v3794 = vpop.f32.mrb[0].mxu0
        %v3795 = vadd.f32 0.0, %v3794
        %v3796 = vpop.f32.mrb[0].mxu0
        %3797 = vmatprep.mubr.bf16.mxu0 0
        %3798 = vmatmul.mubr.bf16.gmra.mrb[0].mxu0 %v3669
        %v3799 = vpop.f32.mrb[0].mxu0
        %v3800 = vadd.f32 0.0, %v3799
        %v3801 = vpop.f32.mrb[0].mxu0
        %v3802 = vpop.f32.mrb[0].mxu0
        %v3803 = vadd.f32 0.0, %v3802
        %v3804 = vpop.f32.mrb[0].mxu0
        %3805 = vmatprep.mubr.bf16.mxu0 0
        %3806 = vmatmul.mubr.bf16.gmra.mrb[0].mxu0 %v3672
        %v3807 = vpop.f32.mrb[0].mxu0
        %v3808 = vadd.f32 0.0, %v3807
        %v3809 = vpop.f32.mrb[0].mxu0
        %v3810 = vpop.f32.mrb[0].mxu0
        %v3811 = vadd.f32 0.0, %v3810
        %v3812 = vpop.f32.mrb[0].mxu0
        %3813 = vmatprep.mubr.bf16.mxu0 0
        %3814 = vmatmul.mubr.bf16.gmra.mrb[0].mxu0 %v3675
        %v3815 = vpop.f32.mrb[0].mxu0
        %v3816 = vadd.f32 0.0, %v3815
        %v3817 = vpop.f32.mrb[0].mxu0
        %v3818 = vpop.f32.mrb[0].mxu0
        %v3819 = vadd.f32 0.0, %v3818
        %v3820 = vpop.f32.mrb[0].mxu0
        %3821 = vmatprep.mubr.bf16.mxu0 0
        %3822 = vmatmul.mubr.bf16.gmra.mrb[0].mxu0 %v3678
        %v3823 = vpop.f32.mrb[0].mxu0
        %v3824 = vadd.f32 0.0, %v3823
        %v3825 = vpop.f32.mrb[0].mxu0
        %v3826 = vpop.f32.mrb[0].mxu0
        %v3827 = vadd.f32 0.0, %v3826
        %v3828 = vpop.f32.mrb[0].mxu0
        %3829 = vmatprep.mubr.bf16.mxu0 0
        %3830 = vmatmul.mubr.bf16.gmra.mrb[0].mxu0 %v3681
        %v3831 = vpop.f32.mrb[0].mxu0
        %v3832 = vadd.f32 0.0, %v3831
        %v3833 = vpop.f32.mrb[0].mxu0
        %v3834 = vpop.f32.mrb[0].mxu0
        %v3835 = vadd.f32 0.0, %v3834
        %v3836 = vpop.f32.mrb[0].mxu0
        %3837 = vmatprep.mubr.bf16.mxu0 0
        %3838 = vmatmul.mubr.bf16.gmra.mrb[0].mxu0 %v3684
        %v3839 = vpop.f32.mrb[0].mxu0
        %v3840 = vadd.f32 0.0, %v3839
        %v3841 = vpop.f32.mrb[0].mxu0
        %v3842 = vpop.f32.mrb[0].mxu0
        %v3843 = vadd.f32 0.0, %v3842
        %v3844 = vpop.f32.mrb[0].mxu0
        %3845 = vmatprep.mubr.bf16.mxu0 0
        %3846 = vmatmul.mubr.bf16.gmra.mrb[0].mxu0 %v3687
        %v3847 = vpop.f32.mrb[0].mxu0
        %v3848 = vadd.f32 0.0, %v3847
        %v3849 = vpop.f32.mrb[0].mxu0
        %v3850 = vpop.f32.mrb[0].mxu0
        %v3851 = vadd.f32 0.0, %v3850
        %v3852 = vpop.f32.mrb[0].mxu0
        %3853 = vmatprep.mubr.bf16.mxu0 0
        %3854 = vmatmul.mubr.bf16.gmra.mrb[0].mxu0 %v3690
        %v3855 = vpop.f32.mrb[0].mxu0
        %v3856 = vadd.f32 0.0, %v3855
        %v3857 = vpop.f32.mrb[0].mxu0
        %v3858 = vpop.f32.mrb[0].mxu0
        %v3859 = vadd.f32 0.0, %v3858
        %v3860 = vpop.f32.mrb[0].mxu0
        %3861 = vmatprep.mubr.bf16.mxu0 0
        %3862 = vmatmul.mubr.bf16.gmra.mrb[0].mxu0 %v3693
        %v3863 = vpop.f32.mrb[0].mxu0
        %v3864 = vadd.f32 0.0, %v3863
        %v3865 = vpop.f32.mrb[0].mxu0
        %v3866 = vpop.f32.mrb[0].mxu0
        %v3867 = vadd.f32 0.0, %v3866
        %v3868 = vpop.f32.mrb[0].mxu0
        %3869 = vmatprep.mubr.bf16.mxu0 0
        %3870 = vmatmul.mubr.bf16.gmra.mrb[0].mxu0 %v3696
        %v3871 = vpop.f32.mrb[0].mxu0
        %v3872 = vadd.f32 0.0, %v3871
        %v3873 = vpop.f32.mrb[0].mxu0
        %v3874 = vpop.f32.mrb[0].mxu0
        %v3875 = vadd.f32 0.0, %v3874
        %v3876 = vpop.f32.mrb[0].mxu0
        %3877 = vdwg.mxu0
        %v3878 = vadd.f32 %v3431, %v3736
        %v3879 = vadd.f32 %v3432, %v3739
        %v3880 = vadd.f32 %v3433, %v3744
        %v3881 = vadd.f32 %v3434, %v3747
        %v3882 = vadd.f32 %v3435, %v3752
        %v3883 = vadd.f32 %v3436, %v3755
        %v3884 = vadd.f32 %v3437, %v3760
        %v3885 = vadd.f32 %v3438, %v3763
        %v3886 = vadd.f32 %v3439, %v3768
        %v3887 = vadd.f32 %v3440, %v3771
        %v3888 = vadd.f32 %v3441, %v3776
        %v3889 = vadd.f32 %v3442, %v3779
        %v3890 = vadd.f32 %v3443, %v3784
        %v3891 = vadd.f32 %v3444, %v3787
        %v3892 = vadd.f32 %v3445, %v3792
        %v3893 = vadd.f32 %v3446, %v3795
        %v3894 = vadd.f32 %v3447, %v3800
        %v3895 = vadd.f32 %v3448, %v3803
        %v3896 = vadd.f32 %v3449, %v3808
        %v3897 = vadd.f32 %v3450, %v3811
        %v3898 = vadd.f32 %v3451, %v3816
        %v3899 = vadd.f32 %v3452, %v3819
        %v3900 = vadd.f32 %v3453, %v3824
        %v3901 = vadd.f32 %v3454, %v3827
        %v3902 = vadd.f32 %v3455, %v3832
        %v3903 = vadd.f32 %v3456, %v3835
        %v3904 = vadd.f32 %v3457, %v3840
        %v3905 = vadd.f32 %v3458, %v3843
        %v3906 = vadd.f32 %v3459, %v3848
        %v3907 = vadd.f32 %v3460, %v3851
        %v3908 = vadd.f32 %v3461, %v3856
        %v3909 = vadd.f32 %v3462, %v3859
        %v3910 = vadd.f32 %v3463, %v3864
        %v3911 = vadd.f32 %v3464, %v3867
        %v3912 = vadd.f32 %v3465, %v3872
        %v3913 = vadd.f32 %v3466, %v3875
        %v3914 = vld [vmem:[#allocation2 + $0x10] sm:$0x8]
        %s3915 = scalar_lea.vmem [#allocation7], 32
        %v3916 = vld [vmem:[%s3915] sm:$0xf]
        %v3918 = vunpack.c.l.b16 %v3914
        %v3919 = vpack.c.b16 %v3105, %v3918
        %vm3920 = vcmask 1044480
        %v3921 = vrot.slane %v3919, 3
        %v3922 = vrot.slane %v3142, 3
        %v3923 = vsel %vm3920, %v3921, %v3922
        %v3924 = vrot.slane %v3143, 3
        %v3925 = vsel %vm3920, %v3922, %v3924
        %v3926 = vrot.slane %v3144, 3
        %v3927 = vsel %vm3920, %v3924, %v3926
        %v3928 = vrot.slane %v3145, 3
        %v3929 = vsel %vm3920, %v3926, %v3928
        %v3930 = vrot.slane %v3146, 3
        %v3931 = vsel %vm3920, %v3928, %v3930
        %v3932 = vrot.slane %v3147, 3
        %v3933 = vsel %vm3920, %v3930, %v3932
        %v3934 = vrot.slane %v3148, 3
        %v3935 = vsel %vm3920, %v3932, %v3934
        %v3936 = vrot.slane %v3149, 3
        %v3937 = vsel %vm3920, %v3934, %v3936
        %v3938 = vrot.slane %v3150, 3
        %v3939 = vsel %vm3920, %v3936, %v3938
        %v3940 = vrot.slane %v3151, 3
        %v3941 = vsel %vm3920, %v3938, %v3940
        %v3942 = vrot.slane %v3152, 3
        %v3943 = vsel %vm3920, %v3940, %v3942
        %v3944 = vrot.slane %v3153, 3
        %v3945 = vsel %vm3920, %v3942, %v3944
        %v3946 = vrot.slane %v3154, 3
        %v3947 = vsel %vm3920, %v3944, %v3946
        %v3948 = vrot.slane %v3155, 3
        %v3949 = vsel %vm3920, %v3946, %v3948
        %v3950 = vrot.slane %v3156, 3
        %v3951 = vsel %vm3920, %v3948, %v3950
        %v3952 = vrot.slane %v3157, 3
        %v3953 = vsel %vm3920, %v3950, %v3952
        %v3954 = vrot.slane %v3158, 3
        %v3955 = vsel %vm3920, %v3952, %v3954
        %v3956 = vrot.slane %v3472, 3
        %v3957 = vsel %vm3920, %v3954, %v3956
        %v3959 = vsel %vm546, %v3923, 0
        %v3962 = vsel %vm546, %v3925, 0
        %v3965 = vsel %vm546, %v3927, 0
        %v3968 = vsel %vm546, %v3929, 0
        %v3971 = vsel %vm546, %v3931, 0
        %v3974 = vsel %vm546, %v3933, 0
        %v3977 = vsel %vm546, %v3935, 0
        %v3980 = vsel %vm546, %v3937, 0
        %v3983 = vsel %vm546, %v3939, 0
        %v3986 = vsel %vm546, %v3941, 0
        %v3989 = vsel %vm546, %v3943, 0
        %v3992 = vsel %vm546, %v3945, 0
        %v3995 = vsel %vm546, %v3947, 0
        %v3998 = vsel %vm546, %v3949, 0
        %v4001 = vsel %vm546, %v3951, 0
        %v4004 = vsel %vm546, %v3953, 0
        %v4007 = vsel %vm546, %v3955, 0
        %v4010 = vsel %vm546, %v3957, 0
        %v4013 = vsel %vm1117, %v3916, 0
        %4015 = vmatprep.subr.bf16.mxu0 0
        %4016 = vmatpush1.bf16.msra.mxu0 %v4013
        %4017 = vmatprep.subr.bf16.mxu0 0
        %4018 = vmatpush1.bf16.msra.mxu0 0
        %4019 = vmatprep.subr.bf16.mxu0 0
        %4020 = vmatpush1.bf16.msra.mxu0 0
        %4021 = vmatprep.subr.bf16.mxu0 0
        %4022 = vmatpush1.bf16.msra.mxu0 0
        %4023 = vmatprep.subr.bf16.mxu0 0
        %4024 = vmatpush1.bf16.msra.mxu0 0
        %4025 = vmatprep.subr.bf16.mxu0 0
        %4026 = vmatpush1.bf16.msra.mxu0 0
        %4027 = vmatprep.subr.bf16.mxu0 0
        %4028 = vmatpush1.bf16.msra.mxu0 0
        %4029 = vmatprep.subr.bf16.mxu0 0
        %4030 = vmatpush1.bf16.msra.mxu0 0
        %4031 = vmatprep.subr.bf16.mxu0 0
        %4032 = vmatpush1.bf16.msra.mxu0 0
        %4033 = vmatprep.subr.bf16.mxu0 0
        %4034 = vmatpush1.bf16.msra.mxu0 0
        %4035 = vmatprep.subr.bf16.mxu0 0
        %4036 = vmatpush1.bf16.msra.mxu0 0
        %4037 = vmatprep.subr.bf16.mxu0 0
        %4038 = vmatpush1.bf16.msra.mxu0 0
        %4039 = vmatprep.subr.bf16.mxu0 0
        %4040 = vmatpush1.bf16.msra.mxu0 0
        %4041 = vmatprep.subr.bf16.mxu0 0
        %4042 = vmatpush1.bf16.msra.mxu0 0
        %4043 = vmatprep.subr.bf16.mxu0 0
        %4044 = vmatpush1.bf16.msra.mxu0 0
        %4045 = vmatprep.subr.bf16.mxu0 0
        %4046 = vmatpush1.bf16.msra.mxu0 0
        %4047 = vmatprep.mubr.bf16.mxu0 0
        %4048 = vmatmul.mubr.bf16.gmra.mrb[0].mxu0 %v3959
        %v4049 = vpop.f32.mrb[0].mxu0
        %v4050 = vadd.f32 0.0, %v4049
        %v4051 = vpop.f32.mrb[0].mxu0
        %v4052 = vpop.f32.mrb[0].mxu0
        %v4053 = vadd.f32 0.0, %v4052
        %v4054 = vpop.f32.mrb[0].mxu0
        %4055 = vmatprep.mubr.bf16.mxu0 0
        %4056 = vmatmul.mubr.bf16.gmra.mrb[0].mxu0 %v3962
        %v4057 = vpop.f32.mrb[0].mxu0
        %v4058 = vadd.f32 0.0, %v4057
        %v4059 = vpop.f32.mrb[0].mxu0
        %v4060 = vpop.f32.mrb[0].mxu0
        %v4061 = vadd.f32 0.0, %v4060
        %v4062 = vpop.f32.mrb[0].mxu0
        %4063 = vmatprep.mubr.bf16.mxu0 0
        %4064 = vmatmul.mubr.bf16.gmra.mrb[0].mxu0 %v3965
        %v4065 = vpop.f32.mrb[0].mxu0
        %v4066 = vadd.f32 0.0, %v4065
        %v4067 = vpop.f32.mrb[0].mxu0
        %v4068 = vpop.f32.mrb[0].mxu0
        %v4069 = vadd.f32 0.0, %v4068
        %v4070 = vpop.f32.mrb[0].mxu0
        %4071 = vmatprep.mubr.bf16.mxu0 0
        %4072 = vmatmul.mubr.bf16.gmra.mrb[0].mxu0 %v3968
        %v4073 = vpop.f32.mrb[0].mxu0
        %v4074 = vadd.f32 0.0, %v4073
        %v4075 = vpop.f32.mrb[0].mxu0
        %v4076 = vpop.f32.mrb[0].mxu0
        %v4077 = vadd.f32 0.0, %v4076
        %v4078 = vpop.f32.mrb[0].mxu0
        %4079 = vmatprep.mubr.bf16.mxu0 0
        %4080 = vmatmul.mubr.bf16.gmra.mrb[0].mxu0 %v3971
        %v4081 = vpop.f32.mrb[0].mxu0
        %v4082 = vadd.f32 0.0, %v4081
        %v4083 = vpop.f32.mrb[0].mxu0
        %v4084 = vpop.f32.mrb[0].mxu0
        %v4085 = vadd.f32 0.0, %v4084
        %v4086 = vpop.f32.mrb[0].mxu0
        %4087 = vmatprep.mubr.bf16.mxu0 0
        %4088 = vmatmul.mubr.bf16.gmra.mrb[0].mxu0 %v3974
        %v4089 = vpop.f32.mrb[0].mxu0
        %v4090 = vadd.f32 0.0, %v4089
        %v4091 = vpop.f32.mrb[0].mxu0
        %v4092 = vpop.f32.mrb[0].mxu0
        %v4093 = vadd.f32 0.0, %v4092
        %v4094 = vpop.f32.mrb[0].mxu0
        %4095 = vmatprep.mubr.bf16.mxu0 0
        %4096 = vmatmul.mubr.bf16.gmra.mrb[0].mxu0 %v3977
        %v4097 = vpop.f32.mrb[0].mxu0
        %v4098 = vadd.f32 0.0, %v4097
        %v4099 = vpop.f32.mrb[0].mxu0
        %v4100 = vpop.f32.mrb[0].mxu0
        %v4101 = vadd.f32 0.0, %v4100
        %v4102 = vpop.f32.mrb[0].mxu0
        %4103 = vmatprep.mubr.bf16.mxu0 0
        %4104 = vmatmul.mubr.bf16.gmra.mrb[0].mxu0 %v3980
        %v4105 = vpop.f32.mrb[0].mxu0
        %v4106 = vadd.f32 0.0, %v4105
        %v4107 = vpop.f32.mrb[0].mxu0
        %v4108 = vpop.f32.mrb[0].mxu0
        %v4109 = vadd.f32 0.0, %v4108
        %v4110 = vpop.f32.mrb[0].mxu0
        %4111 = vmatprep.mubr.bf16.mxu0 0
        %4112 = vmatmul.mubr.bf16.gmra.mrb[0].mxu0 %v3983
        %v4113 = vpop.f32.mrb[0].mxu0
        %v4114 = vadd.f32 0.0, %v4113
        %v4115 = vpop.f32.mrb[0].mxu0
        %v4116 = vpop.f32.mrb[0].mxu0
        %v4117 = vadd.f32 0.0, %v4116
        %v4118 = vpop.f32.mrb[0].mxu0
        %4119 = vmatprep.mubr.bf16.mxu0 0
        %4120 = vmatmul.mubr.bf16.gmra.mrb[0].mxu0 %v3986
        %v4121 = vpop.f32.mrb[0].mxu0
        %v4122 = vadd.f32 0.0, %v4121
        %v4123 = vpop.f32.mrb[0].mxu0
        %v4124 = vpop.f32.mrb[0].mxu0
        %v4125 = vadd.f32 0.0, %v4124
        %v4126 = vpop.f32.mrb[0].mxu0
        %4127 = vmatprep.mubr.bf16.mxu0 0
        %4128 = vmatmul.mubr.bf16.gmra.mrb[0].mxu0 %v3989
        %v4129 = vpop.f32.mrb[0].mxu0
        %v4130 = vadd.f32 0.0, %v4129
        %v4131 = vpop.f32.mrb[0].mxu0
        %v4132 = vpop.f32.mrb[0].mxu0
        %v4133 = vadd.f32 0.0, %v4132
        %v4134 = vpop.f32.mrb[0].mxu0
        %4135 = vmatprep.mubr.bf16.mxu0 0
        %4136 = vmatmul.mubr.bf16.gmra.mrb[0].mxu0 %v3992
        %v4137 = vpop.f32.mrb[0].mxu0
        %v4138 = vadd.f32 0.0, %v4137
        %v4139 = vpop.f32.mrb[0].mxu0
        %v4140 = vpop.f32.mrb[0].mxu0
        %v4141 = vadd.f32 0.0, %v4140
        %v4142 = vpop.f32.mrb[0].mxu0
        %4143 = vmatprep.mubr.bf16.mxu0 0
        %4144 = vmatmul.mubr.bf16.gmra.mrb[0].mxu0 %v3995
        %v4145 = vpop.f32.mrb[0].mxu0
        %v4146 = vadd.f32 0.0, %v4145
        %v4147 = vpop.f32.mrb[0].mxu0
        %v4148 = vpop.f32.mrb[0].mxu0
        %v4149 = vadd.f32 0.0, %v4148
        %v4150 = vpop.f32.mrb[0].mxu0
        %4151 = vmatprep.mubr.bf16.mxu0 0
        %4152 = vmatmul.mubr.bf16.gmra.mrb[0].mxu0 %v3998
        %v4153 = vpop.f32.mrb[0].mxu0
        %v4154 = vadd.f32 0.0, %v4153
        %v4155 = vpop.f32.mrb[0].mxu0
        %v4156 = vpop.f32.mrb[0].mxu0
        %v4157 = vadd.f32 0.0, %v4156
        %v4158 = vpop.f32.mrb[0].mxu0
        %4159 = vmatprep.mubr.bf16.mxu0 0
        %4160 = vmatmul.mubr.bf16.gmra.mrb[0].mxu0 %v4001
        %v4161 = vpop.f32.mrb[0].mxu0
        %v4162 = vadd.f32 0.0, %v4161
        %v4163 = vpop.f32.mrb[0].mxu0
        %v4164 = vpop.f32.mrb[0].mxu0
        %v4165 = vadd.f32 0.0, %v4164
        %v4166 = vpop.f32.mrb[0].mxu0
        %4167 = vmatprep.mubr.bf16.mxu0 0
        %4168 = vmatmul.mubr.bf16.gmra.mrb[0].mxu0 %v4004
        %v4169 = vpop.f32.mrb[0].mxu0
        %v4170 = vadd.f32 0.0, %v4169
        %v4171 = vpop.f32.mrb[0].mxu0
        %v4172 = vpop.f32.mrb[0].mxu0
        %v4173 = vadd.f32 0.0, %v4172
        %v4174 = vpop.f32.mrb[0].mxu0
        %4175 = vmatprep.mubr.bf16.mxu0 0
        %4176 = vmatmul.mubr.bf16.gmra.mrb[0].mxu0 %v4007
        %v4177 = vpop.f32.mrb[0].mxu0
        %v4178 = vadd.f32 0.0, %v4177
        %v4179 = vpop.f32.mrb[0].mxu0
        %v4180 = vpop.f32.mrb[0].mxu0
        %v4181 = vadd.f32 0.0, %v4180
        %v4182 = vpop.f32.mrb[0].mxu0
        %4183 = vmatprep.mubr.bf16.mxu0 0
        %4184 = vmatmul.mubr.bf16.gmra.mrb[0].mxu0 %v4010
        %v4185 = vpop.f32.mrb[0].mxu0
        %v4186 = vadd.f32 0.0, %v4185
        %v4187 = vpop.f32.mrb[0].mxu0
        %v4188 = vpop.f32.mrb[0].mxu0
        %v4189 = vadd.f32 0.0, %v4188
        %v4190 = vpop.f32.mrb[0].mxu0
        %4191 = vdwg.mxu0
        %v4192 = vadd.f32 %v3878, %v4050
        %v4193 = vadd.f32 %v3879, %v4053
        %v4194 = vadd.f32 %v3880, %v4058
        %v4195 = vadd.f32 %v3881, %v4061
        %v4196 = vadd.f32 %v3882, %v4066
        %v4197 = vadd.f32 %v3883, %v4069
        %v4198 = vadd.f32 %v3884, %v4074
        %v4199 = vadd.f32 %v3885, %v4077
        %v4200 = vadd.f32 %v3886, %v4082
        %v4201 = vadd.f32 %v3887, %v4085
        %v4202 = vadd.f32 %v3888, %v4090
        %v4203 = vadd.f32 %v3889, %v4093
        %v4204 = vadd.f32 %v3890, %v4098
        %v4205 = vadd.f32 %v3891, %v4101
        %v4206 = vadd.f32 %v3892, %v4106
        %v4207 = vadd.f32 %v3893, %v4109
        %v4208 = vadd.f32 %v3894, %v4114
        %v4209 = vadd.f32 %v3895, %v4117
        %v4210 = vadd.f32 %v3896, %v4122
        %v4211 = vadd.f32 %v3897, %v4125
        %v4212 = vadd.f32 %v3898, %v4130
        %v4213 = vadd.f32 %v3899, %v4133
        %v4214 = vadd.f32 %v3900, %v4138
        %v4215 = vadd.f32 %v3901, %v4141
        %v4216 = vadd.f32 %v3902, %v4146
        %v4217 = vadd.f32 %v3903, %v4149
        %v4218 = vadd.f32 %v3904, %v4154
        %v4219 = vadd.f32 %v3905, %v4157
        %v4220 = vadd.f32 %v3906, %v4162
        %v4221 = vadd.f32 %v3907, %v4165
        %v4222 = vadd.f32 %v3908, %v4170
        %v4223 = vadd.f32 %v3909, %v4173
        %v4224 = vadd.f32 %v3910, %v4178
        %v4225 = vadd.f32 %v3911, %v4181
        %v4226 = vadd.f32 %v3912, %v4186
        %v4227 = vadd.f32 %v3913, %v4189
        %v4228 = vlaneseq
        %v4229 = vshrl.u32 %v4228, 7
        %v4230 = vadd.s32 %v4229, 8
        %v4231 = vadd.s32 %v4229, 16
        %v4232 = vadd.s32 %v4229, 24
        %v4233 = vadd.s32 %v4229, 32
        %v4234 = vadd.s32 %v4229, 40
        %v4235 = vadd.s32 %v4229, 48
        %v4236 = vadd.s32 %v4229, 56
        %v4237 = vadd.s32 %v4229, 64
        %v4238 = vadd.s32 %v4229, 72
        %v4239 = vadd.s32 %v4229, 80
        %v4240 = vadd.s32 %v4229, 88
        %v4241 = vadd.s32 %v4229, 96
        %v4242 = vadd.s32 %v4229, 104
        %v4243 = vadd.s32 %v4229, 112
        %v4244 = vadd.s32 %v4229, 120
        %v4245 = vadd.s32 %v4229, 128
        %v4246 = vadd.s32 %v4229, 136
        %v4247 = vadd.s32 %v4229, 144
        %v4248 = vadd.s32 %v4229, 152
        %v4249 = vadd.s32 %v4229, 160
        %v4250 = vadd.s32 %v4229, 168
        %v4251 = vadd.s32 %v4229, 176
        %v4252 = vadd.s32 %v4229, 184
        %v4253 = vadd.s32 %v4229, 192
        %v4254 = vadd.s32 %v4229, 200
        %v4255 = vadd.s32 %v4229, 208
        %v4256 = vadd.s32 %v4229, 216
        %v4257 = vadd.s32 %v4229, 224
        %v4258 = vadd.s32 %v4229, 232
        %v4259 = vadd.s32 %v4229, 240
        %v4260 = vadd.s32 %v4229, 248
        %v4261 = vadd.s32 %v4229, 256
        %v4262 = vadd.s32 %v4229, 264
        %v4263 = vadd.s32 %v4229, 272
        %v4264 = vadd.s32 %v4229, 280
        %vm4265 = vcmp.lt.s32.totalorder %v4229, 0
        %v4266 = vsub.s32 0, %v4229
        %v4267 = vsel %vm4265, %v4266, %v4229
        %v4268 = vmul.u32.u64.compose %v4267, 3817748708
        %v4269 = vextract.low.u32 %v4268
        %v4270 = vextract.high.u32 %v4268
        %v4271 = vshrl.u32 %v4270, 4
        %v4272 = vmul.u32 %v4271, 18
        %v4273 = vsub.s32 %v4267, %v4272
        %v4274 = vsub.s32 0, %v4273
        %v4275 = vsel %vm4265, %v4274, %v4273
        %vm4276 = vcmp.lt.s32.totalorder %v4230, 0
        %v4277 = vsub.s32 0, %v4230
        %v4278 = vsel %vm4276, %v4277, %v4230
        %v4279 = vmul.u32.u64.compose %v4278, 3817748708
        %v4280 = vextract.low.u32 %v4279
        %v4281 = vextract.high.u32 %v4279
        %v4282 = vshrl.u32 %v4281, 4
        %v4283 = vmul.u32 %v4282, 18
        %v4284 = vsub.s32 %v4278, %v4283
        %v4285 = vsub.s32 0, %v4284
        %v4286 = vsel %vm4276, %v4285, %v4284
        %vm4287 = vcmp.lt.s32.totalorder %v4231, 0
        %v4288 = vsub.s32 0, %v4231
        %v4289 = vsel %vm4287, %v4288, %v4231
        %v4290 = vmul.u32.u64.compose %v4289, 3817748708
        %v4291 = vextract.low.u32 %v4290
        %v4292 = vextract.high.u32 %v4290
        %v4293 = vshrl.u32 %v4292, 4
        %v4294 = vmul.u32 %v4293, 18
        %v4295 = vsub.s32 %v4289, %v4294
        %v4296 = vsub.s32 0, %v4295
        %v4297 = vsel %vm4287, %v4296, %v4295
        %vm4298 = vcmp.lt.s32.totalorder %v4232, 0
        %v4299 = vsub.s32 0, %v4232
        %v4300 = vsel %vm4298, %v4299, %v4232
        %v4301 = vmul.u32.u64.compose %v4300, 3817748708
        %v4302 = vextract.low.u32 %v4301
        %v4303 = vextract.high.u32 %v4301
        %v4304 = vshrl.u32 %v4303, 4
        %v4305 = vmul.u32 %v4304, 18
        %v4306 = vsub.s32 %v4300, %v4305
        %v4307 = vsub.s32 0, %v4306
        %v4308 = vsel %vm4298, %v4307, %v4306
        %vm4309 = vcmp.lt.s32.totalorder %v4233, 0
        %v4310 = vsub.s32 0, %v4233
        %v4311 = vsel %vm4309, %v4310, %v4233
        %v4312 = vmul.u32.u64.compose %v4311, 3817748708
        %v4313 = vextract.low.u32 %v4312
        %v4314 = vextract.high.u32 %v4312
        %v4315 = vshrl.u32 %v4314, 4
        %v4316 = vmul.u32 %v4315, 18
        %v4317 = vsub.s32 %v4311, %v4316
        %v4318 = vsub.s32 0, %v4317
        %v4319 = vsel %vm4309, %v4318, %v4317
        %vm4320 = vcmp.lt.s32.totalorder %v4234, 0
        %v4321 = vsub.s32 0, %v4234
        %v4322 = vsel %vm4320, %v4321, %v4234
        %v4323 = vmul.u32.u64.compose %v4322, 3817748708
        %v4324 = vextract.low.u32 %v4323
        %v4325 = vextract.high.u32 %v4323
        %v4326 = vshrl.u32 %v4325, 4
        %v4327 = vmul.u32 %v4326, 18
        %v4328 = vsub.s32 %v4322, %v4327
        %v4329 = vsub.s32 0, %v4328
        %v4330 = vsel %vm4320, %v4329, %v4328
        %vm4331 = vcmp.lt.s32.totalorder %v4235, 0
        %v4332 = vsub.s32 0, %v4235
        %v4333 = vsel %vm4331, %v4332, %v4235
        %v4334 = vmul.u32.u64.compose %v4333, 3817748708
        %v4335 = vextract.low.u32 %v4334
        %v4336 = vextract.high.u32 %v4334
        %v4337 = vshrl.u32 %v4336, 4
        %v4338 = vmul.u32 %v4337, 18
        %v4339 = vsub.s32 %v4333, %v4338
        %v4340 = vsub.s32 0, %v4339
        %v4341 = vsel %vm4331, %v4340, %v4339
        %vm4342 = vcmp.lt.s32.totalorder %v4236, 0
        %v4343 = vsub.s32 0, %v4236
        %v4344 = vsel %vm4342, %v4343, %v4236
        %v4345 = vmul.u32.u64.compose %v4344, 3817748708
        %v4346 = vextract.low.u32 %v4345
        %v4347 = vextract.high.u32 %v4345
        %v4348 = vshrl.u32 %v4347, 4
        %v4349 = vmul.u32 %v4348, 18
        %v4350 = vsub.s32 %v4344, %v4349
        %v4351 = vsub.s32 0, %v4350
        %v4352 = vsel %vm4342, %v4351, %v4350
        %vm4353 = vcmp.lt.s32.totalorder %v4237, 0
        %v4354 = vsub.s32 0, %v4237
        %v4355 = vsel %vm4353, %v4354, %v4237
        %v4356 = vmul.u32.u64.compose %v4355, 3817748708
        %v4357 = vextract.low.u32 %v4356
        %v4358 = vextract.high.u32 %v4356
        %v4359 = vshrl.u32 %v4358, 4
        %v4360 = vmul.u32 %v4359, 18
        %v4361 = vsub.s32 %v4355, %v4360
        %v4362 = vsub.s32 0, %v4361
        %v4363 = vsel %vm4353, %v4362, %v4361
        %vm4364 = vcmp.lt.s32.totalorder %v4238, 0
        %v4365 = vsub.s32 0, %v4238
        %v4366 = vsel %vm4364, %v4365, %v4238
        %v4367 = vmul.u32.u64.compose %v4366, 3817748708
        %v4368 = vextract.low.u32 %v4367
        %v4369 = vextract.high.u32 %v4367
        %v4370 = vshrl.u32 %v4369, 4
        %v4371 = vmul.u32 %v4370, 18
        %v4372 = vsub.s32 %v4366, %v4371
        %v4373 = vsub.s32 0, %v4372
        %v4374 = vsel %vm4364, %v4373, %v4372
        %vm4375 = vcmp.lt.s32.totalorder %v4239, 0
        %v4376 = vsub.s32 0, %v4239
        %v4377 = vsel %vm4375, %v4376, %v4239
        %v4378 = vmul.u32.u64.compose %v4377, 3817748708
        %v4379 = vextract.low.u32 %v4378
        %v4380 = vextract.high.u32 %v4378
        %v4381 = vshrl.u32 %v4380, 4
        %v4382 = vmul.u32 %v4381, 18
        %v4383 = vsub.s32 %v4377, %v4382
        %v4384 = vsub.s32 0, %v4383
        %v4385 = vsel %vm4375, %v4384, %v4383
        %vm4386 = vcmp.lt.s32.totalorder %v4240, 0
        %v4387 = vsub.s32 0, %v4240
        %v4388 = vsel %vm4386, %v4387, %v4240
        %v4389 = vmul.u32.u64.compose %v4388, 3817748708
        %v4390 = vextract.low.u32 %v4389
        %v4391 = vextract.high.u32 %v4389
        %v4392 = vshrl.u32 %v4391, 4
        %v4393 = vmul.u32 %v4392, 18
        %v4394 = vsub.s32 %v4388, %v4393
        %v4395 = vsub.s32 0, %v4394
        %v4396 = vsel %vm4386, %v4395, %v4394
        %vm4397 = vcmp.lt.s32.totalorder %v4241, 0
        %v4398 = vsub.s32 0, %v4241
        %v4399 = vsel %vm4397, %v4398, %v4241
        %v4400 = vmul.u32.u64.compose %v4399, 3817748708
        %v4401 = vextract.low.u32 %v4400
        %v4402 = vextract.high.u32 %v4400
        %v4403 = vshrl.u32 %v4402, 4
        %v4404 = vmul.u32 %v4403, 18
        %v4405 = vsub.s32 %v4399, %v4404
        %v4406 = vsub.s32 0, %v4405
        %v4407 = vsel %vm4397, %v4406, %v4405
        %vm4408 = vcmp.lt.s32.totalorder %v4242, 0
        %v4409 = vsub.s32 0, %v4242
        %v4410 = vsel %vm4408, %v4409, %v4242
        %v4411 = vmul.u32.u64.compose %v4410, 3817748708
        %v4412 = vextract.low.u32 %v4411
        %v4413 = vextract.high.u32 %v4411
        %v4414 = vshrl.u32 %v4413, 4
        %v4415 = vmul.u32 %v4414, 18
        %v4416 = vsub.s32 %v4410, %v4415
        %v4417 = vsub.s32 0, %v4416
        %v4418 = vsel %vm4408, %v4417, %v4416
        %vm4419 = vcmp.lt.s32.totalorder %v4243, 0
        %v4420 = vsub.s32 0, %v4243
        %v4421 = vsel %vm4419, %v4420, %v4243
        %v4422 = vmul.u32.u64.compose %v4421, 3817748708
        %v4423 = vextract.low.u32 %v4422
        %v4424 = vextract.high.u32 %v4422
        %v4425 = vshrl.u32 %v4424, 4
        %v4426 = vmul.u32 %v4425, 18
        %v4427 = vsub.s32 %v4421, %v4426
        %v4428 = vsub.s32 0, %v4427
        %v4429 = vsel %vm4419, %v4428, %v4427
        %vm4430 = vcmp.lt.s32.totalorder %v4244, 0
        %v4431 = vsub.s32 0, %v4244
        %v4432 = vsel %vm4430, %v4431, %v4244
        %v4433 = vmul.u32.u64.compose %v4432, 3817748708
        %v4434 = vextract.low.u32 %v4433
        %v4435 = vextract.high.u32 %v4433
        %v4436 = vshrl.u32 %v4435, 4
        %v4437 = vmul.u32 %v4436, 18
        %v4438 = vsub.s32 %v4432, %v4437
        %v4439 = vsub.s32 0, %v4438
        %v4440 = vsel %vm4430, %v4439, %v4438
        %vm4441 = vcmp.lt.s32.totalorder %v4245, 0
        %v4442 = vsub.s32 0, %v4245
        %v4443 = vsel %vm4441, %v4442, %v4245
        %v4444 = vmul.u32.u64.compose %v4443, 3817748708
        %v4445 = vextract.low.u32 %v4444
        %v4446 = vextract.high.u32 %v4444
        %v4447 = vshrl.u32 %v4446, 4
        %v4448 = vmul.u32 %v4447, 18
        %v4449 = vsub.s32 %v4443, %v4448
        %v4450 = vsub.s32 0, %v4449
        %v4451 = vsel %vm4441, %v4450, %v4449
        %vm4452 = vcmp.lt.s32.totalorder %v4246, 0
        %v4453 = vsub.s32 0, %v4246
        %v4454 = vsel %vm4452, %v4453, %v4246
        %v4455 = vmul.u32.u64.compose %v4454, 3817748708
        %v4456 = vextract.low.u32 %v4455
        %v4457 = vextract.high.u32 %v4455
        %v4458 = vshrl.u32 %v4457, 4
        %v4459 = vmul.u32 %v4458, 18
        %v4460 = vsub.s32 %v4454, %v4459
        %v4461 = vsub.s32 0, %v4460
        %v4462 = vsel %vm4452, %v4461, %v4460
        %vm4463 = vcmp.lt.s32.totalorder %v4247, 0
        %v4464 = vsub.s32 0, %v4247
        %v4465 = vsel %vm4463, %v4464, %v4247
        %v4466 = vmul.u32.u64.compose %v4465, 3817748708
        %v4467 = vextract.low.u32 %v4466
        %v4468 = vextract.high.u32 %v4466
        %v4469 = vshrl.u32 %v4468, 4
        %v4470 = vmul.u32 %v4469, 18
        %v4471 = vsub.s32 %v4465, %v4470
        %v4472 = vsub.s32 0, %v4471
        %v4473 = vsel %vm4463, %v4472, %v4471
        %vm4474 = vcmp.lt.s32.totalorder %v4248, 0
        %v4475 = vsub.s32 0, %v4248
        %v4476 = vsel %vm4474, %v4475, %v4248
        %v4477 = vmul.u32.u64.compose %v4476, 3817748708
        %v4478 = vextract.low.u32 %v4477
        %v4479 = vextract.high.u32 %v4477
        %v4480 = vshrl.u32 %v4479, 4
        %v4481 = vmul.u32 %v4480, 18
        %v4482 = vsub.s32 %v4476, %v4481
        %v4483 = vsub.s32 0, %v4482
        %v4484 = vsel %vm4474, %v4483, %v4482
        %vm4485 = vcmp.lt.s32.totalorder %v4249, 0
        %v4486 = vsub.s32 0, %v4249
        %v4487 = vsel %vm4485, %v4486, %v4249
        %v4488 = vmul.u32.u64.compose %v4487, 3817748708
        %v4489 = vextract.low.u32 %v4488
        %v4490 = vextract.high.u32 %v4488
        %v4491 = vshrl.u32 %v4490, 4
        %v4492 = vmul.u32 %v4491, 18
        %v4493 = vsub.s32 %v4487, %v4492
        %v4494 = vsub.s32 0, %v4493
        %v4495 = vsel %vm4485, %v4494, %v4493
        %vm4496 = vcmp.lt.s32.totalorder %v4250, 0
        %v4497 = vsub.s32 0, %v4250
        %v4498 = vsel %vm4496, %v4497, %v4250
        %v4499 = vmul.u32.u64.compose %v4498, 3817748708
        %v4500 = vextract.low.u32 %v4499
        %v4501 = vextract.high.u32 %v4499
        %v4502 = vshrl.u32 %v4501, 4
        %v4503 = vmul.u32 %v4502, 18
        %v4504 = vsub.s32 %v4498, %v4503
        %v4505 = vsub.s32 0, %v4504
        %v4506 = vsel %vm4496, %v4505, %v4504
        %vm4507 = vcmp.lt.s32.totalorder %v4251, 0
        %v4508 = vsub.s32 0, %v4251
        %v4509 = vsel %vm4507, %v4508, %v4251
        %v4510 = vmul.u32.u64.compose %v4509, 3817748708
        %v4511 = vextract.low.u32 %v4510
        %v4512 = vextract.high.u32 %v4510
        %v4513 = vshrl.u32 %v4512, 4
        %v4514 = vmul.u32 %v4513, 18
        %v4515 = vsub.s32 %v4509, %v4514
        %v4516 = vsub.s32 0, %v4515
        %v4517 = vsel %vm4507, %v4516, %v4515
        %vm4518 = vcmp.lt.s32.totalorder %v4252, 0
        %v4519 = vsub.s32 0, %v4252
        %v4520 = vsel %vm4518, %v4519, %v4252
        %v4521 = vmul.u32.u64.compose %v4520, 3817748708
        %v4522 = vextract.low.u32 %v4521
        %v4523 = vextract.high.u32 %v4521
        %v4524 = vshrl.u32 %v4523, 4
        %v4525 = vmul.u32 %v4524, 18
        %v4526 = vsub.s32 %v4520, %v4525
        %v4527 = vsub.s32 0, %v4526
        %v4528 = vsel %vm4518, %v4527, %v4526
        %vm4529 = vcmp.lt.s32.totalorder %v4253, 0
        %v4530 = vsub.s32 0, %v4253
        %v4531 = vsel %vm4529, %v4530, %v4253
        %v4532 = vmul.u32.u64.compose %v4531, 3817748708
        %v4533 = vextract.low.u32 %v4532
        %v4534 = vextract.high.u32 %v4532
        %v4535 = vshrl.u32 %v4534, 4
        %v4536 = vmul.u32 %v4535, 18
        %v4537 = vsub.s32 %v4531, %v4536
        %v4538 = vsub.s32 0, %v4537
        %v4539 = vsel %vm4529, %v4538, %v4537
        %vm4540 = vcmp.lt.s32.totalorder %v4254, 0
        %v4541 = vsub.s32 0, %v4254
        %v4542 = vsel %vm4540, %v4541, %v4254
        %v4543 = vmul.u32.u64.compose %v4542, 3817748708
        %v4544 = vextract.low.u32 %v4543
        %v4545 = vextract.high.u32 %v4543
        %v4546 = vshrl.u32 %v4545, 4
        %v4547 = vmul.u32 %v4546, 18
        %v4548 = vsub.s32 %v4542, %v4547
        %v4549 = vsub.s32 0, %v4548
        %v4550 = vsel %vm4540, %v4549, %v4548
        %vm4551 = vcmp.lt.s32.totalorder %v4255, 0
        %v4552 = vsub.s32 0, %v4255
        %v4553 = vsel %vm4551, %v4552, %v4255
        %v4554 = vmul.u32.u64.compose %v4553, 3817748708
        %v4555 = vextract.low.u32 %v4554
        %v4556 = vextract.high.u32 %v4554
        %v4557 = vshrl.u32 %v4556, 4
        %v4558 = vmul.u32 %v4557, 18
        %v4559 = vsub.s32 %v4553, %v4558
        %v4560 = vsub.s32 0, %v4559
        %v4561 = vsel %vm4551, %v4560, %v4559
        %vm4562 = vcmp.lt.s32.totalorder %v4256, 0
        %v4563 = vsub.s32 0, %v4256
        %v4564 = vsel %vm4562, %v4563, %v4256
        %v4565 = vmul.u32.u64.compose %v4564, 3817748708
        %v4566 = vextract.low.u32 %v4565
        %v4567 = vextract.high.u32 %v4565
        %v4568 = vshrl.u32 %v4567, 4
        %v4569 = vmul.u32 %v4568, 18
        %v4570 = vsub.s32 %v4564, %v4569
        %v4571 = vsub.s32 0, %v4570
        %v4572 = vsel %vm4562, %v4571, %v4570
        %vm4573 = vcmp.lt.s32.totalorder %v4257, 0
        %v4574 = vsub.s32 0, %v4257
        %v4575 = vsel %vm4573, %v4574, %v4257
        %v4576 = vmul.u32.u64.compose %v4575, 3817748708
        %v4577 = vextract.low.u32 %v4576
        %v4578 = vextract.high.u32 %v4576
        %v4579 = vshrl.u32 %v4578, 4
        %v4580 = vmul.u32 %v4579, 18
        %v4581 = vsub.s32 %v4575, %v4580
        %v4582 = vsub.s32 0, %v4581
        %v4583 = vsel %vm4573, %v4582, %v4581
        %vm4584 = vcmp.lt.s32.totalorder %v4258, 0
        %v4585 = vsub.s32 0, %v4258
        %v4586 = vsel %vm4584, %v4585, %v4258
        %v4587 = vmul.u32.u64.compose %v4586, 3817748708
        %v4588 = vextract.low.u32 %v4587
        %v4589 = vextract.high.u32 %v4587
        %v4590 = vshrl.u32 %v4589, 4
        %v4591 = vmul.u32 %v4590, 18
        %v4592 = vsub.s32 %v4586, %v4591
        %v4593 = vsub.s32 0, %v4592
        %v4594 = vsel %vm4584, %v4593, %v4592
        %vm4595 = vcmp.lt.s32.totalorder %v4259, 0
        %v4596 = vsub.s32 0, %v4259
        %v4597 = vsel %vm4595, %v4596, %v4259
        %v4598 = vmul.u32.u64.compose %v4597, 3817748708
        %v4599 = vextract.low.u32 %v4598
        %v4600 = vextract.high.u32 %v4598
        %v4601 = vshrl.u32 %v4600, 4
        %v4602 = vmul.u32 %v4601, 18
        %v4603 = vsub.s32 %v4597, %v4602
        %v4604 = vsub.s32 0, %v4603
        %v4605 = vsel %vm4595, %v4604, %v4603
        %vm4606 = vcmp.lt.s32.totalorder %v4260, 0
        %v4607 = vsub.s32 0, %v4260
        %v4608 = vsel %vm4606, %v4607, %v4260
        %v4609 = vmul.u32.u64.compose %v4608, 3817748708
        %v4610 = vextract.low.u32 %v4609
        %v4611 = vextract.high.u32 %v4609
        %v4612 = vshrl.u32 %v4611, 4
        %v4613 = vmul.u32 %v4612, 18
        %v4614 = vsub.s32 %v4608, %v4613
        %v4615 = vsub.s32 0, %v4614
        %v4616 = vsel %vm4606, %v4615, %v4614
        %vm4617 = vcmp.lt.s32.totalorder %v4261, 0
        %v4618 = vsub.s32 0, %v4261
        %v4619 = vsel %vm4617, %v4618, %v4261
        %v4620 = vmul.u32.u64.compose %v4619, 3817748708
        %v4621 = vextract.low.u32 %v4620
        %v4622 = vextract.high.u32 %v4620
        %v4623 = vshrl.u32 %v4622, 4
        %v4624 = vmul.u32 %v4623, 18
        %v4625 = vsub.s32 %v4619, %v4624
        %v4626 = vsub.s32 0, %v4625
        %v4627 = vsel %vm4617, %v4626, %v4625
        %vm4628 = vcmp.lt.s32.totalorder %v4262, 0
        %v4629 = vsub.s32 0, %v4262
        %v4630 = vsel %vm4628, %v4629, %v4262
        %v4631 = vmul.u32.u64.compose %v4630, 3817748708
        %v4632 = vextract.low.u32 %v4631
        %v4633 = vextract.high.u32 %v4631
        %v4634 = vshrl.u32 %v4633, 4
        %v4635 = vmul.u32 %v4634, 18
        %v4636 = vsub.s32 %v4630, %v4635
        %v4637 = vsub.s32 0, %v4636
        %v4638 = vsel %vm4628, %v4637, %v4636
        %vm4639 = vcmp.lt.s32.totalorder %v4263, 0
        %v4640 = vsub.s32 0, %v4263
        %v4641 = vsel %vm4639, %v4640, %v4263
        %v4642 = vmul.u32.u64.compose %v4641, 3817748708
        %v4643 = vextract.low.u32 %v4642
        %v4644 = vextract.high.u32 %v4642
        %v4645 = vshrl.u32 %v4644, 4
        %v4646 = vmul.u32 %v4645, 18
        %v4647 = vsub.s32 %v4641, %v4646
        %v4648 = vsub.s32 0, %v4647
        %v4649 = vsel %vm4639, %v4648, %v4647
        %vm4650 = vcmp.lt.s32.totalorder %v4264, 0
        %v4651 = vsub.s32 0, %v4264
        %v4652 = vsel %vm4650, %v4651, %v4264
        %v4653 = vmul.u32.u64.compose %v4652, 3817748708
        %v4654 = vextract.low.u32 %v4653
        %v4655 = vextract.high.u32 %v4653
        %v4656 = vshrl.u32 %v4655, 4
        %v4657 = vmul.u32 %v4656, 18
        %v4658 = vsub.s32 %v4652, %v4657
        %v4659 = vsub.s32 0, %v4658
        %v4660 = vsel %vm4650, %v4659, %v4658
        %vm4661 = vcmp.ne.s32.totalorder %v4275, 0
        %vm4662 = vcmp.ne.s32.totalorder %v4286, 0
        %vm4663 = vcmp.ne.s32.totalorder %v4297, 0
        %vm4664 = vcmp.ne.s32.totalorder %v4308, 0
        %vm4665 = vcmp.ne.s32.totalorder %v4319, 0
        %vm4666 = vcmp.ne.s32.totalorder %v4330, 0
        %vm4667 = vcmp.ne.s32.totalorder %v4341, 0
        %vm4668 = vcmp.ne.s32.totalorder %v4352, 0
        %vm4669 = vcmp.ne.s32.totalorder %v4363, 0
        %vm4670 = vcmp.ne.s32.totalorder %v4374, 0
        %vm4671 = vcmp.ne.s32.totalorder %v4385, 0
        %vm4672 = vcmp.ne.s32.totalorder %v4396, 0
        %vm4673 = vcmp.ne.s32.totalorder %v4407, 0
        %vm4674 = vcmp.ne.s32.totalorder %v4418, 0
        %vm4675 = vcmp.ne.s32.totalorder %v4429, 0
        %vm4676 = vcmp.ne.s32.totalorder %v4440, 0
        %vm4677 = vcmp.ne.s32.totalorder %v4451, 0
        %vm4678 = vcmp.ne.s32.totalorder %v4462, 0
        %vm4679 = vcmp.ne.s32.totalorder %v4473, 0
        %vm4680 = vcmp.ne.s32.totalorder %v4484, 0
        %vm4681 = vcmp.ne.s32.totalorder %v4495, 0
        %vm4682 = vcmp.ne.s32.totalorder %v4506, 0
        %vm4683 = vcmp.ne.s32.totalorder %v4517, 0
        %vm4684 = vcmp.ne.s32.totalorder %v4528, 0
        %vm4685 = vcmp.ne.s32.totalorder %v4539, 0
        %vm4686 = vcmp.ne.s32.totalorder %v4550, 0
        %vm4687 = vcmp.ne.s32.totalorder %v4561, 0
        %vm4688 = vcmp.ne.s32.totalorder %v4572, 0
        %vm4689 = vcmp.ne.s32.totalorder %v4583, 0
        %vm4690 = vcmp.ne.s32.totalorder %v4594, 0
        %vm4691 = vcmp.ne.s32.totalorder %v4605, 0
        %vm4692 = vcmp.ne.s32.totalorder %v4616, 0
        %vm4693 = vcmp.ne.s32.totalorder %v4627, 0
        %vm4694 = vcmp.ne.s32.totalorder %v4638, 0
        %vm4695 = vcmp.ne.s32.totalorder %v4649, 0
        %vm4696 = vcmp.ne.s32.totalorder %v4660, 0
        %vm4697 = vcmp.lt.s32.totalorder %v4275, 0
        %vm4698 = vcmp.lt.s32.totalorder %v4286, 0
        %vm4699 = vcmp.lt.s32.totalorder %v4297, 0
        %vm4700 = vcmp.lt.s32.totalorder %v4308, 0
        %vm4701 = vcmp.lt.s32.totalorder %v4319, 0
        %vm4702 = vcmp.lt.s32.totalorder %v4330, 0
        %vm4703 = vcmp.lt.s32.totalorder %v4341, 0
        %vm4704 = vcmp.lt.s32.totalorder %v4352, 0
        %vm4705 = vcmp.lt.s32.totalorder %v4363, 0
        %vm4706 = vcmp.lt.s32.totalorder %v4374, 0
        %vm4707 = vcmp.lt.s32.totalorder %v4385, 0
        %vm4708 = vcmp.lt.s32.totalorder %v4396, 0
        %vm4709 = vcmp.lt.s32.totalorder %v4407, 0
        %vm4710 = vcmp.lt.s32.totalorder %v4418, 0
        %vm4711 = vcmp.lt.s32.totalorder %v4429, 0
        %vm4712 = vcmp.lt.s32.totalorder %v4440, 0
        %vm4713 = vcmp.lt.s32.totalorder %v4451, 0
        %vm4714 = vcmp.lt.s32.totalorder %v4462, 0
        %vm4715 = vcmp.lt.s32.totalorder %v4473, 0
        %vm4716 = vcmp.lt.s32.totalorder %v4484, 0
        %vm4717 = vcmp.lt.s32.totalorder %v4495, 0
        %vm4718 = vcmp.lt.s32.totalorder %v4506, 0
        %vm4719 = vcmp.lt.s32.totalorder %v4517, 0
        %vm4720 = vcmp.lt.s32.totalorder %v4528, 0
        %vm4721 = vcmp.lt.s32.totalorder %v4539, 0
        %vm4722 = vcmp.lt.s32.totalorder %v4550, 0
        %vm4723 = vcmp.lt.s32.totalorder %v4561, 0
        %vm4724 = vcmp.lt.s32.totalorder %v4572, 0
        %vm4725 = vcmp.lt.s32.totalorder %v4583, 0
        %vm4726 = vcmp.lt.s32.totalorder %v4594, 0
        %vm4727 = vcmp.lt.s32.totalorder %v4605, 0
        %vm4728 = vcmp.lt.s32.totalorder %v4616, 0
        %vm4729 = vcmp.lt.s32.totalorder %v4627, 0
        %vm4730 = vcmp.lt.s32.totalorder %v4638, 0
        %vm4731 = vcmp.lt.s32.totalorder %v4649, 0
        %vm4732 = vcmp.lt.s32.totalorder %v4660, 0
        %vm4733 = vmand %vm4697, %vm4661
        %vm4734 = vmand %vm4698, %vm4662
        %vm4735 = vmand %vm4699, %vm4663
        %vm4736 = vmand %vm4700, %vm4664
        %vm4737 = vmand %vm4701, %vm4665
        %vm4738 = vmand %vm4702, %vm4666
        %vm4739 = vmand %vm4703, %vm4667
        %vm4740 = vmand %vm4704, %vm4668
        %vm4741 = vmand %vm4705, %vm4669
        %vm4742 = vmand %vm4706, %vm4670
        %vm4743 = vmand %vm4707, %vm4671
        %vm4744 = vmand %vm4708, %vm4672
        %vm4745 = vmand %vm4709, %vm4673
        %vm4746 = vmand %vm4710, %vm4674
        %vm4747 = vmand %vm4711, %vm4675
        %vm4748 = vmand %vm4712, %vm4676
        %vm4749 = vmand %vm4713, %vm4677
        %vm4750 = vmand %vm4714, %vm4678
        %vm4751 = vmand %vm4715, %vm4679
        %vm4752 = vmand %vm4716, %vm4680
        %vm4753 = vmand %vm4717, %vm4681
        %vm4754 = vmand %vm4718, %vm4682
        %vm4755 = vmand %vm4719, %vm4683
        %vm4756 = vmand %vm4720, %vm4684
        %vm4757 = vmand %vm4721, %vm4685
        %vm4758 = vmand %vm4722, %vm4686
        %vm4759 = vmand %vm4723, %vm4687
        %vm4760 = vmand %vm4724, %vm4688
        %vm4761 = vmand %vm4725, %vm4689
        %vm4762 = vmand %vm4726, %vm4690
        %vm4763 = vmand %vm4727, %vm4691
        %vm4764 = vmand %vm4728, %vm4692
        %vm4765 = vmand %vm4729, %vm4693
        %vm4766 = vmand %vm4730, %vm4694
        %vm4767 = vmand %vm4731, %vm4695
        %vm4768 = vmand %vm4732, %vm4696
        %v4769 = vadd.s32 %v4275, 18
        %v4770 = vadd.s32 %v4286, 18
        %v4771 = vadd.s32 %v4297, 18
        %v4772 = vadd.s32 %v4308, 18
        %v4773 = vadd.s32 %v4319, 18
        %v4774 = vadd.s32 %v4330, 18
        %v4775 = vadd.s32 %v4341, 18
        %v4776 = vadd.s32 %v4352, 18
        %v4777 = vadd.s32 %v4363, 18
        %v4778 = vadd.s32 %v4374, 18
        %v4779 = vadd.s32 %v4385, 18
        %v4780 = vadd.s32 %v4396, 18
        %v4781 = vadd.s32 %v4407, 18
        %v4782 = vadd.s32 %v4418, 18
        %v4783 = vadd.s32 %v4429, 18
        %v4784 = vadd.s32 %v4440, 18
        %v4785 = vadd.s32 %v4451, 18
        %v4786 = vadd.s32 %v4462, 18
        %v4787 = vadd.s32 %v4473, 18
        %v4788 = vadd.s32 %v4484, 18
        %v4789 = vadd.s32 %v4495, 18
        %v4790 = vadd.s32 %v4506, 18
        %v4791 = vadd.s32 %v4517, 18
        %v4792 = vadd.s32 %v4528, 18
        %v4793 = vadd.s32 %v4539, 18
        %v4794 = vadd.s32 %v4550, 18
        %v4795 = vadd.s32 %v4561, 18
        %v4796 = vadd.s32 %v4572, 18
        %v4797 = vadd.s32 %v4583, 18
        %v4798 = vadd.s32 %v4594, 18
        %v4799 = vadd.s32 %v4605, 18
        %v4800 = vadd.s32 %v4616, 18
        %v4801 = vadd.s32 %v4627, 18
        %v4802 = vadd.s32 %v4638, 18
        %v4803 = vadd.s32 %v4649, 18
        %v4804 = vadd.s32 %v4660, 18
        %v4805 = vsel %vm4733, %v4769, %v4275
        %v4806 = vsel %vm4734, %v4770, %v4286
        %v4807 = vsel %vm4735, %v4771, %v4297
        %v4808 = vsel %vm4736, %v4772, %v4308
        %v4809 = vsel %vm4737, %v4773, %v4319
        %v4810 = vsel %vm4738, %v4774, %v4330
        %v4811 = vsel %vm4739, %v4775, %v4341
        %v4812 = vsel %vm4740, %v4776, %v4352
        %v4813 = vsel %vm4741, %v4777, %v4363
        %v4814 = vsel %vm4742, %v4778, %v4374
        %v4815 = vsel %vm4743, %v4779, %v4385
        %v4816 = vsel %vm4744, %v4780, %v4396
        %v4817 = vsel %vm4745, %v4781, %v4407
        %v4818 = vsel %vm4746, %v4782, %v4418
        %v4819 = vsel %vm4747, %v4783, %v4429
        %v4820 = vsel %vm4748, %v4784, %v4440
        %v4821 = vsel %vm4749, %v4785, %v4451
        %v4822 = vsel %vm4750, %v4786, %v4462
        %v4823 = vsel %vm4751, %v4787, %v4473
        %v4824 = vsel %vm4752, %v4788, %v4484
        %v4825 = vsel %vm4753, %v4789, %v4495
        %v4826 = vsel %vm4754, %v4790, %v4506
        %v4827 = vsel %vm4755, %v4791, %v4517
        %v4828 = vsel %vm4756, %v4792, %v4528
        %v4829 = vsel %vm4757, %v4793, %v4539
        %v4830 = vsel %vm4758, %v4794, %v4550
        %v4831 = vsel %vm4759, %v4795, %v4561
        %v4832 = vsel %vm4760, %v4796, %v4572
        %v4833 = vsel %vm4761, %v4797, %v4583
        %v4834 = vsel %vm4762, %v4798, %v4594
        %v4835 = vsel %vm4763, %v4799, %v4605
        %v4836 = vsel %vm4764, %v4800, %v4616
        %v4837 = vsel %vm4765, %v4801, %v4627
        %v4838 = vsel %vm4766, %v4802, %v4638
        %v4839 = vsel %vm4767, %v4803, %v4649
        %v4840 = vsel %vm4768, %v4804, %v4660
        %vm4841 = vcmp.lt.s32.totalorder %v4805, 16
        %vm4842 = vcmp.lt.s32.totalorder %v4806, 16
        %vm4843 = vcmp.lt.s32.totalorder %v4807, 16
        %vm4844 = vcmp.lt.s32.totalorder %v4808, 16
        %vm4845 = vcmp.lt.s32.totalorder %v4809, 16
        %vm4846 = vcmp.lt.s32.totalorder %v4810, 16
        %vm4847 = vcmp.lt.s32.totalorder %v4811, 16
        %vm4848 = vcmp.lt.s32.totalorder %v4812, 16
        %vm4849 = vcmp.lt.s32.totalorder %v4813, 16
        %vm4850 = vcmp.lt.s32.totalorder %v4814, 16
        %vm4851 = vcmp.lt.s32.totalorder %v4815, 16
        %vm4852 = vcmp.lt.s32.totalorder %v4816, 16
        %vm4853 = vcmp.lt.s32.totalorder %v4817, 16
        %vm4854 = vcmp.lt.s32.totalorder %v4818, 16
        %vm4855 = vcmp.lt.s32.totalorder %v4819, 16
        %vm4856 = vcmp.lt.s32.totalorder %v4820, 16
        %vm4857 = vcmp.lt.s32.totalorder %v4821, 16
        %vm4858 = vcmp.lt.s32.totalorder %v4822, 16
        %vm4859 = vcmp.lt.s32.totalorder %v4823, 16
        %vm4860 = vcmp.lt.s32.totalorder %v4824, 16
        %vm4861 = vcmp.lt.s32.totalorder %v4825, 16
        %vm4862 = vcmp.lt.s32.totalorder %v4826, 16
        %vm4863 = vcmp.lt.s32.totalorder %v4827, 16
        %vm4864 = vcmp.lt.s32.totalorder %v4828, 16
        %vm4865 = vcmp.lt.s32.totalorder %v4829, 16
        %vm4866 = vcmp.lt.s32.totalorder %v4830, 16
        %vm4867 = vcmp.lt.s32.totalorder %v4831, 16
        %vm4868 = vcmp.lt.s32.totalorder %v4832, 16
        %vm4869 = vcmp.lt.s32.totalorder %v4833, 16
        %vm4870 = vcmp.lt.s32.totalorder %v4834, 16
        %vm4871 = vcmp.lt.s32.totalorder %v4835, 16
        %vm4872 = vcmp.lt.s32.totalorder %v4836, 16
        %vm4873 = vcmp.lt.s32.totalorder %v4837, 16
        %vm4874 = vcmp.lt.s32.totalorder %v4838, 16
        %vm4875 = vcmp.lt.s32.totalorder %v4839, 16
        %vm4876 = vcmp.lt.s32.totalorder %v4840, 16
        %v4877 = vld [vmem:[#allocation9] sm:$0x1]
        %v4879 = vlaneseq
        %v4880 = vshrl.u32 %v4879, 7
        %v4881 = vsub.s32 0, %v4880
        %v4882 = vrot.slane %v4877, %v4881
        %v4884 = vadd.f32 %v4192, %v4882
        %v4885 = vadd.f32 %v4193, %v4882
        %v4886 = vadd.f32 %v4194, %v4882
        %v4887 = vadd.f32 %v4195, %v4882
        %v4888 = vadd.f32 %v4196, %v4882
        %v4889 = vadd.f32 %v4197, %v4882
        %v4890 = vadd.f32 %v4198, %v4882
        %v4891 = vadd.f32 %v4199, %v4882
        %v4892 = vadd.f32 %v4200, %v4882
        %v4893 = vadd.f32 %v4201, %v4882
        %v4894 = vadd.f32 %v4202, %v4882
        %v4895 = vadd.f32 %v4203, %v4882
        %v4896 = vadd.f32 %v4204, %v4882
        %v4897 = vadd.f32 %v4205, %v4882
        %v4898 = vadd.f32 %v4206, %v4882
        %v4899 = vadd.f32 %v4207, %v4882
        %v4900 = vadd.f32 %v4208, %v4882
        %v4901 = vadd.f32 %v4209, %v4882
        %v4902 = vadd.f32 %v4210, %v4882
        %v4903 = vadd.f32 %v4211, %v4882
        %v4904 = vadd.f32 %v4212, %v4882
        %v4905 = vadd.f32 %v4213, %v4882
        %v4906 = vadd.f32 %v4214, %v4882
        %v4907 = vadd.f32 %v4215, %v4882
        %v4908 = vadd.f32 %v4216, %v4882
        %v4909 = vadd.f32 %v4217, %v4882
        %v4910 = vadd.f32 %v4218, %v4882
        %v4911 = vadd.f32 %v4219, %v4882
        %v4912 = vadd.f32 %v4220, %v4882
        %v4913 = vadd.f32 %v4221, %v4882
        %v4914 = vadd.f32 %v4222, %v4882
        %v4915 = vadd.f32 %v4223, %v4882
        %v4916 = vadd.f32 %v4224, %v4882
        %v4917 = vadd.f32 %v4225, %v4882
        %v4918 = vadd.f32 %v4226, %v4882
        %v4919 = vadd.f32 %v4227, %v4882
        %v4920 = vmax.f32 %v4884, 0.0
        %v4921 = vmax.f32 %v4885, 0.0
        %v4922 = vmax.f32 %v4886, 0.0
        %v4923 = vmax.f32 %v4887, 0.0
        %v4924 = vmax.f32 %v4888, 0.0
        %v4925 = vmax.f32 %v4889, 0.0
        %v4926 = vmax.f32 %v4890, 0.0
        %v4927 = vmax.f32 %v4891, 0.0
        %v4928 = vmax.f32 %v4892, 0.0
        %v4929 = vmax.f32 %v4893, 0.0
        %v4930 = vmax.f32 %v4894, 0.0
        %v4931 = vmax.f32 %v4895, 0.0
        %v4932 = vmax.f32 %v4896, 0.0
        %v4933 = vmax.f32 %v4897, 0.0
        %v4934 = vmax.f32 %v4898, 0.0
        %v4935 = vmax.f32 %v4899, 0.0
        %v4936 = vmax.f32 %v4900, 0.0
        %v4937 = vmax.f32 %v4901, 0.0
        %v4938 = vmax.f32 %v4902, 0.0
        %v4939 = vmax.f32 %v4903, 0.0
        %v4940 = vmax.f32 %v4904, 0.0
        %v4941 = vmax.f32 %v4905, 0.0
        %v4942 = vmax.f32 %v4906, 0.0
        %v4943 = vmax.f32 %v4907, 0.0
        %v4944 = vmax.f32 %v4908, 0.0
        %v4945 = vmax.f32 %v4909, 0.0
        %v4946 = vmax.f32 %v4910, 0.0
        %v4947 = vmax.f32 %v4911, 0.0
        %v4948 = vmax.f32 %v4912, 0.0
        %v4949 = vmax.f32 %v4913, 0.0
        %v4950 = vmax.f32 %v4914, 0.0
        %v4951 = vmax.f32 %v4915, 0.0
        %v4952 = vmax.f32 %v4916, 0.0
        %v4953 = vmax.f32 %v4917, 0.0
        %v4954 = vmax.f32 %v4918, 0.0
        %v4955 = vmax.f32 %v4919, 0.0
        %v4956 = vsel %vm4841, 1, 0
        %v4957 = vsel %vm4842, 1, 0
        %v4958 = vsel %vm4843, 1, 0
        %v4959 = vsel %vm4844, 1, 0
        %v4960 = vsel %vm4845, 1, 0
        %v4961 = vsel %vm4846, 1, 0
        %v4962 = vsel %vm4847, 1, 0
        %v4963 = vsel %vm4848, 1, 0
        %v4964 = vsel %vm4849, 1, 0
        %v4965 = vsel %vm4850, 1, 0
        %v4966 = vsel %vm4851, 1, 0
        %v4967 = vsel %vm4852, 1, 0
        %v4968 = vsel %vm4853, 1, 0
        %v4969 = vsel %vm4854, 1, 0
        %v4970 = vsel %vm4855, 1, 0
        %v4971 = vsel %vm4856, 1, 0
        %v4972 = vsel %vm4857, 1, 0
        %v4973 = vsel %vm4858, 1, 0
        %v4974 = vsel %vm4859, 1, 0
        %v4975 = vsel %vm4860, 1, 0
        %v4976 = vsel %vm4861, 1, 0
        %v4977 = vsel %vm4862, 1, 0
        %v4978 = vsel %vm4863, 1, 0
        %v4979 = vsel %vm4864, 1, 0
        %v4980 = vsel %vm4865, 1, 0
        %v4981 = vsel %vm4866, 1, 0
        %v4982 = vsel %vm4867, 1, 0
        %v4983 = vsel %vm4868, 1, 0
        %v4984 = vsel %vm4869, 1, 0
        %v4985 = vsel %vm4870, 1, 0
        %v4986 = vsel %vm4871, 1, 0
        %v4987 = vsel %vm4872, 1, 0
        %v4988 = vsel %vm4873, 1, 0
        %v4989 = vsel %vm4874, 1, 0
        %v4990 = vsel %vm4875, 1, 0
        %v4991 = vsel %vm4876, 1, 0
        %vm4992 = vcmp.eq.s32.totalorder %v4956, 1
        %vm4993 = vcmp.eq.s32.totalorder %v4957, 1
        %vm4994 = vcmp.eq.s32.totalorder %v4958, 1
        %vm4995 = vcmp.eq.s32.totalorder %v4959, 1
        %vm4996 = vcmp.eq.s32.totalorder %v4960, 1
        %vm4997 = vcmp.eq.s32.totalorder %v4961, 1
        %vm4998 = vcmp.eq.s32.totalorder %v4962, 1
        %vm4999 = vcmp.eq.s32.totalorder %v4963, 1
        %vm5000 = vcmp.eq.s32.totalorder %v4964, 1
        %vm5001 = vcmp.eq.s32.totalorder %v4965, 1
        %vm5002 = vcmp.eq.s32.totalorder %v4966, 1
        %vm5003 = vcmp.eq.s32.totalorder %v4967, 1
        %vm5004 = vcmp.eq.s32.totalorder %v4968, 1
        %vm5005 = vcmp.eq.s32.totalorder %v4969, 1
        %vm5006 = vcmp.eq.s32.totalorder %v4970, 1
        %vm5007 = vcmp.eq.s32.totalorder %v4971, 1
        %vm5008 = vcmp.eq.s32.totalorder %v4972, 1
        %vm5009 = vcmp.eq.s32.totalorder %v4973, 1
        %vm5010 = vcmp.eq.s32.totalorder %v4974, 1
        %vm5011 = vcmp.eq.s32.totalorder %v4975, 1
        %vm5012 = vcmp.eq.s32.totalorder %v4976, 1
        %vm5013 = vcmp.eq.s32.totalorder %v4977, 1
        %vm5014 = vcmp.eq.s32.totalorder %v4978, 1
        %vm5015 = vcmp.eq.s32.totalorder %v4979, 1
        %vm5016 = vcmp.eq.s32.totalorder %v4980, 1
        %vm5017 = vcmp.eq.s32.totalorder %v4981, 1
        %vm5018 = vcmp.eq.s32.totalorder %v4982, 1
        %vm5019 = vcmp.eq.s32.totalorder %v4983, 1
        %vm5020 = vcmp.eq.s32.totalorder %v4984, 1
        %vm5021 = vcmp.eq.s32.totalorder %v4985, 1
        %vm5022 = vcmp.eq.s32.totalorder %v4986, 1
        %vm5023 = vcmp.eq.s32.totalorder %v4987, 1
        %vm5024 = vcmp.eq.s32.totalorder %v4988, 1
        %vm5025 = vcmp.eq.s32.totalorder %v4989, 1
        %vm5026 = vcmp.eq.s32.totalorder %v4990, 1
        %vm5027 = vcmp.eq.s32.totalorder %v4991, 1
        %v5028 = vsel %vm4992, %v4920, 0.0
        %v5029 = vsel %vm4993, %v4921, 0.0
        %v5030 = vsel %vm4994, %v4922, 0.0
        %v5031 = vsel %vm4995, %v4923, 0.0
        %v5032 = vsel %vm4996, %v4924, 0.0
        %v5033 = vsel %vm4997, %v4925, 0.0
        %v5034 = vsel %vm4998, %v4926, 0.0
        %v5035 = vsel %vm4999, %v4927, 0.0
        %v5036 = vsel %vm5000, %v4928, 0.0
        %v5037 = vsel %vm5001, %v4929, 0.0
        %v5038 = vsel %vm5002, %v4930, 0.0
        %v5039 = vsel %vm5003, %v4931, 0.0
        %v5040 = vsel %vm5004, %v4932, 0.0
        %v5041 = vsel %vm5005, %v4933, 0.0
        %v5042 = vsel %vm5006, %v4934, 0.0
        %v5043 = vsel %vm5007, %v4935, 0.0
        %v5044 = vsel %vm5008, %v4936, 0.0
        %v5045 = vsel %vm5009, %v4937, 0.0
        %v5046 = vsel %vm5010, %v4938, 0.0
        %v5047 = vsel %vm5011, %v4939, 0.0
        %v5048 = vsel %vm5012, %v4940, 0.0
        %v5049 = vsel %vm5013, %v4941, 0.0
        %v5050 = vsel %vm5014, %v4942, 0.0
        %v5051 = vsel %vm5015, %v4943, 0.0
        %v5052 = vsel %vm5016, %v4944, 0.0
        %v5053 = vsel %vm5017, %v4945, 0.0
        %v5054 = vsel %vm5018, %v4946, 0.0
        %v5055 = vsel %vm5019, %v4947, 0.0
        %v5056 = vsel %vm5020, %v4948, 0.0
        %v5057 = vsel %vm5021, %v4949, 0.0
        %v5058 = vsel %vm5022, %v4950, 0.0
        %v5059 = vsel %vm5023, %v4951, 0.0
        %v5060 = vsel %vm5024, %v4952, 0.0
        %v5061 = vsel %vm5025, %v4953, 0.0
        %v5062 = vsel %vm5026, %v4954, 0.0
        %v5063 = vsel %vm5027, %v4955, 0.0
        %vm5064 = vcmask 27648
        %5065 = vst.msk [vmem:[#allocation3] sm:$0xf] %vm5064, 0
        %5066 = vst.msk [vmem:[#allocation3 + $0x4] sm:$0xf] %vm5064, 0
        %vm5067 = vcmask 25600
        %vm5068 = vsmask.f32 1280
        %vm5069 = vmand %vm5067, %vm5068
        %v5070 = vld [vmem:[#allocation3 + $0x8] sm:$0x3]
        %v5071 = vsel %vm5069, 0, %v5070
        %5072 = vst [vmem:[#allocation3 + $0x8] sm:$0x3] %v5071
        %vm5073 = vcmask 27649
        %vm5074 = vsmask.f32 7942
        %vm5075 = vmand %vm5073, %vm5074
        %v5076 = vld [vmem:[#allocation3 + $0x98] sm:$0xe]
        %v5077 = vsel %vm5075, 0, %v5076
        %5078 = vst [vmem:[#allocation3 + $0x98] sm:$0xe] %v5077
        %5079 = vst.msk [vmem:[#allocation3 + $0x9c] sm:$0xf] %vm5064, 0
        %5080 = vst.msk [vmem:[#allocation3 + $0xa0] sm:$0xf] %vm5064, 0
        %v5081 = vpack.c.bf16 %v5029, %v5028
        %v5082 = vpack.c.bf16 %v5031, %v5030
        %v5083 = vpack.c.bf16 %v5033, %v5032
        %v5084 = vpack.c.bf16 %v5035, %v5034
        %v5085 = vpack.c.bf16 %v5037, %v5036
        %v5086 = vpack.c.bf16 %v5039, %v5038
        %v5087 = vpack.c.bf16 %v5041, %v5040
        %v5088 = vpack.c.bf16 %v5043, %v5042
        %v5089 = vpack.c.bf16 %v5045, %v5044
        %v5090 = vpack.c.bf16 %v5047, %v5046
        %v5091 = vpack.c.bf16 %v5049, %v5048
        %v5092 = vpack.c.bf16 %v5051, %v5050
        %v5093 = vpack.c.bf16 %v5053, %v5052
        %v5094 = vpack.c.bf16 %v5055, %v5054
        %v5095 = vpack.c.bf16 %v5057, %v5056
        %v5096 = vpack.c.bf16 %v5059, %v5058
        %v5097 = vpack.c.bf16 %v5061, %v5060
        %v5098 = vpack.c.bf16 %v5063, %v5062
        %v5117 = vunpack.c.l.b16 %v5081
        %v5118 = vunpack.c.h.b16 %v5081
        %v5119 = vunpack.c.l.b16 %v5082
        %v5120 = vunpack.c.h.b16 %v5082
        %v5121 = vunpack.c.l.b16 %v5083
        %v5122 = vunpack.c.h.b16 %v5083
        %v5123 = vunpack.c.l.b16 %v5084
        %v5124 = vunpack.c.h.b16 %v5084
        %v5125 = vunpack.c.l.b16 %v5085
        %v5126 = vunpack.c.h.b16 %v5085
        %v5127 = vunpack.c.l.b16 %v5086
        %v5128 = vunpack.c.h.b16 %v5086
        %v5129 = vunpack.c.l.b16 %v5087
        %v5130 = vunpack.c.h.b16 %v5087
        %v5131 = vunpack.c.l.b16 %v5088
        %v5132 = vunpack.c.h.b16 %v5088
        %v5133 = vunpack.c.l.b16 %v5089
        %v5134 = vunpack.c.h.b16 %v5089
        %v5135 = vunpack.c.l.b16 %v5090
        %v5136 = vunpack.c.h.b16 %v5090
        %v5137 = vunpack.c.l.b16 %v5091
        %v5138 = vunpack.c.h.b16 %v5091
        %v5139 = vunpack.c.l.b16 %v5092
        %v5140 = vunpack.c.h.b16 %v5092
        %v5141 = vunpack.c.l.b16 %v5093
        %v5142 = vunpack.c.h.b16 %v5093
        %v5143 = vunpack.c.l.b16 %v5094
        %v5144 = vunpack.c.h.b16 %v5094
        %v5145 = vunpack.c.l.b16 %v5095
        %v5146 = vunpack.c.h.b16 %v5095
        %v5147 = vunpack.c.l.b16 %v5096
        %v5148 = vunpack.c.h.b16 %v5096
        %v5149 = vunpack.c.l.b16 %v5097
        %v5150 = vunpack.c.h.b16 %v5097
        %v5151 = vunpack.c.l.b16 %v5098
        %v5152 = vunpack.c.h.b16 %v5098
        %v5153 = vpack.c.b16 %v5117, %v5117
        %v5154 = vpack.c.b16 %v5118, %v5118
        %v5155 = vpack.c.b16 %v5119, %v5119
        %v5156 = vpack.c.b16 %v5120, %v5120
        %v5157 = vpack.c.b16 %v5121, %v5121
        %v5158 = vpack.c.b16 %v5122, %v5122
        %v5159 = vpack.c.b16 %v5123, %v5123
        %v5160 = vpack.c.b16 %v5124, %v5124
        %v5161 = vpack.c.b16 %v5125, %v5125
        %v5162 = vpack.c.b16 %v5126, %v5126
        %v5163 = vpack.c.b16 %v5127, %v5127
        %v5164 = vpack.c.b16 %v5128, %v5128
        %v5165 = vpack.c.b16 %v5129, %v5129
        %v5166 = vpack.c.b16 %v5130, %v5130
        %v5167 = vpack.c.b16 %v5131, %v5131
        %v5168 = vpack.c.b16 %v5132, %v5132
        %v5169 = vpack.c.b16 %v5133, %v5133
        %v5170 = vpack.c.b16 %v5134, %v5134
        %v5171 = vpack.c.b16 %v5135, %v5135
        %v5172 = vpack.c.b16 %v5136, %v5136
        %v5173 = vpack.c.b16 %v5137, %v5137
        %v5174 = vpack.c.b16 %v5138, %v5138
        %v5175 = vpack.c.b16 %v5139, %v5139
        %v5176 = vpack.c.b16 %v5140, %v5140
        %v5177 = vpack.c.b16 %v5141, %v5141
        %v5178 = vpack.c.b16 %v5142, %v5142
        %v5179 = vpack.c.b16 %v5143, %v5143
        %v5180 = vpack.c.b16 %v5144, %v5144
        %v5181 = vpack.c.b16 %v5145, %v5145
        %v5182 = vpack.c.b16 %v5146, %v5146
        %v5183 = vpack.c.b16 %v5147, %v5147
        %v5184 = vpack.c.b16 %v5148, %v5148
        %v5185 = vpack.c.b16 %v5149, %v5149
        %v5186 = vpack.c.b16 %v5150, %v5150
        %v5187 = vpack.c.b16 %v5151, %v5151
        %v5188 = vpack.c.b16 %v5152, %v5152
        %vm5189 = vsmask.f32 5392
        %vm5190 = vmor %vm5068, %vm5189
        %v5192 = vshrl.u32 %v5153, 16
        %v5194 = vrot.slane %v5192, 6
        %v5195 = vshll.u32 %v5153, 16
        %v5197 = vrot.slane %v5195, 7
        %v5198 = vor.u32 %v5194, %v5197
        %v5199 = vrot.slane %v5198, 4
        %v5201 = vshrl.u32 %v5154, 16
        %v5203 = vrot.slane %v5201, 6
        %v5204 = vshll.u32 %v5154, 16
        %v5206 = vrot.slane %v5204, 7
        %v5207 = vor.u32 %v5203, %v5206
        %v5208 = vsel %vm5190, %v5199, %v5207
        %v5209 = vrot.slane %v5207, 4
        %v5211 = vshrl.u32 %v5155, 16
        %v5213 = vrot.slane %v5211, 6
        %v5214 = vshll.u32 %v5155, 16
        %v5216 = vrot.slane %v5214, 7
        %v5217 = vor.u32 %v5213, %v5216
        %v5218 = vsel %vm5190, %v5209, %v5217
        %v5219 = vrot.slane %v5217, 4
        %v5221 = vshrl.u32 %v5156, 16
        %v5223 = vrot.slane %v5221, 6
        %v5224 = vshll.u32 %v5156, 16
        %v5226 = vrot.slane %v5224, 7
        %v5227 = vor.u32 %v5223, %v5226
        %v5228 = vsel %vm5190, %v5219, %v5227
        %v5229 = vrot.slane %v5227, 4
        %v5231 = vshrl.u32 %v5157, 16
        %v5233 = vrot.slane %v5231, 6
        %v5234 = vshll.u32 %v5157, 16
        %v5236 = vrot.slane %v5234, 7
        %v5237 = vor.u32 %v5233, %v5236
        %v5238 = vsel %vm5190, %v5229, %v5237
        %v5239 = vrot.slane %v5237, 4
        %v5241 = vshrl.u32 %v5158, 16
        %v5243 = vrot.slane %v5241, 6
        %v5244 = vshll.u32 %v5158, 16
        %v5246 = vrot.slane %v5244, 7
        %v5247 = vor.u32 %v5243, %v5246
        %v5248 = vsel %vm5190, %v5239, %v5247
        %v5249 = vrot.slane %v5247, 4
        %v5251 = vshrl.u32 %v5159, 16
        %v5253 = vrot.slane %v5251, 6
        %v5254 = vshll.u32 %v5159, 16
        %v5256 = vrot.slane %v5254, 7
        %v5257 = vor.u32 %v5253, %v5256
        %v5258 = vsel %vm5190, %v5249, %v5257
        %v5259 = vrot.slane %v5257, 4
        %v5261 = vshrl.u32 %v5160, 16
        %v5263 = vrot.slane %v5261, 6
        %v5264 = vshll.u32 %v5160, 16
        %v5266 = vrot.slane %v5264, 7
        %v5267 = vor.u32 %v5263, %v5266
        %v5268 = vsel %vm5190, %v5259, %v5267
        %v5269 = vrot.slane %v5267, 4
        %v5271 = vshrl.u32 %v5161, 16
        %v5273 = vrot.slane %v5271, 6
        %v5274 = vshll.u32 %v5161, 16
        %v5276 = vrot.slane %v5274, 7
        %v5277 = vor.u32 %v5273, %v5276
        %v5278 = vsel %vm5190, %v5269, %v5277
        %v5279 = vrot.slane %v5277, 4
        %v5281 = vshrl.u32 %v5162, 16
        %v5283 = vrot.slane %v5281, 6
        %v5284 = vshll.u32 %v5162, 16
        %v5286 = vrot.slane %v5284, 7
        %v5287 = vor.u32 %v5283, %v5286
        %v5288 = vsel %vm5190, %v5279, %v5287
        %v5289 = vrot.slane %v5287, 4
        %v5291 = vshrl.u32 %v5163, 16
        %v5293 = vrot.slane %v5291, 6
        %v5294 = vshll.u32 %v5163, 16
        %v5296 = vrot.slane %v5294, 7
        %v5297 = vor.u32 %v5293, %v5296
        %v5298 = vsel %vm5190, %v5289, %v5297
        %v5299 = vrot.slane %v5297, 4
        %v5301 = vshrl.u32 %v5164, 16
        %v5303 = vrot.slane %v5301, 6
        %v5304 = vshll.u32 %v5164, 16
        %v5306 = vrot.slane %v5304, 7
        %v5307 = vor.u32 %v5303, %v5306
        %v5308 = vsel %vm5190, %v5299, %v5307
        %v5309 = vrot.slane %v5307, 4
        %v5311 = vshrl.u32 %v5165, 16
        %v5313 = vrot.slane %v5311, 6
        %v5314 = vshll.u32 %v5165, 16
        %v5316 = vrot.slane %v5314, 7
        %v5317 = vor.u32 %v5313, %v5316
        %v5318 = vsel %vm5190, %v5309, %v5317
        %v5319 = vrot.slane %v5317, 4
        %v5321 = vshrl.u32 %v5166, 16
        %v5323 = vrot.slane %v5321, 6
        %v5324 = vshll.u32 %v5166, 16
        %v5326 = vrot.slane %v5324, 7
        %v5327 = vor.u32 %v5323, %v5326
        %v5328 = vsel %vm5190, %v5319, %v5327
        %v5329 = vrot.slane %v5327, 4
        %v5331 = vshrl.u32 %v5167, 16
        %v5333 = vrot.slane %v5331, 6
        %v5334 = vshll.u32 %v5167, 16
        %v5336 = vrot.slane %v5334, 7
        %v5337 = vor.u32 %v5333, %v5336
        %v5338 = vsel %vm5190, %v5329, %v5337
        %v5339 = vrot.slane %v5337, 4
        %v5341 = vshrl.u32 %v5168, 16
        %v5343 = vrot.slane %v5341, 6
        %v5344 = vshll.u32 %v5168, 16
        %v5346 = vrot.slane %v5344, 7
        %v5347 = vor.u32 %v5343, %v5346
        %v5348 = vsel %vm5190, %v5339, %v5347
        %v5349 = vrot.slane %v5347, 4
        %v5351 = vshrl.u32 %v5169, 16
        %v5353 = vrot.slane %v5351, 6
        %v5354 = vshll.u32 %v5169, 16
        %v5356 = vrot.slane %v5354, 7
        %v5357 = vor.u32 %v5353, %v5356
        %v5358 = vsel %vm5190, %v5349, %v5357
        %v5359 = vrot.slane %v5357, 4
        %v5361 = vshrl.u32 %v5170, 16
        %v5363 = vrot.slane %v5361, 6
        %v5364 = vshll.u32 %v5170, 16
        %v5366 = vrot.slane %v5364, 7
        %v5367 = vor.u32 %v5363, %v5366
        %v5368 = vsel %vm5190, %v5359, %v5367
        %v5369 = vrot.slane %v5367, 4
        %v5371 = vshrl.u32 %v5171, 16
        %v5373 = vrot.slane %v5371, 6
        %v5374 = vshll.u32 %v5171, 16
        %v5376 = vrot.slane %v5374, 7
        %v5377 = vor.u32 %v5373, %v5376
        %v5378 = vsel %vm5190, %v5369, %v5377
        %v5379 = vrot.slane %v5377, 4
        %v5381 = vshrl.u32 %v5172, 16
        %v5383 = vrot.slane %v5381, 6
        %v5384 = vshll.u32 %v5172, 16
        %v5386 = vrot.slane %v5384, 7
        %v5387 = vor.u32 %v5383, %v5386
        %v5388 = vsel %vm5190, %v5379, %v5387
        %v5389 = vrot.slane %v5387, 4
        %v5391 = vshrl.u32 %v5173, 16
        %v5393 = vrot.slane %v5391, 6
        %v5394 = vshll.u32 %v5173, 16
        %v5396 = vrot.slane %v5394, 7
        %v5397 = vor.u32 %v5393, %v5396
        %v5398 = vsel %vm5190, %v5389, %v5397
        %v5399 = vrot.slane %v5397, 4
        %v5401 = vshrl.u32 %v5174, 16
        %v5403 = vrot.slane %v5401, 6
        %v5404 = vshll.u32 %v5174, 16
        %v5406 = vrot.slane %v5404, 7
        %v5407 = vor.u32 %v5403, %v5406
        %v5408 = vsel %vm5190, %v5399, %v5407
        %v5409 = vrot.slane %v5407, 4
        %v5411 = vshrl.u32 %v5175, 16
        %v5413 = vrot.slane %v5411, 6
        %v5414 = vshll.u32 %v5175, 16
        %v5416 = vrot.slane %v5414, 7
        %v5417 = vor.u32 %v5413, %v5416
        %v5418 = vsel %vm5190, %v5409, %v5417
        %v5419 = vrot.slane %v5417, 4
        %v5421 = vshrl.u32 %v5176, 16
        %v5423 = vrot.slane %v5421, 6
        %v5424 = vshll.u32 %v5176, 16
        %v5426 = vrot.slane %v5424, 7
        %v5427 = vor.u32 %v5423, %v5426
        %v5428 = vsel %vm5190, %v5419, %v5427
        %v5429 = vrot.slane %v5427, 4
        %v5431 = vshrl.u32 %v5177, 16
        %v5433 = vrot.slane %v5431, 6
        %v5434 = vshll.u32 %v5177, 16
        %v5436 = vrot.slane %v5434, 7
        %v5437 = vor.u32 %v5433, %v5436
        %v5438 = vsel %vm5190, %v5429, %v5437
        %v5439 = vrot.slane %v5437, 4
        %v5441 = vshrl.u32 %v5178, 16
        %v5443 = vrot.slane %v5441, 6
        %v5444 = vshll.u32 %v5178, 16
        %v5446 = vrot.slane %v5444, 7
        %v5447 = vor.u32 %v5443, %v5446
        %v5448 = vsel %vm5190, %v5439, %v5447
        %v5449 = vrot.slane %v5447, 4
        %v5451 = vshrl.u32 %v5179, 16
        %v5453 = vrot.slane %v5451, 6
        %v5454 = vshll.u32 %v5179, 16
        %v5456 = vrot.slane %v5454, 7
        %v5457 = vor.u32 %v5453, %v5456
        %v5458 = vsel %vm5190, %v5449, %v5457
        %v5459 = vrot.slane %v5457, 4
        %v5461 = vshrl.u32 %v5180, 16
        %v5463 = vrot.slane %v5461, 6
        %v5464 = vshll.u32 %v5180, 16
        %v5466 = vrot.slane %v5464, 7
        %v5467 = vor.u32 %v5463, %v5466
        %v5468 = vsel %vm5190, %v5459, %v5467
        %v5469 = vrot.slane %v5467, 4
        %v5471 = vshrl.u32 %v5181, 16
        %v5473 = vrot.slane %v5471, 6
        %v5474 = vshll.u32 %v5181, 16
        %v5476 = vrot.slane %v5474, 7
        %v5477 = vor.u32 %v5473, %v5476
        %v5478 = vsel %vm5190, %v5469, %v5477
        %v5479 = vrot.slane %v5477, 4
        %v5481 = vshrl.u32 %v5182, 16
        %v5483 = vrot.slane %v5481, 6
        %v5484 = vshll.u32 %v5182, 16
        %v5486 = vrot.slane %v5484, 7
        %v5487 = vor.u32 %v5483, %v5486
        %v5488 = vsel %vm5190, %v5479, %v5487
        %v5489 = vrot.slane %v5487, 4
        %v5491 = vshrl.u32 %v5183, 16
        %v5493 = vrot.slane %v5491, 6
        %v5494 = vshll.u32 %v5183, 16
        %v5496 = vrot.slane %v5494, 7
        %v5497 = vor.u32 %v5493, %v5496
        %v5498 = vsel %vm5190, %v5489, %v5497
        %v5499 = vrot.slane %v5497, 4
        %v5501 = vshrl.u32 %v5184, 16
        %v5503 = vrot.slane %v5501, 6
        %v5504 = vshll.u32 %v5184, 16
        %v5506 = vrot.slane %v5504, 7
        %v5507 = vor.u32 %v5503, %v5506
        %v5508 = vsel %vm5190, %v5499, %v5507
        %v5509 = vrot.slane %v5507, 4
        %v5511 = vshrl.u32 %v5185, 16
        %v5513 = vrot.slane %v5511, 6
        %v5514 = vshll.u32 %v5185, 16
        %v5516 = vrot.slane %v5514, 7
        %v5517 = vor.u32 %v5513, %v5516
        %v5518 = vsel %vm5190, %v5509, %v5517
        %v5519 = vrot.slane %v5517, 4
        %v5521 = vshrl.u32 %v5186, 16
        %v5523 = vrot.slane %v5521, 6
        %v5524 = vshll.u32 %v5186, 16
        %v5526 = vrot.slane %v5524, 7
        %v5527 = vor.u32 %v5523, %v5526
        %v5528 = vsel %vm5190, %v5519, %v5527
        %v5529 = vrot.slane %v5527, 4
        %v5531 = vshrl.u32 %v5187, 16
        %v5533 = vrot.slane %v5531, 6
        %v5534 = vshll.u32 %v5187, 16
        %v5536 = vrot.slane %v5534, 7
        %v5537 = vor.u32 %v5533, %v5536
        %v5538 = vsel %vm5190, %v5529, %v5537
        %v5539 = vrot.slane %v5537, 4
        %v5541 = vshrl.u32 %v5188, 16
        %v5543 = vrot.slane %v5541, 6
        %v5544 = vshll.u32 %v5188, 16
        %v5546 = vrot.slane %v5544, 7
        %v5547 = vor.u32 %v5543, %v5546
        %v5548 = vsel %vm5190, %v5539, %v5547
        %v5549 = vrot.slane %v5547, 4
        %v5587 = vld [vmem:[#allocation3 + $0x8] sm:$0xe]
        %v5588 = vsel %vm5075, %v5198, %v5587
        %5589 = vst [vmem:[#allocation3 + $0x8] sm:$0xe] %v5588
        %5590 = vst.msk [vmem:[#allocation3 + $0xc] sm:$0xf] %vm5064, %v5208
        %5591 = vst.msk [vmem:[#allocation3 + $0x10] sm:$0xf] %vm5064, %v5218
        %5592 = vst.msk [vmem:[#allocation3 + $0x14] sm:$0xf] %vm5064, %v5228
        %5593 = vst.msk [vmem:[#allocation3 + $0x18] sm:$0xf] %vm5064, %v5238
        %5594 = vst.msk [vmem:[#allocation3 + $0x1c] sm:$0xf] %vm5064, %v5248
        %5595 = vst.msk [vmem:[#allocation3 + $0x20] sm:$0xf] %vm5064, %v5258
        %5596 = vst.msk [vmem:[#allocation3 + $0x24] sm:$0xf] %vm5064, %v5268
        %5597 = vst.msk [vmem:[#allocation3 + $0x28] sm:$0xf] %vm5064, %v5278
        %5598 = vst.msk [vmem:[#allocation3 + $0x2c] sm:$0xf] %vm5064, %v5288
        %5599 = vst.msk [vmem:[#allocation3 + $0x30] sm:$0xf] %vm5064, %v5298
        %5600 = vst.msk [vmem:[#allocation3 + $0x34] sm:$0xf] %vm5064, %v5308
        %5601 = vst.msk [vmem:[#allocation3 + $0x38] sm:$0xf] %vm5064, %v5318
        %5602 = vst.msk [vmem:[#allocation3 + $0x3c] sm:$0xf] %vm5064, %v5328
        %5603 = vst.msk [vmem:[#allocation3 + $0x40] sm:$0xf] %vm5064, %v5338
        %5604 = vst.msk [vmem:[#allocation3 + $0x44] sm:$0xf] %vm5064, %v5348
        %5605 = vst.msk [vmem:[#allocation3 + $0x48] sm:$0xf] %vm5064, %v5358
        %5606 = vst.msk [vmem:[#allocation3 + $0x4c] sm:$0xf] %vm5064, %v5368
        %5607 = vst.msk [vmem:[#allocation3 + $0x50] sm:$0xf] %vm5064, %v5378
        %5608 = vst.msk [vmem:[#allocation3 + $0x54] sm:$0xf] %vm5064, %v5388
        %5609 = vst.msk [vmem:[#allocation3 + $0x58] sm:$0xf] %vm5064, %v5398
        %5610 = vst.msk [vmem:[#allocation3 + $0x5c] sm:$0xf] %vm5064, %v5408
        %5611 = vst.msk [vmem:[#allocation3 + $0x60] sm:$0xf] %vm5064, %v5418
        %5612 = vst.msk [vmem:[#allocation3 + $0x64] sm:$0xf] %vm5064, %v5428
        %5613 = vst.msk [vmem:[#allocation3 + $0x68] sm:$0xf] %vm5064, %v5438
        %5614 = vst.msk [vmem:[#allocation3 + $0x6c] sm:$0xf] %vm5064, %v5448
        %5615 = vst.msk [vmem:[#allocation3 + $0x70] sm:$0xf] %vm5064, %v5458
        %5616 = vst.msk [vmem:[#allocation3 + $0x74] sm:$0xf] %vm5064, %v5468
        %5617 = vst.msk [vmem:[#allocation3 + $0x78] sm:$0xf] %vm5064, %v5478
        %5618 = vst.msk [vmem:[#allocation3 + $0x7c] sm:$0xf] %vm5064, %v5488
        %5619 = vst.msk [vmem:[#allocation3 + $0x80] sm:$0xf] %vm5064, %v5498
        %5620 = vst.msk [vmem:[#allocation3 + $0x84] sm:$0xf] %vm5064, %v5508
        %5621 = vst.msk [vmem:[#allocation3 + $0x88] sm:$0xf] %vm5064, %v5518
        %5622 = vst.msk [vmem:[#allocation3 + $0x8c] sm:$0xf] %vm5064, %v5528
        %5623 = vst.msk [vmem:[#allocation3 + $0x90] sm:$0xf] %vm5064, %v5538
        %5624 = vst.msk [vmem:[#allocation3 + $0x94] sm:$0xf] %vm5064, %v5548
        %v5625 = vld [vmem:[#allocation3 + $0x98] sm:$0x3]
        %v5626 = vsel %vm5069, %v5549, %v5625
        %5627 = vst [vmem:[#allocation3 + $0x98] sm:$0x3] %v5626
        %v5628 = vld [vmem:[#allocation3] sm:$0xf]
        %v5629 = vld [vmem:[#allocation3 + $0x4] sm:$0xf]
        %v5630 = vld [vmem:[#allocation3 + $0x8] sm:$0xf]
        %v5631 = vld [vmem:[#allocation3 + $0xc] sm:$0xf]
        %v5632 = vld [vmem:[#allocation3 + $0x10] sm:$0xf]
        %v5633 = vld [vmem:[#allocation3 + $0x14] sm:$0xf]
        %v5634 = vld [vmem:[#allocation3 + $0x18] sm:$0xf]
        %v5635 = vld [vmem:[#allocation3 + $0x1c] sm:$0xf]
        %v5636 = vld [vmem:[#allocation3 + $0x20] sm:$0xf]
        %v5637 = vld [vmem:[#allocation3 + $0x24] sm:$0xf]
        %v5638 = vld [vmem:[#allocation3 + $0x28] sm:$0xf]
        %v5639 = vld [vmem:[#allocation3 + $0x2c] sm:$0xf]
        %v5640 = vld [vmem:[#allocation3 + $0x30] sm:$0xf]
        %v5641 = vld [vmem:[#allocation3 + $0x34] sm:$0xf]
        %v5642 = vld [vmem:[#allocation3 + $0x38] sm:$0xf]
        %v5643 = vld [vmem:[#allocation3 + $0x3c] sm:$0xf]
        %v5644 = vld [vmem:[#allocation3 + $0x40] sm:$0xf]
        %v5645 = vld [vmem:[#allocation3 + $0x44] sm:$0xf]
        %v5646 = vld [vmem:[#allocation3 + $0x48] sm:$0xf]
        %v5647 = vld [vmem:[#allocation3 + $0x4c] sm:$0xf]
        %v5648 = vld [vmem:[#allocation3 + $0x50] sm:$0xf]
        %v5649 = vld [vmem:[#allocation3 + $0x54] sm:$0xf]
        %v5650 = vld [vmem:[#allocation3 + $0x58] sm:$0xf]
        %v5651 = vld [vmem:[#allocation3 + $0x5c] sm:$0xf]
        %v5652 = vld [vmem:[#allocation3 + $0x60] sm:$0xf]
        %v5653 = vld [vmem:[#allocation3 + $0x64] sm:$0xf]
        %v5654 = vld [vmem:[#allocation3 + $0x68] sm:$0xf]
        %v5655 = vld [vmem:[#allocation3 + $0x6c] sm:$0xf]
        %v5656 = vld [vmem:[#allocation3 + $0x70] sm:$0xf]
        %v5657 = vld [vmem:[#allocation3 + $0x74] sm:$0xf]
        %v5658 = vld [vmem:[#allocation3 + $0x78] sm:$0xf]
        %v5659 = vld [vmem:[#allocation3 + $0x7c] sm:$0xf]
        %v5660 = vld [vmem:[#allocation3 + $0x80] sm:$0xf]
        %v5661 = vld [vmem:[#allocation3 + $0x84] sm:$0xf]
        %v5662 = vld [vmem:[#allocation3 + $0x88] sm:$0xf]
        %v5663 = vld [vmem:[#allocation3 + $0x8c] sm:$0xf]
        %v5664 = vld [vmem:[#allocation10] sm:$0x3]
        %v5665 = vld [vmem:[#allocation3 + $0x90] sm:$0x1]
        %s5666 = scalar_lea.vmem [#allocation10], 2
        %v5667 = vld [vmem:[%s5666] sm:$0x3]
        %v5705 = vunpack.c.l.b16 %v5628
        %v5706 = vunpack.c.l.b16 %v5629
        %v5707 = vunpack.c.l.b16 %v5630
        %v5708 = vunpack.c.l.b16 %v5631
        %v5709 = vunpack.c.l.b16 %v5632
        %v5710 = vunpack.c.l.b16 %v5633
        %v5711 = vunpack.c.l.b16 %v5634
        %v5712 = vunpack.c.l.b16 %v5635
        %v5713 = vunpack.c.l.b16 %v5636
        %v5714 = vunpack.c.l.b16 %v5637
        %v5715 = vunpack.c.l.b16 %v5638
        %v5716 = vunpack.c.l.b16 %v5639
        %v5717 = vunpack.c.l.b16 %v5640
        %v5718 = vunpack.c.l.b16 %v5641
        %v5719 = vunpack.c.l.b16 %v5642
        %v5720 = vunpack.c.l.b16 %v5643
        %v5721 = vunpack.c.l.b16 %v5644
        %v5722 = vunpack.c.l.b16 %v5645
        %v5723 = vunpack.c.l.b16 %v5646
        %v5724 = vunpack.c.l.b16 %v5647
        %v5725 = vunpack.c.l.b16 %v5648
        %v5726 = vunpack.c.l.b16 %v5649
        %v5727 = vunpack.c.l.b16 %v5650
        %v5728 = vunpack.c.l.b16 %v5651
        %v5729 = vunpack.c.l.b16 %v5652
        %v5730 = vunpack.c.l.b16 %v5653
        %v5731 = vunpack.c.l.b16 %v5654
        %v5732 = vunpack.c.l.b16 %v5655
        %v5733 = vunpack.c.l.b16 %v5656
        %v5734 = vunpack.c.l.b16 %v5657
        %v5735 = vunpack.c.l.b16 %v5658
        %v5736 = vunpack.c.l.b16 %v5659
        %v5737 = vunpack.c.l.b16 %v5660
        %v5738 = vunpack.c.l.b16 %v5661
        %v5739 = vunpack.c.l.b16 %v5662
        %v5740 = vunpack.c.l.b16 %v5663
        %v5741 = vunpack.c.l.b16 %v5665
        %v5742 = vpack.c.b16 %v5706, %v5705
        %v5743 = vpack.c.b16 %v5708, %v5707
        %v5744 = vpack.c.b16 %v5710, %v5709
        %v5745 = vpack.c.b16 %v5712, %v5711
        %v5746 = vpack.c.b16 %v5714, %v5713
        %v5747 = vpack.c.b16 %v5716, %v5715
        %v5748 = vpack.c.b16 %v5718, %v5717
        %v5749 = vpack.c.b16 %v5720, %v5719
        %v5750 = vpack.c.b16 %v5722, %v5721
        %v5751 = vpack.c.b16 %v5724, %v5723
        %v5752 = vpack.c.b16 %v5726, %v5725
        %v5753 = vpack.c.b16 %v5728, %v5727
        %v5754 = vpack.c.b16 %v5730, %v5729
        %v5755 = vpack.c.b16 %v5732, %v5731
        %v5756 = vpack.c.b16 %v5734, %v5733
        %v5757 = vpack.c.b16 %v5736, %v5735
        %v5758 = vpack.c.b16 %v5738, %v5737
        %v5759 = vpack.c.b16 %v5740, %v5739
        %v5760 = vpack.c.b16 %v5741, %v5741
        %v5762 = vshrl.u32 %v5742, 16
        %v5764 = vshll.u32 %v5742, 16
        %v5766 = vrot.slane %v5764, 1
        %v5767 = vor.u32 %v5762, %v5766
        %v5769 = vshll.u32 %v5743, 16
        %v5771 = vrot.slane %v5769, 1
        %v5772 = vsel %vm914, %v5767, %v5771
        %v5773 = vshrl.u32 %v5743, 16
        %v5775 = vor.u32 %v5773, %v5771
        %v5777 = vshll.u32 %v5744, 16
        %v5779 = vrot.slane %v5777, 1
        %v5780 = vsel %vm914, %v5775, %v5779
        %v5781 = vshrl.u32 %v5744, 16
        %v5783 = vor.u32 %v5781, %v5779
        %v5785 = vshll.u32 %v5745, 16
        %v5787 = vrot.slane %v5785, 1
        %v5788 = vsel %vm914, %v5783, %v5787
        %v5789 = vshrl.u32 %v5745, 16
        %v5791 = vor.u32 %v5789, %v5787
        %v5793 = vshll.u32 %v5746, 16
        %v5795 = vrot.slane %v5793, 1
        %v5796 = vsel %vm914, %v5791, %v5795
        %v5797 = vshrl.u32 %v5746, 16
        %v5799 = vor.u32 %v5797, %v5795
        %v5801 = vshll.u32 %v5747, 16
        %v5803 = vrot.slane %v5801, 1
        %v5804 = vsel %vm914, %v5799, %v5803
        %v5805 = vshrl.u32 %v5747, 16
        %v5807 = vor.u32 %v5805, %v5803
        %v5809 = vshll.u32 %v5748, 16
        %v5811 = vrot.slane %v5809, 1
        %v5812 = vsel %vm914, %v5807, %v5811
        %v5813 = vshrl.u32 %v5748, 16
        %v5815 = vor.u32 %v5813, %v5811
        %v5817 = vshll.u32 %v5749, 16
        %v5819 = vrot.slane %v5817, 1
        %v5820 = vsel %vm914, %v5815, %v5819
        %v5821 = vshrl.u32 %v5749, 16
        %v5823 = vor.u32 %v5821, %v5819
        %v5825 = vshll.u32 %v5750, 16
        %v5827 = vrot.slane %v5825, 1
        %v5828 = vsel %vm914, %v5823, %v5827
        %v5829 = vshrl.u32 %v5750, 16
        %v5831 = vor.u32 %v5829, %v5827
        %v5833 = vshll.u32 %v5751, 16
        %v5835 = vrot.slane %v5833, 1
        %v5836 = vsel %vm914, %v5831, %v5835
        %v5837 = vshrl.u32 %v5751, 16
        %v5839 = vor.u32 %v5837, %v5835
        %v5841 = vshll.u32 %v5752, 16
        %v5843 = vrot.slane %v5841, 1
        %v5844 = vsel %vm914, %v5839, %v5843
        %v5845 = vshrl.u32 %v5752, 16
        %v5847 = vor.u32 %v5845, %v5843
        %v5849 = vshll.u32 %v5753, 16
        %v5851 = vrot.slane %v5849, 1
        %v5852 = vsel %vm914, %v5847, %v5851
        %v5853 = vshrl.u32 %v5753, 16
        %v5855 = vor.u32 %v5853, %v5851
        %v5857 = vshll.u32 %v5754, 16
        %v5859 = vrot.slane %v5857, 1
        %v5860 = vsel %vm914, %v5855, %v5859
        %v5861 = vshrl.u32 %v5754, 16
        %v5863 = vor.u32 %v5861, %v5859
        %v5865 = vshll.u32 %v5755, 16
        %v5867 = vrot.slane %v5865, 1
        %v5868 = vsel %vm914, %v5863, %v5867
        %v5869 = vshrl.u32 %v5755, 16
        %v5871 = vor.u32 %v5869, %v5867
        %v5873 = vshll.u32 %v5756, 16
        %v5875 = vrot.slane %v5873, 1
        %v5876 = vsel %vm914, %v5871, %v5875
        %v5877 = vshrl.u32 %v5756, 16
        %v5879 = vor.u32 %v5877, %v5875
        %v5881 = vshll.u32 %v5757, 16
        %v5883 = vrot.slane %v5881, 1
        %v5884 = vsel %vm914, %v5879, %v5883
        %v5885 = vshrl.u32 %v5757, 16
        %v5887 = vor.u32 %v5885, %v5883
        %v5889 = vshll.u32 %v5758, 16
        %v5891 = vrot.slane %v5889, 1
        %v5892 = vsel %vm914, %v5887, %v5891
        %v5893 = vshrl.u32 %v5758, 16
        %v5895 = vor.u32 %v5893, %v5891
        %v5897 = vshll.u32 %v5759, 16
        %v5899 = vrot.slane %v5897, 1
        %v5900 = vsel %vm914, %v5895, %v5899
        %v5901 = vshrl.u32 %v5759, 16
        %v5903 = vor.u32 %v5901, %v5899
        %v5905 = vshll.u32 %v5760, 16
        %v5907 = vrot.slane %v5905, 1
        %v5908 = vsel %vm914, %v5903, %v5907
        %vm5909 = vcmask 31744
        %v5911 = vsel %vm5909, %v5772, 0
        %v5914 = vsel %vm5909, %v5780, 0
        %v5917 = vsel %vm5909, %v5788, 0
        %v5920 = vsel %vm5909, %v5796, 0
        %v5923 = vsel %vm5909, %v5804, 0
        %v5926 = vsel %vm5909, %v5812, 0
        %v5929 = vsel %vm5909, %v5820, 0
        %v5932 = vsel %vm5909, %v5828, 0
        %v5935 = vsel %vm5909, %v5836, 0
        %v5938 = vsel %vm5909, %v5844, 0
        %v5941 = vsel %vm5909, %v5852, 0
        %v5944 = vsel %vm5909, %v5860, 0
        %v5947 = vsel %vm5909, %v5868, 0
        %v5950 = vsel %vm5909, %v5876, 0
        %v5953 = vsel %vm5909, %v5884, 0
        %v5956 = vsel %vm5909, %v5892, 0
        %v5959 = vsel %vm5909, %v5900, 0
        %v5962 = vsel %vm5909, %v5908, 0
        %vm5964 = vcmask 1041408
        %v5966 = vsel %vm5964, %v5667, 0
        %5968 = vmatprep.subr.bf16.mxu0 0
        %5969 = vmatpush1.bf16.msra.mxu0 %v5966
        %5970 = vmatprep.subr.bf16.mxu0 0
        %5971 = vmatpush1.bf16.msra.mxu0 0
        %5972 = vmatprep.subr.bf16.mxu0 0
        %5973 = vmatpush1.bf16.msra.mxu0 0
        %5974 = vmatprep.subr.bf16.mxu0 0
        %5975 = vmatpush1.bf16.msra.mxu0 0
        %5976 = vmatprep.subr.bf16.mxu0 0
        %5977 = vmatpush1.bf16.msra.mxu0 0
        %5978 = vmatprep.subr.bf16.mxu0 0
        %5979 = vmatpush1.bf16.msra.mxu0 0
        %5980 = vmatprep.subr.bf16.mxu0 0
        %5981 = vmatpush1.bf16.msra.mxu0 0
        %5982 = vmatprep.subr.bf16.mxu0 0
        %5983 = vmatpush1.bf16.msra.mxu0 0
        %5984 = vmatprep.subr.bf16.mxu0 0
        %5985 = vmatpush1.bf16.msra.mxu0 0
        %5986 = vmatprep.subr.bf16.mxu0 0
        %5987 = vmatpush1.bf16.msra.mxu0 0
        %5988 = vmatprep.subr.bf16.mxu0 0
        %5989 = vmatpush1.bf16.msra.mxu0 0
        %5990 = vmatprep.subr.bf16.mxu0 0
        %5991 = vmatpush1.bf16.msra.mxu0 0
        %5992 = vmatprep.subr.bf16.mxu0 0
        %5993 = vmatpush1.bf16.msra.mxu0 0
        %5994 = vmatprep.subr.bf16.mxu0 0
        %5995 = vmatpush1.bf16.msra.mxu0 0
        %5996 = vmatprep.subr.bf16.mxu0 0
        %5997 = vmatpush1.bf16.msra.mxu0 0
        %5998 = vmatprep.subr.bf16.mxu0 0
        %5999 = vmatpush1.bf16.msra.mxu0 0
        %6000 = vmatprep.mubr.bf16.mxu0 0
        %6001 = vmatmul.mubr.bf16.gmra.mrb[0].mxu0 %v5911
        %v6002 = vpop.f32.mrb[0].mxu0
        %v6003 = vadd.f32 0.0, %v6002
        %v6004 = vpop.f32.mrb[0].mxu0
        %v6005 = vpop.f32.mrb[0].mxu0
        %v6006 = vadd.f32 0.0, %v6005
        %v6007 = vpop.f32.mrb[0].mxu0
        %6008 = vmatprep.mubr.bf16.mxu0 0
        %6009 = vmatmul.mubr.bf16.gmra.mrb[0].mxu0 %v5914
        %v6010 = vpop.f32.mrb[0].mxu0
        %v6011 = vadd.f32 0.0, %v6010
        %v6012 = vpop.f32.mrb[0].mxu0
        %v6013 = vpop.f32.mrb[0].mxu0
        %v6014 = vadd.f32 0.0, %v6013
        %v6015 = vpop.f32.mrb[0].mxu0
        %6016 = vmatprep.mubr.bf16.mxu0 0
        %6017 = vmatmul.mubr.bf16.gmra.mrb[0].mxu0 %v5917
        %v6018 = vpop.f32.mrb[0].mxu0
        %v6019 = vadd.f32 0.0, %v6018
        %v6020 = vpop.f32.mrb[0].mxu0
        %v6021 = vpop.f32.mrb[0].mxu0
        %v6022 = vadd.f32 0.0, %v6021
        %v6023 = vpop.f32.mrb[0].mxu0
        %6024 = vmatprep.mubr.bf16.mxu0 0
        %6025 = vmatmul.mubr.bf16.gmra.mrb[0].mxu0 %v5920
        %v6026 = vpop.f32.mrb[0].mxu0
        %v6027 = vadd.f32 0.0, %v6026
        %v6028 = vpop.f32.mrb[0].mxu0
        %v6029 = vpop.f32.mrb[0].mxu0
        %v6030 = vadd.f32 0.0, %v6029
        %v6031 = vpop.f32.mrb[0].mxu0
        %6032 = vmatprep.mubr.bf16.mxu0 0
        %6033 = vmatmul.mubr.bf16.gmra.mrb[0].mxu0 %v5923
        %v6034 = vpop.f32.mrb[0].mxu0
        %v6035 = vadd.f32 0.0, %v6034
        %v6036 = vpop.f32.mrb[0].mxu0
        %v6037 = vpop.f32.mrb[0].mxu0
        %v6038 = vadd.f32 0.0, %v6037
        %v6039 = vpop.f32.mrb[0].mxu0
        %6040 = vmatprep.mubr.bf16.mxu0 0
        %6041 = vmatmul.mubr.bf16.gmra.mrb[0].mxu0 %v5926
        %v6042 = vpop.f32.mrb[0].mxu0
        %v6043 = vadd.f32 0.0, %v6042
        %v6044 = vpop.f32.mrb[0].mxu0
        %v6045 = vpop.f32.mrb[0].mxu0
        %v6046 = vadd.f32 0.0, %v6045
        %v6047 = vpop.f32.mrb[0].mxu0
        %6048 = vmatprep.mubr.bf16.mxu0 0
        %6049 = vmatmul.mubr.bf16.gmra.mrb[0].mxu0 %v5929
        %v6050 = vpop.f32.mrb[0].mxu0
        %v6051 = vadd.f32 0.0, %v6050
        %v6052 = vpop.f32.mrb[0].mxu0
        %v6053 = vpop.f32.mrb[0].mxu0
        %v6054 = vadd.f32 0.0, %v6053
        %v6055 = vpop.f32.mrb[0].mxu0
        %6056 = vmatprep.mubr.bf16.mxu0 0
        %6057 = vmatmul.mubr.bf16.gmra.mrb[0].mxu0 %v5932
        %v6058 = vpop.f32.mrb[0].mxu0
        %v6059 = vadd.f32 0.0, %v6058
        %v6060 = vpop.f32.mrb[0].mxu0
        %v6061 = vpop.f32.mrb[0].mxu0
        %v6062 = vadd.f32 0.0, %v6061
        %v6063 = vpop.f32.mrb[0].mxu0
        %6064 = vmatprep.mubr.bf16.mxu0 0
        %6065 = vmatmul.mubr.bf16.gmra.mrb[0].mxu0 %v5935
        %v6066 = vpop.f32.mrb[0].mxu0
        %v6067 = vadd.f32 0.0, %v6066
        %v6068 = vpop.f32.mrb[0].mxu0
        %v6069 = vpop.f32.mrb[0].mxu0
        %v6070 = vadd.f32 0.0, %v6069
        %v6071 = vpop.f32.mrb[0].mxu0
        %6072 = vmatprep.mubr.bf16.mxu0 0
        %6073 = vmatmul.mubr.bf16.gmra.mrb[0].mxu0 %v5938
        %v6074 = vpop.f32.mrb[0].mxu0
        %v6075 = vadd.f32 0.0, %v6074
        %v6076 = vpop.f32.mrb[0].mxu0
        %v6077 = vpop.f32.mrb[0].mxu0
        %v6078 = vadd.f32 0.0, %v6077
        %v6079 = vpop.f32.mrb[0].mxu0
        %6080 = vmatprep.mubr.bf16.mxu0 0
        %6081 = vmatmul.mubr.bf16.gmra.mrb[0].mxu0 %v5941
        %v6082 = vpop.f32.mrb[0].mxu0
        %v6083 = vadd.f32 0.0, %v6082
        %v6084 = vpop.f32.mrb[0].mxu0
        %v6085 = vpop.f32.mrb[0].mxu0
        %v6086 = vadd.f32 0.0, %v6085
        %v6087 = vpop.f32.mrb[0].mxu0
        %6088 = vmatprep.mubr.bf16.mxu0 0
        %6089 = vmatmul.mubr.bf16.gmra.mrb[0].mxu0 %v5944
        %v6090 = vpop.f32.mrb[0].mxu0
        %v6091 = vadd.f32 0.0, %v6090
        %v6092 = vpop.f32.mrb[0].mxu0
        %v6093 = vpop.f32.mrb[0].mxu0
        %v6094 = vadd.f32 0.0, %v6093
        %v6095 = vpop.f32.mrb[0].mxu0
        %6096 = vmatprep.mubr.bf16.mxu0 0
        %6097 = vmatmul.mubr.bf16.gmra.mrb[0].mxu0 %v5947
        %v6098 = vpop.f32.mrb[0].mxu0
        %v6099 = vadd.f32 0.0, %v6098
        %v6100 = vpop.f32.mrb[0].mxu0
        %v6101 = vpop.f32.mrb[0].mxu0
        %v6102 = vadd.f32 0.0, %v6101
        %v6103 = vpop.f32.mrb[0].mxu0
        %6104 = vmatprep.mubr.bf16.mxu0 0
        %6105 = vmatmul.mubr.bf16.gmra.mrb[0].mxu0 %v5950
        %v6106 = vpop.f32.mrb[0].mxu0
        %v6107 = vadd.f32 0.0, %v6106
        %v6108 = vpop.f32.mrb[0].mxu0
        %v6109 = vpop.f32.mrb[0].mxu0
        %v6110 = vadd.f32 0.0, %v6109
        %v6111 = vpop.f32.mrb[0].mxu0
        %6112 = vmatprep.mubr.bf16.mxu0 0
        %6113 = vmatmul.mubr.bf16.gmra.mrb[0].mxu0 %v5953
        %v6114 = vpop.f32.mrb[0].mxu0
        %v6115 = vadd.f32 0.0, %v6114
        %v6116 = vpop.f32.mrb[0].mxu0
        %v6117 = vpop.f32.mrb[0].mxu0
        %v6118 = vadd.f32 0.0, %v6117
        %v6119 = vpop.f32.mrb[0].mxu0
        %6120 = vmatprep.mubr.bf16.mxu0 0
        %6121 = vmatmul.mubr.bf16.gmra.mrb[0].mxu0 %v5956
        %v6122 = vpop.f32.mrb[0].mxu0
        %v6123 = vadd.f32 0.0, %v6122
        %v6124 = vpop.f32.mrb[0].mxu0
        %v6125 = vpop.f32.mrb[0].mxu0
        %v6126 = vadd.f32 0.0, %v6125
        %v6127 = vpop.f32.mrb[0].mxu0
        %6128 = vmatprep.mubr.bf16.mxu0 0
        %6129 = vmatmul.mubr.bf16.gmra.mrb[0].mxu0 %v5959
        %v6130 = vpop.f32.mrb[0].mxu0
        %v6131 = vadd.f32 0.0, %v6130
        %v6132 = vpop.f32.mrb[0].mxu0
        %v6133 = vpop.f32.mrb[0].mxu0
        %v6134 = vadd.f32 0.0, %v6133
        %v6135 = vpop.f32.mrb[0].mxu0
        %6136 = vmatprep.mubr.bf16.mxu0 0
        %6137 = vmatmul.mubr.bf16.gmra.mrb[0].mxu0 %v5962
        %v6138 = vpop.f32.mrb[0].mxu0
        %v6139 = vadd.f32 0.0, %v6138
        %v6140 = vpop.f32.mrb[0].mxu0
        %v6141 = vpop.f32.mrb[0].mxu0
        %v6142 = vadd.f32 0.0, %v6141
        %v6143 = vpop.f32.mrb[0].mxu0
        %6144 = vdwg.mxu0
        %v6145 = vsel %vm5909, %v5742, 0
        %v6147 = vsel %vm5909, %v5743, 0
        %v6149 = vsel %vm5909, %v5744, 0
        %v6151 = vsel %vm5909, %v5745, 0
        %v6153 = vsel %vm5909, %v5746, 0
        %v6155 = vsel %vm5909, %v5747, 0
        %v6157 = vsel %vm5909, %v5748, 0
        %v6159 = vsel %vm5909, %v5749, 0
        %v6161 = vsel %vm5909, %v5750, 0
        %v6163 = vsel %vm5909, %v5751, 0
        %v6165 = vsel %vm5909, %v5752, 0
        %v6167 = vsel %vm5909, %v5753, 0
        %v6169 = vsel %vm5909, %v5754, 0
        %v6171 = vsel %vm5909, %v5755, 0
        %v6173 = vsel %vm5909, %v5756, 0
        %v6175 = vsel %vm5909, %v5757, 0
        %v6177 = vsel %vm5909, %v5758, 0
        %v6179 = vsel %vm5909, %v5759, 0
        %v6182 = vsel %vm5964, %v5664, 0
        %6184 = vmatprep.subr.bf16.mxu0 0
        %6185 = vmatpush1.bf16.msra.mxu0 %v6182
        %6186 = vmatprep.subr.bf16.mxu0 0
        %6187 = vmatpush1.bf16.msra.mxu0 0
        %6188 = vmatprep.subr.bf16.mxu0 0
        %6189 = vmatpush1.bf16.msra.mxu0 0
        %6190 = vmatprep.subr.bf16.mxu0 0
        %6191 = vmatpush1.bf16.msra.mxu0 0
        %6192 = vmatprep.subr.bf16.mxu0 0
        %6193 = vmatpush1.bf16.msra.mxu0 0
        %6194 = vmatprep.subr.bf16.mxu0 0
        %6195 = vmatpush1.bf16.msra.mxu0 0
        %6196 = vmatprep.subr.bf16.mxu0 0
        %6197 = vmatpush1.bf16.msra.mxu0 0
        %6198 = vmatprep.subr.bf16.mxu0 0
        %6199 = vmatpush1.bf16.msra.mxu0 0
        %6200 = vmatprep.subr.bf16.mxu0 0
        %6201 = vmatpush1.bf16.msra.mxu0 0
        %6202 = vmatprep.subr.bf16.mxu0 0
        %6203 = vmatpush1.bf16.msra.mxu0 0
        %6204 = vmatprep.subr.bf16.mxu0 0
        %6205 = vmatpush1.bf16.msra.mxu0 0
        %6206 = vmatprep.subr.bf16.mxu0 0
        %6207 = vmatpush1.bf16.msra.mxu0 0
        %6208 = vmatprep.subr.bf16.mxu0 0
        %6209 = vmatpush1.bf16.msra.mxu0 0
        %6210 = vmatprep.subr.bf16.mxu0 0
        %6211 = vmatpush1.bf16.msra.mxu0 0
        %6212 = vmatprep.subr.bf16.mxu0 0
        %6213 = vmatpush1.bf16.msra.mxu0 0
        %6214 = vmatprep.subr.bf16.mxu0 0
        %6215 = vmatpush1.bf16.msra.mxu0 0
        %6216 = vmatprep.mubr.bf16.mxu0 0
        %6217 = vmatmul.mubr.bf16.gmra.mrb[0].mxu0 %v6145
        %v6218 = vpop.f32.mrb[0].mxu0
        %v6219 = vadd.f32 %v6003, %v6218
        %v6220 = vpop.f32.mrb[0].mxu0
        %v6221 = vpop.f32.mrb[0].mxu0
        %v6222 = vadd.f32 %v6006, %v6221
        %v6223 = vpop.f32.mrb[0].mxu0
        %6224 = vmatprep.mubr.bf16.mxu0 0
        %6225 = vmatmul.mubr.bf16.gmra.mrb[0].mxu0 %v6147
        %v6226 = vpop.f32.mrb[0].mxu0
        %v6227 = vadd.f32 %v6011, %v6226
        %v6228 = vpop.f32.mrb[0].mxu0
        %v6229 = vpop.f32.mrb[0].mxu0
        %v6230 = vadd.f32 %v6014, %v6229
        %v6231 = vpop.f32.mrb[0].mxu0
        %6232 = vmatprep.mubr.bf16.mxu0 0
        %6233 = vmatmul.mubr.bf16.gmra.mrb[0].mxu0 %v6149
        %v6234 = vpop.f32.mrb[0].mxu0
        %v6235 = vadd.f32 %v6019, %v6234
        %v6236 = vpop.f32.mrb[0].mxu0
        %v6237 = vpop.f32.mrb[0].mxu0
        %v6238 = vadd.f32 %v6022, %v6237
        %v6239 = vpop.f32.mrb[0].mxu0
        %6240 = vmatprep.mubr.bf16.mxu0 0
        %6241 = vmatmul.mubr.bf16.gmra.mrb[0].mxu0 %v6151
        %v6242 = vpop.f32.mrb[0].mxu0
        %v6243 = vadd.f32 %v6027, %v6242
        %v6244 = vpop.f32.mrb[0].mxu0
        %v6245 = vpop.f32.mrb[0].mxu0
        %v6246 = vadd.f32 %v6030, %v6245
        %v6247 = vpop.f32.mrb[0].mxu0
        %6248 = vmatprep.mubr.bf16.mxu0 0
        %6249 = vmatmul.mubr.bf16.gmra.mrb[0].mxu0 %v6153
        %v6250 = vpop.f32.mrb[0].mxu0
        %v6251 = vadd.f32 %v6035, %v6250
        %v6252 = vpop.f32.mrb[0].mxu0
        %v6253 = vpop.f32.mrb[0].mxu0
        %v6254 = vadd.f32 %v6038, %v6253
        %v6255 = vpop.f32.mrb[0].mxu0
        %6256 = vmatprep.mubr.bf16.mxu0 0
        %6257 = vmatmul.mubr.bf16.gmra.mrb[0].mxu0 %v6155
        %v6258 = vpop.f32.mrb[0].mxu0
        %v6259 = vadd.f32 %v6043, %v6258
        %v6260 = vpop.f32.mrb[0].mxu0
        %v6261 = vpop.f32.mrb[0].mxu0
        %v6262 = vadd.f32 %v6046, %v6261
        %v6263 = vpop.f32.mrb[0].mxu0
        %6264 = vmatprep.mubr.bf16.mxu0 0
        %6265 = vmatmul.mubr.bf16.gmra.mrb[0].mxu0 %v6157
        %v6266 = vpop.f32.mrb[0].mxu0
        %v6267 = vadd.f32 %v6051, %v6266
        %v6268 = vpop.f32.mrb[0].mxu0
        %v6269 = vpop.f32.mrb[0].mxu0
        %v6270 = vadd.f32 %v6054, %v6269
        %v6271 = vpop.f32.mrb[0].mxu0
        %6272 = vmatprep.mubr.bf16.mxu0 0
        %6273 = vmatmul.mubr.bf16.gmra.mrb[0].mxu0 %v6159
        %v6274 = vpop.f32.mrb[0].mxu0
        %v6275 = vadd.f32 %v6059, %v6274
        %v6276 = vpop.f32.mrb[0].mxu0
        %v6277 = vpop.f32.mrb[0].mxu0
        %v6278 = vadd.f32 %v6062, %v6277
        %v6279 = vpop.f32.mrb[0].mxu0
        %6280 = vmatprep.mubr.bf16.mxu0 0
        %6281 = vmatmul.mubr.bf16.gmra.mrb[0].mxu0 %v6161
        %v6282 = vpop.f32.mrb[0].mxu0
        %v6283 = vadd.f32 %v6067, %v6282
        %v6284 = vpop.f32.mrb[0].mxu0
        %v6285 = vpop.f32.mrb[0].mxu0
        %v6286 = vadd.f32 %v6070, %v6285
        %v6287 = vpop.f32.mrb[0].mxu0
        %6288 = vmatprep.mubr.bf16.mxu0 0
        %6289 = vmatmul.mubr.bf16.gmra.mrb[0].mxu0 %v6163
        %v6290 = vpop.f32.mrb[0].mxu0
        %v6291 = vadd.f32 %v6075, %v6290
        %v6292 = vpop.f32.mrb[0].mxu0
        %v6293 = vpop.f32.mrb[0].mxu0
        %v6294 = vadd.f32 %v6078, %v6293
        %v6295 = vpop.f32.mrb[0].mxu0
        %6296 = vmatprep.mubr.bf16.mxu0 0
        %6297 = vmatmul.mubr.bf16.gmra.mrb[0].mxu0 %v6165
        %v6298 = vpop.f32.mrb[0].mxu0
        %v6299 = vadd.f32 %v6083, %v6298
        %v6300 = vpop.f32.mrb[0].mxu0
        %v6301 = vpop.f32.mrb[0].mxu0
        %v6302 = vadd.f32 %v6086, %v6301
        %v6303 = vpop.f32.mrb[0].mxu0
        %6304 = vmatprep.mubr.bf16.mxu0 0
        %6305 = vmatmul.mubr.bf16.gmra.mrb[0].mxu0 %v6167
        %v6306 = vpop.f32.mrb[0].mxu0
        %v6307 = vadd.f32 %v6091, %v6306
        %v6308 = vpop.f32.mrb[0].mxu0
        %v6309 = vpop.f32.mrb[0].mxu0
        %v6310 = vadd.f32 %v6094, %v6309
        %v6311 = vpop.f32.mrb[0].mxu0
        %6312 = vmatprep.mubr.bf16.mxu0 0
        %6313 = vmatmul.mubr.bf16.gmra.mrb[0].mxu0 %v6169
        %v6314 = vpop.f32.mrb[0].mxu0
        %v6315 = vadd.f32 %v6099, %v6314
        %v6316 = vpop.f32.mrb[0].mxu0
        %v6317 = vpop.f32.mrb[0].mxu0
        %v6318 = vadd.f32 %v6102, %v6317
        %v6319 = vpop.f32.mrb[0].mxu0
        %6320 = vmatprep.mubr.bf16.mxu0 0
        %6321 = vmatmul.mubr.bf16.gmra.mrb[0].mxu0 %v6171
        %v6322 = vpop.f32.mrb[0].mxu0
        %v6323 = vadd.f32 %v6107, %v6322
        %v6324 = vpop.f32.mrb[0].mxu0
        %v6325 = vpop.f32.mrb[0].mxu0
        %v6326 = vadd.f32 %v6110, %v6325
        %v6327 = vpop.f32.mrb[0].mxu0
        %6328 = vmatprep.mubr.bf16.mxu0 0
        %6329 = vmatmul.mubr.bf16.gmra.mrb[0].mxu0 %v6173
        %v6330 = vpop.f32.mrb[0].mxu0
        %v6331 = vadd.f32 %v6115, %v6330
        %v6332 = vpop.f32.mrb[0].mxu0
        %v6333 = vpop.f32.mrb[0].mxu0
        %v6334 = vadd.f32 %v6118, %v6333
        %v6335 = vpop.f32.mrb[0].mxu0
        %6336 = vmatprep.mubr.bf16.mxu0 0
        %6337 = vmatmul.mubr.bf16.gmra.mrb[0].mxu0 %v6175
        %v6338 = vpop.f32.mrb[0].mxu0
        %v6339 = vadd.f32 %v6123, %v6338
        %v6340 = vpop.f32.mrb[0].mxu0
        %v6341 = vpop.f32.mrb[0].mxu0
        %v6342 = vadd.f32 %v6126, %v6341
        %v6343 = vpop.f32.mrb[0].mxu0
        %6344 = vmatprep.mubr.bf16.mxu0 0
        %6345 = vmatmul.mubr.bf16.gmra.mrb[0].mxu0 %v6177
        %v6346 = vpop.f32.mrb[0].mxu0
        %v6347 = vadd.f32 %v6131, %v6346
        %v6348 = vpop.f32.mrb[0].mxu0
        %v6349 = vpop.f32.mrb[0].mxu0
        %v6350 = vadd.f32 %v6134, %v6349
        %v6351 = vpop.f32.mrb[0].mxu0
        %6352 = vmatprep.mubr.bf16.mxu0 0
        %6353 = vmatmul.mubr.bf16.gmra.mrb[0].mxu0 %v6179
        %v6354 = vpop.f32.mrb[0].mxu0
        %v6355 = vadd.f32 %v6139, %v6354
        %v6356 = vpop.f32.mrb[0].mxu0
        %v6357 = vpop.f32.mrb[0].mxu0
        %v6358 = vadd.f32 %v6142, %v6357
        %v6359 = vpop.f32.mrb[0].mxu0
        %6360 = vdwg.mxu0
        %v6361 = vld [vmem:[#allocation3] sm:$0xe]
        %s6362 = scalar_lea.vmem [#allocation10], 4
        %v6363 = vld [vmem:[%s6362] sm:$0x3]
        %v6365 = vunpack.c.l.b16 %v6361
        %v6366 = vpack.c.b16 %v5706, %v6365
        %v6367 = vrot.slane %v6366, 1
        %v6368 = vrot.slane %v5743, 1
        %v6369 = vsel %vm1520, %v6367, %v6368
        %v6370 = vrot.slane %v5744, 1
        %v6371 = vsel %vm1520, %v6368, %v6370
        %v6372 = vrot.slane %v5745, 1
        %v6373 = vsel %vm1520, %v6370, %v6372
        %v6374 = vrot.slane %v5746, 1
        %v6375 = vsel %vm1520, %v6372, %v6374
        %v6376 = vrot.slane %v5747, 1
        %v6377 = vsel %vm1520, %v6374, %v6376
        %v6378 = vrot.slane %v5748, 1
        %v6379 = vsel %vm1520, %v6376, %v6378
        %v6380 = vrot.slane %v5749, 1
        %v6381 = vsel %vm1520, %v6378, %v6380
        %v6382 = vrot.slane %v5750, 1
        %v6383 = vsel %vm1520, %v6380, %v6382
        %v6384 = vrot.slane %v5751, 1
        %v6385 = vsel %vm1520, %v6382, %v6384
        %v6386 = vrot.slane %v5752, 1
        %v6387 = vsel %vm1520, %v6384, %v6386
        %v6388 = vrot.slane %v5753, 1
        %v6389 = vsel %vm1520, %v6386, %v6388
        %v6390 = vrot.slane %v5754, 1
        %v6391 = vsel %vm1520, %v6388, %v6390
        %v6392 = vrot.slane %v5755, 1
        %v6393 = vsel %vm1520, %v6390, %v6392
        %v6394 = vrot.slane %v5756, 1
        %v6395 = vsel %vm1520, %v6392, %v6394
        %v6396 = vrot.slane %v5757, 1
        %v6397 = vsel %vm1520, %v6394, %v6396
        %v6398 = vrot.slane %v5758, 1
        %v6399 = vsel %vm1520, %v6396, %v6398
        %v6400 = vrot.slane %v5759, 1
        %v6401 = vsel %vm1520, %v6398, %v6400
        %v6402 = vrot.slane %v5760, 1
        %v6403 = vsel %vm1520, %v6400, %v6402
        %v6405 = vsel %vm5909, %v6369, 0
        %v6408 = vsel %vm5909, %v6371, 0
        %v6411 = vsel %vm5909, %v6373, 0
        %v6414 = vsel %vm5909, %v6375, 0
        %v6417 = vsel %vm5909, %v6377, 0
        %v6420 = vsel %vm5909, %v6379, 0
        %v6423 = vsel %vm5909, %v6381, 0
        %v6426 = vsel %vm5909, %v6383, 0
        %v6429 = vsel %vm5909, %v6385, 0
        %v6432 = vsel %vm5909, %v6387, 0
        %v6435 = vsel %vm5909, %v6389, 0
        %v6438 = vsel %vm5909, %v6391, 0
        %v6441 = vsel %vm5909, %v6393, 0
        %v6444 = vsel %vm5909, %v6395, 0
        %v6447 = vsel %vm5909, %v6397, 0
        %v6450 = vsel %vm5909, %v6399, 0
        %v6453 = vsel %vm5909, %v6401, 0
        %v6456 = vsel %vm5909, %v6403, 0
        %v6459 = vsel %vm5964, %v6363, 0
        %6461 = vmatprep.subr.bf16.mxu0 0
        %6462 = vmatpush1.bf16.msra.mxu0 %v6459
        %6463 = vmatprep.subr.bf16.mxu0 0
        %6464 = vmatpush1.bf16.msra.mxu0 0
        %6465 = vmatprep.subr.bf16.mxu0 0
        %6466 = vmatpush1.bf16.msra.mxu0 0
        %6467 = vmatprep.subr.bf16.mxu0 0
        %6468 = vmatpush1.bf16.msra.mxu0 0
        %6469 = vmatprep.subr.bf16.mxu0 0
        %6470 = vmatpush1.bf16.msra.mxu0 0
        %6471 = vmatprep.subr.bf16.mxu0 0
        %6472 = vmatpush1.bf16.msra.mxu0 0
        %6473 = vmatprep.subr.bf16.mxu0 0
        %6474 = vmatpush1.bf16.msra.mxu0 0
        %6475 = vmatprep.subr.bf16.mxu0 0
        %6476 = vmatpush1.bf16.msra.mxu0 0
        %6477 = vmatprep.subr.bf16.mxu0 0
        %6478 = vmatpush1.bf16.msra.mxu0 0
        %6479 = vmatprep.subr.bf16.mxu0 0
        %6480 = vmatpush1.bf16.msra.mxu0 0
        %6481 = vmatprep.subr.bf16.mxu0 0
        %6482 = vmatpush1.bf16.msra.mxu0 0
        %6483 = vmatprep.subr.bf16.mxu0 0
        %6484 = vmatpush1.bf16.msra.mxu0 0
        %6485 = vmatprep.subr.bf16.mxu0 0
        %6486 = vmatpush1.bf16.msra.mxu0 0
        %6487 = vmatprep.subr.bf16.mxu0 0
        %6488 = vmatpush1.bf16.msra.mxu0 0
        %6489 = vmatprep.subr.bf16.mxu0 0
        %6490 = vmatpush1.bf16.msra.mxu0 0
        %6491 = vmatprep.subr.bf16.mxu0 0
        %6492 = vmatpush1.bf16.msra.mxu0 0
        %6493 = vmatprep.mubr.bf16.mxu0 0
        %6494 = vmatmul.mubr.bf16.gmra.mrb[0].mxu0 %v6405
        %v6495 = vpop.f32.mrb[0].mxu0
        %v6496 = vadd.f32 0.0, %v6495
        %v6497 = vpop.f32.mrb[0].mxu0
        %v6498 = vpop.f32.mrb[0].mxu0
        %v6499 = vadd.f32 0.0, %v6498
        %v6500 = vpop.f32.mrb[0].mxu0
        %6501 = vmatprep.mubr.bf16.mxu0 0
        %6502 = vmatmul.mubr.bf16.gmra.mrb[0].mxu0 %v6408
        %v6503 = vpop.f32.mrb[0].mxu0
        %v6504 = vadd.f32 0.0, %v6503
        %v6505 = vpop.f32.mrb[0].mxu0
        %v6506 = vpop.f32.mrb[0].mxu0
        %v6507 = vadd.f32 0.0, %v6506
        %v6508 = vpop.f32.mrb[0].mxu0
        %6509 = vmatprep.mubr.bf16.mxu0 0
        %6510 = vmatmul.mubr.bf16.gmra.mrb[0].mxu0 %v6411
        %v6511 = vpop.f32.mrb[0].mxu0
        %v6512 = vadd.f32 0.0, %v6511
        %v6513 = vpop.f32.mrb[0].mxu0
        %v6514 = vpop.f32.mrb[0].mxu0
        %v6515 = vadd.f32 0.0, %v6514
        %v6516 = vpop.f32.mrb[0].mxu0
        %6517 = vmatprep.mubr.bf16.mxu0 0
        %6518 = vmatmul.mubr.bf16.gmra.mrb[0].mxu0 %v6414
        %v6519 = vpop.f32.mrb[0].mxu0
        %v6520 = vadd.f32 0.0, %v6519
        %v6521 = vpop.f32.mrb[0].mxu0
        %v6522 = vpop.f32.mrb[0].mxu0
        %v6523 = vadd.f32 0.0, %v6522
        %v6524 = vpop.f32.mrb[0].mxu0
        %6525 = vmatprep.mubr.bf16.mxu0 0
        %6526 = vmatmul.mubr.bf16.gmra.mrb[0].mxu0 %v6417
        %v6527 = vpop.f32.mrb[0].mxu0
        %v6528 = vadd.f32 0.0, %v6527
        %v6529 = vpop.f32.mrb[0].mxu0
        %v6530 = vpop.f32.mrb[0].mxu0
        %v6531 = vadd.f32 0.0, %v6530
        %v6532 = vpop.f32.mrb[0].mxu0
        %6533 = vmatprep.mubr.bf16.mxu0 0
        %6534 = vmatmul.mubr.bf16.gmra.mrb[0].mxu0 %v6420
        %v6535 = vpop.f32.mrb[0].mxu0
        %v6536 = vadd.f32 0.0, %v6535
        %v6537 = vpop.f32.mrb[0].mxu0
        %v6538 = vpop.f32.mrb[0].mxu0
        %v6539 = vadd.f32 0.0, %v6538
        %v6540 = vpop.f32.mrb[0].mxu0
        %6541 = vmatprep.mubr.bf16.mxu0 0
        %6542 = vmatmul.mubr.bf16.gmra.mrb[0].mxu0 %v6423
        %v6543 = vpop.f32.mrb[0].mxu0
        %v6544 = vadd.f32 0.0, %v6543
        %v6545 = vpop.f32.mrb[0].mxu0
        %v6546 = vpop.f32.mrb[0].mxu0
        %v6547 = vadd.f32 0.0, %v6546
        %v6548 = vpop.f32.mrb[0].mxu0
        %6549 = vmatprep.mubr.bf16.mxu0 0
        %6550 = vmatmul.mubr.bf16.gmra.mrb[0].mxu0 %v6426
        %v6551 = vpop.f32.mrb[0].mxu0
        %v6552 = vadd.f32 0.0, %v6551
        %v6553 = vpop.f32.mrb[0].mxu0
        %v6554 = vpop.f32.mrb[0].mxu0
        %v6555 = vadd.f32 0.0, %v6554
        %v6556 = vpop.f32.mrb[0].mxu0
        %6557 = vmatprep.mubr.bf16.mxu0 0
        %6558 = vmatmul.mubr.bf16.gmra.mrb[0].mxu0 %v6429
        %v6559 = vpop.f32.mrb[0].mxu0
        %v6560 = vadd.f32 0.0, %v6559
        %v6561 = vpop.f32.mrb[0].mxu0
        %v6562 = vpop.f32.mrb[0].mxu0
        %v6563 = vadd.f32 0.0, %v6562
        %v6564 = vpop.f32.mrb[0].mxu0
        %6565 = vmatprep.mubr.bf16.mxu0 0
        %6566 = vmatmul.mubr.bf16.gmra.mrb[0].mxu0 %v6432
        %v6567 = vpop.f32.mrb[0].mxu0
        %v6568 = vadd.f32 0.0, %v6567
        %v6569 = vpop.f32.mrb[0].mxu0
        %v6570 = vpop.f32.mrb[0].mxu0
        %v6571 = vadd.f32 0.0, %v6570
        %v6572 = vpop.f32.mrb[0].mxu0
        %6573 = vmatprep.mubr.bf16.mxu0 0
        %6574 = vmatmul.mubr.bf16.gmra.mrb[0].mxu0 %v6435
        %v6575 = vpop.f32.mrb[0].mxu0
        %v6576 = vadd.f32 0.0, %v6575
        %v6577 = vpop.f32.mrb[0].mxu0
        %v6578 = vpop.f32.mrb[0].mxu0
        %v6579 = vadd.f32 0.0, %v6578
        %v6580 = vpop.f32.mrb[0].mxu0
        %6581 = vmatprep.mubr.bf16.mxu0 0
        %6582 = vmatmul.mubr.bf16.gmra.mrb[0].mxu0 %v6438
        %v6583 = vpop.f32.mrb[0].mxu0
        %v6584 = vadd.f32 0.0, %v6583
        %v6585 = vpop.f32.mrb[0].mxu0
        %v6586 = vpop.f32.mrb[0].mxu0
        %v6587 = vadd.f32 0.0, %v6586
        %v6588 = vpop.f32.mrb[0].mxu0
        %6589 = vmatprep.mubr.bf16.mxu0 0
        %6590 = vmatmul.mubr.bf16.gmra.mrb[0].mxu0 %v6441
        %v6591 = vpop.f32.mrb[0].mxu0
        %v6592 = vadd.f32 0.0, %v6591
        %v6593 = vpop.f32.mrb[0].mxu0
        %v6594 = vpop.f32.mrb[0].mxu0
        %v6595 = vadd.f32 0.0, %v6594
        %v6596 = vpop.f32.mrb[0].mxu0
        %6597 = vmatprep.mubr.bf16.mxu0 0
        %6598 = vmatmul.mubr.bf16.gmra.mrb[0].mxu0 %v6444
        %v6599 = vpop.f32.mrb[0].mxu0
        %v6600 = vadd.f32 0.0, %v6599
        %v6601 = vpop.f32.mrb[0].mxu0
        %v6602 = vpop.f32.mrb[0].mxu0
        %v6603 = vadd.f32 0.0, %v6602
        %v6604 = vpop.f32.mrb[0].mxu0
        %6605 = vmatprep.mubr.bf16.mxu0 0
        %6606 = vmatmul.mubr.bf16.gmra.mrb[0].mxu0 %v6447
        %v6607 = vpop.f32.mrb[0].mxu0
        %v6608 = vadd.f32 0.0, %v6607
        %v6609 = vpop.f32.mrb[0].mxu0
        %v6610 = vpop.f32.mrb[0].mxu0
        %v6611 = vadd.f32 0.0, %v6610
        %v6612 = vpop.f32.mrb[0].mxu0
        %6613 = vmatprep.mubr.bf16.mxu0 0
        %6614 = vmatmul.mubr.bf16.gmra.mrb[0].mxu0 %v6450
        %v6615 = vpop.f32.mrb[0].mxu0
        %v6616 = vadd.f32 0.0, %v6615
        %v6617 = vpop.f32.mrb[0].mxu0
        %v6618 = vpop.f32.mrb[0].mxu0
        %v6619 = vadd.f32 0.0, %v6618
        %v6620 = vpop.f32.mrb[0].mxu0
        %6621 = vmatprep.mubr.bf16.mxu0 0
        %6622 = vmatmul.mubr.bf16.gmra.mrb[0].mxu0 %v6453
        %v6623 = vpop.f32.mrb[0].mxu0
        %v6624 = vadd.f32 0.0, %v6623
        %v6625 = vpop.f32.mrb[0].mxu0
        %v6626 = vpop.f32.mrb[0].mxu0
        %v6627 = vadd.f32 0.0, %v6626
        %v6628 = vpop.f32.mrb[0].mxu0
        %6629 = vmatprep.mubr.bf16.mxu0 0
        %6630 = vmatmul.mubr.bf16.gmra.mrb[0].mxu0 %v6456
        %v6631 = vpop.f32.mrb[0].mxu0
        %v6632 = vadd.f32 0.0, %v6631
        %v6633 = vpop.f32.mrb[0].mxu0
        %v6634 = vpop.f32.mrb[0].mxu0
        %v6635 = vadd.f32 0.0, %v6634
        %v6636 = vpop.f32.mrb[0].mxu0
        %6637 = vdwg.mxu0
        %v6638 = vadd.f32 %v6219, %v6496
        %v6639 = vadd.f32 %v6222, %v6499
        %v6640 = vadd.f32 %v6227, %v6504
        %v6641 = vadd.f32 %v6230, %v6507
        %v6642 = vadd.f32 %v6235, %v6512
        %v6643 = vadd.f32 %v6238, %v6515
        %v6644 = vadd.f32 %v6243, %v6520
        %v6645 = vadd.f32 %v6246, %v6523
        %v6646 = vadd.f32 %v6251, %v6528
        %v6647 = vadd.f32 %v6254, %v6531
        %v6648 = vadd.f32 %v6259, %v6536
        %v6649 = vadd.f32 %v6262, %v6539
        %v6650 = vadd.f32 %v6267, %v6544
        %v6651 = vadd.f32 %v6270, %v6547
        %v6652 = vadd.f32 %v6275, %v6552
        %v6653 = vadd.f32 %v6278, %v6555
        %v6654 = vadd.f32 %v6283, %v6560
        %v6655 = vadd.f32 %v6286, %v6563
        %v6656 = vadd.f32 %v6291, %v6568
        %v6657 = vadd.f32 %v6294, %v6571
        %v6658 = vadd.f32 %v6299, %v6576
        %v6659 = vadd.f32 %v6302, %v6579
        %v6660 = vadd.f32 %v6307, %v6584
        %v6661 = vadd.f32 %v6310, %v6587
        %v6662 = vadd.f32 %v6315, %v6592
        %v6663 = vadd.f32 %v6318, %v6595
        %v6664 = vadd.f32 %v6323, %v6600
        %v6665 = vadd.f32 %v6326, %v6603
        %v6666 = vadd.f32 %v6331, %v6608
        %v6667 = vadd.f32 %v6334, %v6611
        %v6668 = vadd.f32 %v6339, %v6616
        %v6669 = vadd.f32 %v6342, %v6619
        %v6670 = vadd.f32 %v6347, %v6624
        %v6671 = vadd.f32 %v6350, %v6627
        %v6672 = vadd.f32 %v6355, %v6632
        %v6673 = vadd.f32 %v6358, %v6635
        %v6674 = vld [vmem:[#allocation3 + $0x8] sm:$0xe]
        %v6675 = vld [vmem:[#allocation3 + $0xc] sm:$0xf]
        %v6676 = vld [vmem:[#allocation3 + $0x10] sm:$0xf]
        %v6677 = vld [vmem:[#allocation3 + $0x14] sm:$0xf]
        %v6678 = vld [vmem:[#allocation3 + $0x18] sm:$0xf]
        %v6679 = vld [vmem:[#allocation3 + $0x1c] sm:$0xf]
        %v6680 = vld [vmem:[#allocation3 + $0x20] sm:$0xf]
        %v6681 = vld [vmem:[#allocation3 + $0x24] sm:$0xf]
        %v6682 = vld [vmem:[#allocation3 + $0x28] sm:$0xf]
        %v6683 = vld [vmem:[#allocation3 + $0x2c] sm:$0xf]
        %v6684 = vld [vmem:[#allocation3 + $0x30] sm:$0xf]
        %v6685 = vld [vmem:[#allocation3 + $0x34] sm:$0xf]
        %v6686 = vld [vmem:[#allocation3 + $0x38] sm:$0xf]
        %v6687 = vld [vmem:[#allocation3 + $0x3c] sm:$0xf]
        %v6688 = vld [vmem:[#allocation3 + $0x40] sm:$0xf]
        %v6689 = vld [vmem:[#allocation3 + $0x44] sm:$0xf]
        %v6690 = vld [vmem:[#allocation3 + $0x48] sm:$0xf]
        %v6691 = vld [vmem:[#allocation3 + $0x4c] sm:$0xf]
        %v6692 = vld [vmem:[#allocation3 + $0x50] sm:$0xf]
        %v6693 = vld [vmem:[#allocation3 + $0x54] sm:$0xf]
        %v6694 = vld [vmem:[#allocation3 + $0x58] sm:$0xf]
        %v6695 = vld [vmem:[#allocation3 + $0x5c] sm:$0xf]
        %v6696 = vld [vmem:[#allocation3 + $0x60] sm:$0xf]
        %v6697 = vld [vmem:[#allocation3 + $0x64] sm:$0xf]
        %v6698 = vld [vmem:[#allocation3 + $0x68] sm:$0xf]
        %v6699 = vld [vmem:[#allocation3 + $0x6c] sm:$0xf]
        %v6700 = vld [vmem:[#allocation3 + $0x70] sm:$0xf]
        %v6701 = vld [vmem:[#allocation3 + $0x74] sm:$0xf]
        %v6702 = vld [vmem:[#allocation3 + $0x78] sm:$0xf]
        %v6703 = vld [vmem:[#allocation3 + $0x7c] sm:$0xf]
        %v6704 = vld [vmem:[#allocation3 + $0x80] sm:$0xf]
        %v6705 = vld [vmem:[#allocation3 + $0x84] sm:$0xf]
        %v6706 = vld [vmem:[#allocation3 + $0x88] sm:$0xf]
        %v6707 = vld [vmem:[#allocation3 + $0x8c] sm:$0xf]
        %v6708 = vld [vmem:[#allocation3 + $0x90] sm:$0xf]
        %v6709 = vld [vmem:[#allocation3 + $0x94] sm:$0xf]
        %v6710 = vld [vmem:[#allocation3 + $0x98] sm:$0x1]
        %s6711 = scalar_lea.vmem [#allocation10], 6
        %v6712 = vld [vmem:[%s6711] sm:$0x3]
        %v6750 = vunpack.c.l.b16 %v6674
        %v6751 = vunpack.c.l.b16 %v6675
        %v6752 = vunpack.c.l.b16 %v6676
        %v6753 = vunpack.c.l.b16 %v6677
        %v6754 = vunpack.c.l.b16 %v6678
        %v6755 = vunpack.c.l.b16 %v6679
        %v6756 = vunpack.c.l.b16 %v6680
        %v6757 = vunpack.c.l.b16 %v6681
        %v6758 = vunpack.c.l.b16 %v6682
        %v6759 = vunpack.c.l.b16 %v6683
        %v6760 = vunpack.c.l.b16 %v6684
        %v6761 = vunpack.c.l.b16 %v6685
        %v6762 = vunpack.c.l.b16 %v6686
        %v6763 = vunpack.c.l.b16 %v6687
        %v6764 = vunpack.c.l.b16 %v6688
        %v6765 = vunpack.c.l.b16 %v6689
        %v6766 = vunpack.c.l.b16 %v6690
        %v6767 = vunpack.c.l.b16 %v6691
        %v6768 = vunpack.c.l.b16 %v6692
        %v6769 = vunpack.c.l.b16 %v6693
        %v6770 = vunpack.c.l.b16 %v6694
        %v6771 = vunpack.c.l.b16 %v6695
        %v6772 = vunpack.c.l.b16 %v6696
        %v6773 = vunpack.c.l.b16 %v6697
        %v6774 = vunpack.c.l.b16 %v6698
        %v6775 = vunpack.c.l.b16 %v6699
        %v6776 = vunpack.c.l.b16 %v6700
        %v6777 = vunpack.c.l.b16 %v6701
        %v6778 = vunpack.c.l.b16 %v6702
        %v6779 = vunpack.c.l.b16 %v6703
        %v6780 = vunpack.c.l.b16 %v6704
        %v6781 = vunpack.c.l.b16 %v6705
        %v6782 = vunpack.c.l.b16 %v6706
        %v6783 = vunpack.c.l.b16 %v6707
        %v6784 = vunpack.c.l.b16 %v6708
        %v6785 = vunpack.c.l.b16 %v6709
        %v6786 = vunpack.c.l.b16 %v6710
        %v6787 = vpack.c.b16 %v6751, %v6750
        %v6788 = vpack.c.b16 %v6753, %v6752
        %v6789 = vpack.c.b16 %v6755, %v6754
        %v6790 = vpack.c.b16 %v6757, %v6756
        %v6791 = vpack.c.b16 %v6759, %v6758
        %v6792 = vpack.c.b16 %v6761, %v6760
        %v6793 = vpack.c.b16 %v6763, %v6762
        %v6794 = vpack.c.b16 %v6765, %v6764
        %v6795 = vpack.c.b16 %v6767, %v6766
        %v6796 = vpack.c.b16 %v6769, %v6768
        %v6797 = vpack.c.b16 %v6771, %v6770
        %v6798 = vpack.c.b16 %v6773, %v6772
        %v6799 = vpack.c.b16 %v6775, %v6774
        %v6800 = vpack.c.b16 %v6777, %v6776
        %v6801 = vpack.c.b16 %v6779, %v6778
        %v6802 = vpack.c.b16 %v6781, %v6780
        %v6803 = vpack.c.b16 %v6783, %v6782
        %v6804 = vpack.c.b16 %v6785, %v6784
        %v6805 = vpack.c.b16 %v6786, %v6786
        %v6806 = vrot.slane %v6787, 1
        %v6807 = vrot.slane %v6788, 1
        %v6808 = vsel %vm1520, %v6806, %v6807
        %v6809 = vrot.slane %v6789, 1
        %v6810 = vsel %vm1520, %v6807, %v6809
        %v6811 = vrot.slane %v6790, 1
        %v6812 = vsel %vm1520, %v6809, %v6811
        %v6813 = vrot.slane %v6791, 1
        %v6814 = vsel %vm1520, %v6811, %v6813
        %v6815 = vrot.slane %v6792, 1
        %v6816 = vsel %vm1520, %v6813, %v6815
        %v6817 = vrot.slane %v6793, 1
        %v6818 = vsel %vm1520, %v6815, %v6817
        %v6819 = vrot.slane %v6794, 1
        %v6820 = vsel %vm1520, %v6817, %v6819
        %v6821 = vrot.slane %v6795, 1
        %v6822 = vsel %vm1520, %v6819, %v6821
        %v6823 = vrot.slane %v6796, 1
        %v6824 = vsel %vm1520, %v6821, %v6823
        %v6825 = vrot.slane %v6797, 1
        %v6826 = vsel %vm1520, %v6823, %v6825
        %v6827 = vrot.slane %v6798, 1
        %v6828 = vsel %vm1520, %v6825, %v6827
        %v6829 = vrot.slane %v6799, 1
        %v6830 = vsel %vm1520, %v6827, %v6829
        %v6831 = vrot.slane %v6800, 1
        %v6832 = vsel %vm1520, %v6829, %v6831
        %v6833 = vrot.slane %v6801, 1
        %v6834 = vsel %vm1520, %v6831, %v6833
        %v6835 = vrot.slane %v6802, 1
        %v6836 = vsel %vm1520, %v6833, %v6835
        %v6837 = vrot.slane %v6803, 1
        %v6838 = vsel %vm1520, %v6835, %v6837
        %v6839 = vrot.slane %v6804, 1
        %v6840 = vsel %vm1520, %v6837, %v6839
        %v6841 = vrot.slane %v6805, 1
        %v6842 = vsel %vm1520, %v6839, %v6841
        %v6844 = vsel %vm5909, %v6808, 0
        %v6847 = vsel %vm5909, %v6810, 0
        %v6850 = vsel %vm5909, %v6812, 0
        %v6853 = vsel %vm5909, %v6814, 0
        %v6856 = vsel %vm5909, %v6816, 0
        %v6859 = vsel %vm5909, %v6818, 0
        %v6862 = vsel %vm5909, %v6820, 0
        %v6865 = vsel %vm5909, %v6822, 0
        %v6868 = vsel %vm5909, %v6824, 0
        %v6871 = vsel %vm5909, %v6826, 0
        %v6874 = vsel %vm5909, %v6828, 0
        %v6877 = vsel %vm5909, %v6830, 0
        %v6880 = vsel %vm5909, %v6832, 0
        %v6883 = vsel %vm5909, %v6834, 0
        %v6886 = vsel %vm5909, %v6836, 0
        %v6889 = vsel %vm5909, %v6838, 0
        %v6892 = vsel %vm5909, %v6840, 0
        %v6895 = vsel %vm5909, %v6842, 0
        %v6898 = vsel %vm5964, %v6712, 0
        %6900 = vmatprep.subr.bf16.mxu0 0
        %6901 = vmatpush1.bf16.msra.mxu0 %v6898
        %6902 = vmatprep.subr.bf16.mxu0 0
        %6903 = vmatpush1.bf16.msra.mxu0 0
        %6904 = vmatprep.subr.bf16.mxu0 0
        %6905 = vmatpush1.bf16.msra.mxu0 0
        %6906 = vmatprep.subr.bf16.mxu0 0
        %6907 = vmatpush1.bf16.msra.mxu0 0
        %6908 = vmatprep.subr.bf16.mxu0 0
        %6909 = vmatpush1.bf16.msra.mxu0 0
        %6910 = vmatprep.subr.bf16.mxu0 0
        %6911 = vmatpush1.bf16.msra.mxu0 0
        %6912 = vmatprep.subr.bf16.mxu0 0
        %6913 = vmatpush1.bf16.msra.mxu0 0
        %6914 = vmatprep.subr.bf16.mxu0 0
        %6915 = vmatpush1.bf16.msra.mxu0 0
        %6916 = vmatprep.subr.bf16.mxu0 0
        %6917 = vmatpush1.bf16.msra.mxu0 0
        %6918 = vmatprep.subr.bf16.mxu0 0
        %6919 = vmatpush1.bf16.msra.mxu0 0
        %6920 = vmatprep.subr.bf16.mxu0 0
        %6921 = vmatpush1.bf16.msra.mxu0 0
        %6922 = vmatprep.subr.bf16.mxu0 0
        %6923 = vmatpush1.bf16.msra.mxu0 0
        %6924 = vmatprep.subr.bf16.mxu0 0
        %6925 = vmatpush1.bf16.msra.mxu0 0
        %6926 = vmatprep.subr.bf16.mxu0 0
        %6927 = vmatpush1.bf16.msra.mxu0 0
        %6928 = vmatprep.subr.bf16.mxu0 0
        %6929 = vmatpush1.bf16.msra.mxu0 0
        %6930 = vmatprep.subr.bf16.mxu0 0
        %6931 = vmatpush1.bf16.msra.mxu0 0
        %6932 = vmatprep.mubr.bf16.mxu0 0
        %6933 = vmatmul.mubr.bf16.gmra.mrb[0].mxu0 %v6844
        %v6934 = vpop.f32.mrb[0].mxu0
        %v6935 = vadd.f32 0.0, %v6934
        %v6936 = vpop.f32.mrb[0].mxu0
        %v6937 = vpop.f32.mrb[0].mxu0
        %v6938 = vadd.f32 0.0, %v6937
        %v6939 = vpop.f32.mrb[0].mxu0
        %6940 = vmatprep.mubr.bf16.mxu0 0
        %6941 = vmatmul.mubr.bf16.gmra.mrb[0].mxu0 %v6847
        %v6942 = vpop.f32.mrb[0].mxu0
        %v6943 = vadd.f32 0.0, %v6942
        %v6944 = vpop.f32.mrb[0].mxu0
        %v6945 = vpop.f32.mrb[0].mxu0
        %v6946 = vadd.f32 0.0, %v6945
        %v6947 = vpop.f32.mrb[0].mxu0
        %6948 = vmatprep.mubr.bf16.mxu0 0
        %6949 = vmatmul.mubr.bf16.gmra.mrb[0].mxu0 %v6850
        %v6950 = vpop.f32.mrb[0].mxu0
        %v6951 = vadd.f32 0.0, %v6950
        %v6952 = vpop.f32.mrb[0].mxu0
        %v6953 = vpop.f32.mrb[0].mxu0
        %v6954 = vadd.f32 0.0, %v6953
        %v6955 = vpop.f32.mrb[0].mxu0
        %6956 = vmatprep.mubr.bf16.mxu0 0
        %6957 = vmatmul.mubr.bf16.gmra.mrb[0].mxu0 %v6853
        %v6958 = vpop.f32.mrb[0].mxu0
        %v6959 = vadd.f32 0.0, %v6958
        %v6960 = vpop.f32.mrb[0].mxu0
        %v6961 = vpop.f32.mrb[0].mxu0
        %v6962 = vadd.f32 0.0, %v6961
        %v6963 = vpop.f32.mrb[0].mxu0
        %6964 = vmatprep.mubr.bf16.mxu0 0
        %6965 = vmatmul.mubr.bf16.gmra.mrb[0].mxu0 %v6856
        %v6966 = vpop.f32.mrb[0].mxu0
        %v6967 = vadd.f32 0.0, %v6966
        %v6968 = vpop.f32.mrb[0].mxu0
        %v6969 = vpop.f32.mrb[0].mxu0
        %v6970 = vadd.f32 0.0, %v6969
        %v6971 = vpop.f32.mrb[0].mxu0
        %6972 = vmatprep.mubr.bf16.mxu0 0
        %6973 = vmatmul.mubr.bf16.gmra.mrb[0].mxu0 %v6859
        %v6974 = vpop.f32.mrb[0].mxu0
        %v6975 = vadd.f32 0.0, %v6974
        %v6976 = vpop.f32.mrb[0].mxu0
        %v6977 = vpop.f32.mrb[0].mxu0
        %v6978 = vadd.f32 0.0, %v6977
        %v6979 = vpop.f32.mrb[0].mxu0
        %6980 = vmatprep.mubr.bf16.mxu0 0
        %6981 = vmatmul.mubr.bf16.gmra.mrb[0].mxu0 %v6862
        %v6982 = vpop.f32.mrb[0].mxu0
        %v6983 = vadd.f32 0.0, %v6982
        %v6984 = vpop.f32.mrb[0].mxu0
        %v6985 = vpop.f32.mrb[0].mxu0
        %v6986 = vadd.f32 0.0, %v6985
        %v6987 = vpop.f32.mrb[0].mxu0
        %6988 = vmatprep.mubr.bf16.mxu0 0
        %6989 = vmatmul.mubr.bf16.gmra.mrb[0].mxu0 %v6865
        %v6990 = vpop.f32.mrb[0].mxu0
        %v6991 = vadd.f32 0.0, %v6990
        %v6992 = vpop.f32.mrb[0].mxu0
        %v6993 = vpop.f32.mrb[0].mxu0
        %v6994 = vadd.f32 0.0, %v6993
        %v6995 = vpop.f32.mrb[0].mxu0
        %6996 = vmatprep.mubr.bf16.mxu0 0
        %6997 = vmatmul.mubr.bf16.gmra.mrb[0].mxu0 %v6868
        %v6998 = vpop.f32.mrb[0].mxu0
        %v6999 = vadd.f32 0.0, %v6998
        %v7000 = vpop.f32.mrb[0].mxu0
        %v7001 = vpop.f32.mrb[0].mxu0
        %v7002 = vadd.f32 0.0, %v7001
        %v7003 = vpop.f32.mrb[0].mxu0
        %7004 = vmatprep.mubr.bf16.mxu0 0
        %7005 = vmatmul.mubr.bf16.gmra.mrb[0].mxu0 %v6871
        %v7006 = vpop.f32.mrb[0].mxu0
        %v7007 = vadd.f32 0.0, %v7006
        %v7008 = vpop.f32.mrb[0].mxu0
        %v7009 = vpop.f32.mrb[0].mxu0
        %v7010 = vadd.f32 0.0, %v7009
        %v7011 = vpop.f32.mrb[0].mxu0
        %7012 = vmatprep.mubr.bf16.mxu0 0
        %7013 = vmatmul.mubr.bf16.gmra.mrb[0].mxu0 %v6874
        %v7014 = vpop.f32.mrb[0].mxu0
        %v7015 = vadd.f32 0.0, %v7014
        %v7016 = vpop.f32.mrb[0].mxu0
        %v7017 = vpop.f32.mrb[0].mxu0
        %v7018 = vadd.f32 0.0, %v7017
        %v7019 = vpop.f32.mrb[0].mxu0
        %7020 = vmatprep.mubr.bf16.mxu0 0
        %7021 = vmatmul.mubr.bf16.gmra.mrb[0].mxu0 %v6877
        %v7022 = vpop.f32.mrb[0].mxu0
        %v7023 = vadd.f32 0.0, %v7022
        %v7024 = vpop.f32.mrb[0].mxu0
        %v7025 = vpop.f32.mrb[0].mxu0
        %v7026 = vadd.f32 0.0, %v7025
        %v7027 = vpop.f32.mrb[0].mxu0
        %7028 = vmatprep.mubr.bf16.mxu0 0
        %7029 = vmatmul.mubr.bf16.gmra.mrb[0].mxu0 %v6880
        %v7030 = vpop.f32.mrb[0].mxu0
        %v7031 = vadd.f32 0.0, %v7030
        %v7032 = vpop.f32.mrb[0].mxu0
        %v7033 = vpop.f32.mrb[0].mxu0
        %v7034 = vadd.f32 0.0, %v7033
        %v7035 = vpop.f32.mrb[0].mxu0
        %7036 = vmatprep.mubr.bf16.mxu0 0
        %7037 = vmatmul.mubr.bf16.gmra.mrb[0].mxu0 %v6883
        %v7038 = vpop.f32.mrb[0].mxu0
        %v7039 = vadd.f32 0.0, %v7038
        %v7040 = vpop.f32.mrb[0].mxu0
        %v7041 = vpop.f32.mrb[0].mxu0
        %v7042 = vadd.f32 0.0, %v7041
        %v7043 = vpop.f32.mrb[0].mxu0
        %7044 = vmatprep.mubr.bf16.mxu0 0
        %7045 = vmatmul.mubr.bf16.gmra.mrb[0].mxu0 %v6886
        %v7046 = vpop.f32.mrb[0].mxu0
        %v7047 = vadd.f32 0.0, %v7046
        %v7048 = vpop.f32.mrb[0].mxu0
        %v7049 = vpop.f32.mrb[0].mxu0
        %v7050 = vadd.f32 0.0, %v7049
        %v7051 = vpop.f32.mrb[0].mxu0
        %7052 = vmatprep.mubr.bf16.mxu0 0
        %7053 = vmatmul.mubr.bf16.gmra.mrb[0].mxu0 %v6889
        %v7054 = vpop.f32.mrb[0].mxu0
        %v7055 = vadd.f32 0.0, %v7054
        %v7056 = vpop.f32.mrb[0].mxu0
        %v7057 = vpop.f32.mrb[0].mxu0
        %v7058 = vadd.f32 0.0, %v7057
        %v7059 = vpop.f32.mrb[0].mxu0
        %7060 = vmatprep.mubr.bf16.mxu0 0
        %7061 = vmatmul.mubr.bf16.gmra.mrb[0].mxu0 %v6892
        %v7062 = vpop.f32.mrb[0].mxu0
        %v7063 = vadd.f32 0.0, %v7062
        %v7064 = vpop.f32.mrb[0].mxu0
        %v7065 = vpop.f32.mrb[0].mxu0
        %v7066 = vadd.f32 0.0, %v7065
        %v7067 = vpop.f32.mrb[0].mxu0
        %7068 = vmatprep.mubr.bf16.mxu0 0
        %7069 = vmatmul.mubr.bf16.gmra.mrb[0].mxu0 %v6895
        %v7070 = vpop.f32.mrb[0].mxu0
        %v7071 = vadd.f32 0.0, %v7070
        %v7072 = vpop.f32.mrb[0].mxu0
        %v7073 = vpop.f32.mrb[0].mxu0
        %v7074 = vadd.f32 0.0, %v7073
        %v7075 = vpop.f32.mrb[0].mxu0
        %7076 = vdwg.mxu0
        %v7077 = vadd.f32 %v6638, %v6935
        %v7078 = vadd.f32 %v6639, %v6938
        %v7079 = vadd.f32 %v6640, %v6943
        %v7080 = vadd.f32 %v6641, %v6946
        %v7081 = vadd.f32 %v6642, %v6951
        %v7082 = vadd.f32 %v6643, %v6954
        %v7083 = vadd.f32 %v6644, %v6959
        %v7084 = vadd.f32 %v6645, %v6962
        %v7085 = vadd.f32 %v6646, %v6967
        %v7086 = vadd.f32 %v6647, %v6970
        %v7087 = vadd.f32 %v6648, %v6975
        %v7088 = vadd.f32 %v6649, %v6978
        %v7089 = vadd.f32 %v6650, %v6983
        %v7090 = vadd.f32 %v6651, %v6986
        %v7091 = vadd.f32 %v6652, %v6991
        %v7092 = vadd.f32 %v6653, %v6994
        %v7093 = vadd.f32 %v6654, %v6999
        %v7094 = vadd.f32 %v6655, %v7002
        %v7095 = vadd.f32 %v6656, %v7007
        %v7096 = vadd.f32 %v6657, %v7010
        %v7097 = vadd.f32 %v6658, %v7015
        %v7098 = vadd.f32 %v6659, %v7018
        %v7099 = vadd.f32 %v6660, %v7023
        %v7100 = vadd.f32 %v6661, %v7026
        %v7101 = vadd.f32 %v6662, %v7031
        %v7102 = vadd.f32 %v6663, %v7034
        %v7103 = vadd.f32 %v6664, %v7039
        %v7104 = vadd.f32 %v6665, %v7042
        %v7105 = vadd.f32 %v6666, %v7047
        %v7106 = vadd.f32 %v6667, %v7050
        %v7107 = vadd.f32 %v6668, %v7055
        %v7108 = vadd.f32 %v6669, %v7058
        %v7109 = vadd.f32 %v6670, %v7063
        %v7110 = vadd.f32 %v6671, %v7066
        %v7111 = vadd.f32 %v6672, %v7071
        %v7112 = vadd.f32 %v6673, %v7074
        %v7113 = vld [vmem:[#allocation3 + $0x98] sm:$0x3]
        %s7114 = scalar_lea.vmem [#allocation10], 8
        %v7115 = vld [vmem:[%s7114] sm:$0x3]
        %v7117 = vunpack.c.l.b16 %v7113
        %v7118 = vpack.c.b16 %v7117, %v7117
        %v7120 = vshrl.u32 %v6787, 16
        %v7122 = vrot.slane %v7120, 1
        %v7123 = vshll.u32 %v6787, 16
        %v7125 = vrot.slane %v7123, 2
        %v7126 = vor.u32 %v7122, %v7125
        %v7128 = vshrl.u32 %v6788, 16
        %v7130 = vrot.slane %v7128, 1
        %v7131 = vshll.u32 %v6788, 16
        %v7133 = vrot.slane %v7131, 2
        %v7134 = vor.u32 %v7130, %v7133
        %v7135 = vsel %vm2273, %v7126, %v7134
        %v7137 = vshrl.u32 %v6789, 16
        %v7139 = vrot.slane %v7137, 1
        %v7140 = vshll.u32 %v6789, 16
        %v7142 = vrot.slane %v7140, 2
        %v7143 = vor.u32 %v7139, %v7142
        %v7144 = vsel %vm2273, %v7134, %v7143
        %v7146 = vshrl.u32 %v6790, 16
        %v7148 = vrot.slane %v7146, 1
        %v7149 = vshll.u32 %v6790, 16
        %v7151 = vrot.slane %v7149, 2
        %v7152 = vor.u32 %v7148, %v7151
        %v7153 = vsel %vm2273, %v7143, %v7152
        %v7155 = vshrl.u32 %v6791, 16
        %v7157 = vrot.slane %v7155, 1
        %v7158 = vshll.u32 %v6791, 16
        %v7160 = vrot.slane %v7158, 2
        %v7161 = vor.u32 %v7157, %v7160
        %v7162 = vsel %vm2273, %v7152, %v7161
        %v7164 = vshrl.u32 %v6792, 16
        %v7166 = vrot.slane %v7164, 1
        %v7167 = vshll.u32 %v6792, 16
        %v7169 = vrot.slane %v7167, 2
        %v7170 = vor.u32 %v7166, %v7169
        %v7171 = vsel %vm2273, %v7161, %v7170
        %v7173 = vshrl.u32 %v6793, 16
        %v7175 = vrot.slane %v7173, 1
        %v7176 = vshll.u32 %v6793, 16
        %v7178 = vrot.slane %v7176, 2
        %v7179 = vor.u32 %v7175, %v7178
        %v7180 = vsel %vm2273, %v7170, %v7179
        %v7182 = vshrl.u32 %v6794, 16
        %v7184 = vrot.slane %v7182, 1
        %v7185 = vshll.u32 %v6794, 16
        %v7187 = vrot.slane %v7185, 2
        %v7188 = vor.u32 %v7184, %v7187
        %v7189 = vsel %vm2273, %v7179, %v7188
        %v7191 = vshrl.u32 %v6795, 16
        %v7193 = vrot.slane %v7191, 1
        %v7194 = vshll.u32 %v6795, 16
        %v7196 = vrot.slane %v7194, 2
        %v7197 = vor.u32 %v7193, %v7196
        %v7198 = vsel %vm2273, %v7188, %v7197
        %v7200 = vshrl.u32 %v6796, 16
        %v7202 = vrot.slane %v7200, 1
        %v7203 = vshll.u32 %v6796, 16
        %v7205 = vrot.slane %v7203, 2
        %v7206 = vor.u32 %v7202, %v7205
        %v7207 = vsel %vm2273, %v7197, %v7206
        %v7209 = vshrl.u32 %v6797, 16
        %v7211 = vrot.slane %v7209, 1
        %v7212 = vshll.u32 %v6797, 16
        %v7214 = vrot.slane %v7212, 2
        %v7215 = vor.u32 %v7211, %v7214
        %v7216 = vsel %vm2273, %v7206, %v7215
        %v7218 = vshrl.u32 %v6798, 16
        %v7220 = vrot.slane %v7218, 1
        %v7221 = vshll.u32 %v6798, 16
        %v7223 = vrot.slane %v7221, 2
        %v7224 = vor.u32 %v7220, %v7223
        %v7225 = vsel %vm2273, %v7215, %v7224
        %v7227 = vshrl.u32 %v6799, 16
        %v7229 = vrot.slane %v7227, 1
        %v7230 = vshll.u32 %v6799, 16
        %v7232 = vrot.slane %v7230, 2
        %v7233 = vor.u32 %v7229, %v7232
        %v7234 = vsel %vm2273, %v7224, %v7233
        %v7236 = vshrl.u32 %v6800, 16
        %v7238 = vrot.slane %v7236, 1
        %v7239 = vshll.u32 %v6800, 16
        %v7241 = vrot.slane %v7239, 2
        %v7242 = vor.u32 %v7238, %v7241
        %v7243 = vsel %vm2273, %v7233, %v7242
        %v7245 = vshrl.u32 %v6801, 16
        %v7247 = vrot.slane %v7245, 1
        %v7248 = vshll.u32 %v6801, 16
        %v7250 = vrot.slane %v7248, 2
        %v7251 = vor.u32 %v7247, %v7250
        %v7252 = vsel %vm2273, %v7242, %v7251
        %v7254 = vshrl.u32 %v6802, 16
        %v7256 = vrot.slane %v7254, 1
        %v7257 = vshll.u32 %v6802, 16
        %v7259 = vrot.slane %v7257, 2
        %v7260 = vor.u32 %v7256, %v7259
        %v7261 = vsel %vm2273, %v7251, %v7260
        %v7263 = vshrl.u32 %v6803, 16
        %v7265 = vrot.slane %v7263, 1
        %v7266 = vshll.u32 %v6803, 16
        %v7268 = vrot.slane %v7266, 2
        %v7269 = vor.u32 %v7265, %v7268
        %v7270 = vsel %vm2273, %v7260, %v7269
        %v7272 = vshrl.u32 %v6804, 16
        %v7274 = vrot.slane %v7272, 1
        %v7275 = vshll.u32 %v6804, 16
        %v7277 = vrot.slane %v7275, 2
        %v7278 = vor.u32 %v7274, %v7277
        %v7279 = vsel %vm2273, %v7269, %v7278
        %v7281 = vshrl.u32 %v7118, 16
        %v7283 = vrot.slane %v7281, 1
        %v7284 = vshll.u32 %v7118, 16
        %v7286 = vrot.slane %v7284, 2
        %v7287 = vor.u32 %v7283, %v7286
        %v7288 = vsel %vm2273, %v7278, %v7287
        %v7290 = vsel %vm5909, %v7135, 0
        %v7293 = vsel %vm5909, %v7144, 0
        %v7296 = vsel %vm5909, %v7153, 0
        %v7299 = vsel %vm5909, %v7162, 0
        %v7302 = vsel %vm5909, %v7171, 0
        %v7305 = vsel %vm5909, %v7180, 0
        %v7308 = vsel %vm5909, %v7189, 0
        %v7311 = vsel %vm5909, %v7198, 0
        %v7314 = vsel %vm5909, %v7207, 0
        %v7317 = vsel %vm5909, %v7216, 0
        %v7320 = vsel %vm5909, %v7225, 0
        %v7323 = vsel %vm5909, %v7234, 0
        %v7326 = vsel %vm5909, %v7243, 0
        %v7329 = vsel %vm5909, %v7252, 0
        %v7332 = vsel %vm5909, %v7261, 0
        %v7335 = vsel %vm5909, %v7270, 0
        %v7338 = vsel %vm5909, %v7279, 0
        %v7341 = vsel %vm5909, %v7288, 0
        %v7344 = vsel %vm5964, %v7115, 0
        %7346 = vmatprep.subr.bf16.mxu0 0
        %7347 = vmatpush1.bf16.msra.mxu0 %v7344
        %7348 = vmatprep.subr.bf16.mxu0 0
        %7349 = vmatpush1.bf16.msra.mxu0 0
        %7350 = vmatprep.subr.bf16.mxu0 0
        %7351 = vmatpush1.bf16.msra.mxu0 0
        %7352 = vmatprep.subr.bf16.mxu0 0
        %7353 = vmatpush1.bf16.msra.mxu0 0
        %7354 = vmatprep.subr.bf16.mxu0 0
        %7355 = vmatpush1.bf16.msra.mxu0 0
        %7356 = vmatprep.subr.bf16.mxu0 0
        %7357 = vmatpush1.bf16.msra.mxu0 0
        %7358 = vmatprep.subr.bf16.mxu0 0
        %7359 = vmatpush1.bf16.msra.mxu0 0
        %7360 = vmatprep.subr.bf16.mxu0 0
        %7361 = vmatpush1.bf16.msra.mxu0 0
        %7362 = vmatprep.subr.bf16.mxu0 0
        %7363 = vmatpush1.bf16.msra.mxu0 0
        %7364 = vmatprep.subr.bf16.mxu0 0
        %7365 = vmatpush1.bf16.msra.mxu0 0
        %7366 = vmatprep.subr.bf16.mxu0 0
        %7367 = vmatpush1.bf16.msra.mxu0 0
        %7368 = vmatprep.subr.bf16.mxu0 0
        %7369 = vmatpush1.bf16.msra.mxu0 0
        %7370 = vmatprep.subr.bf16.mxu0 0
        %7371 = vmatpush1.bf16.msra.mxu0 0
        %7372 = vmatprep.subr.bf16.mxu0 0
        %7373 = vmatpush1.bf16.msra.mxu0 0
        %7374 = vmatprep.subr.bf16.mxu0 0
        %7375 = vmatpush1.bf16.msra.mxu0 0
        %7376 = vmatprep.subr.bf16.mxu0 0
        %7377 = vmatpush1.bf16.msra.mxu0 0
        %7378 = vmatprep.mubr.bf16.mxu0 0
        %7379 = vmatmul.mubr.bf16.gmra.mrb[0].mxu0 %v7290
        %v7380 = vpop.f32.mrb[0].mxu0
        %v7381 = vadd.f32 0.0, %v7380
        %v7382 = vpop.f32.mrb[0].mxu0
        %v7383 = vpop.f32.mrb[0].mxu0
        %v7384 = vadd.f32 0.0, %v7383
        %v7385 = vpop.f32.mrb[0].mxu0
        %7386 = vmatprep.mubr.bf16.mxu0 0
        %7387 = vmatmul.mubr.bf16.gmra.mrb[0].mxu0 %v7293
        %v7388 = vpop.f32.mrb[0].mxu0
        %v7389 = vadd.f32 0.0, %v7388
        %v7390 = vpop.f32.mrb[0].mxu0
        %v7391 = vpop.f32.mrb[0].mxu0
        %v7392 = vadd.f32 0.0, %v7391
        %v7393 = vpop.f32.mrb[0].mxu0
        %7394 = vmatprep.mubr.bf16.mxu0 0
        %7395 = vmatmul.mubr.bf16.gmra.mrb[0].mxu0 %v7296
        %v7396 = vpop.f32.mrb[0].mxu0
        %v7397 = vadd.f32 0.0, %v7396
        %v7398 = vpop.f32.mrb[0].mxu0
        %v7399 = vpop.f32.mrb[0].mxu0
        %v7400 = vadd.f32 0.0, %v7399
        %v7401 = vpop.f32.mrb[0].mxu0
        %7402 = vmatprep.mubr.bf16.mxu0 0
        %7403 = vmatmul.mubr.bf16.gmra.mrb[0].mxu0 %v7299
        %v7404 = vpop.f32.mrb[0].mxu0
        %v7405 = vadd.f32 0.0, %v7404
        %v7406 = vpop.f32.mrb[0].mxu0
        %v7407 = vpop.f32.mrb[0].mxu0
        %v7408 = vadd.f32 0.0, %v7407
        %v7409 = vpop.f32.mrb[0].mxu0
        %7410 = vmatprep.mubr.bf16.mxu0 0
        %7411 = vmatmul.mubr.bf16.gmra.mrb[0].mxu0 %v7302
        %v7412 = vpop.f32.mrb[0].mxu0
        %v7413 = vadd.f32 0.0, %v7412
        %v7414 = vpop.f32.mrb[0].mxu0
        %v7415 = vpop.f32.mrb[0].mxu0
        %v7416 = vadd.f32 0.0, %v7415
        %v7417 = vpop.f32.mrb[0].mxu0
        %7418 = vmatprep.mubr.bf16.mxu0 0
        %7419 = vmatmul.mubr.bf16.gmra.mrb[0].mxu0 %v7305
        %v7420 = vpop.f32.mrb[0].mxu0
        %v7421 = vadd.f32 0.0, %v7420
        %v7422 = vpop.f32.mrb[0].mxu0
        %v7423 = vpop.f32.mrb[0].mxu0
        %v7424 = vadd.f32 0.0, %v7423
        %v7425 = vpop.f32.mrb[0].mxu0
        %7426 = vmatprep.mubr.bf16.mxu0 0
        %7427 = vmatmul.mubr.bf16.gmra.mrb[0].mxu0 %v7308
        %v7428 = vpop.f32.mrb[0].mxu0
        %v7429 = vadd.f32 0.0, %v7428
        %v7430 = vpop.f32.mrb[0].mxu0
        %v7431 = vpop.f32.mrb[0].mxu0
        %v7432 = vadd.f32 0.0, %v7431
        %v7433 = vpop.f32.mrb[0].mxu0
        %7434 = vmatprep.mubr.bf16.mxu0 0
        %7435 = vmatmul.mubr.bf16.gmra.mrb[0].mxu0 %v7311
        %v7436 = vpop.f32.mrb[0].mxu0
        %v7437 = vadd.f32 0.0, %v7436
        %v7438 = vpop.f32.mrb[0].mxu0
        %v7439 = vpop.f32.mrb[0].mxu0
        %v7440 = vadd.f32 0.0, %v7439
        %v7441 = vpop.f32.mrb[0].mxu0
        %7442 = vmatprep.mubr.bf16.mxu0 0
        %7443 = vmatmul.mubr.bf16.gmra.mrb[0].mxu0 %v7314
        %v7444 = vpop.f32.mrb[0].mxu0
        %v7445 = vadd.f32 0.0, %v7444
        %v7446 = vpop.f32.mrb[0].mxu0
        %v7447 = vpop.f32.mrb[0].mxu0
        %v7448 = vadd.f32 0.0, %v7447
        %v7449 = vpop.f32.mrb[0].mxu0
        %7450 = vmatprep.mubr.bf16.mxu0 0
        %7451 = vmatmul.mubr.bf16.gmra.mrb[0].mxu0 %v7317
        %v7452 = vpop.f32.mrb[0].mxu0
        %v7453 = vadd.f32 0.0, %v7452
        %v7454 = vpop.f32.mrb[0].mxu0
        %v7455 = vpop.f32.mrb[0].mxu0
        %v7456 = vadd.f32 0.0, %v7455
        %v7457 = vpop.f32.mrb[0].mxu0
        %7458 = vmatprep.mubr.bf16.mxu0 0
        %7459 = vmatmul.mubr.bf16.gmra.mrb[0].mxu0 %v7320
        %v7460 = vpop.f32.mrb[0].mxu0
        %v7461 = vadd.f32 0.0, %v7460
        %v7462 = vpop.f32.mrb[0].mxu0
        %v7463 = vpop.f32.mrb[0].mxu0
        %v7464 = vadd.f32 0.0, %v7463
        %v7465 = vpop.f32.mrb[0].mxu0
        %7466 = vmatprep.mubr.bf16.mxu0 0
        %7467 = vmatmul.mubr.bf16.gmra.mrb[0].mxu0 %v7323
        %v7468 = vpop.f32.mrb[0].mxu0
        %v7469 = vadd.f32 0.0, %v7468
        %v7470 = vpop.f32.mrb[0].mxu0
        %v7471 = vpop.f32.mrb[0].mxu0
        %v7472 = vadd.f32 0.0, %v7471
        %v7473 = vpop.f32.mrb[0].mxu0
        %7474 = vmatprep.mubr.bf16.mxu0 0
        %7475 = vmatmul.mubr.bf16.gmra.mrb[0].mxu0 %v7326
        %v7476 = vpop.f32.mrb[0].mxu0
        %v7477 = vadd.f32 0.0, %v7476
        %v7478 = vpop.f32.mrb[0].mxu0
        %v7479 = vpop.f32.mrb[0].mxu0
        %v7480 = vadd.f32 0.0, %v7479
        %v7481 = vpop.f32.mrb[0].mxu0
        %7482 = vmatprep.mubr.bf16.mxu0 0
        %7483 = vmatmul.mubr.bf16.gmra.mrb[0].mxu0 %v7329
        %v7484 = vpop.f32.mrb[0].mxu0
        %v7485 = vadd.f32 0.0, %v7484
        %v7486 = vpop.f32.mrb[0].mxu0
        %v7487 = vpop.f32.mrb[0].mxu0
        %v7488 = vadd.f32 0.0, %v7487
        %v7489 = vpop.f32.mrb[0].mxu0
        %7490 = vmatprep.mubr.bf16.mxu0 0
        %7491 = vmatmul.mubr.bf16.gmra.mrb[0].mxu0 %v7332
        %v7492 = vpop.f32.mrb[0].mxu0
        %v7493 = vadd.f32 0.0, %v7492
        %v7494 = vpop.f32.mrb[0].mxu0
        %v7495 = vpop.f32.mrb[0].mxu0
        %v7496 = vadd.f32 0.0, %v7495
        %v7497 = vpop.f32.mrb[0].mxu0
        %7498 = vmatprep.mubr.bf16.mxu0 0
        %7499 = vmatmul.mubr.bf16.gmra.mrb[0].mxu0 %v7335
        %v7500 = vpop.f32.mrb[0].mxu0
        %v7501 = vadd.f32 0.0, %v7500
        %v7502 = vpop.f32.mrb[0].mxu0
        %v7503 = vpop.f32.mrb[0].mxu0
        %v7504 = vadd.f32 0.0, %v7503
        %v7505 = vpop.f32.mrb[0].mxu0
        %7506 = vmatprep.mubr.bf16.mxu0 0
        %7507 = vmatmul.mubr.bf16.gmra.mrb[0].mxu0 %v7338
        %v7508 = vpop.f32.mrb[0].mxu0
        %v7509 = vadd.f32 0.0, %v7508
        %v7510 = vpop.f32.mrb[0].mxu0
        %v7511 = vpop.f32.mrb[0].mxu0
        %v7512 = vadd.f32 0.0, %v7511
        %v7513 = vpop.f32.mrb[0].mxu0
        %7514 = vmatprep.mubr.bf16.mxu0 0
        %7515 = vmatmul.mubr.bf16.gmra.mrb[0].mxu0 %v7341
        %v7516 = vpop.f32.mrb[0].mxu0
        %v7517 = vadd.f32 0.0, %v7516
        %v7518 = vpop.f32.mrb[0].mxu0
        %v7519 = vpop.f32.mrb[0].mxu0
        %v7520 = vadd.f32 0.0, %v7519
        %v7521 = vpop.f32.mrb[0].mxu0
        %7522 = vdwg.mxu0
        %v7523 = vadd.f32 %v7077, %v7381
        %v7524 = vadd.f32 %v7078, %v7384
        %v7525 = vadd.f32 %v7079, %v7389
        %v7526 = vadd.f32 %v7080, %v7392
        %v7527 = vadd.f32 %v7081, %v7397
        %v7528 = vadd.f32 %v7082, %v7400
        %v7529 = vadd.f32 %v7083, %v7405
        %v7530 = vadd.f32 %v7084, %v7408
        %v7531 = vadd.f32 %v7085, %v7413
        %v7532 = vadd.f32 %v7086, %v7416
        %v7533 = vadd.f32 %v7087, %v7421
        %v7534 = vadd.f32 %v7088, %v7424
        %v7535 = vadd.f32 %v7089, %v7429
        %v7536 = vadd.f32 %v7090, %v7432
        %v7537 = vadd.f32 %v7091, %v7437
        %v7538 = vadd.f32 %v7092, %v7440
        %v7539 = vadd.f32 %v7093, %v7445
        %v7540 = vadd.f32 %v7094, %v7448
        %v7541 = vadd.f32 %v7095, %v7453
        %v7542 = vadd.f32 %v7096, %v7456
        %v7543 = vadd.f32 %v7097, %v7461
        %v7544 = vadd.f32 %v7098, %v7464
        %v7545 = vadd.f32 %v7099, %v7469
        %v7546 = vadd.f32 %v7100, %v7472
        %v7547 = vadd.f32 %v7101, %v7477
        %v7548 = vadd.f32 %v7102, %v7480
        %v7549 = vadd.f32 %v7103, %v7485
        %v7550 = vadd.f32 %v7104, %v7488
        %v7551 = vadd.f32 %v7105, %v7493
        %v7552 = vadd.f32 %v7106, %v7496
        %v7553 = vadd.f32 %v7107, %v7501
        %v7554 = vadd.f32 %v7108, %v7504
        %v7555 = vadd.f32 %v7109, %v7509
        %v7556 = vadd.f32 %v7110, %v7512
        %v7557 = vadd.f32 %v7111, %v7517
        %v7558 = vadd.f32 %v7112, %v7520
        %v7559 = vld [vmem:[#allocation3 + $0x8] sm:$0xc]
        %s7560 = scalar_lea.vmem [#allocation10], 10
        %v7561 = vld [vmem:[%s7560] sm:$0x3]
        %v7563 = vunpack.c.l.b16 %v7559
        %v7564 = vpack.c.b16 %v6751, %v7563
        %v7565 = vrot.slane %v7564, 2
        %v7566 = vrot.slane %v6788, 2
        %v7567 = vsel %vm2720, %v7565, %v7566
        %v7568 = vrot.slane %v6789, 2
        %v7569 = vsel %vm2720, %v7566, %v7568
        %v7570 = vrot.slane %v6790, 2
        %v7571 = vsel %vm2720, %v7568, %v7570
        %v7572 = vrot.slane %v6791, 2
        %v7573 = vsel %vm2720, %v7570, %v7572
        %v7574 = vrot.slane %v6792, 2
        %v7575 = vsel %vm2720, %v7572, %v7574
        %v7576 = vrot.slane %v6793, 2
        %v7577 = vsel %vm2720, %v7574, %v7576
        %v7578 = vrot.slane %v6794, 2
        %v7579 = vsel %vm2720, %v7576, %v7578
        %v7580 = vrot.slane %v6795, 2
        %v7581 = vsel %vm2720, %v7578, %v7580
        %v7582 = vrot.slane %v6796, 2
        %v7583 = vsel %vm2720, %v7580, %v7582
        %v7584 = vrot.slane %v6797, 2
        %v7585 = vsel %vm2720, %v7582, %v7584
        %v7586 = vrot.slane %v6798, 2
        %v7587 = vsel %vm2720, %v7584, %v7586
        %v7588 = vrot.slane %v6799, 2
        %v7589 = vsel %vm2720, %v7586, %v7588
        %v7590 = vrot.slane %v6800, 2
        %v7591 = vsel %vm2720, %v7588, %v7590
        %v7592 = vrot.slane %v6801, 2
        %v7593 = vsel %vm2720, %v7590, %v7592
        %v7594 = vrot.slane %v6802, 2
        %v7595 = vsel %vm2720, %v7592, %v7594
        %v7596 = vrot.slane %v6803, 2
        %v7597 = vsel %vm2720, %v7594, %v7596
        %v7598 = vrot.slane %v6804, 2
        %v7599 = vsel %vm2720, %v7596, %v7598
        %v7600 = vrot.slane %v7118, 2
        %v7601 = vsel %vm2720, %v7598, %v7600
        %v7603 = vsel %vm5909, %v7567, 0
        %v7606 = vsel %vm5909, %v7569, 0
        %v7609 = vsel %vm5909, %v7571, 0
        %v7612 = vsel %vm5909, %v7573, 0
        %v7615 = vsel %vm5909, %v7575, 0
        %v7618 = vsel %vm5909, %v7577, 0
        %v7621 = vsel %vm5909, %v7579, 0
        %v7624 = vsel %vm5909, %v7581, 0
        %v7627 = vsel %vm5909, %v7583, 0
        %v7630 = vsel %vm5909, %v7585, 0
        %v7633 = vsel %vm5909, %v7587, 0
        %v7636 = vsel %vm5909, %v7589, 0
        %v7639 = vsel %vm5909, %v7591, 0
        %v7642 = vsel %vm5909, %v7593, 0
        %v7645 = vsel %vm5909, %v7595, 0
        %v7648 = vsel %vm5909, %v7597, 0
        %v7651 = vsel %vm5909, %v7599, 0
        %v7654 = vsel %vm5909, %v7601, 0
        %v7657 = vsel %vm5964, %v7561, 0
        %7659 = vmatprep.subr.bf16.mxu0 0
        %7660 = vmatpush1.bf16.msra.mxu0 %v7657
        %7661 = vmatprep.subr.bf16.mxu0 0
        %7662 = vmatpush1.bf16.msra.mxu0 0
        %7663 = vmatprep.subr.bf16.mxu0 0
        %7664 = vmatpush1.bf16.msra.mxu0 0
        %7665 = vmatprep.subr.bf16.mxu0 0
        %7666 = vmatpush1.bf16.msra.mxu0 0
        %7667 = vmatprep.subr.bf16.mxu0 0
        %7668 = vmatpush1.bf16.msra.mxu0 0
        %7669 = vmatprep.subr.bf16.mxu0 0
        %7670 = vmatpush1.bf16.msra.mxu0 0
        %7671 = vmatprep.subr.bf16.mxu0 0
        %7672 = vmatpush1.bf16.msra.mxu0 0
        %7673 = vmatprep.subr.bf16.mxu0 0
        %7674 = vmatpush1.bf16.msra.mxu0 0
        %7675 = vmatprep.subr.bf16.mxu0 0
        %7676 = vmatpush1.bf16.msra.mxu0 0
        %7677 = vmatprep.subr.bf16.mxu0 0
        %7678 = vmatpush1.bf16.msra.mxu0 0
        %7679 = vmatprep.subr.bf16.mxu0 0
        %7680 = vmatpush1.bf16.msra.mxu0 0
        %7681 = vmatprep.subr.bf16.mxu0 0
        %7682 = vmatpush1.bf16.msra.mxu0 0
        %7683 = vmatprep.subr.bf16.mxu0 0
        %7684 = vmatpush1.bf16.msra.mxu0 0
        %7685 = vmatprep.subr.bf16.mxu0 0
        %7686 = vmatpush1.bf16.msra.mxu0 0
        %7687 = vmatprep.subr.bf16.mxu0 0
        %7688 = vmatpush1.bf16.msra.mxu0 0
        %7689 = vmatprep.subr.bf16.mxu0 0
        %7690 = vmatpush1.bf16.msra.mxu0 0
        %7691 = vmatprep.mubr.bf16.mxu0 0
        %7692 = vmatmul.mubr.bf16.gmra.mrb[0].mxu0 %v7603
        %v7693 = vpop.f32.mrb[0].mxu0
        %v7694 = vadd.f32 0.0, %v7693
        %v7695 = vpop.f32.mrb[0].mxu0
        %v7696 = vpop.f32.mrb[0].mxu0
        %v7697 = vadd.f32 0.0, %v7696
        %v7698 = vpop.f32.mrb[0].mxu0
        %7699 = vmatprep.mubr.bf16.mxu0 0
        %7700 = vmatmul.mubr.bf16.gmra.mrb[0].mxu0 %v7606
        %v7701 = vpop.f32.mrb[0].mxu0
        %v7702 = vadd.f32 0.0, %v7701
        %v7703 = vpop.f32.mrb[0].mxu0
        %v7704 = vpop.f32.mrb[0].mxu0
        %v7705 = vadd.f32 0.0, %v7704
        %v7706 = vpop.f32.mrb[0].mxu0
        %7707 = vmatprep.mubr.bf16.mxu0 0
        %7708 = vmatmul.mubr.bf16.gmra.mrb[0].mxu0 %v7609
        %v7709 = vpop.f32.mrb[0].mxu0
        %v7710 = vadd.f32 0.0, %v7709
        %v7711 = vpop.f32.mrb[0].mxu0
        %v7712 = vpop.f32.mrb[0].mxu0
        %v7713 = vadd.f32 0.0, %v7712
        %v7714 = vpop.f32.mrb[0].mxu0
        %7715 = vmatprep.mubr.bf16.mxu0 0
        %7716 = vmatmul.mubr.bf16.gmra.mrb[0].mxu0 %v7612
        %v7717 = vpop.f32.mrb[0].mxu0
        %v7718 = vadd.f32 0.0, %v7717
        %v7719 = vpop.f32.mrb[0].mxu0
        %v7720 = vpop.f32.mrb[0].mxu0
        %v7721 = vadd.f32 0.0, %v7720
        %v7722 = vpop.f32.mrb[0].mxu0
        %7723 = vmatprep.mubr.bf16.mxu0 0
        %7724 = vmatmul.mubr.bf16.gmra.mrb[0].mxu0 %v7615
        %v7725 = vpop.f32.mrb[0].mxu0
        %v7726 = vadd.f32 0.0, %v7725
        %v7727 = vpop.f32.mrb[0].mxu0
        %v7728 = vpop.f32.mrb[0].mxu0
        %v7729 = vadd.f32 0.0, %v7728
        %v7730 = vpop.f32.mrb[0].mxu0
        %7731 = vmatprep.mubr.bf16.mxu0 0
        %7732 = vmatmul.mubr.bf16.gmra.mrb[0].mxu0 %v7618
        %v7733 = vpop.f32.mrb[0].mxu0
        %v7734 = vadd.f32 0.0, %v7733
        %v7735 = vpop.f32.mrb[0].mxu0
        %v7736 = vpop.f32.mrb[0].mxu0
        %v7737 = vadd.f32 0.0, %v7736
        %v7738 = vpop.f32.mrb[0].mxu0
        %7739 = vmatprep.mubr.bf16.mxu0 0
        %7740 = vmatmul.mubr.bf16.gmra.mrb[0].mxu0 %v7621
        %v7741 = vpop.f32.mrb[0].mxu0
        %v7742 = vadd.f32 0.0, %v7741
        %v7743 = vpop.f32.mrb[0].mxu0
        %v7744 = vpop.f32.mrb[0].mxu0
        %v7745 = vadd.f32 0.0, %v7744
        %v7746 = vpop.f32.mrb[0].mxu0
        %7747 = vmatprep.mubr.bf16.mxu0 0
        %7748 = vmatmul.mubr.bf16.gmra.mrb[0].mxu0 %v7624
        %v7749 = vpop.f32.mrb[0].mxu0
        %v7750 = vadd.f32 0.0, %v7749
        %v7751 = vpop.f32.mrb[0].mxu0
        %v7752 = vpop.f32.mrb[0].mxu0
        %v7753 = vadd.f32 0.0, %v7752
        %v7754 = vpop.f32.mrb[0].mxu0
        %7755 = vmatprep.mubr.bf16.mxu0 0
        %7756 = vmatmul.mubr.bf16.gmra.mrb[0].mxu0 %v7627
        %v7757 = vpop.f32.mrb[0].mxu0
        %v7758 = vadd.f32 0.0, %v7757
        %v7759 = vpop.f32.mrb[0].mxu0
        %v7760 = vpop.f32.mrb[0].mxu0
        %v7761 = vadd.f32 0.0, %v7760
        %v7762 = vpop.f32.mrb[0].mxu0
        %7763 = vmatprep.mubr.bf16.mxu0 0
        %7764 = vmatmul.mubr.bf16.gmra.mrb[0].mxu0 %v7630
        %v7765 = vpop.f32.mrb[0].mxu0
        %v7766 = vadd.f32 0.0, %v7765
        %v7767 = vpop.f32.mrb[0].mxu0
        %v7768 = vpop.f32.mrb[0].mxu0
        %v7769 = vadd.f32 0.0, %v7768
        %v7770 = vpop.f32.mrb[0].mxu0
        %7771 = vmatprep.mubr.bf16.mxu0 0
        %7772 = vmatmul.mubr.bf16.gmra.mrb[0].mxu0 %v7633
        %v7773 = vpop.f32.mrb[0].mxu0
        %v7774 = vadd.f32 0.0, %v7773
        %v7775 = vpop.f32.mrb[0].mxu0
        %v7776 = vpop.f32.mrb[0].mxu0
        %v7777 = vadd.f32 0.0, %v7776
        %v7778 = vpop.f32.mrb[0].mxu0
        %7779 = vmatprep.mubr.bf16.mxu0 0
        %7780 = vmatmul.mubr.bf16.gmra.mrb[0].mxu0 %v7636
        %v7781 = vpop.f32.mrb[0].mxu0
        %v7782 = vadd.f32 0.0, %v7781
        %v7783 = vpop.f32.mrb[0].mxu0
        %v7784 = vpop.f32.mrb[0].mxu0
        %v7785 = vadd.f32 0.0, %v7784
        %v7786 = vpop.f32.mrb[0].mxu0
        %7787 = vmatprep.mubr.bf16.mxu0 0
        %7788 = vmatmul.mubr.bf16.gmra.mrb[0].mxu0 %v7639
        %v7789 = vpop.f32.mrb[0].mxu0
        %v7790 = vadd.f32 0.0, %v7789
        %v7791 = vpop.f32.mrb[0].mxu0
        %v7792 = vpop.f32.mrb[0].mxu0
        %v7793 = vadd.f32 0.0, %v7792
        %v7794 = vpop.f32.mrb[0].mxu0
        %7795 = vmatprep.mubr.bf16.mxu0 0
        %7796 = vmatmul.mubr.bf16.gmra.mrb[0].mxu0 %v7642
        %v7797 = vpop.f32.mrb[0].mxu0
        %v7798 = vadd.f32 0.0, %v7797
        %v7799 = vpop.f32.mrb[0].mxu0
        %v7800 = vpop.f32.mrb[0].mxu0
        %v7801 = vadd.f32 0.0, %v7800
        %v7802 = vpop.f32.mrb[0].mxu0
        %7803 = vmatprep.mubr.bf16.mxu0 0
        %7804 = vmatmul.mubr.bf16.gmra.mrb[0].mxu0 %v7645
        %v7805 = vpop.f32.mrb[0].mxu0
        %v7806 = vadd.f32 0.0, %v7805
        %v7807 = vpop.f32.mrb[0].mxu0
        %v7808 = vpop.f32.mrb[0].mxu0
        %v7809 = vadd.f32 0.0, %v7808
        %v7810 = vpop.f32.mrb[0].mxu0
        %7811 = vmatprep.mubr.bf16.mxu0 0
        %7812 = vmatmul.mubr.bf16.gmra.mrb[0].mxu0 %v7648
        %v7813 = vpop.f32.mrb[0].mxu0
        %v7814 = vadd.f32 0.0, %v7813
        %v7815 = vpop.f32.mrb[0].mxu0
        %v7816 = vpop.f32.mrb[0].mxu0
        %v7817 = vadd.f32 0.0, %v7816
        %v7818 = vpop.f32.mrb[0].mxu0
        %7819 = vmatprep.mubr.bf16.mxu0 0
        %7820 = vmatmul.mubr.bf16.gmra.mrb[0].mxu0 %v7651
        %v7821 = vpop.f32.mrb[0].mxu0
        %v7822 = vadd.f32 0.0, %v7821
        %v7823 = vpop.f32.mrb[0].mxu0
        %v7824 = vpop.f32.mrb[0].mxu0
        %v7825 = vadd.f32 0.0, %v7824
        %v7826 = vpop.f32.mrb[0].mxu0
        %7827 = vmatprep.mubr.bf16.mxu0 0
        %7828 = vmatmul.mubr.bf16.gmra.mrb[0].mxu0 %v7654
        %v7829 = vpop.f32.mrb[0].mxu0
        %v7830 = vadd.f32 0.0, %v7829
        %v7831 = vpop.f32.mrb[0].mxu0
        %v7832 = vpop.f32.mrb[0].mxu0
        %v7833 = vadd.f32 0.0, %v7832
        %v7834 = vpop.f32.mrb[0].mxu0
        %7835 = vdwg.mxu0
        %v7836 = vadd.f32 %v7523, %v7694
        %v7837 = vadd.f32 %v7524, %v7697
        %v7838 = vadd.f32 %v7525, %v7702
        %v7839 = vadd.f32 %v7526, %v7705
        %v7840 = vadd.f32 %v7527, %v7710
        %v7841 = vadd.f32 %v7528, %v7713
        %v7842 = vadd.f32 %v7529, %v7718
        %v7843 = vadd.f32 %v7530, %v7721
        %v7844 = vadd.f32 %v7531, %v7726
        %v7845 = vadd.f32 %v7532, %v7729
        %v7846 = vadd.f32 %v7533, %v7734
        %v7847 = vadd.f32 %v7534, %v7737
        %v7848 = vadd.f32 %v7535, %v7742
        %v7849 = vadd.f32 %v7536, %v7745
        %v7850 = vadd.f32 %v7537, %v7750
        %v7851 = vadd.f32 %v7538, %v7753
        %v7852 = vadd.f32 %v7539, %v7758
        %v7853 = vadd.f32 %v7540, %v7761
        %v7854 = vadd.f32 %v7541, %v7766
        %v7855 = vadd.f32 %v7542, %v7769
        %v7856 = vadd.f32 %v7543, %v7774
        %v7857 = vadd.f32 %v7544, %v7777
        %v7858 = vadd.f32 %v7545, %v7782
        %v7859 = vadd.f32 %v7546, %v7785
        %v7860 = vadd.f32 %v7547, %v7790
        %v7861 = vadd.f32 %v7548, %v7793
        %v7862 = vadd.f32 %v7549, %v7798
        %v7863 = vadd.f32 %v7550, %v7801
        %v7864 = vadd.f32 %v7551, %v7806
        %v7865 = vadd.f32 %v7552, %v7809
        %v7866 = vadd.f32 %v7553, %v7814
        %v7867 = vadd.f32 %v7554, %v7817
        %v7868 = vadd.f32 %v7555, %v7822
        %v7869 = vadd.f32 %v7556, %v7825
        %v7870 = vadd.f32 %v7557, %v7830
        %v7871 = vadd.f32 %v7558, %v7833
        %v7872 = vld [vmem:[#allocation3 + $0x10] sm:$0xc]
        %v7873 = vld [vmem:[#allocation3 + $0x14] sm:$0xf]
        %v7874 = vld [vmem:[#allocation3 + $0x18] sm:$0xf]
        %v7875 = vld [vmem:[#allocation3 + $0x1c] sm:$0xf]
        %v7876 = vld [vmem:[#allocation3 + $0x20] sm:$0xf]
        %v7877 = vld [vmem:[#allocation3 + $0x24] sm:$0xf]
        %v7878 = vld [vmem:[#allocation3 + $0x28] sm:$0xf]
        %v7879 = vld [vmem:[#allocation3 + $0x2c] sm:$0xf]
        %v7880 = vld [vmem:[#allocation3 + $0x30] sm:$0xf]
        %v7881 = vld [vmem:[#allocation3 + $0x34] sm:$0xf]
        %v7882 = vld [vmem:[#allocation3 + $0x38] sm:$0xf]
        %v7883 = vld [vmem:[#allocation3 + $0x3c] sm:$0xf]
        %v7884 = vld [vmem:[#allocation3 + $0x40] sm:$0xf]
        %v7885 = vld [vmem:[#allocation3 + $0x44] sm:$0xf]
        %v7886 = vld [vmem:[#allocation3 + $0x48] sm:$0xf]
        %v7887 = vld [vmem:[#allocation3 + $0x4c] sm:$0xf]
        %v7888 = vld [vmem:[#allocation3 + $0x50] sm:$0xf]
        %v7889 = vld [vmem:[#allocation3 + $0x54] sm:$0xf]
        %v7890 = vld [vmem:[#allocation3 + $0x58] sm:$0xf]
        %v7891 = vld [vmem:[#allocation3 + $0x5c] sm:$0xf]
        %v7892 = vld [vmem:[#allocation3 + $0x60] sm:$0xf]
        %v7893 = vld [vmem:[#allocation3 + $0x64] sm:$0xf]
        %v7894 = vld [vmem:[#allocation3 + $0x68] sm:$0xf]
        %v7895 = vld [vmem:[#allocation3 + $0x6c] sm:$0xf]
        %v7896 = vld [vmem:[#allocation3 + $0x70] sm:$0xf]
        %v7897 = vld [vmem:[#allocation3 + $0x74] sm:$0xf]
        %v7898 = vld [vmem:[#allocation3 + $0x78] sm:$0xf]
        %v7899 = vld [vmem:[#allocation3 + $0x7c] sm:$0xf]
        %v7900 = vld [vmem:[#allocation3 + $0x80] sm:$0xf]
        %v7901 = vld [vmem:[#allocation3 + $0x84] sm:$0xf]
        %v7902 = vld [vmem:[#allocation3 + $0x88] sm:$0xf]
        %v7903 = vld [vmem:[#allocation3 + $0x8c] sm:$0xf]
        %v7904 = vld [vmem:[#allocation3 + $0x90] sm:$0xf]
        %v7905 = vld [vmem:[#allocation3 + $0x94] sm:$0xf]
        %v7906 = vld [vmem:[#allocation3 + $0x98] sm:$0xf]
        %v7907 = vld [vmem:[#allocation3 + $0x9c] sm:$0xf]
        %v7908 = vld [vmem:[#allocation3 + $0xa0] sm:$0x3]
        %s7909 = scalar_lea.vmem [#allocation10], 12
        %v7910 = vld [vmem:[%s7909] sm:$0x3]
        %v7948 = vunpack.c.l.b16 %v7872
        %v7949 = vunpack.c.l.b16 %v7873
        %v7950 = vunpack.c.l.b16 %v7874
        %v7951 = vunpack.c.l.b16 %v7875
        %v7952 = vunpack.c.l.b16 %v7876
        %v7953 = vunpack.c.l.b16 %v7877
        %v7954 = vunpack.c.l.b16 %v7878
        %v7955 = vunpack.c.l.b16 %v7879
        %v7956 = vunpack.c.l.b16 %v7880
        %v7957 = vunpack.c.l.b16 %v7881
        %v7958 = vunpack.c.l.b16 %v7882
        %v7959 = vunpack.c.l.b16 %v7883
        %v7960 = vunpack.c.l.b16 %v7884
        %v7961 = vunpack.c.l.b16 %v7885
        %v7962 = vunpack.c.l.b16 %v7886
        %v7963 = vunpack.c.l.b16 %v7887
        %v7964 = vunpack.c.l.b16 %v7888
        %v7965 = vunpack.c.l.b16 %v7889
        %v7966 = vunpack.c.l.b16 %v7890
        %v7967 = vunpack.c.l.b16 %v7891
        %v7968 = vunpack.c.l.b16 %v7892
        %v7969 = vunpack.c.l.b16 %v7893
        %v7970 = vunpack.c.l.b16 %v7894
        %v7971 = vunpack.c.l.b16 %v7895
        %v7972 = vunpack.c.l.b16 %v7896
        %v7973 = vunpack.c.l.b16 %v7897
        %v7974 = vunpack.c.l.b16 %v7898
        %v7975 = vunpack.c.l.b16 %v7899
        %v7976 = vunpack.c.l.b16 %v7900
        %v7977 = vunpack.c.l.b16 %v7901
        %v7978 = vunpack.c.l.b16 %v7902
        %v7979 = vunpack.c.l.b16 %v7903
        %v7980 = vunpack.c.l.b16 %v7904
        %v7981 = vunpack.c.l.b16 %v7905
        %v7982 = vunpack.c.l.b16 %v7906
        %v7983 = vunpack.c.l.b16 %v7907
        %v7984 = vunpack.c.l.b16 %v7908
        %v7985 = vpack.c.b16 %v7949, %v7948
        %v7986 = vpack.c.b16 %v7951, %v7950
        %v7987 = vpack.c.b16 %v7953, %v7952
        %v7988 = vpack.c.b16 %v7955, %v7954
        %v7989 = vpack.c.b16 %v7957, %v7956
        %v7990 = vpack.c.b16 %v7959, %v7958
        %v7991 = vpack.c.b16 %v7961, %v7960
        %v7992 = vpack.c.b16 %v7963, %v7962
        %v7993 = vpack.c.b16 %v7965, %v7964
        %v7994 = vpack.c.b16 %v7967, %v7966
        %v7995 = vpack.c.b16 %v7969, %v7968
        %v7996 = vpack.c.b16 %v7971, %v7970
        %v7997 = vpack.c.b16 %v7973, %v7972
        %v7998 = vpack.c.b16 %v7975, %v7974
        %v7999 = vpack.c.b16 %v7977, %v7976
        %v8000 = vpack.c.b16 %v7979, %v7978
        %v8001 = vpack.c.b16 %v7981, %v7980
        %v8002 = vpack.c.b16 %v7983, %v7982
        %v8003 = vpack.c.b16 %v7984, %v7984
        %v8004 = vrot.slane %v7985, 2
        %v8005 = vrot.slane %v7986, 2
        %v8006 = vsel %vm2720, %v8004, %v8005
        %v8007 = vrot.slane %v7987, 2
        %v8008 = vsel %vm2720, %v8005, %v8007
        %v8009 = vrot.slane %v7988, 2
        %v8010 = vsel %vm2720, %v8007, %v8009
        %v8011 = vrot.slane %v7989, 2
        %v8012 = vsel %vm2720, %v8009, %v8011
        %v8013 = vrot.slane %v7990, 2
        %v8014 = vsel %vm2720, %v8011, %v8013
        %v8015 = vrot.slane %v7991, 2
        %v8016 = vsel %vm2720, %v8013, %v8015
        %v8017 = vrot.slane %v7992, 2
        %v8018 = vsel %vm2720, %v8015, %v8017
        %v8019 = vrot.slane %v7993, 2
        %v8020 = vsel %vm2720, %v8017, %v8019
        %v8021 = vrot.slane %v7994, 2
        %v8022 = vsel %vm2720, %v8019, %v8021
        %v8023 = vrot.slane %v7995, 2
        %v8024 = vsel %vm2720, %v8021, %v8023
        %v8025 = vrot.slane %v7996, 2
        %v8026 = vsel %vm2720, %v8023, %v8025
        %v8027 = vrot.slane %v7997, 2
        %v8028 = vsel %vm2720, %v8025, %v8027
        %v8029 = vrot.slane %v7998, 2
        %v8030 = vsel %vm2720, %v8027, %v8029
        %v8031 = vrot.slane %v7999, 2
        %v8032 = vsel %vm2720, %v8029, %v8031
        %v8033 = vrot.slane %v8000, 2
        %v8034 = vsel %vm2720, %v8031, %v8033
        %v8035 = vrot.slane %v8001, 2
        %v8036 = vsel %vm2720, %v8033, %v8035
        %v8037 = vrot.slane %v8002, 2
        %v8038 = vsel %vm2720, %v8035, %v8037
        %v8039 = vrot.slane %v8003, 2
        %v8040 = vsel %vm2720, %v8037, %v8039
        %v8042 = vsel %vm5909, %v8006, 0
        %v8045 = vsel %vm5909, %v8008, 0
        %v8048 = vsel %vm5909, %v8010, 0
        %v8051 = vsel %vm5909, %v8012, 0
        %v8054 = vsel %vm5909, %v8014, 0
        %v8057 = vsel %vm5909, %v8016, 0
        %v8060 = vsel %vm5909, %v8018, 0
        %v8063 = vsel %vm5909, %v8020, 0
        %v8066 = vsel %vm5909, %v8022, 0
        %v8069 = vsel %vm5909, %v8024, 0
        %v8072 = vsel %vm5909, %v8026, 0
        %v8075 = vsel %vm5909, %v8028, 0
        %v8078 = vsel %vm5909, %v8030, 0
        %v8081 = vsel %vm5909, %v8032, 0
        %v8084 = vsel %vm5909, %v8034, 0
        %v8087 = vsel %vm5909, %v8036, 0
        %v8090 = vsel %vm5909, %v8038, 0
        %v8093 = vsel %vm5909, %v8040, 0
        %v8096 = vsel %vm5964, %v7910, 0
        %8098 = vmatprep.subr.bf16.mxu0 0
        %8099 = vmatpush1.bf16.msra.mxu0 %v8096
        %8100 = vmatprep.subr.bf16.mxu0 0
        %8101 = vmatpush1.bf16.msra.mxu0 0
        %8102 = vmatprep.subr.bf16.mxu0 0
        %8103 = vmatpush1.bf16.msra.mxu0 0
        %8104 = vmatprep.subr.bf16.mxu0 0
        %8105 = vmatpush1.bf16.msra.mxu0 0
        %8106 = vmatprep.subr.bf16.mxu0 0
        %8107 = vmatpush1.bf16.msra.mxu0 0
        %8108 = vmatprep.subr.bf16.mxu0 0
        %8109 = vmatpush1.bf16.msra.mxu0 0
        %8110 = vmatprep.subr.bf16.mxu0 0
        %8111 = vmatpush1.bf16.msra.mxu0 0
        %8112 = vmatprep.subr.bf16.mxu0 0
        %8113 = vmatpush1.bf16.msra.mxu0 0
        %8114 = vmatprep.subr.bf16.mxu0 0
        %8115 = vmatpush1.bf16.msra.mxu0 0
        %8116 = vmatprep.subr.bf16.mxu0 0
        %8117 = vmatpush1.bf16.msra.mxu0 0
        %8118 = vmatprep.subr.bf16.mxu0 0
        %8119 = vmatpush1.bf16.msra.mxu0 0
        %8120 = vmatprep.subr.bf16.mxu0 0
        %8121 = vmatpush1.bf16.msra.mxu0 0
        %8122 = vmatprep.subr.bf16.mxu0 0
        %8123 = vmatpush1.bf16.msra.mxu0 0
        %8124 = vmatprep.subr.bf16.mxu0 0
        %8125 = vmatpush1.bf16.msra.mxu0 0
        %8126 = vmatprep.subr.bf16.mxu0 0
        %8127 = vmatpush1.bf16.msra.mxu0 0
        %8128 = vmatprep.subr.bf16.mxu0 0
        %8129 = vmatpush1.bf16.msra.mxu0 0
        %8130 = vmatprep.mubr.bf16.mxu0 0
        %8131 = vmatmul.mubr.bf16.gmra.mrb[0].mxu0 %v8042
        %v8132 = vpop.f32.mrb[0].mxu0
        %v8133 = vadd.f32 0.0, %v8132
        %v8134 = vpop.f32.mrb[0].mxu0
        %v8135 = vpop.f32.mrb[0].mxu0
        %v8136 = vadd.f32 0.0, %v8135
        %v8137 = vpop.f32.mrb[0].mxu0
        %8138 = vmatprep.mubr.bf16.mxu0 0
        %8139 = vmatmul.mubr.bf16.gmra.mrb[0].mxu0 %v8045
        %v8140 = vpop.f32.mrb[0].mxu0
        %v8141 = vadd.f32 0.0, %v8140
        %v8142 = vpop.f32.mrb[0].mxu0
        %v8143 = vpop.f32.mrb[0].mxu0
        %v8144 = vadd.f32 0.0, %v8143
        %v8145 = vpop.f32.mrb[0].mxu0
        %8146 = vmatprep.mubr.bf16.mxu0 0
        %8147 = vmatmul.mubr.bf16.gmra.mrb[0].mxu0 %v8048
        %v8148 = vpop.f32.mrb[0].mxu0
        %v8149 = vadd.f32 0.0, %v8148
        %v8150 = vpop.f32.mrb[0].mxu0
        %v8151 = vpop.f32.mrb[0].mxu0
        %v8152 = vadd.f32 0.0, %v8151
        %v8153 = vpop.f32.mrb[0].mxu0
        %8154 = vmatprep.mubr.bf16.mxu0 0
        %8155 = vmatmul.mubr.bf16.gmra.mrb[0].mxu0 %v8051
        %v8156 = vpop.f32.mrb[0].mxu0
        %v8157 = vadd.f32 0.0, %v8156
        %v8158 = vpop.f32.mrb[0].mxu0
        %v8159 = vpop.f32.mrb[0].mxu0
        %v8160 = vadd.f32 0.0, %v8159
        %v8161 = vpop.f32.mrb[0].mxu0
        %8162 = vmatprep.mubr.bf16.mxu0 0
        %8163 = vmatmul.mubr.bf16.gmra.mrb[0].mxu0 %v8054
        %v8164 = vpop.f32.mrb[0].mxu0
        %v8165 = vadd.f32 0.0, %v8164
        %v8166 = vpop.f32.mrb[0].mxu0
        %v8167 = vpop.f32.mrb[0].mxu0
        %v8168 = vadd.f32 0.0, %v8167
        %v8169 = vpop.f32.mrb[0].mxu0
        %8170 = vmatprep.mubr.bf16.mxu0 0
        %8171 = vmatmul.mubr.bf16.gmra.mrb[0].mxu0 %v8057
        %v8172 = vpop.f32.mrb[0].mxu0
        %v8173 = vadd.f32 0.0, %v8172
        %v8174 = vpop.f32.mrb[0].mxu0
        %v8175 = vpop.f32.mrb[0].mxu0
        %v8176 = vadd.f32 0.0, %v8175
        %v8177 = vpop.f32.mrb[0].mxu0
        %8178 = vmatprep.mubr.bf16.mxu0 0
        %8179 = vmatmul.mubr.bf16.gmra.mrb[0].mxu0 %v8060
        %v8180 = vpop.f32.mrb[0].mxu0
        %v8181 = vadd.f32 0.0, %v8180
        %v8182 = vpop.f32.mrb[0].mxu0
        %v8183 = vpop.f32.mrb[0].mxu0
        %v8184 = vadd.f32 0.0, %v8183
        %v8185 = vpop.f32.mrb[0].mxu0
        %8186 = vmatprep.mubr.bf16.mxu0 0
        %8187 = vmatmul.mubr.bf16.gmra.mrb[0].mxu0 %v8063
        %v8188 = vpop.f32.mrb[0].mxu0
        %v8189 = vadd.f32 0.0, %v8188
        %v8190 = vpop.f32.mrb[0].mxu0
        %v8191 = vpop.f32.mrb[0].mxu0
        %v8192 = vadd.f32 0.0, %v8191
        %v8193 = vpop.f32.mrb[0].mxu0
        %8194 = vmatprep.mubr.bf16.mxu0 0
        %8195 = vmatmul.mubr.bf16.gmra.mrb[0].mxu0 %v8066
        %v8196 = vpop.f32.mrb[0].mxu0
        %v8197 = vadd.f32 0.0, %v8196
        %v8198 = vpop.f32.mrb[0].mxu0
        %v8199 = vpop.f32.mrb[0].mxu0
        %v8200 = vadd.f32 0.0, %v8199
        %v8201 = vpop.f32.mrb[0].mxu0
        %8202 = vmatprep.mubr.bf16.mxu0 0
        %8203 = vmatmul.mubr.bf16.gmra.mrb[0].mxu0 %v8069
        %v8204 = vpop.f32.mrb[0].mxu0
        %v8205 = vadd.f32 0.0, %v8204
        %v8206 = vpop.f32.mrb[0].mxu0
        %v8207 = vpop.f32.mrb[0].mxu0
        %v8208 = vadd.f32 0.0, %v8207
        %v8209 = vpop.f32.mrb[0].mxu0
        %8210 = vmatprep.mubr.bf16.mxu0 0
        %8211 = vmatmul.mubr.bf16.gmra.mrb[0].mxu0 %v8072
        %v8212 = vpop.f32.mrb[0].mxu0
        %v8213 = vadd.f32 0.0, %v8212
        %v8214 = vpop.f32.mrb[0].mxu0
        %v8215 = vpop.f32.mrb[0].mxu0
        %v8216 = vadd.f32 0.0, %v8215
        %v8217 = vpop.f32.mrb[0].mxu0
        %8218 = vmatprep.mubr.bf16.mxu0 0
        %8219 = vmatmul.mubr.bf16.gmra.mrb[0].mxu0 %v8075
        %v8220 = vpop.f32.mrb[0].mxu0
        %v8221 = vadd.f32 0.0, %v8220
        %v8222 = vpop.f32.mrb[0].mxu0
        %v8223 = vpop.f32.mrb[0].mxu0
        %v8224 = vadd.f32 0.0, %v8223
        %v8225 = vpop.f32.mrb[0].mxu0
        %8226 = vmatprep.mubr.bf16.mxu0 0
        %8227 = vmatmul.mubr.bf16.gmra.mrb[0].mxu0 %v8078
        %v8228 = vpop.f32.mrb[0].mxu0
        %v8229 = vadd.f32 0.0, %v8228
        %v8230 = vpop.f32.mrb[0].mxu0
        %v8231 = vpop.f32.mrb[0].mxu0
        %v8232 = vadd.f32 0.0, %v8231
        %v8233 = vpop.f32.mrb[0].mxu0
        %8234 = vmatprep.mubr.bf16.mxu0 0
        %8235 = vmatmul.mubr.bf16.gmra.mrb[0].mxu0 %v8081
        %v8236 = vpop.f32.mrb[0].mxu0
        %v8237 = vadd.f32 0.0, %v8236
        %v8238 = vpop.f32.mrb[0].mxu0
        %v8239 = vpop.f32.mrb[0].mxu0
        %v8240 = vadd.f32 0.0, %v8239
        %v8241 = vpop.f32.mrb[0].mxu0
        %8242 = vmatprep.mubr.bf16.mxu0 0
        %8243 = vmatmul.mubr.bf16.gmra.mrb[0].mxu0 %v8084
        %v8244 = vpop.f32.mrb[0].mxu0
        %v8245 = vadd.f32 0.0, %v8244
        %v8246 = vpop.f32.mrb[0].mxu0
        %v8247 = vpop.f32.mrb[0].mxu0
        %v8248 = vadd.f32 0.0, %v8247
        %v8249 = vpop.f32.mrb[0].mxu0
        %8250 = vmatprep.mubr.bf16.mxu0 0
        %8251 = vmatmul.mubr.bf16.gmra.mrb[0].mxu0 %v8087
        %v8252 = vpop.f32.mrb[0].mxu0
        %v8253 = vadd.f32 0.0, %v8252
        %v8254 = vpop.f32.mrb[0].mxu0
        %v8255 = vpop.f32.mrb[0].mxu0
        %v8256 = vadd.f32 0.0, %v8255
        %v8257 = vpop.f32.mrb[0].mxu0
        %8258 = vmatprep.mubr.bf16.mxu0 0
        %8259 = vmatmul.mubr.bf16.gmra.mrb[0].mxu0 %v8090
        %v8260 = vpop.f32.mrb[0].mxu0
        %v8261 = vadd.f32 0.0, %v8260
        %v8262 = vpop.f32.mrb[0].mxu0
        %v8263 = vpop.f32.mrb[0].mxu0
        %v8264 = vadd.f32 0.0, %v8263
        %v8265 = vpop.f32.mrb[0].mxu0
        %8266 = vmatprep.mubr.bf16.mxu0 0
        %8267 = vmatmul.mubr.bf16.gmra.mrb[0].mxu0 %v8093
        %v8268 = vpop.f32.mrb[0].mxu0
        %v8269 = vadd.f32 0.0, %v8268
        %v8270 = vpop.f32.mrb[0].mxu0
        %v8271 = vpop.f32.mrb[0].mxu0
        %v8272 = vadd.f32 0.0, %v8271
        %v8273 = vpop.f32.mrb[0].mxu0
        %8274 = vdwg.mxu0
        %v8275 = vadd.f32 %v7836, %v8133
        %v8276 = vadd.f32 %v7837, %v8136
        %v8277 = vadd.f32 %v7838, %v8141
        %v8278 = vadd.f32 %v7839, %v8144
        %v8279 = vadd.f32 %v7840, %v8149
        %v8280 = vadd.f32 %v7841, %v8152
        %v8281 = vadd.f32 %v7842, %v8157
        %v8282 = vadd.f32 %v7843, %v8160
        %v8283 = vadd.f32 %v7844, %v8165
        %v8284 = vadd.f32 %v7845, %v8168
        %v8285 = vadd.f32 %v7846, %v8173
        %v8286 = vadd.f32 %v7847, %v8176
        %v8287 = vadd.f32 %v7848, %v8181
        %v8288 = vadd.f32 %v7849, %v8184
        %v8289 = vadd.f32 %v7850, %v8189
        %v8290 = vadd.f32 %v7851, %v8192
        %v8291 = vadd.f32 %v7852, %v8197
        %v8292 = vadd.f32 %v7853, %v8200
        %v8293 = vadd.f32 %v7854, %v8205
        %v8294 = vadd.f32 %v7855, %v8208
        %v8295 = vadd.f32 %v7856, %v8213
        %v8296 = vadd.f32 %v7857, %v8216
        %v8297 = vadd.f32 %v7858, %v8221
        %v8298 = vadd.f32 %v7859, %v8224
        %v8299 = vadd.f32 %v7860, %v8229
        %v8300 = vadd.f32 %v7861, %v8232
        %v8301 = vadd.f32 %v7862, %v8237
        %v8302 = vadd.f32 %v7863, %v8240
        %v8303 = vadd.f32 %v7864, %v8245
        %v8304 = vadd.f32 %v7865, %v8248
        %v8305 = vadd.f32 %v7866, %v8253
        %v8306 = vadd.f32 %v7867, %v8256
        %v8307 = vadd.f32 %v7868, %v8261
        %v8308 = vadd.f32 %v7869, %v8264
        %v8309 = vadd.f32 %v7870, %v8269
        %v8310 = vadd.f32 %v7871, %v8272
        %v8311 = vld [vmem:[#allocation3 + $0xa0] sm:$0x7]
        %s8312 = scalar_lea.vmem [#allocation10], 14
        %v8313 = vld [vmem:[%s8312] sm:$0x3]
        %v8315 = vunpack.c.l.b16 %v8311
        %v8316 = vpack.c.b16 %v8315, %v8315
        %v8318 = vshrl.u32 %v7985, 16
        %v8320 = vrot.slane %v8318, 2
        %v8321 = vshll.u32 %v7985, 16
        %v8323 = vrot.slane %v8321, 3
        %v8324 = vor.u32 %v8320, %v8323
        %v8326 = vshrl.u32 %v7986, 16
        %v8328 = vrot.slane %v8326, 2
        %v8329 = vshll.u32 %v7986, 16
        %v8331 = vrot.slane %v8329, 3
        %v8332 = vor.u32 %v8328, %v8331
        %v8333 = vsel %vm3473, %v8324, %v8332
        %v8335 = vshrl.u32 %v7987, 16
        %v8337 = vrot.slane %v8335, 2
        %v8338 = vshll.u32 %v7987, 16
        %v8340 = vrot.slane %v8338, 3
        %v8341 = vor.u32 %v8337, %v8340
        %v8342 = vsel %vm3473, %v8332, %v8341
        %v8344 = vshrl.u32 %v7988, 16
        %v8346 = vrot.slane %v8344, 2
        %v8347 = vshll.u32 %v7988, 16
        %v8349 = vrot.slane %v8347, 3
        %v8350 = vor.u32 %v8346, %v8349
        %v8351 = vsel %vm3473, %v8341, %v8350
        %v8353 = vshrl.u32 %v7989, 16
        %v8355 = vrot.slane %v8353, 2
        %v8356 = vshll.u32 %v7989, 16
        %v8358 = vrot.slane %v8356, 3
        %v8359 = vor.u32 %v8355, %v8358
        %v8360 = vsel %vm3473, %v8350, %v8359
        %v8362 = vshrl.u32 %v7990, 16
        %v8364 = vrot.slane %v8362, 2
        %v8365 = vshll.u32 %v7990, 16
        %v8367 = vrot.slane %v8365, 3
        %v8368 = vor.u32 %v8364, %v8367
        %v8369 = vsel %vm3473, %v8359, %v8368
        %v8371 = vshrl.u32 %v7991, 16
        %v8373 = vrot.slane %v8371, 2
        %v8374 = vshll.u32 %v7991, 16
        %v8376 = vrot.slane %v8374, 3
        %v8377 = vor.u32 %v8373, %v8376
        %v8378 = vsel %vm3473, %v8368, %v8377
        %v8380 = vshrl.u32 %v7992, 16
        %v8382 = vrot.slane %v8380, 2
        %v8383 = vshll.u32 %v7992, 16
        %v8385 = vrot.slane %v8383, 3
        %v8386 = vor.u32 %v8382, %v8385
        %v8387 = vsel %vm3473, %v8377, %v8386
        %v8389 = vshrl.u32 %v7993, 16
        %v8391 = vrot.slane %v8389, 2
        %v8392 = vshll.u32 %v7993, 16
        %v8394 = vrot.slane %v8392, 3
        %v8395 = vor.u32 %v8391, %v8394
        %v8396 = vsel %vm3473, %v8386, %v8395
        %v8398 = vshrl.u32 %v7994, 16
        %v8400 = vrot.slane %v8398, 2
        %v8401 = vshll.u32 %v7994, 16
        %v8403 = vrot.slane %v8401, 3
        %v8404 = vor.u32 %v8400, %v8403
        %v8405 = vsel %vm3473, %v8395, %v8404
        %v8407 = vshrl.u32 %v7995, 16
        %v8409 = vrot.slane %v8407, 2
        %v8410 = vshll.u32 %v7995, 16
        %v8412 = vrot.slane %v8410, 3
        %v8413 = vor.u32 %v8409, %v8412
        %v8414 = vsel %vm3473, %v8404, %v8413
        %v8416 = vshrl.u32 %v7996, 16
        %v8418 = vrot.slane %v8416, 2
        %v8419 = vshll.u32 %v7996, 16
        %v8421 = vrot.slane %v8419, 3
        %v8422 = vor.u32 %v8418, %v8421
        %v8423 = vsel %vm3473, %v8413, %v8422
        %v8425 = vshrl.u32 %v7997, 16
        %v8427 = vrot.slane %v8425, 2
        %v8428 = vshll.u32 %v7997, 16
        %v8430 = vrot.slane %v8428, 3
        %v8431 = vor.u32 %v8427, %v8430
        %v8432 = vsel %vm3473, %v8422, %v8431
        %v8434 = vshrl.u32 %v7998, 16
        %v8436 = vrot.slane %v8434, 2
        %v8437 = vshll.u32 %v7998, 16
        %v8439 = vrot.slane %v8437, 3
        %v8440 = vor.u32 %v8436, %v8439
        %v8441 = vsel %vm3473, %v8431, %v8440
        %v8443 = vshrl.u32 %v7999, 16
        %v8445 = vrot.slane %v8443, 2
        %v8446 = vshll.u32 %v7999, 16
        %v8448 = vrot.slane %v8446, 3
        %v8449 = vor.u32 %v8445, %v8448
        %v8450 = vsel %vm3473, %v8440, %v8449
        %v8452 = vshrl.u32 %v8000, 16
        %v8454 = vrot.slane %v8452, 2
        %v8455 = vshll.u32 %v8000, 16
        %v8457 = vrot.slane %v8455, 3
        %v8458 = vor.u32 %v8454, %v8457
        %v8459 = vsel %vm3473, %v8449, %v8458
        %v8461 = vshrl.u32 %v8001, 16
        %v8463 = vrot.slane %v8461, 2
        %v8464 = vshll.u32 %v8001, 16
        %v8466 = vrot.slane %v8464, 3
        %v8467 = vor.u32 %v8463, %v8466
        %v8468 = vsel %vm3473, %v8458, %v8467
        %v8470 = vshrl.u32 %v8002, 16
        %v8472 = vrot.slane %v8470, 2
        %v8473 = vshll.u32 %v8002, 16
        %v8475 = vrot.slane %v8473, 3
        %v8476 = vor.u32 %v8472, %v8475
        %v8477 = vsel %vm3473, %v8467, %v8476
        %v8479 = vshrl.u32 %v8316, 16
        %v8481 = vrot.slane %v8479, 2
        %v8482 = vshll.u32 %v8316, 16
        %v8484 = vrot.slane %v8482, 3
        %v8485 = vor.u32 %v8481, %v8484
        %v8486 = vsel %vm3473, %v8476, %v8485
        %v8488 = vsel %vm5909, %v8333, 0
        %v8491 = vsel %vm5909, %v8342, 0
        %v8494 = vsel %vm5909, %v8351, 0
        %v8497 = vsel %vm5909, %v8360, 0
        %v8500 = vsel %vm5909, %v8369, 0
        %v8503 = vsel %vm5909, %v8378, 0
        %v8506 = vsel %vm5909, %v8387, 0
        %v8509 = vsel %vm5909, %v8396, 0
        %v8512 = vsel %vm5909, %v8405, 0
        %v8515 = vsel %vm5909, %v8414, 0
        %v8518 = vsel %vm5909, %v8423, 0
        %v8521 = vsel %vm5909, %v8432, 0
        %v8524 = vsel %vm5909, %v8441, 0
        %v8527 = vsel %vm5909, %v8450, 0
        %v8530 = vsel %vm5909, %v8459, 0
        %v8533 = vsel %vm5909, %v8468, 0
        %v8536 = vsel %vm5909, %v8477, 0
        %v8539 = vsel %vm5909, %v8486, 0
        %v8542 = vsel %vm5964, %v8313, 0
        %8544 = vmatprep.subr.bf16.mxu0 0
        %8545 = vmatpush1.bf16.msra.mxu0 %v8542
        %8546 = vmatprep.subr.bf16.mxu0 0
        %8547 = vmatpush1.bf16.msra.mxu0 0
        %8548 = vmatprep.subr.bf16.mxu0 0
        %8549 = vmatpush1.bf16.msra.mxu0 0
        %8550 = vmatprep.subr.bf16.mxu0 0
        %8551 = vmatpush1.bf16.msra.mxu0 0
        %8552 = vmatprep.subr.bf16.mxu0 0
        %8553 = vmatpush1.bf16.msra.mxu0 0
        %8554 = vmatprep.subr.bf16.mxu0 0
        %8555 = vmatpush1.bf16.msra.mxu0 0
        %8556 = vmatprep.subr.bf16.mxu0 0
        %8557 = vmatpush1.bf16.msra.mxu0 0
        %8558 = vmatprep.subr.bf16.mxu0 0
        %8559 = vmatpush1.bf16.msra.mxu0 0
        %8560 = vmatprep.subr.bf16.mxu0 0
        %8561 = vmatpush1.bf16.msra.mxu0 0
        %8562 = vmatprep.subr.bf16.mxu0 0
        %8563 = vmatpush1.bf16.msra.mxu0 0
        %8564 = vmatprep.subr.bf16.mxu0 0
        %8565 = vmatpush1.bf16.msra.mxu0 0
        %8566 = vmatprep.subr.bf16.mxu0 0
        %8567 = vmatpush1.bf16.msra.mxu0 0
        %8568 = vmatprep.subr.bf16.mxu0 0
        %8569 = vmatpush1.bf16.msra.mxu0 0
        %8570 = vmatprep.subr.bf16.mxu0 0
        %8571 = vmatpush1.bf16.msra.mxu0 0
        %8572 = vmatprep.subr.bf16.mxu0 0
        %8573 = vmatpush1.bf16.msra.mxu0 0
        %8574 = vmatprep.subr.bf16.mxu0 0
        %8575 = vmatpush1.bf16.msra.mxu0 0
        %8576 = vmatprep.mubr.bf16.mxu0 0
        %8577 = vmatmul.mubr.bf16.gmra.mrb[0].mxu0 %v8488
        %v8578 = vpop.f32.mrb[0].mxu0
        %v8579 = vadd.f32 0.0, %v8578
        %v8580 = vpop.f32.mrb[0].mxu0
        %v8581 = vpop.f32.mrb[0].mxu0
        %v8582 = vadd.f32 0.0, %v8581
        %v8583 = vpop.f32.mrb[0].mxu0
        %8584 = vmatprep.mubr.bf16.mxu0 0
        %8585 = vmatmul.mubr.bf16.gmra.mrb[0].mxu0 %v8491
        %v8586 = vpop.f32.mrb[0].mxu0
        %v8587 = vadd.f32 0.0, %v8586
        %v8588 = vpop.f32.mrb[0].mxu0
        %v8589 = vpop.f32.mrb[0].mxu0
        %v8590 = vadd.f32 0.0, %v8589
        %v8591 = vpop.f32.mrb[0].mxu0
        %8592 = vmatprep.mubr.bf16.mxu0 0
        %8593 = vmatmul.mubr.bf16.gmra.mrb[0].mxu0 %v8494
        %v8594 = vpop.f32.mrb[0].mxu0
        %v8595 = vadd.f32 0.0, %v8594
        %v8596 = vpop.f32.mrb[0].mxu0
        %v8597 = vpop.f32.mrb[0].mxu0
        %v8598 = vadd.f32 0.0, %v8597
        %v8599 = vpop.f32.mrb[0].mxu0
        %8600 = vmatprep.mubr.bf16.mxu0 0
        %8601 = vmatmul.mubr.bf16.gmra.mrb[0].mxu0 %v8497
        %v8602 = vpop.f32.mrb[0].mxu0
        %v8603 = vadd.f32 0.0, %v8602
        %v8604 = vpop.f32.mrb[0].mxu0
        %v8605 = vpop.f32.mrb[0].mxu0
        %v8606 = vadd.f32 0.0, %v8605
        %v8607 = vpop.f32.mrb[0].mxu0
        %8608 = vmatprep.mubr.bf16.mxu0 0
        %8609 = vmatmul.mubr.bf16.gmra.mrb[0].mxu0 %v8500
        %v8610 = vpop.f32.mrb[0].mxu0
        %v8611 = vadd.f32 0.0, %v8610
        %v8612 = vpop.f32.mrb[0].mxu0
        %v8613 = vpop.f32.mrb[0].mxu0
        %v8614 = vadd.f32 0.0, %v8613
        %v8615 = vpop.f32.mrb[0].mxu0
        %8616 = vmatprep.mubr.bf16.mxu0 0
        %8617 = vmatmul.mubr.bf16.gmra.mrb[0].mxu0 %v8503
        %v8618 = vpop.f32.mrb[0].mxu0
        %v8619 = vadd.f32 0.0, %v8618
        %v8620 = vpop.f32.mrb[0].mxu0
        %v8621 = vpop.f32.mrb[0].mxu0
        %v8622 = vadd.f32 0.0, %v8621
        %v8623 = vpop.f32.mrb[0].mxu0
        %8624 = vmatprep.mubr.bf16.mxu0 0
        %8625 = vmatmul.mubr.bf16.gmra.mrb[0].mxu0 %v8506
        %v8626 = vpop.f32.mrb[0].mxu0
        %v8627 = vadd.f32 0.0, %v8626
        %v8628 = vpop.f32.mrb[0].mxu0
        %v8629 = vpop.f32.mrb[0].mxu0
        %v8630 = vadd.f32 0.0, %v8629
        %v8631 = vpop.f32.mrb[0].mxu0
        %8632 = vmatprep.mubr.bf16.mxu0 0
        %8633 = vmatmul.mubr.bf16.gmra.mrb[0].mxu0 %v8509
        %v8634 = vpop.f32.mrb[0].mxu0
        %v8635 = vadd.f32 0.0, %v8634
        %v8636 = vpop.f32.mrb[0].mxu0
        %v8637 = vpop.f32.mrb[0].mxu0
        %v8638 = vadd.f32 0.0, %v8637
        %v8639 = vpop.f32.mrb[0].mxu0
        %8640 = vmatprep.mubr.bf16.mxu0 0
        %8641 = vmatmul.mubr.bf16.gmra.mrb[0].mxu0 %v8512
        %v8642 = vpop.f32.mrb[0].mxu0
        %v8643 = vadd.f32 0.0, %v8642
        %v8644 = vpop.f32.mrb[0].mxu0
        %v8645 = vpop.f32.mrb[0].mxu0
        %v8646 = vadd.f32 0.0, %v8645
        %v8647 = vpop.f32.mrb[0].mxu0
        %8648 = vmatprep.mubr.bf16.mxu0 0
        %8649 = vmatmul.mubr.bf16.gmra.mrb[0].mxu0 %v8515
        %v8650 = vpop.f32.mrb[0].mxu0
        %v8651 = vadd.f32 0.0, %v8650
        %v8652 = vpop.f32.mrb[0].mxu0
        %v8653 = vpop.f32.mrb[0].mxu0
        %v8654 = vadd.f32 0.0, %v8653
        %v8655 = vpop.f32.mrb[0].mxu0
        %8656 = vmatprep.mubr.bf16.mxu0 0
        %8657 = vmatmul.mubr.bf16.gmra.mrb[0].mxu0 %v8518
        %v8658 = vpop.f32.mrb[0].mxu0
        %v8659 = vadd.f32 0.0, %v8658
        %v8660 = vpop.f32.mrb[0].mxu0
        %v8661 = vpop.f32.mrb[0].mxu0
        %v8662 = vadd.f32 0.0, %v8661
        %v8663 = vpop.f32.mrb[0].mxu0
        %8664 = vmatprep.mubr.bf16.mxu0 0
        %8665 = vmatmul.mubr.bf16.gmra.mrb[0].mxu0 %v8521
        %v8666 = vpop.f32.mrb[0].mxu0
        %v8667 = vadd.f32 0.0, %v8666
        %v8668 = vpop.f32.mrb[0].mxu0
        %v8669 = vpop.f32.mrb[0].mxu0
        %v8670 = vadd.f32 0.0, %v8669
        %v8671 = vpop.f32.mrb[0].mxu0
        %8672 = vmatprep.mubr.bf16.mxu0 0
        %8673 = vmatmul.mubr.bf16.gmra.mrb[0].mxu0 %v8524
        %v8674 = vpop.f32.mrb[0].mxu0
        %v8675 = vadd.f32 0.0, %v8674
        %v8676 = vpop.f32.mrb[0].mxu0
        %v8677 = vpop.f32.mrb[0].mxu0
        %v8678 = vadd.f32 0.0, %v8677
        %v8679 = vpop.f32.mrb[0].mxu0
        %8680 = vmatprep.mubr.bf16.mxu0 0
        %8681 = vmatmul.mubr.bf16.gmra.mrb[0].mxu0 %v8527
        %v8682 = vpop.f32.mrb[0].mxu0
        %v8683 = vadd.f32 0.0, %v8682
        %v8684 = vpop.f32.mrb[0].mxu0
        %v8685 = vpop.f32.mrb[0].mxu0
        %v8686 = vadd.f32 0.0, %v8685
        %v8687 = vpop.f32.mrb[0].mxu0
        %8688 = vmatprep.mubr.bf16.mxu0 0
        %8689 = vmatmul.mubr.bf16.gmra.mrb[0].mxu0 %v8530
        %v8690 = vpop.f32.mrb[0].mxu0
        %v8691 = vadd.f32 0.0, %v8690
        %v8692 = vpop.f32.mrb[0].mxu0
        %v8693 = vpop.f32.mrb[0].mxu0
        %v8694 = vadd.f32 0.0, %v8693
        %v8695 = vpop.f32.mrb[0].mxu0
        %8696 = vmatprep.mubr.bf16.mxu0 0
        %8697 = vmatmul.mubr.bf16.gmra.mrb[0].mxu0 %v8533
        %v8698 = vpop.f32.mrb[0].mxu0
        %v8699 = vadd.f32 0.0, %v8698
        %v8700 = vpop.f32.mrb[0].mxu0
        %v8701 = vpop.f32.mrb[0].mxu0
        %v8702 = vadd.f32 0.0, %v8701
        %v8703 = vpop.f32.mrb[0].mxu0
        %8704 = vmatprep.mubr.bf16.mxu0 0
        %8705 = vmatmul.mubr.bf16.gmra.mrb[0].mxu0 %v8536
        %v8706 = vpop.f32.mrb[0].mxu0
        %v8707 = vadd.f32 0.0, %v8706
        %v8708 = vpop.f32.mrb[0].mxu0
        %v8709 = vpop.f32.mrb[0].mxu0
        %v8710 = vadd.f32 0.0, %v8709
        %v8711 = vpop.f32.mrb[0].mxu0
        %8712 = vmatprep.mubr.bf16.mxu0 0
        %8713 = vmatmul.mubr.bf16.gmra.mrb[0].mxu0 %v8539
        %v8714 = vpop.f32.mrb[0].mxu0
        %v8715 = vadd.f32 0.0, %v8714
        %v8716 = vpop.f32.mrb[0].mxu0
        %v8717 = vpop.f32.mrb[0].mxu0
        %v8718 = vadd.f32 0.0, %v8717
        %v8719 = vpop.f32.mrb[0].mxu0
        %8720 = vdwg.mxu0
        %v8721 = vadd.f32 %v8275, %v8579
        %v8722 = vadd.f32 %v8276, %v8582
        %v8723 = vadd.f32 %v8277, %v8587
        %v8724 = vadd.f32 %v8278, %v8590
        %v8725 = vadd.f32 %v8279, %v8595
        %v8726 = vadd.f32 %v8280, %v8598
        %v8727 = vadd.f32 %v8281, %v8603
        %v8728 = vadd.f32 %v8282, %v8606
        %v8729 = vadd.f32 %v8283, %v8611
        %v8730 = vadd.f32 %v8284, %v8614
        %v8731 = vadd.f32 %v8285, %v8619
        %v8732 = vadd.f32 %v8286, %v8622
        %v8733 = vadd.f32 %v8287, %v8627
        %v8734 = vadd.f32 %v8288, %v8630
        %v8735 = vadd.f32 %v8289, %v8635
        %v8736 = vadd.f32 %v8290, %v8638
        %v8737 = vadd.f32 %v8291, %v8643
        %v8738 = vadd.f32 %v8292, %v8646
        %v8739 = vadd.f32 %v8293, %v8651
        %v8740 = vadd.f32 %v8294, %v8654
        %v8741 = vadd.f32 %v8295, %v8659
        %v8742 = vadd.f32 %v8296, %v8662
        %v8743 = vadd.f32 %v8297, %v8667
        %v8744 = vadd.f32 %v8298, %v8670
        %v8745 = vadd.f32 %v8299, %v8675
        %v8746 = vadd.f32 %v8300, %v8678
        %v8747 = vadd.f32 %v8301, %v8683
        %v8748 = vadd.f32 %v8302, %v8686
        %v8749 = vadd.f32 %v8303, %v8691
        %v8750 = vadd.f32 %v8304, %v8694
        %v8751 = vadd.f32 %v8305, %v8699
        %v8752 = vadd.f32 %v8306, %v8702
        %v8753 = vadd.f32 %v8307, %v8707
        %v8754 = vadd.f32 %v8308, %v8710
        %v8755 = vadd.f32 %v8309, %v8715
        %v8756 = vadd.f32 %v8310, %v8718
        %v8757 = vld [vmem:[#allocation3 + $0x10] sm:$0x8]
        %s8758 = scalar_lea.vmem [#allocation10], 16
        %v8759 = vld [vmem:[%s8758] sm:$0x3]
        %v8761 = vunpack.c.l.b16 %v8757
        %v8762 = vpack.c.b16 %v7949, %v8761
        %v8763 = vrot.slane %v8762, 3
        %v8764 = vrot.slane %v7986, 3
        %v8765 = vsel %vm3920, %v8763, %v8764
        %v8766 = vrot.slane %v7987, 3
        %v8767 = vsel %vm3920, %v8764, %v8766
        %v8768 = vrot.slane %v7988, 3
        %v8769 = vsel %vm3920, %v8766, %v8768
        %v8770 = vrot.slane %v7989, 3
        %v8771 = vsel %vm3920, %v8768, %v8770
        %v8772 = vrot.slane %v7990, 3
        %v8773 = vsel %vm3920, %v8770, %v8772
        %v8774 = vrot.slane %v7991, 3
        %v8775 = vsel %vm3920, %v8772, %v8774
        %v8776 = vrot.slane %v7992, 3
        %v8777 = vsel %vm3920, %v8774, %v8776
        %v8778 = vrot.slane %v7993, 3
        %v8779 = vsel %vm3920, %v8776, %v8778
        %v8780 = vrot.slane %v7994, 3
        %v8781 = vsel %vm3920, %v8778, %v8780
        %v8782 = vrot.slane %v7995, 3
        %v8783 = vsel %vm3920, %v8780, %v8782
        %v8784 = vrot.slane %v7996, 3
        %v8785 = vsel %vm3920, %v8782, %v8784
        %v8786 = vrot.slane %v7997, 3
        %v8787 = vsel %vm3920, %v8784, %v8786
        %v8788 = vrot.slane %v7998, 3
        %v8789 = vsel %vm3920, %v8786, %v8788
        %v8790 = vrot.slane %v7999, 3
        %v8791 = vsel %vm3920, %v8788, %v8790
        %v8792 = vrot.slane %v8000, 3
        %v8793 = vsel %vm3920, %v8790, %v8792
        %v8794 = vrot.slane %v8001, 3
        %v8795 = vsel %vm3920, %v8792, %v8794
        %v8796 = vrot.slane %v8002, 3
        %v8797 = vsel %vm3920, %v8794, %v8796
        %v8798 = vrot.slane %v8316, 3
        %v8799 = vsel %vm3920, %v8796, %v8798
        %v8801 = vsel %vm5909, %v8765, 0
        %v8804 = vsel %vm5909, %v8767, 0
        %v8807 = vsel %vm5909, %v8769, 0
        %v8810 = vsel %vm5909, %v8771, 0
        %v8813 = vsel %vm5909, %v8773, 0
        %v8816 = vsel %vm5909, %v8775, 0
        %v8819 = vsel %vm5909, %v8777, 0
        %v8822 = vsel %vm5909, %v8779, 0
        %v8825 = vsel %vm5909, %v8781, 0
        %v8828 = vsel %vm5909, %v8783, 0
        %v8831 = vsel %vm5909, %v8785, 0
        %v8834 = vsel %vm5909, %v8787, 0
        %v8837 = vsel %vm5909, %v8789, 0
        %v8840 = vsel %vm5909, %v8791, 0
        %v8843 = vsel %vm5909, %v8793, 0
        %v8846 = vsel %vm5909, %v8795, 0
        %v8849 = vsel %vm5909, %v8797, 0
        %v8852 = vsel %vm5909, %v8799, 0
        %v8855 = vsel %vm5964, %v8759, 0
        %8857 = vmatprep.subr.bf16.mxu0 0
        %8858 = vmatpush1.bf16.msra.mxu0 %v8855
        %8859 = vmatprep.subr.bf16.mxu0 0
        %8860 = vmatpush1.bf16.msra.mxu0 0
        %8861 = vmatprep.subr.bf16.mxu0 0
        %8862 = vmatpush1.bf16.msra.mxu0 0
        %8863 = vmatprep.subr.bf16.mxu0 0
        %8864 = vmatpush1.bf16.msra.mxu0 0
        %8865 = vmatprep.subr.bf16.mxu0 0
        %8866 = vmatpush1.bf16.msra.mxu0 0
        %8867 = vmatprep.subr.bf16.mxu0 0
        %8868 = vmatpush1.bf16.msra.mxu0 0
        %8869 = vmatprep.subr.bf16.mxu0 0
        %8870 = vmatpush1.bf16.msra.mxu0 0
        %8871 = vmatprep.subr.bf16.mxu0 0
        %8872 = vmatpush1.bf16.msra.mxu0 0
        %8873 = vmatprep.subr.bf16.mxu0 0
        %8874 = vmatpush1.bf16.msra.mxu0 0
        %8875 = vmatprep.subr.bf16.mxu0 0
        %8876 = vmatpush1.bf16.msra.mxu0 0
        %8877 = vmatprep.subr.bf16.mxu0 0
        %8878 = vmatpush1.bf16.msra.mxu0 0
        %8879 = vmatprep.subr.bf16.mxu0 0
        %8880 = vmatpush1.bf16.msra.mxu0 0
        %8881 = vmatprep.subr.bf16.mxu0 0
        %8882 = vmatpush1.bf16.msra.mxu0 0
        %8883 = vmatprep.subr.bf16.mxu0 0
        %8884 = vmatpush1.bf16.msra.mxu0 0
        %8885 = vmatprep.subr.bf16.mxu0 0
        %8886 = vmatpush1.bf16.msra.mxu0 0
        %8887 = vmatprep.subr.bf16.mxu0 0
        %8888 = vmatpush1.bf16.msra.mxu0 0
        %8889 = vmatprep.mubr.bf16.mxu0 0
        %8890 = vmatmul.mubr.bf16.gmra.mrb[0].mxu0 %v8801
        %v8891 = vpop.f32.mrb[0].mxu0
        %v8892 = vadd.f32 0.0, %v8891
        %v8893 = vpop.f32.mrb[0].mxu0
        %v8894 = vpop.f32.mrb[0].mxu0
        %v8895 = vadd.f32 0.0, %v8894
        %v8896 = vpop.f32.mrb[0].mxu0
        %8897 = vmatprep.mubr.bf16.mxu0 0
        %8898 = vmatmul.mubr.bf16.gmra.mrb[0].mxu0 %v8804
        %v8899 = vpop.f32.mrb[0].mxu0
        %v8900 = vadd.f32 0.0, %v8899
        %v8901 = vpop.f32.mrb[0].mxu0
        %v8902 = vpop.f32.mrb[0].mxu0
        %v8903 = vadd.f32 0.0, %v8902
        %v8904 = vpop.f32.mrb[0].mxu0
        %8905 = vmatprep.mubr.bf16.mxu0 0
        %8906 = vmatmul.mubr.bf16.gmra.mrb[0].mxu0 %v8807
        %v8907 = vpop.f32.mrb[0].mxu0
        %v8908 = vadd.f32 0.0, %v8907
        %v8909 = vpop.f32.mrb[0].mxu0
        %v8910 = vpop.f32.mrb[0].mxu0
        %v8911 = vadd.f32 0.0, %v8910
        %v8912 = vpop.f32.mrb[0].mxu0
        %8913 = vmatprep.mubr.bf16.mxu0 0
        %8914 = vmatmul.mubr.bf16.gmra.mrb[0].mxu0 %v8810
        %v8915 = vpop.f32.mrb[0].mxu0
        %v8916 = vadd.f32 0.0, %v8915
        %v8917 = vpop.f32.mrb[0].mxu0
        %v8918 = vpop.f32.mrb[0].mxu0
        %v8919 = vadd.f32 0.0, %v8918
        %v8920 = vpop.f32.mrb[0].mxu0
        %8921 = vmatprep.mubr.bf16.mxu0 0
        %8922 = vmatmul.mubr.bf16.gmra.mrb[0].mxu0 %v8813
        %v8923 = vpop.f32.mrb[0].mxu0
        %v8924 = vadd.f32 0.0, %v8923
        %v8925 = vpop.f32.mrb[0].mxu0
        %v8926 = vpop.f32.mrb[0].mxu0
        %v8927 = vadd.f32 0.0, %v8926
        %v8928 = vpop.f32.mrb[0].mxu0
        %8929 = vmatprep.mubr.bf16.mxu0 0
        %8930 = vmatmul.mubr.bf16.gmra.mrb[0].mxu0 %v8816
        %v8931 = vpop.f32.mrb[0].mxu0
        %v8932 = vadd.f32 0.0, %v8931
        %v8933 = vpop.f32.mrb[0].mxu0
        %v8934 = vpop.f32.mrb[0].mxu0
        %v8935 = vadd.f32 0.0, %v8934
        %v8936 = vpop.f32.mrb[0].mxu0
        %8937 = vmatprep.mubr.bf16.mxu0 0
        %8938 = vmatmul.mubr.bf16.gmra.mrb[0].mxu0 %v8819
        %v8939 = vpop.f32.mrb[0].mxu0
        %v8940 = vadd.f32 0.0, %v8939
        %v8941 = vpop.f32.mrb[0].mxu0
        %v8942 = vpop.f32.mrb[0].mxu0
        %v8943 = vadd.f32 0.0, %v8942
        %v8944 = vpop.f32.mrb[0].mxu0
        %8945 = vmatprep.mubr.bf16.mxu0 0
        %8946 = vmatmul.mubr.bf16.gmra.mrb[0].mxu0 %v8822
        %v8947 = vpop.f32.mrb[0].mxu0
        %v8948 = vadd.f32 0.0, %v8947
        %v8949 = vpop.f32.mrb[0].mxu0
        %v8950 = vpop.f32.mrb[0].mxu0
        %v8951 = vadd.f32 0.0, %v8950
        %v8952 = vpop.f32.mrb[0].mxu0
        %8953 = vmatprep.mubr.bf16.mxu0 0
        %8954 = vmatmul.mubr.bf16.gmra.mrb[0].mxu0 %v8825
        %v8955 = vpop.f32.mrb[0].mxu0
        %v8956 = vadd.f32 0.0, %v8955
        %v8957 = vpop.f32.mrb[0].mxu0
        %v8958 = vpop.f32.mrb[0].mxu0
        %v8959 = vadd.f32 0.0, %v8958
        %v8960 = vpop.f32.mrb[0].mxu0
        %8961 = vmatprep.mubr.bf16.mxu0 0
        %8962 = vmatmul.mubr.bf16.gmra.mrb[0].mxu0 %v8828
        %v8963 = vpop.f32.mrb[0].mxu0
        %v8964 = vadd.f32 0.0, %v8963
        %v8965 = vpop.f32.mrb[0].mxu0
        %v8966 = vpop.f32.mrb[0].mxu0
        %v8967 = vadd.f32 0.0, %v8966
        %v8968 = vpop.f32.mrb[0].mxu0
        %8969 = vmatprep.mubr.bf16.mxu0 0
        %8970 = vmatmul.mubr.bf16.gmra.mrb[0].mxu0 %v8831
        %v8971 = vpop.f32.mrb[0].mxu0
        %v8972 = vadd.f32 0.0, %v8971
        %v8973 = vpop.f32.mrb[0].mxu0
        %v8974 = vpop.f32.mrb[0].mxu0
        %v8975 = vadd.f32 0.0, %v8974
        %v8976 = vpop.f32.mrb[0].mxu0
        %8977 = vmatprep.mubr.bf16.mxu0 0
        %8978 = vmatmul.mubr.bf16.gmra.mrb[0].mxu0 %v8834
        %v8979 = vpop.f32.mrb[0].mxu0
        %v8980 = vadd.f32 0.0, %v8979
        %v8981 = vpop.f32.mrb[0].mxu0
        %v8982 = vpop.f32.mrb[0].mxu0
        %v8983 = vadd.f32 0.0, %v8982
        %v8984 = vpop.f32.mrb[0].mxu0
        %8985 = vmatprep.mubr.bf16.mxu0 0
        %8986 = vmatmul.mubr.bf16.gmra.mrb[0].mxu0 %v8837
        %v8987 = vpop.f32.mrb[0].mxu0
        %v8988 = vadd.f32 0.0, %v8987
        %v8989 = vpop.f32.mrb[0].mxu0
        %v8990 = vpop.f32.mrb[0].mxu0
        %v8991 = vadd.f32 0.0, %v8990
        %v8992 = vpop.f32.mrb[0].mxu0
        %8993 = vmatprep.mubr.bf16.mxu0 0
        %8994 = vmatmul.mubr.bf16.gmra.mrb[0].mxu0 %v8840
        %v8995 = vpop.f32.mrb[0].mxu0
        %v8996 = vadd.f32 0.0, %v8995
        %v8997 = vpop.f32.mrb[0].mxu0
        %v8998 = vpop.f32.mrb[0].mxu0
        %v8999 = vadd.f32 0.0, %v8998
        %v9000 = vpop.f32.mrb[0].mxu0
        %9001 = vmatprep.mubr.bf16.mxu0 0
        %9002 = vmatmul.mubr.bf16.gmra.mrb[0].mxu0 %v8843
        %v9003 = vpop.f32.mrb[0].mxu0
        %v9004 = vadd.f32 0.0, %v9003
        %v9005 = vpop.f32.mrb[0].mxu0
        %v9006 = vpop.f32.mrb[0].mxu0
        %v9007 = vadd.f32 0.0, %v9006
        %v9008 = vpop.f32.mrb[0].mxu0
        %9009 = vmatprep.mubr.bf16.mxu0 0
        %9010 = vmatmul.mubr.bf16.gmra.mrb[0].mxu0 %v8846
        %v9011 = vpop.f32.mrb[0].mxu0
        %v9012 = vadd.f32 0.0, %v9011
        %v9013 = vpop.f32.mrb[0].mxu0
        %v9014 = vpop.f32.mrb[0].mxu0
        %v9015 = vadd.f32 0.0, %v9014
        %v9016 = vpop.f32.mrb[0].mxu0
        %9017 = vmatprep.mubr.bf16.mxu0 0
        %9018 = vmatmul.mubr.bf16.gmra.mrb[0].mxu0 %v8849
        %v9019 = vpop.f32.mrb[0].mxu0
        %v9020 = vadd.f32 0.0, %v9019
        %v9021 = vpop.f32.mrb[0].mxu0
        %v9022 = vpop.f32.mrb[0].mxu0
        %v9023 = vadd.f32 0.0, %v9022
        %v9024 = vpop.f32.mrb[0].mxu0
        %9025 = vmatprep.mubr.bf16.mxu0 0
        %9026 = vmatmul.mubr.bf16.gmra.mrb[0].mxu0 %v8852
        %v9027 = vpop.f32.mrb[0].mxu0
        %v9028 = vadd.f32 0.0, %v9027
        %v9029 = vpop.f32.mrb[0].mxu0
        %v9030 = vpop.f32.mrb[0].mxu0
        %v9031 = vadd.f32 0.0, %v9030
        %v9032 = vpop.f32.mrb[0].mxu0
        %9033 = vdwg.mxu0
        %v9034 = vadd.f32 %v8721, %v8892
        %v9035 = vadd.f32 %v8722, %v8895
        %v9036 = vadd.f32 %v8723, %v8900
        %v9037 = vadd.f32 %v8724, %v8903
        %v9038 = vadd.f32 %v8725, %v8908
        %v9039 = vadd.f32 %v8726, %v8911
        %v9040 = vadd.f32 %v8727, %v8916
        %v9041 = vadd.f32 %v8728, %v8919
        %v9042 = vadd.f32 %v8729, %v8924
        %v9043 = vadd.f32 %v8730, %v8927
        %v9044 = vadd.f32 %v8731, %v8932
        %v9045 = vadd.f32 %v8732, %v8935
        %v9046 = vadd.f32 %v8733, %v8940
        %v9047 = vadd.f32 %v8734, %v8943
        %v9048 = vadd.f32 %v8735, %v8948
        %v9049 = vadd.f32 %v8736, %v8951
        %v9050 = vadd.f32 %v8737, %v8956
        %v9051 = vadd.f32 %v8738, %v8959
        %v9052 = vadd.f32 %v8739, %v8964
        %v9053 = vadd.f32 %v8740, %v8967
        %v9054 = vadd.f32 %v8741, %v8972
        %v9055 = vadd.f32 %v8742, %v8975
        %v9056 = vadd.f32 %v8743, %v8980
        %v9057 = vadd.f32 %v8744, %v8983
        %v9058 = vadd.f32 %v8745, %v8988
        %v9059 = vadd.f32 %v8746, %v8991
        %v9060 = vadd.f32 %v8747, %v8996
        %v9061 = vadd.f32 %v8748, %v8999
        %v9062 = vadd.f32 %v8749, %v9004
        %v9063 = vadd.f32 %v8750, %v9007
        %v9064 = vadd.f32 %v8751, %v9012
        %v9065 = vadd.f32 %v8752, %v9015
        %v9066 = vadd.f32 %v8753, %v9020
        %v9067 = vadd.f32 %v8754, %v9023
        %v9068 = vadd.f32 %v8755, %v9028
        %v9069 = vadd.f32 %v8756, %v9031
        %v9070 = vld [vmem:[#allocation12] sm:$0x1]
        %v9072 = vlaneseq
        %v9073 = vshrl.u32 %v9072, 7
        %v9074 = vsub.s32 0, %v9073
        %v9075 = vrot.slane %v9070, %v9074
        %v9077 = vadd.f32 %v9034, %v9075
        %v9078 = vadd.f32 %v9035, %v9075
        %v9079 = vadd.f32 %v9036, %v9075
        %v9080 = vadd.f32 %v9037, %v9075
        %v9081 = vadd.f32 %v9038, %v9075
        %v9082 = vadd.f32 %v9039, %v9075
        %v9083 = vadd.f32 %v9040, %v9075
        %v9084 = vadd.f32 %v9041, %v9075
        %v9085 = vadd.f32 %v9042, %v9075
        %v9086 = vadd.f32 %v9043, %v9075
        %v9087 = vadd.f32 %v9044, %v9075
        %v9088 = vadd.f32 %v9045, %v9075
        %v9089 = vadd.f32 %v9046, %v9075
        %v9090 = vadd.f32 %v9047, %v9075
        %v9091 = vadd.f32 %v9048, %v9075
        %v9092 = vadd.f32 %v9049, %v9075
        %v9093 = vadd.f32 %v9050, %v9075
        %v9094 = vadd.f32 %v9051, %v9075
        %v9095 = vadd.f32 %v9052, %v9075
        %v9096 = vadd.f32 %v9053, %v9075
        %v9097 = vadd.f32 %v9054, %v9075
        %v9098 = vadd.f32 %v9055, %v9075
        %v9099 = vadd.f32 %v9056, %v9075
        %v9100 = vadd.f32 %v9057, %v9075
        %v9101 = vadd.f32 %v9058, %v9075
        %v9102 = vadd.f32 %v9059, %v9075
        %v9103 = vadd.f32 %v9060, %v9075
        %v9104 = vadd.f32 %v9061, %v9075
        %v9105 = vadd.f32 %v9062, %v9075
        %v9106 = vadd.f32 %v9063, %v9075
        %v9107 = vadd.f32 %v9064, %v9075
        %v9108 = vadd.f32 %v9065, %v9075
        %v9109 = vadd.f32 %v9066, %v9075
        %v9110 = vadd.f32 %v9067, %v9075
        %v9111 = vadd.f32 %v9068, %v9075
        %v9112 = vadd.f32 %v9069, %v9075
        %v9113 = vadd.f32 %v9077, %v780
        %v9114 = vadd.f32 %v9078, %v780
        %v9115 = vadd.f32 %v9079, %v780
        %v9116 = vadd.f32 %v9080, %v780
        %v9117 = vadd.f32 %v9081, %v780
        %v9118 = vadd.f32 %v9082, %v780
        %v9119 = vadd.f32 %v9083, %v780
        %v9120 = vadd.f32 %v9084, %v780
        %v9121 = vadd.f32 %v9085, %v780
        %v9122 = vadd.f32 %v9086, %v780
        %v9123 = vadd.f32 %v9087, %v780
        %v9124 = vadd.f32 %v9088, %v780
        %v9125 = vadd.f32 %v9089, %v780
        %v9126 = vadd.f32 %v9090, %v780
        %v9127 = vadd.f32 %v9091, %v780
        %v9128 = vadd.f32 %v9092, %v780
        %v9129 = vadd.f32 %v9093, %v780
        %v9130 = vadd.f32 %v9094, %v780
        %v9131 = vadd.f32 %v9095, %v780
        %v9132 = vadd.f32 %v9096, %v780
        %v9133 = vadd.f32 %v9097, %v780
        %v9134 = vadd.f32 %v9098, %v780
        %v9135 = vadd.f32 %v9099, %v780
        %v9136 = vadd.f32 %v9100, %v780
        %v9137 = vadd.f32 %v9101, %v780
        %v9138 = vadd.f32 %v9102, %v780
        %v9139 = vadd.f32 %v9103, %v780
        %v9140 = vadd.f32 %v9104, %v780
        %v9141 = vadd.f32 %v9105, %v780
        %v9142 = vadd.f32 %v9106, %v780
        %v9143 = vadd.f32 %v9107, %v780
        %v9144 = vadd.f32 %v9108, %v780
        %v9145 = vadd.f32 %v9109, %v780
        %v9146 = vadd.f32 %v9110, %v780
        %v9147 = vadd.f32 %v9111, %v780
        %v9148 = vadd.f32 %v9112, %v780
        %9150 = vrot.lane.b32.xlu0 %v763, 4
        %v9151 = vpop.permute.xlu0 %9150
        %v9153 = vadd.f32 %v9077, %v9151
        %v9154 = vadd.f32 %v9078, %v9151
        %v9155 = vadd.f32 %v9079, %v9151
        %v9156 = vadd.f32 %v9080, %v9151
        %v9157 = vadd.f32 %v9081, %v9151
        %v9158 = vadd.f32 %v9082, %v9151
        %v9159 = vadd.f32 %v9083, %v9151
        %v9160 = vadd.f32 %v9084, %v9151
        %v9161 = vadd.f32 %v9085, %v9151
        %v9162 = vadd.f32 %v9086, %v9151
        %v9163 = vadd.f32 %v9087, %v9151
        %v9164 = vadd.f32 %v9088, %v9151
        %v9165 = vadd.f32 %v9089, %v9151
        %v9166 = vadd.f32 %v9090, %v9151
        %v9167 = vadd.f32 %v9091, %v9151
        %v9168 = vadd.f32 %v9092, %v9151
        %v9169 = vadd.f32 %v9093, %v9151
        %v9170 = vadd.f32 %v9094, %v9151
        %v9171 = vadd.f32 %v9095, %v9151
        %v9172 = vadd.f32 %v9096, %v9151
        %v9173 = vadd.f32 %v9097, %v9151
        %v9174 = vadd.f32 %v9098, %v9151
        %v9175 = vadd.f32 %v9099, %v9151
        %v9176 = vadd.f32 %v9100, %v9151
        %v9177 = vadd.f32 %v9101, %v9151
        %v9178 = vadd.f32 %v9102, %v9151
        %v9179 = vadd.f32 %v9103, %v9151
        %v9180 = vadd.f32 %v9104, %v9151
        %v9181 = vadd.f32 %v9105, %v9151
        %v9182 = vadd.f32 %v9106, %v9151
        %v9183 = vadd.f32 %v9107, %v9151
        %v9184 = vadd.f32 %v9108, %v9151
        %v9185 = vadd.f32 %v9109, %v9151
        %v9186 = vadd.f32 %v9110, %v9151
        %v9187 = vadd.f32 %v9111, %v9151
        %v9188 = vadd.f32 %v9112, %v9151
        %v9189 = vsub.f32 %v300, %v763
        %v9190 = vsub.f32 %v301, %v763
        %v9191 = vsub.f32 %v302, %v763
        %v9192 = vsub.f32 %v303, %v763
        %v9193 = vsub.f32 %v304, %v763
        %v9194 = vsub.f32 %v305, %v763
        %v9195 = vsub.f32 %v306, %v763
        %v9196 = vsub.f32 %v307, %v763
        %v9197 = vsub.f32 %v308, %v763
        %v9198 = vsub.f32 %v309, %v763
        %v9199 = vsub.f32 %v310, %v763
        %v9200 = vsub.f32 %v311, %v763
        %v9201 = vsub.f32 %v312, %v763
        %v9202 = vsub.f32 %v313, %v763
        %v9203 = vsub.f32 %v314, %v763
        %v9204 = vsub.f32 %v315, %v763
        %v9205 = vsub.f32 %v316, %v763
        %v9206 = vsub.f32 %v317, %v763
        %v9207 = vsub.f32 %v318, %v763
        %v9208 = vsub.f32 %v319, %v763
        %v9209 = vsub.f32 %v320, %v763
        %v9210 = vsub.f32 %v321, %v763
        %v9211 = vsub.f32 %v322, %v763
        %v9212 = vsub.f32 %v323, %v763
        %v9213 = vsub.f32 %v324, %v763
        %v9214 = vsub.f32 %v325, %v763
        %v9215 = vsub.f32 %v326, %v763
        %v9216 = vsub.f32 %v327, %v763
        %v9217 = vsub.f32 %v328, %v763
        %v9218 = vsub.f32 %v329, %v763
        %v9219 = vsub.f32 %v330, %v763
        %v9220 = vsub.f32 %v331, %v763
        %v9221 = vsub.f32 %v332, %v763
        %v9222 = vsub.f32 %v333, %v763
        %v9223 = vsub.f32 %v334, %v763
        %v9224 = vsub.f32 %v335, %v763
        %v9225 = vsub.f32 %v336, %v763
        %v9226 = vadd.f32 %v767, 1e-05
        %v9227 = vrsqrt.pop %v9226
        %v9228 = vmul.f32 %v9189, %v9227
        %v9229 = vmul.f32 %v9190, %v9227
        %v9230 = vmul.f32 %v9191, %v9227
        %v9231 = vmul.f32 %v9192, %v9227
        %v9232 = vmul.f32 %v9193, %v9227
        %v9233 = vmul.f32 %v9194, %v9227
        %v9234 = vmul.f32 %v9195, %v9227
        %v9235 = vmul.f32 %v9196, %v9227
        %v9236 = vmul.f32 %v9197, %v9227
        %v9237 = vmul.f32 %v9198, %v9227
        %v9238 = vmul.f32 %v9199, %v9227
        %v9239 = vmul.f32 %v9200, %v9227
        %v9240 = vmul.f32 %v9201, %v9227
        %v9241 = vmul.f32 %v9202, %v9227
        %v9242 = vmul.f32 %v9203, %v9227
        %v9243 = vmul.f32 %v9204, %v9227
        %v9244 = vmul.f32 %v9205, %v9227
        %v9245 = vmul.f32 %v9206, %v9227
        %v9246 = vmul.f32 %v9207, %v9227
        %v9247 = vmul.f32 %v9208, %v9227
        %v9248 = vmul.f32 %v9209, %v9227
        %v9249 = vmul.f32 %v9210, %v9227
        %v9250 = vmul.f32 %v9211, %v9227
        %v9251 = vmul.f32 %v9212, %v9227
        %v9252 = vmul.f32 %v9213, %v9227
        %v9253 = vmul.f32 %v9214, %v9227
        %v9254 = vmul.f32 %v9215, %v9227
        %v9255 = vmul.f32 %v9216, %v9227
        %v9256 = vmul.f32 %v9217, %v9227
        %v9257 = vmul.f32 %v9218, %v9227
        %v9258 = vmul.f32 %v9219, %v9227
        %v9259 = vmul.f32 %v9220, %v9227
        %v9260 = vmul.f32 %v9221, %v9227
        %v9261 = vmul.f32 %v9222, %v9227
        %v9262 = vmul.f32 %v9223, %v9227
        %v9263 = vmul.f32 %v9224, %v9227
        %v9264 = vmul.f32 %v9225, %v9227
        %vm9301 = vcmask 1042432
        %v9302 = vrot.slane %v9113, 5
        %v9303 = vrot.slane %v9114, 5
        %v9304 = vsel %vm9301, %v9302, %v9303
        %v9305 = vrot.slane %v9115, 5
        %v9306 = vsel %vm9301, %v9303, %v9305
        %v9307 = vrot.slane %v9116, 5
        %v9308 = vsel %vm9301, %v9305, %v9307
        %v9309 = vrot.slane %v9117, 5
        %v9310 = vsel %vm9301, %v9307, %v9309
        %v9311 = vrot.slane %v9118, 5
        %v9312 = vsel %vm9301, %v9309, %v9311
        %v9313 = vrot.slane %v9119, 5
        %v9314 = vsel %vm9301, %v9311, %v9313
        %v9315 = vrot.slane %v9120, 5
        %v9316 = vsel %vm9301, %v9313, %v9315
        %v9317 = vrot.slane %v9121, 5
        %v9318 = vsel %vm9301, %v9315, %v9317
        %v9319 = vrot.slane %v9122, 5
        %v9320 = vsel %vm9301, %v9317, %v9319
        %v9321 = vrot.slane %v9123, 5
        %v9322 = vsel %vm9301, %v9319, %v9321
        %v9323 = vrot.slane %v9124, 5
        %v9324 = vsel %vm9301, %v9321, %v9323
        %v9325 = vrot.slane %v9125, 5
        %v9326 = vsel %vm9301, %v9323, %v9325
        %v9327 = vrot.slane %v9126, 5
        %v9328 = vsel %vm9301, %v9325, %v9327
        %v9329 = vrot.slane %v9127, 5
        %v9330 = vsel %vm9301, %v9327, %v9329
        %v9331 = vrot.slane %v9128, 5
        %v9332 = vsel %vm9301, %v9329, %v9331
        %v9333 = vrot.slane %v9129, 5
        %v9334 = vsel %vm9301, %v9331, %v9333
        %v9335 = vrot.slane %v9130, 5
        %v9336 = vsel %vm9301, %v9333, %v9335
        %v9337 = vrot.slane %v9131, 5
        %v9338 = vsel %vm9301, %v9335, %v9337
        %v9339 = vrot.slane %v9132, 5
        %v9340 = vsel %vm9301, %v9337, %v9339
        %v9341 = vrot.slane %v9133, 5
        %v9342 = vsel %vm9301, %v9339, %v9341
        %v9343 = vrot.slane %v9134, 5
        %v9344 = vsel %vm9301, %v9341, %v9343
        %v9345 = vrot.slane %v9135, 5
        %v9346 = vsel %vm9301, %v9343, %v9345
        %v9347 = vrot.slane %v9136, 5
        %v9348 = vsel %vm9301, %v9345, %v9347
        %v9349 = vrot.slane %v9137, 5
        %v9350 = vsel %vm9301, %v9347, %v9349
        %v9351 = vrot.slane %v9138, 5
        %v9352 = vsel %vm9301, %v9349, %v9351
        %v9353 = vrot.slane %v9139, 5
        %v9354 = vsel %vm9301, %v9351, %v9353
        %v9355 = vrot.slane %v9140, 5
        %v9356 = vsel %vm9301, %v9353, %v9355
        %v9357 = vrot.slane %v9141, 5
        %v9358 = vsel %vm9301, %v9355, %v9357
        %v9359 = vrot.slane %v9142, 5
        %v9360 = vsel %vm9301, %v9357, %v9359
        %v9361 = vrot.slane %v9143, 5
        %v9362 = vsel %vm9301, %v9359, %v9361
        %v9363 = vrot.slane %v9144, 5
        %v9364 = vsel %vm9301, %v9361, %v9363
        %v9365 = vrot.slane %v9145, 5
        %v9366 = vsel %vm9301, %v9363, %v9365
        %v9367 = vrot.slane %v9146, 5
        %v9368 = vsel %vm9301, %v9365, %v9367
        %v9369 = vrot.slane %v9147, 5
        %v9370 = vsel %vm9301, %v9367, %v9369
        %v9371 = vrot.slane %v9148, 5
        %v9372 = vsel %vm9301, %v9369, %v9371
        %9373 = vrot.lane.b32.xlu0 %v9302, 4
        %v9374 = vpop.permute.xlu0 %9373
        %9375 = vrot.lane.b32.xlu0 %v9304, 4
        %v9376 = vpop.permute.xlu0 %9375
        %9377 = vrot.lane.b32.xlu0 %v9306, 4
        %v9378 = vpop.permute.xlu0 %9377
        %9379 = vrot.lane.b32.xlu0 %v9308, 4
        %v9380 = vpop.permute.xlu0 %9379
        %9381 = vrot.lane.b32.xlu0 %v9310, 4
        %v9382 = vpop.permute.xlu0 %9381
        %9383 = vrot.lane.b32.xlu0 %v9312, 4
        %v9384 = vpop.permute.xlu0 %9383
        %9385 = vrot.lane.b32.xlu0 %v9314, 4
        %v9386 = vpop.permute.xlu0 %9385
        %9387 = vrot.lane.b32.xlu0 %v9316, 4
        %v9388 = vpop.permute.xlu0 %9387
        %9389 = vrot.lane.b32.xlu0 %v9318, 4
        %v9390 = vpop.permute.xlu0 %9389
        %9391 = vrot.lane.b32.xlu0 %v9320, 4
        %v9392 = vpop.permute.xlu0 %9391
        %9393 = vrot.lane.b32.xlu0 %v9322, 4
        %v9394 = vpop.permute.xlu0 %9393
        %9395 = vrot.lane.b32.xlu0 %v9324, 4
        %v9396 = vpop.permute.xlu0 %9395
        %9397 = vrot.lane.b32.xlu0 %v9326, 4
        %v9398 = vpop.permute.xlu0 %9397
        %9399 = vrot.lane.b32.xlu0 %v9328, 4
        %v9400 = vpop.permute.xlu0 %9399
        %9401 = vrot.lane.b32.xlu0 %v9330, 4
        %v9402 = vpop.permute.xlu0 %9401
        %9403 = vrot.lane.b32.xlu0 %v9332, 4
        %v9404 = vpop.permute.xlu0 %9403
        %9405 = vrot.lane.b32.xlu0 %v9334, 4
        %v9406 = vpop.permute.xlu0 %9405
        %9407 = vrot.lane.b32.xlu0 %v9336, 4
        %v9408 = vpop.permute.xlu0 %9407
        %9409 = vrot.lane.b32.xlu0 %v9338, 4
        %v9410 = vpop.permute.xlu0 %9409
        %9411 = vrot.lane.b32.xlu0 %v9340, 4
        %v9412 = vpop.permute.xlu0 %9411
        %9413 = vrot.lane.b32.xlu0 %v9342, 4
        %v9414 = vpop.permute.xlu0 %9413
        %9415 = vrot.lane.b32.xlu0 %v9344, 4
        %v9416 = vpop.permute.xlu0 %9415
        %9417 = vrot.lane.b32.xlu0 %v9346, 4
        %v9418 = vpop.permute.xlu0 %9417
        %9419 = vrot.lane.b32.xlu0 %v9348, 4
        %v9420 = vpop.permute.xlu0 %9419
        %9421 = vrot.lane.b32.xlu0 %v9350, 4
        %v9422 = vpop.permute.xlu0 %9421
        %9423 = vrot.lane.b32.xlu0 %v9352, 4
        %v9424 = vpop.permute.xlu0 %9423
        %9425 = vrot.lane.b32.xlu0 %v9354, 4
        %v9426 = vpop.permute.xlu0 %9425
        %9427 = vrot.lane.b32.xlu0 %v9356, 4
        %v9428 = vpop.permute.xlu0 %9427
        %9429 = vrot.lane.b32.xlu0 %v9358, 4
        %v9430 = vpop.permute.xlu0 %9429
        %9431 = vrot.lane.b32.xlu0 %v9360, 4
        %v9432 = vpop.permute.xlu0 %9431
        %9433 = vrot.lane.b32.xlu0 %v9362, 4
        %v9434 = vpop.permute.xlu0 %9433
        %9435 = vrot.lane.b32.xlu0 %v9364, 4
        %v9436 = vpop.permute.xlu0 %9435
        %9437 = vrot.lane.b32.xlu0 %v9366, 4
        %v9438 = vpop.permute.xlu0 %9437
        %9439 = vrot.lane.b32.xlu0 %v9368, 4
        %v9440 = vpop.permute.xlu0 %9439
        %9441 = vrot.lane.b32.xlu0 %v9370, 4
        %v9442 = vpop.permute.xlu0 %9441
        %9443 = vrot.lane.b32.xlu0 %v9372, 4
        %v9444 = vpop.permute.xlu0 %9443
        %9445 = vrot.lane.b32.xlu0 %v9371, 4
        %v9446 = vpop.permute.xlu0 %9445
        %v9484 = vmul.f32 %v9228, %v9374
        %v9485 = vmul.f32 %v9229, %v9376
        %v9486 = vmul.f32 %v9230, %v9378
        %v9487 = vmul.f32 %v9231, %v9380
        %v9488 = vmul.f32 %v9232, %v9382
        %v9489 = vmul.f32 %v9233, %v9384
        %v9490 = vmul.f32 %v9234, %v9386
        %v9491 = vmul.f32 %v9235, %v9388
        %v9492 = vmul.f32 %v9236, %v9390
        %v9493 = vmul.f32 %v9237, %v9392
        %v9494 = vmul.f32 %v9238, %v9394
        %v9495 = vmul.f32 %v9239, %v9396
        %v9496 = vmul.f32 %v9240, %v9398
        %v9497 = vmul.f32 %v9241, %v9400
        %v9498 = vmul.f32 %v9242, %v9402
        %v9499 = vmul.f32 %v9243, %v9404
        %v9500 = vmul.f32 %v9244, %v9406
        %v9501 = vmul.f32 %v9245, %v9408
        %v9502 = vmul.f32 %v9246, %v9410
        %v9503 = vmul.f32 %v9247, %v9412
        %v9504 = vmul.f32 %v9248, %v9414
        %v9505 = vmul.f32 %v9249, %v9416
        %v9506 = vmul.f32 %v9250, %v9418
        %v9507 = vmul.f32 %v9251, %v9420
        %v9508 = vmul.f32 %v9252, %v9422
        %v9509 = vmul.f32 %v9253, %v9424
        %v9510 = vmul.f32 %v9254, %v9426
        %v9511 = vmul.f32 %v9255, %v9428
        %v9512 = vmul.f32 %v9256, %v9430
        %v9513 = vmul.f32 %v9257, %v9432
        %v9514 = vmul.f32 %v9258, %v9434
        %v9515 = vmul.f32 %v9259, %v9436
        %v9516 = vmul.f32 %v9260, %v9438
        %v9517 = vmul.f32 %v9261, %v9440
        %v9518 = vmul.f32 %v9262, %v9442
        %v9519 = vmul.f32 %v9263, %v9444
        %v9520 = vmul.f32 %v9264, %v9446
        %v9557 = vrot.slane %v9153, 5
        %v9558 = vrot.slane %v9154, 5
        %v9559 = vsel %vm9301, %v9557, %v9558
        %v9560 = vrot.slane %v9155, 5
        %v9561 = vsel %vm9301, %v9558, %v9560
        %v9562 = vrot.slane %v9156, 5
        %v9563 = vsel %vm9301, %v9560, %v9562
        %v9564 = vrot.slane %v9157, 5
        %v9565 = vsel %vm9301, %v9562, %v9564
        %v9566 = vrot.slane %v9158, 5
        %v9567 = vsel %vm9301, %v9564, %v9566
        %v9568 = vrot.slane %v9159, 5
        %v9569 = vsel %vm9301, %v9566, %v9568
        %v9570 = vrot.slane %v9160, 5
        %v9571 = vsel %vm9301, %v9568, %v9570
        %v9572 = vrot.slane %v9161, 5
        %v9573 = vsel %vm9301, %v9570, %v9572
        %v9574 = vrot.slane %v9162, 5
        %v9575 = vsel %vm9301, %v9572, %v9574
        %v9576 = vrot.slane %v9163, 5
        %v9577 = vsel %vm9301, %v9574, %v9576
        %v9578 = vrot.slane %v9164, 5
        %v9579 = vsel %vm9301, %v9576, %v9578
        %v9580 = vrot.slane %v9165, 5
        %v9581 = vsel %vm9301, %v9578, %v9580
        %v9582 = vrot.slane %v9166, 5
        %v9583 = vsel %vm9301, %v9580, %v9582
        %v9584 = vrot.slane %v9167, 5
        %v9585 = vsel %vm9301, %v9582, %v9584
        %v9586 = vrot.slane %v9168, 5
        %v9587 = vsel %vm9301, %v9584, %v9586
        %v9588 = vrot.slane %v9169, 5
        %v9589 = vsel %vm9301, %v9586, %v9588
        %v9590 = vrot.slane %v9170, 5
        %v9591 = vsel %vm9301, %v9588, %v9590
        %v9592 = vrot.slane %v9171, 5
        %v9593 = vsel %vm9301, %v9590, %v9592
        %v9594 = vrot.slane %v9172, 5
        %v9595 = vsel %vm9301, %v9592, %v9594
        %v9596 = vrot.slane %v9173, 5
        %v9597 = vsel %vm9301, %v9594, %v9596
        %v9598 = vrot.slane %v9174, 5
        %v9599 = vsel %vm9301, %v9596, %v9598
        %v9600 = vrot.slane %v9175, 5
        %v9601 = vsel %vm9301, %v9598, %v9600
        %v9602 = vrot.slane %v9176, 5
        %v9603 = vsel %vm9301, %v9600, %v9602
        %v9604 = vrot.slane %v9177, 5
        %v9605 = vsel %vm9301, %v9602, %v9604
        %v9606 = vrot.slane %v9178, 5
        %v9607 = vsel %vm9301, %v9604, %v9606
        %v9608 = vrot.slane %v9179, 5
        %v9609 = vsel %vm9301, %v9606, %v9608
        %v9610 = vrot.slane %v9180, 5
        %v9611 = vsel %vm9301, %v9608, %v9610
        %v9612 = vrot.slane %v9181, 5
        %v9613 = vsel %vm9301, %v9610, %v9612
        %v9614 = vrot.slane %v9182, 5
        %v9615 = vsel %vm9301, %v9612, %v9614
        %v9616 = vrot.slane %v9183, 5
        %v9617 = vsel %vm9301, %v9614, %v9616
        %v9618 = vrot.slane %v9184, 5
        %v9619 = vsel %vm9301, %v9616, %v9618
        %v9620 = vrot.slane %v9185, 5
        %v9621 = vsel %vm9301, %v9618, %v9620
        %v9622 = vrot.slane %v9186, 5
        %v9623 = vsel %vm9301, %v9620, %v9622
        %v9624 = vrot.slane %v9187, 5
        %v9625 = vsel %vm9301, %v9622, %v9624
        %v9626 = vrot.slane %v9188, 5
        %v9627 = vsel %vm9301, %v9624, %v9626
        %v9665 = vadd.f32 %v9484, %v9557
        %v9666 = vadd.f32 %v9485, %v9559
        %v9667 = vadd.f32 %v9486, %v9561
        %v9668 = vadd.f32 %v9487, %v9563
        %v9669 = vadd.f32 %v9488, %v9565
        %v9670 = vadd.f32 %v9489, %v9567
        %v9671 = vadd.f32 %v9490, %v9569
        %v9672 = vadd.f32 %v9491, %v9571
        %v9673 = vadd.f32 %v9492, %v9573
        %v9674 = vadd.f32 %v9493, %v9575
        %v9675 = vadd.f32 %v9494, %v9577
        %v9676 = vadd.f32 %v9495, %v9579
        %v9677 = vadd.f32 %v9496, %v9581
        %v9678 = vadd.f32 %v9497, %v9583
        %v9679 = vadd.f32 %v9498, %v9585
        %v9680 = vadd.f32 %v9499, %v9587
        %v9681 = vadd.f32 %v9500, %v9589
        %v9682 = vadd.f32 %v9501, %v9591
        %v9683 = vadd.f32 %v9502, %v9593
        %v9684 = vadd.f32 %v9503, %v9595
        %v9685 = vadd.f32 %v9504, %v9597
        %v9686 = vadd.f32 %v9505, %v9599
        %v9687 = vadd.f32 %v9506, %v9601
        %v9688 = vadd.f32 %v9507, %v9603
        %v9689 = vadd.f32 %v9508, %v9605
        %v9690 = vadd.f32 %v9509, %v9607
        %v9691 = vadd.f32 %v9510, %v9609
        %v9692 = vadd.f32 %v9511, %v9611
        %v9693 = vadd.f32 %v9512, %v9613
        %v9694 = vadd.f32 %v9513, %v9615
        %v9695 = vadd.f32 %v9514, %v9617
        %v9696 = vadd.f32 %v9515, %v9619
        %v9697 = vadd.f32 %v9516, %v9621
        %v9698 = vadd.f32 %v9517, %v9623
        %v9699 = vadd.f32 %v9518, %v9625
        %v9700 = vadd.f32 %v9519, %v9627
        %v9701 = vadd.f32 %v9520, %v9626
        %v9739 = vcombine.high %v9665, %v9665
        %v9741 = vunpack.c.l.s4 1983009808
        %v9742 = vunpack.c.0.s8 %v9741
        %v9743 = vlaneseq
        %v9744 = vshrl.u32 %v9743, 7
        %v9745 = vsub.s32 %v9742, %v9744
        %v9746 = vrot.slane %v9665, %v9745
        %v9748 = vunpack.c.l.s4 1983009808
        %v9749 = vunpack.c.0.s8 %v9748
        %v9750 = vlaneseq
        %v9751 = vshrl.u32 %v9750, 7
        %v9752 = vsub.s32 %v9749, %v9751
        %v9753 = vrot.slane %v9739, %v9752
        %v9754 = vcombine.high %v9746, %v9746
        %v9755 = vcombine.high %v9753, %v9753
        %v9756 = vcombine.high %v9666, %v9666
        %v9758 = vunpack.c.l.s4 1983009808
        %v9759 = vunpack.c.0.s8 %v9758
        %v9760 = vlaneseq
        %v9761 = vshrl.u32 %v9760, 7
        %v9762 = vsub.s32 %v9759, %v9761
        %v9763 = vrot.slane %v9666, %v9762
        %v9765 = vunpack.c.l.s4 1983009808
        %v9766 = vunpack.c.0.s8 %v9765
        %v9767 = vlaneseq
        %v9768 = vshrl.u32 %v9767, 7
        %v9769 = vsub.s32 %v9766, %v9768
        %v9770 = vrot.slane %v9756, %v9769
        %v9771 = vcombine.high %v9763, %v9763
        %v9772 = vcombine.high %v9770, %v9770
        %v9773 = vcombine.high %v9667, %v9667
        %v9775 = vunpack.c.l.s4 1983009808
        %v9776 = vunpack.c.0.s8 %v9775
        %v9777 = vlaneseq
        %v9778 = vshrl.u32 %v9777, 7
        %v9779 = vsub.s32 %v9776, %v9778
        %v9780 = vrot.slane %v9667, %v9779
        %v9782 = vunpack.c.l.s4 1983009808
        %v9783 = vunpack.c.0.s8 %v9782
        %v9784 = vlaneseq
        %v9785 = vshrl.u32 %v9784, 7
        %v9786 = vsub.s32 %v9783, %v9785
        %v9787 = vrot.slane %v9773, %v9786
        %v9788 = vcombine.high %v9780, %v9780
        %v9789 = vcombine.high %v9787, %v9787
        %v9790 = vcombine.high %v9668, %v9668
        %v9792 = vunpack.c.l.s4 1983009808
        %v9793 = vunpack.c.0.s8 %v9792
        %v9794 = vlaneseq
        %v9795 = vshrl.u32 %v9794, 7
        %v9796 = vsub.s32 %v9793, %v9795
        %v9797 = vrot.slane %v9668, %v9796
        %v9799 = vunpack.c.l.s4 1983009808
        %v9800 = vunpack.c.0.s8 %v9799
        %v9801 = vlaneseq
        %v9802 = vshrl.u32 %v9801, 7
        %v9803 = vsub.s32 %v9800, %v9802
        %v9804 = vrot.slane %v9790, %v9803
        %v9805 = vcombine.high %v9797, %v9797
        %v9806 = vcombine.high %v9804, %v9804
        %v9807 = vcombine.high %v9669, %v9669
        %v9809 = vunpack.c.l.s4 1983009808
        %v9810 = vunpack.c.0.s8 %v9809
        %v9811 = vlaneseq
        %v9812 = vshrl.u32 %v9811, 7
        %v9813 = vsub.s32 %v9810, %v9812
        %v9814 = vrot.slane %v9669, %v9813
        %v9816 = vunpack.c.l.s4 1983009808
        %v9817 = vunpack.c.0.s8 %v9816
        %v9818 = vlaneseq
        %v9819 = vshrl.u32 %v9818, 7
        %v9820 = vsub.s32 %v9817, %v9819
        %v9821 = vrot.slane %v9807, %v9820
        %v9822 = vcombine.high %v9814, %v9814
        %v9823 = vcombine.high %v9821, %v9821
        %v9824 = vcombine.high %v9670, %v9670
        %v9826 = vunpack.c.l.s4 1983009808
        %v9827 = vunpack.c.0.s8 %v9826
        %v9828 = vlaneseq
        %v9829 = vshrl.u32 %v9828, 7
        %v9830 = vsub.s32 %v9827, %v9829
        %v9831 = vrot.slane %v9670, %v9830
        %v9833 = vunpack.c.l.s4 1983009808
        %v9834 = vunpack.c.0.s8 %v9833
        %v9835 = vlaneseq
        %v9836 = vshrl.u32 %v9835, 7
        %v9837 = vsub.s32 %v9834, %v9836
        %v9838 = vrot.slane %v9824, %v9837
        %v9839 = vcombine.high %v9831, %v9831
        %v9840 = vcombine.high %v9838, %v9838
        %v9841 = vcombine.high %v9671, %v9671
        %v9843 = vunpack.c.l.s4 1983009808
        %v9844 = vunpack.c.0.s8 %v9843
        %v9845 = vlaneseq
        %v9846 = vshrl.u32 %v9845, 7
        %v9847 = vsub.s32 %v9844, %v9846
        %v9848 = vrot.slane %v9671, %v9847
        %v9850 = vunpack.c.l.s4 1983009808
        %v9851 = vunpack.c.0.s8 %v9850
        %v9852 = vlaneseq
        %v9853 = vshrl.u32 %v9852, 7
        %v9854 = vsub.s32 %v9851, %v9853
        %v9855 = vrot.slane %v9841, %v9854
        %v9856 = vcombine.high %v9848, %v9848
        %v9857 = vcombine.high %v9855, %v9855
        %v9858 = vcombine.high %v9672, %v9672
        %v9860 = vunpack.c.l.s4 1983009808
        %v9861 = vunpack.c.0.s8 %v9860
        %v9862 = vlaneseq
        %v9863 = vshrl.u32 %v9862, 7
        %v9864 = vsub.s32 %v9861, %v9863
        %v9865 = vrot.slane %v9672, %v9864
        %v9867 = vunpack.c.l.s4 1983009808
        %v9868 = vunpack.c.0.s8 %v9867
        %v9869 = vlaneseq
        %v9870 = vshrl.u32 %v9869, 7
        %v9871 = vsub.s32 %v9868, %v9870
        %v9872 = vrot.slane %v9858, %v9871
        %v9873 = vcombine.high %v9865, %v9865
        %v9874 = vcombine.high %v9872, %v9872
        %v9875 = vcombine.high %v9673, %v9673
        %v9877 = vunpack.c.l.s4 1983009808
        %v9878 = vunpack.c.0.s8 %v9877
        %v9879 = vlaneseq
        %v9880 = vshrl.u32 %v9879, 7
        %v9881 = vsub.s32 %v9878, %v9880
        %v9882 = vrot.slane %v9673, %v9881
        %v9884 = vunpack.c.l.s4 1983009808
        %v9885 = vunpack.c.0.s8 %v9884
        %v9886 = vlaneseq
        %v9887 = vshrl.u32 %v9886, 7
        %v9888 = vsub.s32 %v9885, %v9887
        %v9889 = vrot.slane %v9875, %v9888
        %v9890 = vcombine.high %v9882, %v9882
        %v9891 = vcombine.high %v9889, %v9889
        %v9892 = vcombine.high %v9674, %v9674
        %v9894 = vunpack.c.l.s4 1983009808
        %v9895 = vunpack.c.0.s8 %v9894
        %v9896 = vlaneseq
        %v9897 = vshrl.u32 %v9896, 7
        %v9898 = vsub.s32 %v9895, %v9897
        %v9899 = vrot.slane %v9674, %v9898
        %v9901 = vunpack.c.l.s4 1983009808
        %v9902 = vunpack.c.0.s8 %v9901
        %v9903 = vlaneseq
        %v9904 = vshrl.u32 %v9903, 7
        %v9905 = vsub.s32 %v9902, %v9904
        %v9906 = vrot.slane %v9892, %v9905
        %v9907 = vcombine.high %v9899, %v9899
        %v9908 = vcombine.high %v9906, %v9906
        %v9909 = vcombine.high %v9675, %v9675
        %v9911 = vunpack.c.l.s4 1983009808
        %v9912 = vunpack.c.0.s8 %v9911
        %v9913 = vlaneseq
        %v9914 = vshrl.u32 %v9913, 7
        %v9915 = vsub.s32 %v9912, %v9914
        %v9916 = vrot.slane %v9675, %v9915
        %v9918 = vunpack.c.l.s4 1983009808
        %v9919 = vunpack.c.0.s8 %v9918
        %v9920 = vlaneseq
        %v9921 = vshrl.u32 %v9920, 7
        %v9922 = vsub.s32 %v9919, %v9921
        %v9923 = vrot.slane %v9909, %v9922
        %v9924 = vcombine.high %v9916, %v9916
        %v9925 = vcombine.high %v9923, %v9923
        %v9926 = vcombine.high %v9676, %v9676
        %v9928 = vunpack.c.l.s4 1983009808
        %v9929 = vunpack.c.0.s8 %v9928
        %v9930 = vlaneseq
        %v9931 = vshrl.u32 %v9930, 7
        %v9932 = vsub.s32 %v9929, %v9931
        %v9933 = vrot.slane %v9676, %v9932
        %v9935 = vunpack.c.l.s4 1983009808
        %v9936 = vunpack.c.0.s8 %v9935
        %v9937 = vlaneseq
        %v9938 = vshrl.u32 %v9937, 7
        %v9939 = vsub.s32 %v9936, %v9938
        %v9940 = vrot.slane %v9926, %v9939
        %v9941 = vcombine.high %v9933, %v9933
        %v9942 = vcombine.high %v9940, %v9940
        %v9943 = vcombine.high %v9677, %v9677
        %v9945 = vunpack.c.l.s4 1983009808
        %v9946 = vunpack.c.0.s8 %v9945
        %v9947 = vlaneseq
        %v9948 = vshrl.u32 %v9947, 7
        %v9949 = vsub.s32 %v9946, %v9948
        %v9950 = vrot.slane %v9677, %v9949
        %v9952 = vunpack.c.l.s4 1983009808
        %v9953 = vunpack.c.0.s8 %v9952
        %v9954 = vlaneseq
        %v9955 = vshrl.u32 %v9954, 7
        %v9956 = vsub.s32 %v9953, %v9955
        %v9957 = vrot.slane %v9943, %v9956
        %v9958 = vcombine.high %v9950, %v9950
        %v9959 = vcombine.high %v9957, %v9957
        %v9960 = vcombine.high %v9678, %v9678
        %v9962 = vunpack.c.l.s4 1983009808
        %v9963 = vunpack.c.0.s8 %v9962
        %v9964 = vlaneseq
        %v9965 = vshrl.u32 %v9964, 7
        %v9966 = vsub.s32 %v9963, %v9965
        %v9967 = vrot.slane %v9678, %v9966
        %v9969 = vunpack.c.l.s4 1983009808
        %v9970 = vunpack.c.0.s8 %v9969
        %v9971 = vlaneseq
        %v9972 = vshrl.u32 %v9971, 7
        %v9973 = vsub.s32 %v9970, %v9972
        %v9974 = vrot.slane %v9960, %v9973
        %v9975 = vcombine.high %v9967, %v9967
        %v9976 = vcombine.high %v9974, %v9974
        %v9977 = vcombine.high %v9679, %v9679
        %v9979 = vunpack.c.l.s4 1983009808
        %v9980 = vunpack.c.0.s8 %v9979
        %v9981 = vlaneseq
        %v9982 = vshrl.u32 %v9981, 7
        %v9983 = vsub.s32 %v9980, %v9982
        %v9984 = vrot.slane %v9679, %v9983
        %v9986 = vunpack.c.l.s4 1983009808
        %v9987 = vunpack.c.0.s8 %v9986
        %v9988 = vlaneseq
        %v9989 = vshrl.u32 %v9988, 7
        %v9990 = vsub.s32 %v9987, %v9989
        %v9991 = vrot.slane %v9977, %v9990
        %v9992 = vcombine.high %v9984, %v9984
        %v9993 = vcombine.high %v9991, %v9991
        %v9994 = vcombine.high %v9680, %v9680
        %v9996 = vunpack.c.l.s4 1983009808
        %v9997 = vunpack.c.0.s8 %v9996
        %v9998 = vlaneseq
        %v9999 = vshrl.u32 %v9998, 7
        %v10000 = vsub.s32 %v9997, %v9999
        %v10001 = vrot.slane %v9680, %v10000
        %v10003 = vunpack.c.l.s4 1983009808
        %v10004 = vunpack.c.0.s8 %v10003
        %v10005 = vlaneseq
        %v10006 = vshrl.u32 %v10005, 7
        %v10007 = vsub.s32 %v10004, %v10006
        %v10008 = vrot.slane %v9994, %v10007
        %v10009 = vcombine.high %v10001, %v10001
        %v10010 = vcombine.high %v10008, %v10008
        %v10011 = vcombine.high %v9681, %v9681
        %v10013 = vunpack.c.l.s4 1983009808
        %v10014 = vunpack.c.0.s8 %v10013
        %v10015 = vlaneseq
        %v10016 = vshrl.u32 %v10015, 7
        %v10017 = vsub.s32 %v10014, %v10016
        %v10018 = vrot.slane %v9681, %v10017
        %v10020 = vunpack.c.l.s4 1983009808
        %v10021 = vunpack.c.0.s8 %v10020
        %v10022 = vlaneseq
        %v10023 = vshrl.u32 %v10022, 7
        %v10024 = vsub.s32 %v10021, %v10023
        %v10025 = vrot.slane %v10011, %v10024
        %v10026 = vcombine.high %v10018, %v10018
        %v10027 = vcombine.high %v10025, %v10025
        %v10028 = vcombine.high %v9682, %v9682
        %v10030 = vunpack.c.l.s4 1983009808
        %v10031 = vunpack.c.0.s8 %v10030
        %v10032 = vlaneseq
        %v10033 = vshrl.u32 %v10032, 7
        %v10034 = vsub.s32 %v10031, %v10033
        %v10035 = vrot.slane %v9682, %v10034
        %v10037 = vunpack.c.l.s4 1983009808
        %v10038 = vunpack.c.0.s8 %v10037
        %v10039 = vlaneseq
        %v10040 = vshrl.u32 %v10039, 7
        %v10041 = vsub.s32 %v10038, %v10040
        %v10042 = vrot.slane %v10028, %v10041
        %v10043 = vcombine.high %v10035, %v10035
        %v10044 = vcombine.high %v10042, %v10042
        %v10045 = vcombine.high %v9683, %v9683
        %v10047 = vunpack.c.l.s4 1983009808
        %v10048 = vunpack.c.0.s8 %v10047
        %v10049 = vlaneseq
        %v10050 = vshrl.u32 %v10049, 7
        %v10051 = vsub.s32 %v10048, %v10050
        %v10052 = vrot.slane %v9683, %v10051
        %v10054 = vunpack.c.l.s4 1983009808
        %v10055 = vunpack.c.0.s8 %v10054
        %v10056 = vlaneseq
        %v10057 = vshrl.u32 %v10056, 7
        %v10058 = vsub.s32 %v10055, %v10057
        %v10059 = vrot.slane %v10045, %v10058
        %v10060 = vcombine.high %v10052, %v10052
        %v10061 = vcombine.high %v10059, %v10059
        %v10062 = vcombine.high %v9684, %v9684
        %v10064 = vunpack.c.l.s4 1983009808
        %v10065 = vunpack.c.0.s8 %v10064
        %v10066 = vlaneseq
        %v10067 = vshrl.u32 %v10066, 7
        %v10068 = vsub.s32 %v10065, %v10067
        %v10069 = vrot.slane %v9684, %v10068
        %v10071 = vunpack.c.l.s4 1983009808
        %v10072 = vunpack.c.0.s8 %v10071
        %v10073 = vlaneseq
        %v10074 = vshrl.u32 %v10073, 7
        %v10075 = vsub.s32 %v10072, %v10074
        %v10076 = vrot.slane %v10062, %v10075
        %v10077 = vcombine.high %v10069, %v10069
        %v10078 = vcombine.high %v10076, %v10076
        %v10079 = vcombine.high %v9685, %v9685
        %v10081 = vunpack.c.l.s4 1983009808
        %v10082 = vunpack.c.0.s8 %v10081
        %v10083 = vlaneseq
        %v10084 = vshrl.u32 %v10083, 7
        %v10085 = vsub.s32 %v10082, %v10084
        %v10086 = vrot.slane %v9685, %v10085
        %v10088 = vunpack.c.l.s4 1983009808
        %v10089 = vunpack.c.0.s8 %v10088
        %v10090 = vlaneseq
        %v10091 = vshrl.u32 %v10090, 7
        %v10092 = vsub.s32 %v10089, %v10091
        %v10093 = vrot.slane %v10079, %v10092
        %v10094 = vcombine.high %v10086, %v10086
        %v10095 = vcombine.high %v10093, %v10093
        %v10096 = vcombine.high %v9686, %v9686
        %v10098 = vunpack.c.l.s4 1983009808
        %v10099 = vunpack.c.0.s8 %v10098
        %v10100 = vlaneseq
        %v10101 = vshrl.u32 %v10100, 7
        %v10102 = vsub.s32 %v10099, %v10101
        %v10103 = vrot.slane %v9686, %v10102
        %v10105 = vunpack.c.l.s4 1983009808
        %v10106 = vunpack.c.0.s8 %v10105
        %v10107 = vlaneseq
        %v10108 = vshrl.u32 %v10107, 7
        %v10109 = vsub.s32 %v10106, %v10108
        %v10110 = vrot.slane %v10096, %v10109
        %v10111 = vcombine.high %v10103, %v10103
        %v10112 = vcombine.high %v10110, %v10110
        %v10113 = vcombine.high %v9687, %v9687
        %v10115 = vunpack.c.l.s4 1983009808
        %v10116 = vunpack.c.0.s8 %v10115
        %v10117 = vlaneseq
        %v10118 = vshrl.u32 %v10117, 7
        %v10119 = vsub.s32 %v10116, %v10118
        %v10120 = vrot.slane %v9687, %v10119
        %v10122 = vunpack.c.l.s4 1983009808
        %v10123 = vunpack.c.0.s8 %v10122
        %v10124 = vlaneseq
        %v10125 = vshrl.u32 %v10124, 7
        %v10126 = vsub.s32 %v10123, %v10125
        %v10127 = vrot.slane %v10113, %v10126
        %v10128 = vcombine.high %v10120, %v10120
        %v10129 = vcombine.high %v10127, %v10127
        %v10130 = vcombine.high %v9688, %v9688
        %v10132 = vunpack.c.l.s4 1983009808
        %v10133 = vunpack.c.0.s8 %v10132
        %v10134 = vlaneseq
        %v10135 = vshrl.u32 %v10134, 7
        %v10136 = vsub.s32 %v10133, %v10135
        %v10137 = vrot.slane %v9688, %v10136
        %v10139 = vunpack.c.l.s4 1983009808
        %v10140 = vunpack.c.0.s8 %v10139
        %v10141 = vlaneseq
        %v10142 = vshrl.u32 %v10141, 7
        %v10143 = vsub.s32 %v10140, %v10142
        %v10144 = vrot.slane %v10130, %v10143
        %v10145 = vcombine.high %v10137, %v10137
        %v10146 = vcombine.high %v10144, %v10144
        %v10147 = vcombine.high %v9689, %v9689
        %v10149 = vunpack.c.l.s4 1983009808
        %v10150 = vunpack.c.0.s8 %v10149
        %v10151 = vlaneseq
        %v10152 = vshrl.u32 %v10151, 7
        %v10153 = vsub.s32 %v10150, %v10152
        %v10154 = vrot.slane %v9689, %v10153
        %v10156 = vunpack.c.l.s4 1983009808
        %v10157 = vunpack.c.0.s8 %v10156
        %v10158 = vlaneseq
        %v10159 = vshrl.u32 %v10158, 7
        %v10160 = vsub.s32 %v10157, %v10159
        %v10161 = vrot.slane %v10147, %v10160
        %v10162 = vcombine.high %v10154, %v10154
        %v10163 = vcombine.high %v10161, %v10161
        %v10164 = vcombine.high %v9690, %v9690
        %v10166 = vunpack.c.l.s4 1983009808
        %v10167 = vunpack.c.0.s8 %v10166
        %v10168 = vlaneseq
        %v10169 = vshrl.u32 %v10168, 7
        %v10170 = vsub.s32 %v10167, %v10169
        %v10171 = vrot.slane %v9690, %v10170
        %v10173 = vunpack.c.l.s4 1983009808
        %v10174 = vunpack.c.0.s8 %v10173
        %v10175 = vlaneseq
        %v10176 = vshrl.u32 %v10175, 7
        %v10177 = vsub.s32 %v10174, %v10176
        %v10178 = vrot.slane %v10164, %v10177
        %v10179 = vcombine.high %v10171, %v10171
        %v10180 = vcombine.high %v10178, %v10178
        %v10181 = vcombine.high %v9691, %v9691
        %v10183 = vunpack.c.l.s4 1983009808
        %v10184 = vunpack.c.0.s8 %v10183
        %v10185 = vlaneseq
        %v10186 = vshrl.u32 %v10185, 7
        %v10187 = vsub.s32 %v10184, %v10186
        %v10188 = vrot.slane %v9691, %v10187
        %v10190 = vunpack.c.l.s4 1983009808
        %v10191 = vunpack.c.0.s8 %v10190
        %v10192 = vlaneseq
        %v10193 = vshrl.u32 %v10192, 7
        %v10194 = vsub.s32 %v10191, %v10193
        %v10195 = vrot.slane %v10181, %v10194
        %v10196 = vcombine.high %v10188, %v10188
        %v10197 = vcombine.high %v10195, %v10195
        %v10198 = vcombine.high %v9692, %v9692
        %v10200 = vunpack.c.l.s4 1983009808
        %v10201 = vunpack.c.0.s8 %v10200
        %v10202 = vlaneseq
        %v10203 = vshrl.u32 %v10202, 7
        %v10204 = vsub.s32 %v10201, %v10203
        %v10205 = vrot.slane %v9692, %v10204
        %v10207 = vunpack.c.l.s4 1983009808
        %v10208 = vunpack.c.0.s8 %v10207
        %v10209 = vlaneseq
        %v10210 = vshrl.u32 %v10209, 7
        %v10211 = vsub.s32 %v10208, %v10210
        %v10212 = vrot.slane %v10198, %v10211
        %v10213 = vcombine.high %v10205, %v10205
        %v10214 = vcombine.high %v10212, %v10212
        %v10215 = vcombine.high %v9693, %v9693
        %v10217 = vunpack.c.l.s4 1983009808
        %v10218 = vunpack.c.0.s8 %v10217
        %v10219 = vlaneseq
        %v10220 = vshrl.u32 %v10219, 7
        %v10221 = vsub.s32 %v10218, %v10220
        %v10222 = vrot.slane %v9693, %v10221
        %v10224 = vunpack.c.l.s4 1983009808
        %v10225 = vunpack.c.0.s8 %v10224
        %v10226 = vlaneseq
        %v10227 = vshrl.u32 %v10226, 7
        %v10228 = vsub.s32 %v10225, %v10227
        %v10229 = vrot.slane %v10215, %v10228
        %v10230 = vcombine.high %v10222, %v10222
        %v10231 = vcombine.high %v10229, %v10229
        %v10232 = vcombine.high %v9694, %v9694
        %v10234 = vunpack.c.l.s4 1983009808
        %v10235 = vunpack.c.0.s8 %v10234
        %v10236 = vlaneseq
        %v10237 = vshrl.u32 %v10236, 7
        %v10238 = vsub.s32 %v10235, %v10237
        %v10239 = vrot.slane %v9694, %v10238
        %v10241 = vunpack.c.l.s4 1983009808
        %v10242 = vunpack.c.0.s8 %v10241
        %v10243 = vlaneseq
        %v10244 = vshrl.u32 %v10243, 7
        %v10245 = vsub.s32 %v10242, %v10244
        %v10246 = vrot.slane %v10232, %v10245
        %v10247 = vcombine.high %v10239, %v10239
        %v10248 = vcombine.high %v10246, %v10246
        %v10249 = vcombine.high %v9695, %v9695
        %v10251 = vunpack.c.l.s4 1983009808
        %v10252 = vunpack.c.0.s8 %v10251
        %v10253 = vlaneseq
        %v10254 = vshrl.u32 %v10253, 7
        %v10255 = vsub.s32 %v10252, %v10254
        %v10256 = vrot.slane %v9695, %v10255
        %v10258 = vunpack.c.l.s4 1983009808
        %v10259 = vunpack.c.0.s8 %v10258
        %v10260 = vlaneseq
        %v10261 = vshrl.u32 %v10260, 7
        %v10262 = vsub.s32 %v10259, %v10261
        %v10263 = vrot.slane %v10249, %v10262
        %v10264 = vcombine.high %v10256, %v10256
        %v10265 = vcombine.high %v10263, %v10263
        %v10266 = vcombine.high %v9696, %v9696
        %v10268 = vunpack.c.l.s4 1983009808
        %v10269 = vunpack.c.0.s8 %v10268
        %v10270 = vlaneseq
        %v10271 = vshrl.u32 %v10270, 7
        %v10272 = vsub.s32 %v10269, %v10271
        %v10273 = vrot.slane %v9696, %v10272
        %v10275 = vunpack.c.l.s4 1983009808
        %v10276 = vunpack.c.0.s8 %v10275
        %v10277 = vlaneseq
        %v10278 = vshrl.u32 %v10277, 7
        %v10279 = vsub.s32 %v10276, %v10278
        %v10280 = vrot.slane %v10266, %v10279
        %v10281 = vcombine.high %v10273, %v10273
        %v10282 = vcombine.high %v10280, %v10280
        %v10283 = vcombine.high %v9697, %v9697
        %v10285 = vunpack.c.l.s4 1983009808
        %v10286 = vunpack.c.0.s8 %v10285
        %v10287 = vlaneseq
        %v10288 = vshrl.u32 %v10287, 7
        %v10289 = vsub.s32 %v10286, %v10288
        %v10290 = vrot.slane %v9697, %v10289
        %v10292 = vunpack.c.l.s4 1983009808
        %v10293 = vunpack.c.0.s8 %v10292
        %v10294 = vlaneseq
        %v10295 = vshrl.u32 %v10294, 7
        %v10296 = vsub.s32 %v10293, %v10295
        %v10297 = vrot.slane %v10283, %v10296
        %v10298 = vcombine.high %v10290, %v10290
        %v10299 = vcombine.high %v10297, %v10297
        %v10300 = vcombine.high %v9698, %v9698
        %v10302 = vunpack.c.l.s4 1983009808
        %v10303 = vunpack.c.0.s8 %v10302
        %v10304 = vlaneseq
        %v10305 = vshrl.u32 %v10304, 7
        %v10306 = vsub.s32 %v10303, %v10305
        %v10307 = vrot.slane %v9698, %v10306
        %v10309 = vunpack.c.l.s4 1983009808
        %v10310 = vunpack.c.0.s8 %v10309
        %v10311 = vlaneseq
        %v10312 = vshrl.u32 %v10311, 7
        %v10313 = vsub.s32 %v10310, %v10312
        %v10314 = vrot.slane %v10300, %v10313
        %v10315 = vcombine.high %v10307, %v10307
        %v10316 = vcombine.high %v10314, %v10314
        %v10317 = vcombine.high %v9699, %v9699
        %v10319 = vunpack.c.l.s4 1983009808
        %v10320 = vunpack.c.0.s8 %v10319
        %v10321 = vlaneseq
        %v10322 = vshrl.u32 %v10321, 7
        %v10323 = vsub.s32 %v10320, %v10322
        %v10324 = vrot.slane %v9699, %v10323
        %v10326 = vunpack.c.l.s4 1983009808
        %v10327 = vunpack.c.0.s8 %v10326
        %v10328 = vlaneseq
        %v10329 = vshrl.u32 %v10328, 7
        %v10330 = vsub.s32 %v10327, %v10329
        %v10331 = vrot.slane %v10317, %v10330
        %v10332 = vcombine.high %v10324, %v10324
        %v10333 = vcombine.high %v10331, %v10331
        %v10334 = vcombine.high %v9700, %v9700
        %v10336 = vunpack.c.l.s4 1983009808
        %v10337 = vunpack.c.0.s8 %v10336
        %v10338 = vlaneseq
        %v10339 = vshrl.u32 %v10338, 7
        %v10340 = vsub.s32 %v10337, %v10339
        %v10341 = vrot.slane %v9700, %v10340
        %v10343 = vunpack.c.l.s4 1983009808
        %v10344 = vunpack.c.0.s8 %v10343
        %v10345 = vlaneseq
        %v10346 = vshrl.u32 %v10345, 7
        %v10347 = vsub.s32 %v10344, %v10346
        %v10348 = vrot.slane %v10334, %v10347
        %v10349 = vcombine.high %v10341, %v10341
        %v10350 = vcombine.high %v10348, %v10348
        %v10352 = vunpack.c.l.s4 1983009808
        %v10353 = vunpack.c.0.s8 %v10352
        %v10354 = vlaneseq
        %v10355 = vshrl.u32 %v10354, 7
        %v10356 = vsub.s32 %v10353, %v10355
        %v10357 = vrot.slane %v9701, %v10356
        %vm10358 = vcmask 1040384
        %vm10359 = vcmask 1042434
        %vm10360 = vmor %vm10358, %vm10359
        %vm10361 = vcmask 1044484
        %vm10362 = vmor %vm10360, %vm10361
        %vm10363 = vcmask 1046534
        %vm10364 = vmor %vm10362, %vm10363
        %v10365 = vrot.slane %v9754, 7
        %v10366 = vrot.slane %v10365, 2
        %v10367 = vrot.slane %v9753, 7
        %v10368 = vsel %vm10364, %v10366, %v10367
        %v10369 = vrot.slane %v10367, 2
        %v10370 = vrot.slane %v9755, 7
        %v10371 = vsel %vm10364, %v10369, %v10370
        %v10372 = vrot.slane %v10370, 2
        %v10373 = vrot.slane %v9763, 7
        %v10374 = vsel %vm10364, %v10372, %v10373
        %v10375 = vrot.slane %v10373, 2
        %v10376 = vrot.slane %v9771, 7
        %v10377 = vsel %vm10364, %v10375, %v10376
        %v10378 = vrot.slane %v10376, 2
        %v10379 = vrot.slane %v9770, 7
        %v10380 = vsel %vm10364, %v10378, %v10379
        %v10381 = vrot.slane %v10379, 2
        %v10382 = vrot.slane %v9772, 7
        %v10383 = vsel %vm10364, %v10381, %v10382
        %v10384 = vrot.slane %v10382, 2
        %v10385 = vrot.slane %v9780, 7
        %v10386 = vsel %vm10364, %v10384, %v10385
        %v10387 = vrot.slane %v10385, 2
        %v10388 = vrot.slane %v9788, 7
        %v10389 = vsel %vm10364, %v10387, %v10388
        %v10390 = vrot.slane %v9787, 7
        %v10391 = vrot.slane %v10390, 2
        %v10392 = vrot.slane %v9789, 7
        %v10393 = vsel %vm10364, %v10391, %v10392
        %v10394 = vrot.slane %v10392, 2
        %v10395 = vrot.slane %v9797, 7
        %v10396 = vsel %vm10364, %v10394, %v10395
        %v10397 = vrot.slane %v10395, 2
        %v10398 = vrot.slane %v9805, 7
        %v10399 = vsel %vm10364, %v10397, %v10398
        %v10400 = vrot.slane %v10398, 2
        %v10401 = vrot.slane %v9804, 7
        %v10402 = vsel %vm10364, %v10400, %v10401
        %v10403 = vrot.slane %v10401, 2
        %v10404 = vrot.slane %v9806, 7
        %v10405 = vsel %vm10364, %v10403, %v10404
        %v10406 = vrot.slane %v10404, 2
        %v10407 = vrot.slane %v9814, 7
        %v10408 = vsel %vm10364, %v10406, %v10407
        %v10409 = vrot.slane %v10407, 2
        %v10410 = vrot.slane %v9822, 7
        %v10411 = vsel %vm10364, %v10409, %v10410
        %v10412 = vrot.slane %v10410, 2
        %v10413 = vrot.slane %v9821, 7
        %v10414 = vsel %vm10364, %v10412, %v10413
        %v10415 = vrot.slane %v9823, 7
        %v10416 = vrot.slane %v10415, 2
        %v10417 = vrot.slane %v9831, 7
        %v10418 = vsel %vm10364, %v10416, %v10417
        %v10419 = vrot.slane %v10417, 2
        %v10420 = vrot.slane %v9839, 7
        %v10421 = vsel %vm10364, %v10419, %v10420
        %v10422 = vrot.slane %v10420, 2
        %v10423 = vrot.slane %v9838, 7
        %v10424 = vsel %vm10364, %v10422, %v10423
        %v10425 = vrot.slane %v10423, 2
        %v10426 = vrot.slane %v9840, 7
        %v10427 = vsel %vm10364, %v10425, %v10426
        %v10428 = vrot.slane %v10426, 2
        %v10429 = vrot.slane %v9848, 7
        %v10430 = vsel %vm10364, %v10428, %v10429
        %v10431 = vrot.slane %v10429, 2
        %v10432 = vrot.slane %v9856, 7
        %v10433 = vsel %vm10364, %v10431, %v10432
        %v10434 = vrot.slane %v10432, 2
        %v10435 = vrot.slane %v9855, 7
        %v10436 = vsel %vm10364, %v10434, %v10435
        %v10437 = vrot.slane %v10435, 2
        %v10438 = vrot.slane %v9857, 7
        %v10439 = vsel %vm10364, %v10437, %v10438
        %v10440 = vrot.slane %v9865, 7
        %v10441 = vrot.slane %v10440, 2
        %v10442 = vrot.slane %v9873, 7
        %v10443 = vsel %vm10364, %v10441, %v10442
        %v10444 = vrot.slane %v10442, 2
        %v10445 = vrot.slane %v9872, 7
        %v10446 = vsel %vm10364, %v10444, %v10445
        %v10447 = vrot.slane %v10445, 2
        %v10448 = vrot.slane %v9874, 7
        %v10449 = vsel %vm10364, %v10447, %v10448
        %v10450 = vrot.slane %v10448, 2
        %v10451 = vrot.slane %v9882, 7
        %v10452 = vsel %vm10364, %v10450, %v10451
        %v10453 = vrot.slane %v10451, 2
        %v10454 = vrot.slane %v9890, 7
        %v10455 = vsel %vm10364, %v10453, %v10454
        %v10456 = vrot.slane %v10454, 2
        %v10457 = vrot.slane %v9889, 7
        %v10458 = vsel %vm10364, %v10456, %v10457
        %v10459 = vrot.slane %v10457, 2
        %v10460 = vrot.slane %v9891, 7
        %v10461 = vsel %vm10364, %v10459, %v10460
        %v10462 = vrot.slane %v10460, 2
        %v10463 = vrot.slane %v9899, 7
        %v10464 = vsel %vm10364, %v10462, %v10463
        %v10465 = vrot.slane %v9907, 7
        %v10466 = vrot.slane %v10465, 2
        %v10467 = vrot.slane %v9906, 7
        %v10468 = vsel %vm10364, %v10466, %v10467
        %v10469 = vrot.slane %v10467, 2
        %v10470 = vrot.slane %v9908, 7
        %v10471 = vsel %vm10364, %v10469, %v10470
        %v10472 = vrot.slane %v10470, 2
        %v10473 = vrot.slane %v9916, 7
        %v10474 = vsel %vm10364, %v10472, %v10473
        %v10475 = vrot.slane %v10473, 2
        %v10476 = vrot.slane %v9924, 7
        %v10477 = vsel %vm10364, %v10475, %v10476
        %v10478 = vrot.slane %v10476, 2
        %v10479 = vrot.slane %v9923, 7
        %v10480 = vsel %vm10364, %v10478, %v10479
        %v10481 = vrot.slane %v10479, 2
        %v10482 = vrot.slane %v9925, 7
        %v10483 = vsel %vm10364, %v10481, %v10482
        %v10484 = vrot.slane %v10482, 2
        %v10485 = vrot.slane %v9933, 7
        %v10486 = vsel %vm10364, %v10484, %v10485
        %v10487 = vrot.slane %v10485, 2
        %v10488 = vrot.slane %v9941, 7
        %v10489 = vsel %vm10364, %v10487, %v10488
        %v10490 = vrot.slane %v9940, 7
        %v10491 = vrot.slane %v10490, 2
        %v10492 = vrot.slane %v9942, 7
        %v10493 = vsel %vm10364, %v10491, %v10492
        %v10494 = vrot.slane %v10492, 2
        %v10495 = vrot.slane %v9950, 7
        %v10496 = vsel %vm10364, %v10494, %v10495
        %v10497 = vrot.slane %v10495, 2
        %v10498 = vrot.slane %v9958, 7
        %v10499 = vsel %vm10364, %v10497, %v10498
        %v10500 = vrot.slane %v10498, 2
        %v10501 = vrot.slane %v9957, 7
        %v10502 = vsel %vm10364, %v10500, %v10501
        %v10503 = vrot.slane %v10501, 2
        %v10504 = vrot.slane %v9959, 7
        %v10505 = vsel %vm10364, %v10503, %v10504
        %v10506 = vrot.slane %v10504, 2
        %v10507 = vrot.slane %v9967, 7
        %v10508 = vsel %vm10364, %v10506, %v10507
        %v10509 = vrot.slane %v10507, 2
        %v10510 = vrot.slane %v9975, 7
        %v10511 = vsel %vm10364, %v10509, %v10510
        %v10512 = vrot.slane %v10510, 2
        %v10513 = vrot.slane %v9974, 7
        %v10514 = vsel %vm10364, %v10512, %v10513
        %v10515 = vrot.slane %v9976, 7
        %v10516 = vrot.slane %v10515, 2
        %v10517 = vrot.slane %v9984, 7
        %v10518 = vsel %vm10364, %v10516, %v10517
        %v10519 = vrot.slane %v10517, 2
        %v10520 = vrot.slane %v9992, 7
        %v10521 = vsel %vm10364, %v10519, %v10520
        %v10522 = vrot.slane %v10520, 2
        %v10523 = vrot.slane %v9991, 7
        %v10524 = vsel %vm10364, %v10522, %v10523
        %v10525 = vrot.slane %v10523, 2
        %v10526 = vrot.slane %v9993, 7
        %v10527 = vsel %vm10364, %v10525, %v10526
        %v10528 = vrot.slane %v10526, 2
        %v10529 = vrot.slane %v10001, 7
        %v10530 = vsel %vm10364, %v10528, %v10529
        %v10531 = vrot.slane %v10529, 2
        %v10532 = vrot.slane %v10009, 7
        %v10533 = vsel %vm10364, %v10531, %v10532
        %v10534 = vrot.slane %v10532, 2
        %v10535 = vrot.slane %v10008, 7
        %v10536 = vsel %vm10364, %v10534, %v10535
        %v10537 = vrot.slane %v10535, 2
        %v10538 = vrot.slane %v10010, 7
        %v10539 = vsel %vm10364, %v10537, %v10538
        %v10540 = vrot.slane %v10018, 7
        %v10541 = vrot.slane %v10540, 2
        %v10542 = vrot.slane %v10026, 7
        %v10543 = vsel %vm10364, %v10541, %v10542
        %v10544 = vrot.slane %v10542, 2
        %v10545 = vrot.slane %v10025, 7
        %v10546 = vsel %vm10364, %v10544, %v10545
        %v10547 = vrot.slane %v10545, 2
        %v10548 = vrot.slane %v10027, 7
        %v10549 = vsel %vm10364, %v10547, %v10548
        %v10550 = vrot.slane %v10548, 2
        %v10551 = vrot.slane %v10035, 7
        %v10552 = vsel %vm10364, %v10550, %v10551
        %v10553 = vrot.slane %v10551, 2
        %v10554 = vrot.slane %v10043, 7
        %v10555 = vsel %vm10364, %v10553, %v10554
        %v10556 = vrot.slane %v10554, 2
        %v10557 = vrot.slane %v10042, 7
        %v10558 = vsel %vm10364, %v10556, %v10557
        %v10559 = vrot.slane %v10557, 2
        %v10560 = vrot.slane %v10044, 7
        %v10561 = vsel %vm10364, %v10559, %v10560
        %v10562 = vrot.slane %v10560, 2
        %v10563 = vrot.slane %v10052, 7
        %v10564 = vsel %vm10364, %v10562, %v10563
        %v10565 = vrot.slane %v10060, 7
        %v10566 = vrot.slane %v10565, 2
        %v10567 = vrot.slane %v10059, 7
        %v10568 = vsel %vm10364, %v10566, %v10567
        %v10569 = vrot.slane %v10567, 2
        %v10570 = vrot.slane %v10061, 7
        %v10571 = vsel %vm10364, %v10569, %v10570
        %v10572 = vrot.slane %v10570, 2
        %v10573 = vrot.slane %v10069, 7
        %v10574 = vsel %vm10364, %v10572, %v10573
        %v10575 = vrot.slane %v10573, 2
        %v10576 = vrot.slane %v10077, 7
        %v10577 = vsel %vm10364, %v10575, %v10576
        %v10578 = vrot.slane %v10576, 2
        %v10579 = vrot.slane %v10076, 7
        %v10580 = vsel %vm10364, %v10578, %v10579
        %v10581 = vrot.slane %v10579, 2
        %v10582 = vrot.slane %v10078, 7
        %v10583 = vsel %vm10364, %v10581, %v10582
        %v10584 = vrot.slane %v10582, 2
        %v10585 = vrot.slane %v10086, 7
        %v10586 = vsel %vm10364, %v10584, %v10585
        %v10587 = vrot.slane %v10585, 2
        %v10588 = vrot.slane %v10094, 7
        %v10589 = vsel %vm10364, %v10587, %v10588
        %v10590 = vrot.slane %v10093, 7
        %v10591 = vrot.slane %v10590, 2
        %v10592 = vrot.slane %v10095, 7
        %v10593 = vsel %vm10364, %v10591, %v10592
        %v10594 = vrot.slane %v10592, 2
        %v10595 = vrot.slane %v10103, 7
        %v10596 = vsel %vm10364, %v10594, %v10595
        %v10597 = vrot.slane %v10595, 2
        %v10598 = vrot.slane %v10111, 7
        %v10599 = vsel %vm10364, %v10597, %v10598
        %v10600 = vrot.slane %v10598, 2
        %v10601 = vrot.slane %v10110, 7
        %v10602 = vsel %vm10364, %v10600, %v10601
        %v10603 = vrot.slane %v10601, 2
        %v10604 = vrot.slane %v10112, 7
        %v10605 = vsel %vm10364, %v10603, %v10604
        %v10606 = vrot.slane %v10604, 2
        %v10607 = vrot.slane %v10120, 7
        %v10608 = vsel %vm10364, %v10606, %v10607
        %v10609 = vrot.slane %v10607, 2
        %v10610 = vrot.slane %v10128, 7
        %v10611 = vsel %vm10364, %v10609, %v10610
        %v10612 = vrot.slane %v10610, 2
        %v10613 = vrot.slane %v10127, 7
        %v10614 = vsel %vm10364, %v10612, %v10613
        %v10615 = vrot.slane %v10129, 7
        %v10616 = vrot.slane %v10615, 2
        %v10617 = vrot.slane %v10137, 7
        %v10618 = vsel %vm10364, %v10616, %v10617
        %v10619 = vrot.slane %v10617, 2
        %v10620 = vrot.slane %v10145, 7
        %v10621 = vsel %vm10364, %v10619, %v10620
        %v10622 = vrot.slane %v10620, 2
        %v10623 = vrot.slane %v10144, 7
        %v10624 = vsel %vm10364, %v10622, %v10623
        %v10625 = vrot.slane %v10623, 2
        %v10626 = vrot.slane %v10146, 7
        %v10627 = vsel %vm10364, %v10625, %v10626
        %v10628 = vrot.slane %v10626, 2
        %v10629 = vrot.slane %v10154, 7
        %v10630 = vsel %vm10364, %v10628, %v10629
        %v10631 = vrot.slane %v10629, 2
        %v10632 = vrot.slane %v10162, 7
        %v10633 = vsel %vm10364, %v10631, %v10632
        %v10634 = vrot.slane %v10632, 2
        %v10635 = vrot.slane %v10161, 7
        %v10636 = vsel %vm10364, %v10634, %v10635
        %v10637 = vrot.slane %v10635, 2
        %v10638 = vrot.slane %v10163, 7
        %v10639 = vsel %vm10364, %v10637, %v10638
        %v10640 = vrot.slane %v10171, 7
        %v10641 = vrot.slane %v10640, 2
        %v10642 = vrot.slane %v10179, 7
        %v10643 = vsel %vm10364, %v10641, %v10642
        %v10644 = vrot.slane %v10642, 2
        %v10645 = vrot.slane %v10178, 7
        %v10646 = vsel %vm10364, %v10644, %v10645
        %v10647 = vrot.slane %v10645, 2
        %v10648 = vrot.slane %v10180, 7
        %v10649 = vsel %vm10364, %v10647, %v10648
        %v10650 = vrot.slane %v10648, 2
        %v10651 = vrot.slane %v10188, 7
        %v10652 = vsel %vm10364, %v10650, %v10651
        %v10653 = vrot.slane %v10651, 2
        %v10654 = vrot.slane %v10196, 7
        %v10655 = vsel %vm10364, %v10653, %v10654
        %v10656 = vrot.slane %v10654, 2
        %v10657 = vrot.slane %v10195, 7
        %v10658 = vsel %vm10364, %v10656, %v10657
        %v10659 = vrot.slane %v10657, 2
        %v10660 = vrot.slane %v10197, 7
        %v10661 = vsel %vm10364, %v10659, %v10660
        %v10662 = vrot.slane %v10660, 2
        %v10663 = vrot.slane %v10205, 7
        %v10664 = vsel %vm10364, %v10662, %v10663
        %v10665 = vrot.slane %v10213, 7
        %v10666 = vrot.slane %v10665, 2
        %v10667 = vrot.slane %v10212, 7
        %v10668 = vsel %vm10364, %v10666, %v10667
        %v10669 = vrot.slane %v10667, 2
        %v10670 = vrot.slane %v10214, 7
        %v10671 = vsel %vm10364, %v10669, %v10670
        %v10672 = vrot.slane %v10670, 2
        %v10673 = vrot.slane %v10222, 7
        %v10674 = vsel %vm10364, %v10672, %v10673
        %v10675 = vrot.slane %v10673, 2
        %v10676 = vrot.slane %v10230, 7
        %v10677 = vsel %vm10364, %v10675, %v10676
        %v10678 = vrot.slane %v10676, 2
        %v10679 = vrot.slane %v10229, 7
        %v10680 = vsel %vm10364, %v10678, %v10679
        %v10681 = vrot.slane %v10679, 2
        %v10682 = vrot.slane %v10231, 7
        %v10683 = vsel %vm10364, %v10681, %v10682
        %v10684 = vrot.slane %v10682, 2
        %v10685 = vrot.slane %v10239, 7
        %v10686 = vsel %vm10364, %v10684, %v10685
        %v10687 = vrot.slane %v10685, 2
        %v10688 = vrot.slane %v10247, 7
        %v10689 = vsel %vm10364, %v10687, %v10688
        %v10690 = vrot.slane %v10246, 7
        %v10691 = vrot.slane %v10690, 2
        %v10692 = vrot.slane %v10248, 7
        %v10693 = vsel %vm10364, %v10691, %v10692
        %v10694 = vrot.slane %v10692, 2
        %v10695 = vrot.slane %v10256, 7
        %v10696 = vsel %vm10364, %v10694, %v10695
        %v10697 = vrot.slane %v10695, 2
        %v10698 = vrot.slane %v10264, 7
        %v10699 = vsel %vm10364, %v10697, %v10698
        %v10700 = vrot.slane %v10698, 2
        %v10701 = vrot.slane %v10263, 7
        %v10702 = vsel %vm10364, %v10700, %v10701
        %v10703 = vrot.slane %v10701, 2
        %v10704 = vrot.slane %v10265, 7
        %v10705 = vsel %vm10364, %v10703, %v10704
        %v10706 = vrot.slane %v10704, 2
        %v10707 = vrot.slane %v10273, 7
        %v10708 = vsel %vm10364, %v10706, %v10707
        %v10709 = vrot.slane %v10707, 2
        %v10710 = vrot.slane %v10281, 7
        %v10711 = vsel %vm10364, %v10709, %v10710
        %v10712 = vrot.slane %v10710, 2
        %v10713 = vrot.slane %v10280, 7
        %v10714 = vsel %vm10364, %v10712, %v10713
        %v10715 = vrot.slane %v10282, 7
        %v10716 = vrot.slane %v10715, 2
        %v10717 = vrot.slane %v10290, 7
        %v10718 = vsel %vm10364, %v10716, %v10717
        %v10719 = vrot.slane %v10717, 2
        %v10720 = vrot.slane %v10298, 7
        %v10721 = vsel %vm10364, %v10719, %v10720
        %v10722 = vrot.slane %v10720, 2
        %v10723 = vrot.slane %v10297, 7
        %v10724 = vsel %vm10364, %v10722, %v10723
        %v10725 = vrot.slane %v10723, 2
        %v10726 = vrot.slane %v10299, 7
        %v10727 = vsel %vm10364, %v10725, %v10726
        %v10728 = vrot.slane %v10726, 2
        %v10729 = vrot.slane %v10307, 7
        %v10730 = vsel %vm10364, %v10728, %v10729
        %v10731 = vrot.slane %v10729, 2
        %v10732 = vrot.slane %v10315, 7
        %v10733 = vsel %vm10364, %v10731, %v10732
        %v10734 = vrot.slane %v10732, 2
        %v10735 = vrot.slane %v10314, 7
        %v10736 = vsel %vm10364, %v10734, %v10735
        %v10737 = vrot.slane %v10735, 2
        %v10738 = vrot.slane %v10316, 7
        %v10739 = vsel %vm10364, %v10737, %v10738
        %v10740 = vrot.slane %v10324, 7
        %v10741 = vrot.slane %v10740, 2
        %v10742 = vrot.slane %v10332, 7
        %v10743 = vsel %vm10364, %v10741, %v10742
        %v10744 = vrot.slane %v10742, 2
        %v10745 = vrot.slane %v10331, 7
        %v10746 = vsel %vm10364, %v10744, %v10745
        %v10747 = vrot.slane %v10745, 2
        %v10748 = vrot.slane %v10333, 7
        %v10749 = vsel %vm10364, %v10747, %v10748
        %v10750 = vrot.slane %v10748, 2
        %v10751 = vrot.slane %v10341, 7
        %v10752 = vsel %vm10364, %v10750, %v10751
        %v10753 = vrot.slane %v10751, 2
        %v10754 = vrot.slane %v10349, 7
        %v10755 = vsel %vm10364, %v10753, %v10754
        %v10756 = vrot.slane %v10754, 2
        %v10757 = vrot.slane %v10348, 7
        %v10758 = vsel %vm10364, %v10756, %v10757
        %v10759 = vrot.slane %v10757, 2
        %v10760 = vrot.slane %v10350, 7
        %v10761 = vsel %vm10364, %v10759, %v10760
        %v10762 = vrot.slane %v10760, 2
        %v10763 = vrot.slane %v10357, 7
        %v10764 = vsel %vm10364, %v10762, %v10763
        %v10765 = vcombine.low %v10368, %v10371
        %v10766 = vcombine.low %v10374, %v10377
        %v10768 = vunpack.c.l.s4 1983009808
        %v10769 = vunpack.c.0.s8 %v10768
        %v10770 = vlaneseq
        %v10771 = vshrl.u32 %v10770, 7
        %v10772 = vsub.s32 %v10769, %v10771
        %v10773 = vrot.slane %v10765, %v10772
        %v10775 = vunpack.c.l.s4 1983009808
        %v10776 = vunpack.c.0.s8 %v10775
        %v10777 = vlaneseq
        %v10778 = vshrl.u32 %v10777, 7
        %v10779 = vsub.s32 %v10776, %v10778
        %v10780 = vrot.slane %v10766, %v10779
        %v10781 = vcombine.low %v10773, %v10780
        %v10782 = vcombine.low %v10380, %v10383
        %v10783 = vcombine.low %v10386, %v10389
        %v10785 = vunpack.c.l.s4 1983009808
        %v10786 = vunpack.c.0.s8 %v10785
        %v10787 = vlaneseq
        %v10788 = vshrl.u32 %v10787, 7
        %v10789 = vsub.s32 %v10786, %v10788
        %v10790 = vrot.slane %v10782, %v10789
        %v10792 = vunpack.c.l.s4 1983009808
        %v10793 = vunpack.c.0.s8 %v10792
        %v10794 = vlaneseq
        %v10795 = vshrl.u32 %v10794, 7
        %v10796 = vsub.s32 %v10793, %v10795
        %v10797 = vrot.slane %v10783, %v10796
        %v10798 = vcombine.low %v10790, %v10797
        %v10799 = vcombine.low %v10393, %v10396
        %v10800 = vcombine.low %v10399, %v10402
        %v10802 = vunpack.c.l.s4 1983009808
        %v10803 = vunpack.c.0.s8 %v10802
        %v10804 = vlaneseq
        %v10805 = vshrl.u32 %v10804, 7
        %v10806 = vsub.s32 %v10803, %v10805
        %v10807 = vrot.slane %v10799, %v10806
        %v10809 = vunpack.c.l.s4 1983009808
        %v10810 = vunpack.c.0.s8 %v10809
        %v10811 = vlaneseq
        %v10812 = vshrl.u32 %v10811, 7
        %v10813 = vsub.s32 %v10810, %v10812
        %v10814 = vrot.slane %v10800, %v10813
        %v10815 = vcombine.low %v10807, %v10814
        %v10816 = vcombine.low %v10405, %v10408
        %v10817 = vcombine.low %v10411, %v10414
        %v10819 = vunpack.c.l.s4 1983009808
        %v10820 = vunpack.c.0.s8 %v10819
        %v10821 = vlaneseq
        %v10822 = vshrl.u32 %v10821, 7
        %v10823 = vsub.s32 %v10820, %v10822
        %v10824 = vrot.slane %v10816, %v10823
        %v10826 = vunpack.c.l.s4 1983009808
        %v10827 = vunpack.c.0.s8 %v10826
        %v10828 = vlaneseq
        %v10829 = vshrl.u32 %v10828, 7
        %v10830 = vsub.s32 %v10827, %v10829
        %v10831 = vrot.slane %v10817, %v10830
        %v10832 = vcombine.low %v10824, %v10831
        %v10833 = vcombine.low %v10418, %v10421
        %v10834 = vcombine.low %v10424, %v10427
        %v10836 = vunpack.c.l.s4 1983009808
        %v10837 = vunpack.c.0.s8 %v10836
        %v10838 = vlaneseq
        %v10839 = vshrl.u32 %v10838, 7
        %v10840 = vsub.s32 %v10837, %v10839
        %v10841 = vrot.slane %v10833, %v10840
        %v10843 = vunpack.c.l.s4 1983009808
        %v10844 = vunpack.c.0.s8 %v10843
        %v10845 = vlaneseq
        %v10846 = vshrl.u32 %v10845, 7
        %v10847 = vsub.s32 %v10844, %v10846
        %v10848 = vrot.slane %v10834, %v10847
        %v10849 = vcombine.low %v10841, %v10848
        %v10850 = vcombine.low %v10430, %v10433
        %v10851 = vcombine.low %v10436, %v10439
        %v10853 = vunpack.c.l.s4 1983009808
        %v10854 = vunpack.c.0.s8 %v10853
        %v10855 = vlaneseq
        %v10856 = vshrl.u32 %v10855, 7
        %v10857 = vsub.s32 %v10854, %v10856
        %v10858 = vrot.slane %v10850, %v10857
        %v10860 = vunpack.c.l.s4 1983009808
        %v10861 = vunpack.c.0.s8 %v10860
        %v10862 = vlaneseq
        %v10863 = vshrl.u32 %v10862, 7
        %v10864 = vsub.s32 %v10861, %v10863
        %v10865 = vrot.slane %v10851, %v10864
        %v10866 = vcombine.low %v10858, %v10865
        %v10867 = vcombine.low %v10443, %v10446
        %v10868 = vcombine.low %v10449, %v10452
        %v10870 = vunpack.c.l.s4 1983009808
        %v10871 = vunpack.c.0.s8 %v10870
        %v10872 = vlaneseq
        %v10873 = vshrl.u32 %v10872, 7
        %v10874 = vsub.s32 %v10871, %v10873
        %v10875 = vrot.slane %v10867, %v10874
        %v10877 = vunpack.c.l.s4 1983009808
        %v10878 = vunpack.c.0.s8 %v10877
        %v10879 = vlaneseq
        %v10880 = vshrl.u32 %v10879, 7
        %v10881 = vsub.s32 %v10878, %v10880
        %v10882 = vrot.slane %v10868, %v10881
        %v10883 = vcombine.low %v10875, %v10882
        %v10884 = vcombine.low %v10455, %v10458
        %v10885 = vcombine.low %v10461, %v10464
        %v10887 = vunpack.c.l.s4 1983009808
        %v10888 = vunpack.c.0.s8 %v10887
        %v10889 = vlaneseq
        %v10890 = vshrl.u32 %v10889, 7
        %v10891 = vsub.s32 %v10888, %v10890
        %v10892 = vrot.slane %v10884, %v10891
        %v10894 = vunpack.c.l.s4 1983009808
        %v10895 = vunpack.c.0.s8 %v10894
        %v10896 = vlaneseq
        %v10897 = vshrl.u32 %v10896, 7
        %v10898 = vsub.s32 %v10895, %v10897
        %v10899 = vrot.slane %v10885, %v10898
        %v10900 = vcombine.low %v10892, %v10899
        %v10901 = vcombine.low %v10468, %v10471
        %v10902 = vcombine.low %v10474, %v10477
        %v10904 = vunpack.c.l.s4 1983009808
        %v10905 = vunpack.c.0.s8 %v10904
        %v10906 = vlaneseq
        %v10907 = vshrl.u32 %v10906, 7
        %v10908 = vsub.s32 %v10905, %v10907
        %v10909 = vrot.slane %v10901, %v10908
        %v10911 = vunpack.c.l.s4 1983009808
        %v10912 = vunpack.c.0.s8 %v10911
        %v10913 = vlaneseq
        %v10914 = vshrl.u32 %v10913, 7
        %v10915 = vsub.s32 %v10912, %v10914
        %v10916 = vrot.slane %v10902, %v10915
        %v10917 = vcombine.low %v10909, %v10916
        %v10918 = vcombine.low %v10480, %v10483
        %v10919 = vcombine.low %v10486, %v10489
        %v10921 = vunpack.c.l.s4 1983009808
        %v10922 = vunpack.c.0.s8 %v10921
        %v10923 = vlaneseq
        %v10924 = vshrl.u32 %v10923, 7
        %v10925 = vsub.s32 %v10922, %v10924
        %v10926 = vrot.slane %v10918, %v10925
        %v10928 = vunpack.c.l.s4 1983009808
        %v10929 = vunpack.c.0.s8 %v10928
        %v10930 = vlaneseq
        %v10931 = vshrl.u32 %v10930, 7
        %v10932 = vsub.s32 %v10929, %v10931
        %v10933 = vrot.slane %v10919, %v10932
        %v10934 = vcombine.low %v10926, %v10933
        %v10935 = vcombine.low %v10493, %v10496
        %v10936 = vcombine.low %v10499, %v10502
        %v10938 = vunpack.c.l.s4 1983009808
        %v10939 = vunpack.c.0.s8 %v10938
        %v10940 = vlaneseq
        %v10941 = vshrl.u32 %v10940, 7
        %v10942 = vsub.s32 %v10939, %v10941
        %v10943 = vrot.slane %v10935, %v10942
        %v10945 = vunpack.c.l.s4 1983009808
        %v10946 = vunpack.c.0.s8 %v10945
        %v10947 = vlaneseq
        %v10948 = vshrl.u32 %v10947, 7
        %v10949 = vsub.s32 %v10946, %v10948
        %v10950 = vrot.slane %v10936, %v10949
        %v10951 = vcombine.low %v10943, %v10950
        %v10952 = vcombine.low %v10505, %v10508
        %v10953 = vcombine.low %v10511, %v10514
        %v10955 = vunpack.c.l.s4 1983009808
        %v10956 = vunpack.c.0.s8 %v10955
        %v10957 = vlaneseq
        %v10958 = vshrl.u32 %v10957, 7
        %v10959 = vsub.s32 %v10956, %v10958
        %v10960 = vrot.slane %v10952, %v10959
        %v10962 = vunpack.c.l.s4 1983009808
        %v10963 = vunpack.c.0.s8 %v10962
        %v10964 = vlaneseq
        %v10965 = vshrl.u32 %v10964, 7
        %v10966 = vsub.s32 %v10963, %v10965
        %v10967 = vrot.slane %v10953, %v10966
        %v10968 = vcombine.low %v10960, %v10967
        %v10969 = vcombine.low %v10518, %v10521
        %v10970 = vcombine.low %v10524, %v10527
        %v10972 = vunpack.c.l.s4 1983009808
        %v10973 = vunpack.c.0.s8 %v10972
        %v10974 = vlaneseq
        %v10975 = vshrl.u32 %v10974, 7
        %v10976 = vsub.s32 %v10973, %v10975
        %v10977 = vrot.slane %v10969, %v10976
        %v10979 = vunpack.c.l.s4 1983009808
        %v10980 = vunpack.c.0.s8 %v10979
        %v10981 = vlaneseq
        %v10982 = vshrl.u32 %v10981, 7
        %v10983 = vsub.s32 %v10980, %v10982
        %v10984 = vrot.slane %v10970, %v10983
        %v10985 = vcombine.low %v10977, %v10984
        %v10986 = vcombine.low %v10530, %v10533
        %v10987 = vcombine.low %v10536, %v10539
        %v10989 = vunpack.c.l.s4 1983009808
        %v10990 = vunpack.c.0.s8 %v10989
        %v10991 = vlaneseq
        %v10992 = vshrl.u32 %v10991, 7
        %v10993 = vsub.s32 %v10990, %v10992
        %v10994 = vrot.slane %v10986, %v10993
        %v10996 = vunpack.c.l.s4 1983009808
        %v10997 = vunpack.c.0.s8 %v10996
        %v10998 = vlaneseq
        %v10999 = vshrl.u32 %v10998, 7
        %v11000 = vsub.s32 %v10997, %v10999
        %v11001 = vrot.slane %v10987, %v11000
        %v11002 = vcombine.low %v10994, %v11001
        %v11003 = vcombine.low %v10543, %v10546
        %v11004 = vcombine.low %v10549, %v10552
        %v11006 = vunpack.c.l.s4 1983009808
        %v11007 = vunpack.c.0.s8 %v11006
        %v11008 = vlaneseq
        %v11009 = vshrl.u32 %v11008, 7
        %v11010 = vsub.s32 %v11007, %v11009
        %v11011 = vrot.slane %v11003, %v11010
        %v11013 = vunpack.c.l.s4 1983009808
        %v11014 = vunpack.c.0.s8 %v11013
        %v11015 = vlaneseq
        %v11016 = vshrl.u32 %v11015, 7
        %v11017 = vsub.s32 %v11014, %v11016
        %v11018 = vrot.slane %v11004, %v11017
        %v11019 = vcombine.low %v11011, %v11018
        %v11020 = vcombine.low %v10555, %v10558
        %v11021 = vcombine.low %v10561, %v10564
        %v11023 = vunpack.c.l.s4 1983009808
        %v11024 = vunpack.c.0.s8 %v11023
        %v11025 = vlaneseq
        %v11026 = vshrl.u32 %v11025, 7
        %v11027 = vsub.s32 %v11024, %v11026
        %v11028 = vrot.slane %v11020, %v11027
        %v11030 = vunpack.c.l.s4 1983009808
        %v11031 = vunpack.c.0.s8 %v11030
        %v11032 = vlaneseq
        %v11033 = vshrl.u32 %v11032, 7
        %v11034 = vsub.s32 %v11031, %v11033
        %v11035 = vrot.slane %v11021, %v11034
        %v11036 = vcombine.low %v11028, %v11035
        %v11037 = vcombine.low %v10568, %v10571
        %v11038 = vcombine.low %v10574, %v10577
        %v11040 = vunpack.c.l.s4 1983009808
        %v11041 = vunpack.c.0.s8 %v11040
        %v11042 = vlaneseq
        %v11043 = vshrl.u32 %v11042, 7
        %v11044 = vsub.s32 %v11041, %v11043
        %v11045 = vrot.slane %v11037, %v11044
        %v11047 = vunpack.c.l.s4 1983009808
        %v11048 = vunpack.c.0.s8 %v11047
        %v11049 = vlaneseq
        %v11050 = vshrl.u32 %v11049, 7
        %v11051 = vsub.s32 %v11048, %v11050
        %v11052 = vrot.slane %v11038, %v11051
        %v11053 = vcombine.low %v11045, %v11052
        %v11054 = vcombine.low %v10580, %v10583
        %v11055 = vcombine.low %v10586, %v10589
        %v11057 = vunpack.c.l.s4 1983009808
        %v11058 = vunpack.c.0.s8 %v11057
        %v11059 = vlaneseq
        %v11060 = vshrl.u32 %v11059, 7
        %v11061 = vsub.s32 %v11058, %v11060
        %v11062 = vrot.slane %v11054, %v11061
        %v11064 = vunpack.c.l.s4 1983009808
        %v11065 = vunpack.c.0.s8 %v11064
        %v11066 = vlaneseq
        %v11067 = vshrl.u32 %v11066, 7
        %v11068 = vsub.s32 %v11065, %v11067
        %v11069 = vrot.slane %v11055, %v11068
        %v11070 = vcombine.low %v11062, %v11069
        %v11071 = vcombine.low %v10593, %v10596
        %v11072 = vcombine.low %v10599, %v10602
        %v11074 = vunpack.c.l.s4 1983009808
        %v11075 = vunpack.c.0.s8 %v11074
        %v11076 = vlaneseq
        %v11077 = vshrl.u32 %v11076, 7
        %v11078 = vsub.s32 %v11075, %v11077
        %v11079 = vrot.slane %v11071, %v11078
        %v11081 = vunpack.c.l.s4 1983009808
        %v11082 = vunpack.c.0.s8 %v11081
        %v11083 = vlaneseq
        %v11084 = vshrl.u32 %v11083, 7
        %v11085 = vsub.s32 %v11082, %v11084
        %v11086 = vrot.slane %v11072, %v11085
        %v11087 = vcombine.low %v11079, %v11086
        %v11088 = vcombine.low %v10605, %v10608
        %v11089 = vcombine.low %v10611, %v10614
        %v11091 = vunpack.c.l.s4 1983009808
        %v11092 = vunpack.c.0.s8 %v11091
        %v11093 = vlaneseq
        %v11094 = vshrl.u32 %v11093, 7
        %v11095 = vsub.s32 %v11092, %v11094
        %v11096 = vrot.slane %v11088, %v11095
        %v11098 = vunpack.c.l.s4 1983009808
        %v11099 = vunpack.c.0.s8 %v11098
        %v11100 = vlaneseq
        %v11101 = vshrl.u32 %v11100, 7
        %v11102 = vsub.s32 %v11099, %v11101
        %v11103 = vrot.slane %v11089, %v11102
        %v11104 = vcombine.low %v11096, %v11103
        %v11105 = vcombine.low %v10618, %v10621
        %v11106 = vcombine.low %v10624, %v10627
        %v11108 = vunpack.c.l.s4 1983009808
        %v11109 = vunpack.c.0.s8 %v11108
        %v11110 = vlaneseq
        %v11111 = vshrl.u32 %v11110, 7
        %v11112 = vsub.s32 %v11109, %v11111
        %v11113 = vrot.slane %v11105, %v11112
        %v11115 = vunpack.c.l.s4 1983009808
        %v11116 = vunpack.c.0.s8 %v11115
        %v11117 = vlaneseq
        %v11118 = vshrl.u32 %v11117, 7
        %v11119 = vsub.s32 %v11116, %v11118
        %v11120 = vrot.slane %v11106, %v11119
        %v11121 = vcombine.low %v11113, %v11120
        %v11122 = vcombine.low %v10630, %v10633
        %v11123 = vcombine.low %v10636, %v10639
        %v11125 = vunpack.c.l.s4 1983009808
        %v11126 = vunpack.c.0.s8 %v11125
        %v11127 = vlaneseq
        %v11128 = vshrl.u32 %v11127, 7
        %v11129 = vsub.s32 %v11126, %v11128
        %v11130 = vrot.slane %v11122, %v11129
        %v11132 = vunpack.c.l.s4 1983009808
        %v11133 = vunpack.c.0.s8 %v11132
        %v11134 = vlaneseq
        %v11135 = vshrl.u32 %v11134, 7
        %v11136 = vsub.s32 %v11133, %v11135
        %v11137 = vrot.slane %v11123, %v11136
        %v11138 = vcombine.low %v11130, %v11137
        %v11139 = vcombine.low %v10643, %v10646
        %v11140 = vcombine.low %v10649, %v10652
        %v11142 = vunpack.c.l.s4 1983009808
        %v11143 = vunpack.c.0.s8 %v11142
        %v11144 = vlaneseq
        %v11145 = vshrl.u32 %v11144, 7
        %v11146 = vsub.s32 %v11143, %v11145
        %v11147 = vrot.slane %v11139, %v11146
        %v11149 = vunpack.c.l.s4 1983009808
        %v11150 = vunpack.c.0.s8 %v11149
        %v11151 = vlaneseq
        %v11152 = vshrl.u32 %v11151, 7
        %v11153 = vsub.s32 %v11150, %v11152
        %v11154 = vrot.slane %v11140, %v11153
        %v11155 = vcombine.low %v11147, %v11154
        %v11156 = vcombine.low %v10655, %v10658
        %v11157 = vcombine.low %v10661, %v10664
        %v11159 = vunpack.c.l.s4 1983009808
        %v11160 = vunpack.c.0.s8 %v11159
        %v11161 = vlaneseq
        %v11162 = vshrl.u32 %v11161, 7
        %v11163 = vsub.s32 %v11160, %v11162
        %v11164 = vrot.slane %v11156, %v11163
        %v11166 = vunpack.c.l.s4 1983009808
        %v11167 = vunpack.c.0.s8 %v11166
        %v11168 = vlaneseq
        %v11169 = vshrl.u32 %v11168, 7
        %v11170 = vsub.s32 %v11167, %v11169
        %v11171 = vrot.slane %v11157, %v11170
        %v11172 = vcombine.low %v11164, %v11171
        %v11173 = vcombine.low %v10668, %v10671
        %v11174 = vcombine.low %v10674, %v10677
        %v11176 = vunpack.c.l.s4 1983009808
        %v11177 = vunpack.c.0.s8 %v11176
        %v11178 = vlaneseq
        %v11179 = vshrl.u32 %v11178, 7
        %v11180 = vsub.s32 %v11177, %v11179
        %v11181 = vrot.slane %v11173, %v11180
        %v11183 = vunpack.c.l.s4 1983009808
        %v11184 = vunpack.c.0.s8 %v11183
        %v11185 = vlaneseq
        %v11186 = vshrl.u32 %v11185, 7
        %v11187 = vsub.s32 %v11184, %v11186
        %v11188 = vrot.slane %v11174, %v11187
        %v11189 = vcombine.low %v11181, %v11188
        %v11190 = vcombine.low %v10680, %v10683
        %v11191 = vcombine.low %v10686, %v10689
        %v11193 = vunpack.c.l.s4 1983009808
        %v11194 = vunpack.c.0.s8 %v11193
        %v11195 = vlaneseq
        %v11196 = vshrl.u32 %v11195, 7
        %v11197 = vsub.s32 %v11194, %v11196
        %v11198 = vrot.slane %v11190, %v11197
        %v11200 = vunpack.c.l.s4 1983009808
        %v11201 = vunpack.c.0.s8 %v11200
        %v11202 = vlaneseq
        %v11203 = vshrl.u32 %v11202, 7
        %v11204 = vsub.s32 %v11201, %v11203
        %v11205 = vrot.slane %v11191, %v11204
        %v11206 = vcombine.low %v11198, %v11205
        %v11207 = vcombine.low %v10693, %v10696
        %v11208 = vcombine.low %v10699, %v10702
        %v11210 = vunpack.c.l.s4 1983009808
        %v11211 = vunpack.c.0.s8 %v11210
        %v11212 = vlaneseq
        %v11213 = vshrl.u32 %v11212, 7
        %v11214 = vsub.s32 %v11211, %v11213
        %v11215 = vrot.slane %v11207, %v11214
        %v11217 = vunpack.c.l.s4 1983009808
        %v11218 = vunpack.c.0.s8 %v11217
        %v11219 = vlaneseq
        %v11220 = vshrl.u32 %v11219, 7
        %v11221 = vsub.s32 %v11218, %v11220
        %v11222 = vrot.slane %v11208, %v11221
        %v11223 = vcombine.low %v11215, %v11222
        %v11224 = vcombine.low %v10705, %v10708
        %v11225 = vcombine.low %v10711, %v10714
        %v11227 = vunpack.c.l.s4 1983009808
        %v11228 = vunpack.c.0.s8 %v11227
        %v11229 = vlaneseq
        %v11230 = vshrl.u32 %v11229, 7
        %v11231 = vsub.s32 %v11228, %v11230
        %v11232 = vrot.slane %v11224, %v11231
        %v11234 = vunpack.c.l.s4 1983009808
        %v11235 = vunpack.c.0.s8 %v11234
        %v11236 = vlaneseq
        %v11237 = vshrl.u32 %v11236, 7
        %v11238 = vsub.s32 %v11235, %v11237
        %v11239 = vrot.slane %v11225, %v11238
        %v11240 = vcombine.low %v11232, %v11239
        %v11241 = vcombine.low %v10718, %v10721
        %v11242 = vcombine.low %v10724, %v10727
        %v11244 = vunpack.c.l.s4 1983009808
        %v11245 = vunpack.c.0.s8 %v11244
        %v11246 = vlaneseq
        %v11247 = vshrl.u32 %v11246, 7
        %v11248 = vsub.s32 %v11245, %v11247
        %v11249 = vrot.slane %v11241, %v11248
        %v11251 = vunpack.c.l.s4 1983009808
        %v11252 = vunpack.c.0.s8 %v11251
        %v11253 = vlaneseq
        %v11254 = vshrl.u32 %v11253, 7
        %v11255 = vsub.s32 %v11252, %v11254
        %v11256 = vrot.slane %v11242, %v11255
        %v11257 = vcombine.low %v11249, %v11256
        %v11258 = vcombine.low %v10730, %v10733
        %v11259 = vcombine.low %v10736, %v10739
        %v11261 = vunpack.c.l.s4 1983009808
        %v11262 = vunpack.c.0.s8 %v11261
        %v11263 = vlaneseq
        %v11264 = vshrl.u32 %v11263, 7
        %v11265 = vsub.s32 %v11262, %v11264
        %v11266 = vrot.slane %v11258, %v11265
        %v11268 = vunpack.c.l.s4 1983009808
        %v11269 = vunpack.c.0.s8 %v11268
        %v11270 = vlaneseq
        %v11271 = vshrl.u32 %v11270, 7
        %v11272 = vsub.s32 %v11269, %v11271
        %v11273 = vrot.slane %v11259, %v11272
        %v11274 = vcombine.low %v11266, %v11273
        %v11275 = vcombine.low %v10743, %v10746
        %v11276 = vcombine.low %v10749, %v10752
        %v11278 = vunpack.c.l.s4 1983009808
        %v11279 = vunpack.c.0.s8 %v11278
        %v11280 = vlaneseq
        %v11281 = vshrl.u32 %v11280, 7
        %v11282 = vsub.s32 %v11279, %v11281
        %v11283 = vrot.slane %v11275, %v11282
        %v11285 = vunpack.c.l.s4 1983009808
        %v11286 = vunpack.c.0.s8 %v11285
        %v11287 = vlaneseq
        %v11288 = vshrl.u32 %v11287, 7
        %v11289 = vsub.s32 %v11286, %v11288
        %v11290 = vrot.slane %v11276, %v11289
        %v11291 = vcombine.low %v11283, %v11290
        %v11292 = vcombine.low %v10755, %v10758
        %v11293 = vcombine.low %v10761, %v10764
        %v11295 = vunpack.c.l.s4 1983009808
        %v11296 = vunpack.c.0.s8 %v11295
        %v11297 = vlaneseq
        %v11298 = vshrl.u32 %v11297, 7
        %v11299 = vsub.s32 %v11296, %v11298
        %v11300 = vrot.slane %v11292, %v11299
        %v11302 = vunpack.c.l.s4 1983009808
        %v11303 = vunpack.c.0.s8 %v11302
        %v11304 = vlaneseq
        %v11305 = vshrl.u32 %v11304, 7
        %v11306 = vsub.s32 %v11303, %v11305
        %v11307 = vrot.slane %v11293, %v11306
        %v11308 = vcombine.low %v11300, %v11307
        %11309 = vrot.lane.b32.xlu0 %v10781, 124
        %v11310 = vpop.permute.xlu0 %11309
        %11311 = vrot.lane.b32.xlu0 %v10798, 124
        %v11312 = vpop.permute.xlu0 %11311
        %11313 = vrot.lane.b32.xlu0 %v10815, 124
        %v11314 = vpop.permute.xlu0 %11313
        %11315 = vrot.lane.b32.xlu0 %v10832, 124
        %v11316 = vpop.permute.xlu0 %11315
        %11317 = vrot.lane.b32.xlu0 %v10849, 124
        %v11318 = vpop.permute.xlu0 %11317
        %11319 = vrot.lane.b32.xlu0 %v10866, 124
        %v11320 = vpop.permute.xlu0 %11319
        %11321 = vrot.lane.b32.xlu0 %v10883, 124
        %v11322 = vpop.permute.xlu0 %11321
        %11323 = vrot.lane.b32.xlu0 %v10900, 124
        %v11324 = vpop.permute.xlu0 %11323
        %11325 = vrot.lane.b32.xlu0 %v10917, 124
        %v11326 = vpop.permute.xlu0 %11325
        %11327 = vrot.lane.b32.xlu0 %v10934, 124
        %v11328 = vpop.permute.xlu0 %11327
        %11329 = vrot.lane.b32.xlu0 %v10951, 124
        %v11330 = vpop.permute.xlu0 %11329
        %11331 = vrot.lane.b32.xlu0 %v10968, 124
        %v11332 = vpop.permute.xlu0 %11331
        %11333 = vrot.lane.b32.xlu0 %v10985, 124
        %v11334 = vpop.permute.xlu0 %11333
        %11335 = vrot.lane.b32.xlu0 %v11002, 124
        %v11336 = vpop.permute.xlu0 %11335
        %11337 = vrot.lane.b32.xlu0 %v11019, 124
        %v11338 = vpop.permute.xlu0 %11337
        %11339 = vrot.lane.b32.xlu0 %v11036, 124
        %v11340 = vpop.permute.xlu0 %11339
        %11341 = vrot.lane.b32.xlu0 %v11053, 124
        %v11342 = vpop.permute.xlu0 %11341
        %11343 = vrot.lane.b32.xlu0 %v11070, 124
        %v11344 = vpop.permute.xlu0 %11343
        %11345 = vrot.lane.b32.xlu0 %v11087, 124
        %v11346 = vpop.permute.xlu0 %11345
        %11347 = vrot.lane.b32.xlu0 %v11104, 124
        %v11348 = vpop.permute.xlu0 %11347
        %11349 = vrot.lane.b32.xlu0 %v11121, 124
        %v11350 = vpop.permute.xlu0 %11349
        %11351 = vrot.lane.b32.xlu0 %v11138, 124
        %v11352 = vpop.permute.xlu0 %11351
        %11353 = vrot.lane.b32.xlu0 %v11155, 124
        %v11354 = vpop.permute.xlu0 %11353
        %11355 = vrot.lane.b32.xlu0 %v11172, 124
        %v11356 = vpop.permute.xlu0 %11355
        %11357 = vrot.lane.b32.xlu0 %v11189, 124
        %v11358 = vpop.permute.xlu0 %11357
        %11359 = vrot.lane.b32.xlu0 %v11206, 124
        %v11360 = vpop.permute.xlu0 %11359
        %11361 = vrot.lane.b32.xlu0 %v11223, 124
        %v11362 = vpop.permute.xlu0 %11361
        %11363 = vrot.lane.b32.xlu0 %v11240, 124
        %v11364 = vpop.permute.xlu0 %11363
        %11365 = vrot.lane.b32.xlu0 %v11257, 124
        %v11366 = vpop.permute.xlu0 %11365
        %11367 = vrot.lane.b32.xlu0 %v11274, 124
        %v11368 = vpop.permute.xlu0 %11367
        %11369 = vrot.lane.b32.xlu0 %v11291, 124
        %v11370 = vpop.permute.xlu0 %11369
        %11371 = vrot.lane.b32.xlu0 %v11308, 124
        %v11372 = vpop.permute.xlu0 %11371
        %11405 = vst.msk [vmem:[%s296] sm:$0xff] %vm5909, %v11310
        %11406 = vst.msk [vmem:[%s296 + $0x8] sm:$0xff] %vm5909, %v11312
        %11407 = vst.msk [vmem:[%s296 + $0x10] sm:$0xff] %vm5909, %v11314
        %11408 = vst.msk [vmem:[%s296 + $0x18] sm:$0xff] %vm5909, %v11316
        %11409 = vst.msk [vmem:[%s296 + $0x20] sm:$0xff] %vm5909, %v11318
        %11410 = vst.msk [vmem:[%s296 + $0x28] sm:$0xff] %vm5909, %v11320
        %11411 = vst.msk [vmem:[%s296 + $0x30] sm:$0xff] %vm5909, %v11322
        %11412 = vst.msk [vmem:[%s296 + $0x38] sm:$0xff] %vm5909, %v11324
        %11413 = vst.msk [vmem:[%s296 + $0x40] sm:$0xff] %vm5909, %v11326
        %11414 = vst.msk [vmem:[%s296 + $0x48] sm:$0xff] %vm5909, %v11328
        %11415 = vst.msk [vmem:[%s296 + $0x50] sm:$0xff] %vm5909, %v11330
        %11416 = vst.msk [vmem:[%s296 + $0x58] sm:$0xff] %vm5909, %v11332
        %11417 = vst.msk [vmem:[%s296 + $0x60] sm:$0xff] %vm5909, %v11334
        %11418 = vst.msk [vmem:[%s296 + $0x68] sm:$0xff] %vm5909, %v11336
        %11419 = vst.msk [vmem:[%s296 + $0x70] sm:$0xff] %vm5909, %v11338
        %11420 = vst.msk [vmem:[%s296 + $0x78] sm:$0xff] %vm5909, %v11340
        %11421 = vst.msk [vmem:[%s296 + $0x80] sm:$0xff] %vm5909, %v11342
        %11422 = vst.msk [vmem:[%s296 + $0x88] sm:$0xff] %vm5909, %v11344
        %11423 = vst.msk [vmem:[%s296 + $0x90] sm:$0xff] %vm5909, %v11346
        %11424 = vst.msk [vmem:[%s296 + $0x98] sm:$0xff] %vm5909, %v11348
        %11425 = vst.msk [vmem:[%s296 + $0xa0] sm:$0xff] %vm5909, %v11350
        %11426 = vst.msk [vmem:[%s296 + $0xa8] sm:$0xff] %vm5909, %v11352
        %11427 = vst.msk [vmem:[%s296 + $0xb0] sm:$0xff] %vm5909, %v11354
        %11428 = vst.msk [vmem:[%s296 + $0xb8] sm:$0xff] %vm5909, %v11356
        %11429 = vst.msk [vmem:[%s296 + $0xc0] sm:$0xff] %vm5909, %v11358
        %11430 = vst.msk [vmem:[%s296 + $0xc8] sm:$0xff] %vm5909, %v11360
        %11431 = vst.msk [vmem:[%s296 + $0xd0] sm:$0xff] %vm5909, %v11362
        %11432 = vst.msk [vmem:[%s296 + $0xd8] sm:$0xff] %vm5909, %v11364
        %11433 = vst.msk [vmem:[%s296 + $0xe0] sm:$0xff] %vm5909, %v11366
        %11434 = vst.msk [vmem:[%s296 + $0xe8] sm:$0xff] %vm5909, %v11368
        %11435 = vst.msk [vmem:[%s296 + $0xf0] sm:$0xff] %vm5909, %v11370
        %11436 = vst.msk [vmem:[%s296 + $0xf8] sm:$0xff] %vm5909, %v11372
        %s11437 = sand.u32 %s142, 1
        %s11438 = scalar_lea.sflag [#allocation6], %s11437
        %s11439 = sand.u32 %s142, 1
        %s11440 = smul.addr %s11439, 256
        %s11441 = scalar_lea.vmem [#allocation13], %s11440
        // Predicated region
        $region61: #{tpu_custom_call.1} parent=39 // pred_check
          %p11442 = pneg %p152
        $region62: #{tpu_custom_call.1} parent=39 // pred_check_branch
          %11444 = sbr.rel (%p11442) target = $region64
        $region63: #{tpu_custom_call.1} parent=39 // pred_region
          %s11446 = ssub.s32 4096, 4096
          %11447 = vsyncadd %s11438, %s11446
          %s11448 = smul.addr %s24, 32
          %s11449 = smul.addr %s11448, 128
          %s11450 = scalar_lea.hbm %s5, %s11449
          %s11451 = sshll.u32 %s11441, 4
          %s11452 = int_to_ptr.vmem [resolvable:$true] %s11451
          %11457 = dma.vmem_to_hbm [thread:$0]  %s11452, 4096, %s11450, %s11438, 128, 128, 8
        $region64: #{tpu_custom_call.1} parent=39 // pred_fallthru
          _
      $region40: #{tpu_custom_call.1} parent=5 // pred_fallthru
        _
      %p11458 = scmp.le.s32.totalorder 2, %s19
      // Predicated region
      $region65: #{tpu_custom_call.1} parent=5 // pred_check
        %p11459 = pneg %p11458
      $region66: #{tpu_custom_call.1} parent=5 // pred_check_branch
        %11461 = sbr.rel (%p11459) target = $region68
      $region67: #{tpu_custom_call.1} parent=5 // pred_region
        %s11462 = ssub.s32 %s19, 2
        // Predicated region
        $region69: #{tpu_custom_call.1} parent=67 // pred_check
          %p11463 = pneg %p158
        $region70: #{tpu_custom_call.1} parent=67 // pred_check_branch
          %11465 = sbr.rel (%p11463) target = $region72
        $region71: #{tpu_custom_call.1} parent=67 // pred_region
          %s11466 = sand.u32 %s143, 1
          %s11467 = scalar_lea.sflag [#allocation6], %s11466
          %s11468 = sand.u32 %s143, 1
          %s11469 = smul.addr %s11468, 256
          %s11470 = scalar_lea.vmem [#allocation13], %s11469
          %11471 = dma.done %s11467, 4096
        $region72: #{tpu_custom_call.1} parent=67 // pred_fallthru
          _
      $region68: #{tpu_custom_call.1} parent=5 // pred_fallthru
        _
    $region6: #{tpu_custom_call.1} parent=1 // loop_footer
      %s23 = sadd.s32 1, %s19
    $region7: #{tpu_custom_call.1} parent=1 // loop_footer_branch
      %18 = sbr.rel target = $region3
    $region8: #{tpu_custom_call.1} parent=1 // loop_exit
      _
    %11472 = vsyncpa [#allocation5], 1
    %s11473 = scalar_lea.sflag [#allocation5], 1
    %11474 = vsyncpa %s11473, 1
    %11475 = vsyncpa [#allocation8], 1
    %11476 = vsyncpa [#allocation11], 1
    %11477 = vsyncpa [#allocation6], 1
    %s11478 = scalar_lea.sflag [#allocation6], 1
    %11479 = vsyncpa %s11478, 1

</llo_original>
